<compile_context>
chip_gen: v6e
topology: v6e:2x2x1
jax: 0.10.0
libtpu: 0.0.40
codegen_flags: <defaults>
</compile_context>

<pallas_src>
import functools

import jax
import jax.numpy as jnp
from jax.experimental import pallas as pl
from jax.experimental.pallas import tpu as pltpu


# ----------------------------------------------------------------------------- in-kernel helpers
def _layernorm(x, g, b, eps):
    mu = jnp.mean(x, axis=-1, keepdims=True)
    var = jnp.mean(jnp.square(x - mu), axis=-1, keepdims=True)
    return (x - mu) * jax.lax.rsqrt(var + eps) * g + b


def _bf16_dot(a, b):
    return jnp.dot(a.astype(jnp.bfloat16), b.astype(jnp.bfloat16),
                   preferred_element_type=jnp.float32)


def _mha(q, k, v, wo, bo, mask, nhead, scale):
    """Multi-head attention + single K=D output projection.

    q: (Lq, D) f32, k/v: (Lk, D) f32, wo: (D, D), bo: (1, D), mask: (Lq, Lk) additive or None.
    Per-head score/context matmuls are inherently K=Dh; contexts are concatenated along lanes
    so the output projection is ONE full-K matmul.
    """
    Lq, D = q.shape
    Dh = D // nhead
    q = q * scale                                   # fold softmax scale into q (Lq*D, not Lq*Lk)
    ctx = []
    for h in range(nhead):
        sl = slice(h * Dh, (h + 1) * Dh)
        qh = q[:, sl].astype(jnp.bfloat16)
        kh = k[:, sl].astype(jnp.bfloat16)
        vh = v[:, sl].astype(jnp.bfloat16)
        s = jax.lax.dot_general(qh, kh, (((1,), (1,)), ((), ())),
                                preferred_element_type=jnp.float32)
        if mask is not None:
            s = s + mask
        # NB: a fully -inf-masked row yields NaN, matching the PyTorch softmax reference.
        s = s - jnp.max(s, axis=-1, keepdims=True)
        p = jnp.exp(s)
        p = p * pl.reciprocal(jnp.sum(p, axis=-1, keepdims=True), approx=True)
        ctx.append(jnp.dot(p.astype(jnp.bfloat16), vh, preferred_element_type=jnp.float32))
    ctx = jnp.concatenate(ctx, axis=-1)             # (Lq, D): heads are contiguous lane slices
    return _bf16_dot(ctx, wo) + bo                  # single K=D output projection


# ----------------------------------------------------------------------------- fused layer kernel
def _decoder_layer_kernel(*refs, nhead, scale, eps, has_mask, slab):
    it = iter(refs)
    x_ref = next(it)
    pos_ref = next(it)
    refslab_ref = next(it)
    mem_ref = next(it)
    mask_ref = next(it) if has_mask else None
    (sa_wq, sa_bq, sa_wk, sa_bk, sa_wv, sa_bv, sa_wo, sa_bo, n1g, n1b,
     wref, bref, ca_wq, ca_bq, ca_wk, ca_bk, ca_wv, ca_bv, ca_wo, ca_bo, n2g, n2b,
     w1, b1, w2, b2, n3g, n3b,
     wb1, bb1, wc_slab, wb2_slab, bhead,
     y_ref, head_ref) = tuple(it)

    xb = x_ref[0]                       # (Q, D)    bf16
    posb = pos_ref[0]                   # (Q, D)    bf16
    memb = mem_ref[0]                   # (L, D)    bf16
    ref_slab = refslab_ref[0]           # (Q, SLAB) f32
    x32 = xb.astype(jnp.float32)

    # Keep only the ref-window lanes (cols [0:8]); cols [8:] carry the previous layer's class
    # logits, which must not leak into the ref embedding or the box refinement.
    lane = jax.lax.broadcasted_iota(jnp.int32, (1, slab), 1)
    ref_in = jnp.where(lane < 8, ref_slab, 0.0)     # (Q, SLAB)

    # ---------------- self-attention: q = k = x + pos, v = x
    qp = xb + posb
    q = _bf16_dot(qp, sa_wq[...]) + sa_bq[...]
    k = _bf16_dot(qp, sa_wk[...]) + sa_bk[...]
    v = _bf16_dot(xb, sa_wv[...]) + sa_bv[...]
    mask = mask_ref[...] if has_mask else None
    sa = _mha(q, k, v, sa_wo[...], sa_bo[...], mask, nhead, scale)
    x1 = _layernorm(x32 + sa, n1g[...], n1b[...], eps)

    # ---------------- cross-attention over flat memory (dense approximation of box attention)
    ref_emb = _bf16_dot(ref_in, wref[...]) + bref[...]      # K = SLAB (lane-aligned)
    q_in = x1 + posb.astype(jnp.float32) + ref_emb
    cq = _bf16_dot(q_in, ca_wq[...]) + ca_bq[...]
    ck = _bf16_dot(memb, ca_wk[...]) + ca_bk[...]
    cv = _bf16_dot(memb, ca_wv[...]) + ca_bv[...]
    ca = _mha(cq, ck, cv, ca_wo[...], ca_bo[...], None, nhead, scale)
    x2 = _layernorm(x1 + ca, n2g[...], n2b[...], eps)

    # ---------------- FFN + residual + layernorm
    h = jnp.maximum(_bf16_dot(x2, w1[...]) + b1[...], 0.0)
    f = _bf16_dot(h, w2[...]) + b2[...]
    y = _layernorm(x2 + f, n3g[...], n3b[...], eps)
    y_ref[0] = y.astype(y_ref.dtype)

    # ---------------- detection head -> one 128-lane-dense slab (f32 for box precision)
    #   cols [0:7]   = refined ref windows (ref7 + box delta)
    #   cols [8:8+C] = class logits
    hb = jnp.maximum(jnp.dot(y, wb1[...], preferred_element_type=jnp.float32) + bb1[...], 0.0)
    head = (jnp.dot(y, wc_slab[...], preferred_element_type=jnp.float32)
            + jnp.dot(hb, wb2_slab[...], preferred_element_type=jnp.float32)
            + bhead[...] + ref_in)
    head_ref[0] = head.astype(head_ref.dtype)


# ----------------------------------------------------------------------------- pallas_call wrapper
def decoder_layer(x, pos, ref_slab, memory, lp, hp, nhead, attn_mask=None, eps=1e-5):
    B, Q, D = x.shape
    L = memory.shape[1]
    SLAB = ref_slab.shape[-1]
    scale = 1.0 / float(D // nhead) ** 0.5
    has_mask = attn_mask is not None

    weights = [lp["sa_wq"], lp["sa_bq"], lp["sa_wk"], lp["sa_bk"], lp["sa_wv"], lp["sa_bv"],
               lp["sa_wo"], lp["sa_bo"], lp["n1g"], lp["n1b"],
               lp["wref_slab"], lp["bref"],
               lp["ca_wq"], lp["ca_bq"], lp["ca_wk"], lp["ca_bk"], lp["ca_wv"], lp["ca_bv"],
               lp["ca_wo"], lp["ca_bo"], lp["n2g"], lp["n2b"],
               lp["w1"], lp["b1"], lp["w2"], lp["b2"], lp["n3g"], lp["n3b"],
               hp["wb1"], hp["bb1"], hp["wc_slab"], hp["wb2_slab"], hp["bhead"]]

    in_specs = [
        pl.BlockSpec((1, Q, D), lambda b: (b, 0, 0)),       # x (bf16)
        pl.BlockSpec((1, Q, D), lambda b: (b, 0, 0)),       # pos (bf16)
        pl.BlockSpec((1, Q, SLAB), lambda b: (b, 0, 0)),    # ref slab (f32)
        pl.BlockSpec((1, L, D), lambda b: (b, 0, 0)),       # memory (bf16)
    ]
    args = [x, pos, ref_slab, memory]
    if has_mask:
        in_specs.append(pl.BlockSpec((Q, Q), lambda b: (0, 0)))
        args.append(attn_mask)
    # Per-layer weights: constant index map -> fetched once, resident across all grid steps.
    # TODO(synk): on v7x add pipeline_mode=pl.Buffered(1) here to drop the redundant 2nd buffer.
    in_specs += [pl.BlockSpec(tuple(w.shape), lambda b: (0, 0)) for w in weights]
    args += weights

    # Explicit VMEM budget: double-buffered activations/outputs + weights, with headroom.
    act_bytes = (2 * Q * D * 2 + Q * SLAB * 4 + L * D * 2 + Q * D * 2 + Q * SLAB * 4)
    w_bytes = sum(int(w.size) * w.dtype.itemsize for w in weights)
    vmem_limit = int(min(max(4 * (2 * act_bytes + 2 * w_bytes), 32 * 1024 * 1024),
                         64 * 1024 * 1024))

    y, head = pl.pallas_call(
        functools.partial(_decoder_layer_kernel, nhead=nhead, scale=scale, eps=eps,
                          has_mask=has_mask, slab=SLAB),
        out_shape=(jax.ShapeDtypeStruct((B, Q, D), jnp.bfloat16),     # layer output (bf16 carry)
                   jax.ShapeDtypeStruct((B, Q, SLAB), jnp.float32)),  # [new_ref | logits] slab
        grid=(B,),
        in_specs=in_specs,
        out_specs=(pl.BlockSpec((1, Q, D), lambda b: (b, 0, 0)),
                   pl.BlockSpec((1, Q, SLAB), lambda b: (b, 0, 0))),
        compiler_params=pltpu.CompilerParams(dimension_semantics=("parallel",),
                                             vmem_limit_bytes=vmem_limit),
    )(*args)
    return y, head


# --------------------------------------------------------------------------- decoder forward
def transformer_decoder(params, query, query_pos, memory, memory_shape, memory_start_idx,
                        ref_windows, nhead, num_classes, attn_mask=None):
    # memory_shape / memory_start_idx unused: dense attention over the flat memory sequence.
    del memory_shape, memory_start_idx
    B, Q, _ = query.shape
    SLAB = params["layers"][0]["wref_slab"].shape[0]

    x = query.astype(jnp.bfloat16)
    pos = query_pos.astype(jnp.bfloat16)
    mem = memory.astype(jnp.bfloat16)
    ref_slab = jnp.zeros((B, Q, SLAB), jnp.float32).at[..., :7].set(ref_windows[..., :7])

    inter, inter_ref, inter_logits = [], [], []
    for lp, hp in zip(params["layers"], params["heads"]):
        x, head = decoder_layer(x, pos, ref_slab, mem, lp, hp, nhead, attn_mask)
        new_ref = head[..., :7]
        logits = head[..., 8:8 + num_classes]
        # .detach() is identity in the forward pass; the sigmoid probs appended to ref_windows
        # in the reference are never read downstream ([..., :7] slice), so they are not built.
        ref_slab = head        # next layer's kernel masks the logit lanes out of the ref path
        inter.append(x.astype(jnp.float32))
        inter_ref.append(new_ref)
        inter_logits.append(logits)
    return jnp.stack(inter), jnp.stack(inter_ref), jnp.stack(inter_logits)


# ------------------------------------------------------------------------------ params
def init_params(key, d_model, dff, nhead, num_layers, num_classes, slab=128):
    def dense(k, fi, fo, scale=0.02):
        w = scale * jax.random.normal(k, (fi, fo), jnp.float32)
        b = jnp.zeros((1, fo), jnp.float32)
        return w, b

    layers, heads = [], []
    for li in range(num_layers):
        k = jax.random.fold_in(key, li)
        ks = jax.random.split(k, 16)
        lp = {}
        lp["sa_wq"], lp["sa_bq"] = dense(ks[0], d_model, d_model)
        lp["sa_wk"], lp["sa_bk"] = dense(ks[1], d_model, d_model)
        lp["sa_wv"], lp["sa_bv"] = dense(ks[2], d_model, d_model)
        lp["sa_wo"], lp["sa_bo"] = dense(ks[3], d_model, d_model)
        wref, lp["bref"] = dense(ks[4], 7, d_model)
        lp["wref_slab"] = jnp.zeros((slab, d_model), jnp.float32).at[:7, :].set(wref)
        lp["ca_wq"], lp["ca_bq"] = dense(ks[5], d_model, d_model)
        lp["ca_wk"], lp["ca_bk"] = dense(ks[6], d_model, d_model)
        lp["ca_wv"], lp["ca_bv"] = dense(ks[7], d_model, d_model)
        lp["ca_wo"], lp["ca_bo"] = dense(ks[8], d_model, d_model)
        lp["w1"], lp["b1"] = dense(ks[9], d_model, dff)
        lp["w2"], lp["b2"] = dense(ks[10], dff, d_model)
        for n in ("n1", "n2", "n3"):
            lp[n + "g"] = jnp.ones((1, d_model), jnp.float32)
            lp[n + "b"] = jnp.zeros((1, d_model), jnp.float32)
        layers.append(lp)

        hp = {}
        hp["wb1"], hp["bb1"] = dense(ks[11], d_model, d_model)
        wc, bc = dense(ks[12], d_model, num_classes)
        wb2, bb2 = dense(ks[13], d_model, 7)
        # 128-lane-padded head weights: box delta in cols [0:7], class logits in cols [8:8+C].
        hp["wc_slab"] = jnp.zeros((d_model, slab), jnp.float32).at[:, 8:8 + num_classes].set(wc)
        hp["wb2_slab"] = jnp.zeros((d_model, slab), jnp.float32).at[:, :7].set(wb2)
        bhead = jnp.zeros((1, slab), jnp.float32)
        bhead = bhead.at[:, :7].set(bb2).at[:, 8:8 + num_classes].set(bc)
        hp["bhead"] = bhead
        heads.append(hp)
    return {"layers": layers, "heads": heads}


# -------------------------------------------------------------------------------- main
if __name__ == "__main__":
    B, Q, L, D = 2, 8, 16, 32
    nhead, dff, num_layers, num_classes = 4, 64, 2, 3

    key = jax.random.PRNGKey(0)
    k_in, k_par = jax.random.split(key)
    k1, k2, k3, k4 = jax.random.split(k_in, 4)

    query = jax.random.normal(k1, (B, Q, D), jnp.float32)
    query_pos = jax.random.normal(k2, (B, Q, D), jnp.float32)
    memory = jax.random.normal(k3, (B, L, D), jnp.float32)
    memory_shape = jnp.array([[4, 4]], jnp.int32)       # unused (deformable sampling)
    memory_start_idx = jnp.array([0], jnp.int32)        # unused (deformable sampling)
    ref_windows = jax.random.normal(k4, (B, Q, 7 + num_classes), jnp.float32)

    params = init_params(k_par, D, dff, nhead, num_layers, num_classes)

    decoder = jax.jit(functools.partial(transformer_decoder, nhead=nhead,
                                        num_classes=num_classes, attn_mask=None))
    hs, ref_w, ref_l = decoder(params, query, query_pos, memory,
                               memory_shape, memory_start_idx, ref_windows)

    jax.block_until_ready((hs, ref_w, ref_l))
    assert hs.shape == (num_layers, B, Q, D)
    assert ref_w.shape == (num_layers, B, Q, 7)
    assert ref_l.shape == (num_layers, B, Q, num_classes)
    print("KERNEL_OK")
</pallas_src>

<mosaic_0001>
module attributes {stable_mosaic.version = 11 : i64} {
  func.func @_decoder_layer_kernel(%arg0: i32, %arg1: memref<1x8x32xbf16, #tpu.memory_space<vmem>>, %arg2: memref<1x8x32xbf16, #tpu.memory_space<vmem>>, %arg3: memref<1x8x128xf32, #tpu.memory_space<vmem>>, %arg4: memref<1x16x32xbf16, #tpu.memory_space<vmem>>, %arg5: memref<32x32xf32, #tpu.memory_space<vmem>>, %arg6: memref<1x32xf32, #tpu.memory_space<vmem>>, %arg7: memref<32x32xf32, #tpu.memory_space<vmem>>, %arg8: memref<1x32xf32, #tpu.memory_space<vmem>>, %arg9: memref<32x32xf32, #tpu.memory_space<vmem>>, %arg10: memref<1x32xf32, #tpu.memory_space<vmem>>, %arg11: memref<32x32xf32, #tpu.memory_space<vmem>>, %arg12: memref<1x32xf32, #tpu.memory_space<vmem>>, %arg13: memref<1x32xf32, #tpu.memory_space<vmem>>, %arg14: memref<1x32xf32, #tpu.memory_space<vmem>>, %arg15: memref<128x32xf32, #tpu.memory_space<vmem>>, %arg16: memref<1x32xf32, #tpu.memory_space<vmem>>, %arg17: memref<32x32xf32, #tpu.memory_space<vmem>>, %arg18: memref<1x32xf32, #tpu.memory_space<vmem>>, %arg19: memref<32x32xf32, #tpu.memory_space<vmem>>, %arg20: memref<1x32xf32, #tpu.memory_space<vmem>>, %arg21: memref<32x32xf32, #tpu.memory_space<vmem>>, %arg22: memref<1x32xf32, #tpu.memory_space<vmem>>, %arg23: memref<32x32xf32, #tpu.memory_space<vmem>>, %arg24: memref<1x32xf32, #tpu.memory_space<vmem>>, %arg25: memref<1x32xf32, #tpu.memory_space<vmem>>, %arg26: memref<1x32xf32, #tpu.memory_space<vmem>>, %arg27: memref<32x64xf32, #tpu.memory_space<vmem>>, %arg28: memref<1x64xf32, #tpu.memory_space<vmem>>, %arg29: memref<64x32xf32, #tpu.memory_space<vmem>>, %arg30: memref<1x32xf32, #tpu.memory_space<vmem>>, %arg31: memref<1x32xf32, #tpu.memory_space<vmem>>, %arg32: memref<1x32xf32, #tpu.memory_space<vmem>>, %arg33: memref<32x32xf32, #tpu.memory_space<vmem>>, %arg34: memref<1x32xf32, #tpu.memory_space<vmem>>, %arg35: memref<32x128xf32, #tpu.memory_space<vmem>>, %arg36: memref<32x128xf32, #tpu.memory_space<vmem>>, %arg37: memref<1x128xf32, #tpu.memory_space<vmem>>, %arg38: memref<1x8x32xbf16, #tpu.memory_space<vmem>>, %arg39: memref<1x8x128xf32, #tpu.memory_space<vmem>>) attributes {dimension_semantics = [#tpu.dimension_semantics<parallel>], iteration_bounds = array<i64: 2>, scalar_prefetch = 0 : i64, scratch_operands = 0 : i64, tpu.core_type = #tpu.core_type<tc>, window_params = [{transform_indices = @transform_0, window_bounds = array<i64: 1, 8, 32>}, {transform_indices = @transform_1, window_bounds = array<i64: 1, 8, 32>}, {transform_indices = @transform_2, window_bounds = array<i64: 1, 8, 128>}, {transform_indices = @transform_3, window_bounds = array<i64: 1, 16, 32>}, {pipeline_mode = #tpu.pipeline_mode<synchronous>, transform_indices = @transform_4, window_bounds = array<i64: 32, 32>}, {pipeline_mode = #tpu.pipeline_mode<synchronous>, transform_indices = @transform_5, window_bounds = array<i64: 1, 32>}, {pipeline_mode = #tpu.pipeline_mode<synchronous>, transform_indices = @transform_6, window_bounds = array<i64: 32, 32>}, {pipeline_mode = #tpu.pipeline_mode<synchronous>, transform_indices = @transform_7, window_bounds = array<i64: 1, 32>}, {pipeline_mode = #tpu.pipeline_mode<synchronous>, transform_indices = @transform_8, window_bounds = array<i64: 32, 32>}, {pipeline_mode = #tpu.pipeline_mode<synchronous>, transform_indices = @transform_9, window_bounds = array<i64: 1, 32>}, {pipeline_mode = #tpu.pipeline_mode<synchronous>, transform_indices = @transform_10, window_bounds = array<i64: 32, 32>}, {pipeline_mode = #tpu.pipeline_mode<synchronous>, transform_indices = @transform_11, window_bounds = array<i64: 1, 32>}, {pipeline_mode = #tpu.pipeline_mode<synchronous>, transform_indices = @transform_12, window_bounds = array<i64: 1, 32>}, {pipeline_mode = #tpu.pipeline_mode<synchronous>, transform_indices = @transform_13, window_bounds = array<i64: 1, 32>}, {pipeline_mode = #tpu.pipeline_mode<synchronous>, transform_indices = @transform_14, window_bounds = array<i64: 128, 32>}, {pipeline_mode = #tpu.pipeline_mode<synchronous>, transform_indices = @transform_15, window_bounds = array<i64: 1, 32>}, {pipeline_mode = #tpu.pipeline_mode<synchronous>, transform_indices = @transform_16, window_bounds = array<i64: 32, 32>}, {pipeline_mode = #tpu.pipeline_mode<synchronous>, transform_indices = @transform_17, window_bounds = array<i64: 1, 32>}, {pipeline_mode = #tpu.pipeline_mode<synchronous>, transform_indices = @transform_18, window_bounds = array<i64: 32, 32>}, {pipeline_mode = #tpu.pipeline_mode<synchronous>, transform_indices = @transform_19, window_bounds = array<i64: 1, 32>}, {pipeline_mode = #tpu.pipeline_mode<synchronous>, transform_indices = @transform_20, window_bounds = array<i64: 32, 32>}, {pipeline_mode = #tpu.pipeline_mode<synchronous>, transform_indices = @transform_21, window_bounds = array<i64: 1, 32>}, {pipeline_mode = #tpu.pipeline_mode<synchronous>, transform_indices = @transform_22, window_bounds = array<i64: 32, 32>}, {pipeline_mode = #tpu.pipeline_mode<synchronous>, transform_indices = @transform_23, window_bounds = array<i64: 1, 32>}, {pipeline_mode = #tpu.pipeline_mode<synchronous>, transform_indices = @transform_24, window_bounds = array<i64: 1, 32>}, {pipeline_mode = #tpu.pipeline_mode<synchronous>, transform_indices = @transform_25, window_bounds = array<i64: 1, 32>}, {pipeline_mode = #tpu.pipeline_mode<synchronous>, transform_indices = @transform_26, window_bounds = array<i64: 32, 64>}, {pipeline_mode = #tpu.pipeline_mode<synchronous>, transform_indices = @transform_27, window_bounds = array<i64: 1, 64>}, {pipeline_mode = #tpu.pipeline_mode<synchronous>, transform_indices = @transform_28, window_bounds = array<i64: 64, 32>}, {pipeline_mode = #tpu.pipeline_mode<synchronous>, transform_indices = @transform_29, window_bounds = array<i64: 1, 32>}, {pipeline_mode = #tpu.pipeline_mode<synchronous>, transform_indices = @transform_30, window_bounds = array<i64: 1, 32>}, {pipeline_mode = #tpu.pipeline_mode<synchronous>, transform_indices = @transform_31, window_bounds = array<i64: 1, 32>}, {pipeline_mode = #tpu.pipeline_mode<synchronous>, transform_indices = @transform_32, window_bounds = array<i64: 32, 32>}, {pipeline_mode = #tpu.pipeline_mode<synchronous>, transform_indices = @transform_33, window_bounds = array<i64: 1, 32>}, {pipeline_mode = #tpu.pipeline_mode<synchronous>, transform_indices = @transform_34, window_bounds = array<i64: 32, 128>}, {pipeline_mode = #tpu.pipeline_mode<synchronous>, transform_indices = @transform_35, window_bounds = array<i64: 32, 128>}, {pipeline_mode = #tpu.pipeline_mode<synchronous>, transform_indices = @transform_36, window_bounds = array<i64: 1, 128>}, {transform_indices = @transform_37, window_bounds = array<i64: 1, 8, 32>}, {transform_indices = @transform_38, window_bounds = array<i64: 1, 8, 128>}]} {
    %c0 = arith.constant 0 : index
    %c0_0 = arith.constant 0 : index
    %c0_1 = arith.constant 0 : index
    %0 = vector.load %arg1[%c0, %c0_0, %c0_1] : memref<1x8x32xbf16, #tpu.memory_space<vmem>>, vector<1x8x32xbf16>
    %1 = vector.shape_cast %0 : vector<1x8x32xbf16> to vector<8x32xbf16>
    %c0_2 = arith.constant 0 : index
    %c0_3 = arith.constant 0 : index
    %c0_4 = arith.constant 0 : index
    %2 = vector.load %arg2[%c0_2, %c0_3, %c0_4] : memref<1x8x32xbf16, #tpu.memory_space<vmem>>, vector<1x8x32xbf16>
    %3 = vector.shape_cast %2 : vector<1x8x32xbf16> to vector<8x32xbf16>
    %c0_5 = arith.constant 0 : index
    %c0_6 = arith.constant 0 : index
    %c0_7 = arith.constant 0 : index
    %4 = vector.load %arg4[%c0_5, %c0_6, %c0_7] : memref<1x16x32xbf16, #tpu.memory_space<vmem>>, vector<1x16x32xbf16>
    %5 = vector.shape_cast %4 : vector<1x16x32xbf16> to vector<16x32xbf16>
    %c0_8 = arith.constant 0 : index
    %c0_9 = arith.constant 0 : index
    %c0_10 = arith.constant 0 : index
    %6 = vector.load %arg3[%c0_8, %c0_9, %c0_10] : memref<1x8x128xf32, #tpu.memory_space<vmem>>, vector<1x8x128xf32>
    %7 = vector.shape_cast %6 : vector<1x8x128xf32> to vector<8x128xf32>
    %8 = arith.extf %1 : vector<8x32xbf16> to vector<8x32xf32>
    %9 = tpu.iota {dimensions = array<i32: 1>} : vector<1x128xi32>
    %c8_i32 = arith.constant 8 : i32
    %10 = vector.broadcast %c8_i32 : i32 to vector<1x128xi32>
    %11 = arith.cmpi slt, %9, %10 : vector<1x128xi32>
    %cst = arith.constant 0.000000e+00 : f32
    %12 = vector.shape_cast %11 : vector<1x128xi1> to vector<1x128xi1>
    %13 = vector.broadcast %12 : vector<1x128xi1> to vector<8x128xi1>
    %14 = vector.broadcast %cst : f32 to vector<8x128xf32>
    %15 = arith.select %13, %7, %14 : vector<8x128xi1>, vector<8x128xf32>
    %16 = arith.addf %1, %3 : vector<8x32xbf16>
    %c0_11 = arith.constant 0 : index
    %c0_12 = arith.constant 0 : index
    %17 = vector.load %arg5[%c0_11, %c0_12] : memref<32x32xf32, #tpu.memory_space<vmem>>, vector<32x32xf32>
    %18 = arith.truncf %17 : vector<32x32xf32> to vector<32x32xbf16>
    %cst_13 = arith.constant dense<0.000000e+00> : vector<8x32xf32>
    %19 = tpu.matmul %16, %18, %cst_13 {dimension_numbers = #tpu.dot_dimension_numbers<[1], [0], [0], [1], [0, 0, 1, 1], [], []>} : vector<8x32xbf16>, vector<32x32xbf16>, vector<8x32xf32> -> vector<8x32xf32>
    %c0_14 = arith.constant 0 : index
    %c0_15 = arith.constant 0 : index
    %20 = vector.load %arg6[%c0_14, %c0_15] : memref<1x32xf32, #tpu.memory_space<vmem>>, vector<1x32xf32>
    %21 = vector.broadcast %20 : vector<1x32xf32> to vector<8x32xf32>
    %22 = arith.addf %19, %21 : vector<8x32xf32>
    %c0_16 = arith.constant 0 : index
    %c0_17 = arith.constant 0 : index
    %23 = vector.load %arg7[%c0_16, %c0_17] : memref<32x32xf32, #tpu.memory_space<vmem>>, vector<32x32xf32>
    %24 = arith.truncf %23 : vector<32x32xf32> to vector<32x32xbf16>
    %cst_18 = arith.constant dense<0.000000e+00> : vector<8x32xf32>
    %25 = tpu.matmul %16, %24, %cst_18 {dimension_numbers = #tpu.dot_dimension_numbers<[1], [0], [0], [1], [0, 0, 1, 1], [], []>} : vector<8x32xbf16>, vector<32x32xbf16>, vector<8x32xf32> -> vector<8x32xf32>
    %c0_19 = arith.constant 0 : index
    %c0_20 = arith.constant 0 : index
    %26 = vector.load %arg8[%c0_19, %c0_20] : memref<1x32xf32, #tpu.memory_space<vmem>>, vector<1x32xf32>
    %27 = vector.broadcast %26 : vector<1x32xf32> to vector<8x32xf32>
    %28 = arith.addf %25, %27 : vector<8x32xf32>
    %c0_21 = arith.constant 0 : index
    %c0_22 = arith.constant 0 : index
    %29 = vector.load %arg9[%c0_21, %c0_22] : memref<32x32xf32, #tpu.memory_space<vmem>>, vector<32x32xf32>
    %30 = arith.truncf %29 : vector<32x32xf32> to vector<32x32xbf16>
    %cst_23 = arith.constant dense<0.000000e+00> : vector<8x32xf32>
    %31 = tpu.matmul %1, %30, %cst_23 {dimension_numbers = #tpu.dot_dimension_numbers<[1], [0], [0], [1], [0, 0, 1, 1], [], []>} : vector<8x32xbf16>, vector<32x32xbf16>, vector<8x32xf32> -> vector<8x32xf32>
    %c0_24 = arith.constant 0 : index
    %c0_25 = arith.constant 0 : index
    %32 = vector.load %arg10[%c0_24, %c0_25] : memref<1x32xf32, #tpu.memory_space<vmem>>, vector<1x32xf32>
    %33 = vector.broadcast %32 : vector<1x32xf32> to vector<8x32xf32>
    %34 = arith.addf %31, %33 : vector<8x32xf32>
    %c0_26 = arith.constant 0 : index
    %c0_27 = arith.constant 0 : index
    %35 = vector.load %arg11[%c0_26, %c0_27] : memref<32x32xf32, #tpu.memory_space<vmem>>, vector<32x32xf32>
    %c0_28 = arith.constant 0 : index
    %c0_29 = arith.constant 0 : index
    %36 = vector.load %arg12[%c0_28, %c0_29] : memref<1x32xf32, #tpu.memory_space<vmem>>, vector<1x32xf32>
    %cst_30 = arith.constant 0.353553385 : f32
    %37 = vector.broadcast %cst_30 : f32 to vector<8x32xf32>
    %38 = arith.mulf %22, %37 : vector<8x32xf32>
    %39 = vector.extract_strided_slice %38 {offsets = [0, 0], sizes = [8, 8], strides = [1, 1]} : vector<8x32xf32> to vector<8x8xf32>
    %40 = arith.truncf %39 : vector<8x8xf32> to vector<8x8xbf16>
    %41 = vector.extract_strided_slice %28 {offsets = [0, 0], sizes = [8, 8], strides = [1, 1]} : vector<8x32xf32> to vector<8x8xf32>
    %42 = arith.truncf %41 : vector<8x8xf32> to vector<8x8xbf16>
    %43 = vector.extract_strided_slice %34 {offsets = [0, 0], sizes = [8, 8], strides = [1, 1]} : vector<8x32xf32> to vector<8x8xf32>
    %44 = arith.truncf %43 : vector<8x8xf32> to vector<8x8xbf16>
    %cst_31 = arith.constant dense<0.000000e+00> : vector<8x8xf32>
    %45 = tpu.matmul %40, %42, %cst_31 {dimension_numbers = #tpu.dot_dimension_numbers<[1], [1], [0], [0], [0, 0, 1, 0], [], []>} : vector<8x8xbf16>, vector<8x8xbf16>, vector<8x8xf32> -> vector<8x8xf32>
    %cst_32 = arith.constant dense<0xFF800000> : vector<8xf32>
    %46 = vector.multi_reduction <maximumf>, %45, %cst_32 [1] : vector<8x8xf32> to vector<8xf32>
    %47 = vector.shape_cast %46 : vector<8xf32> to vector<8x1xf32>
    %48 = vector.broadcast %47 : vector<8x1xf32> to vector<8x8xf32>
    %49 = arith.subf %45, %48 : vector<8x8xf32>
    %50 = math.exp %49 : vector<8x8xf32>
    %cst_33 = arith.constant dense<0.000000e+00> : vector<8xf32>
    %51 = vector.multi_reduction <add>, %50, %cst_33 [1] : vector<8x8xf32> to vector<8xf32>
    %52 = vector.shape_cast %51 : vector<8xf32> to vector<8x1xf32>
    %53 = tpu.reciprocal %52 {approx = true} : vector<8x1xf32> -> vector<8x1xf32>
    %54 = vector.broadcast %53 : vector<8x1xf32> to vector<8x8xf32>
    %55 = arith.mulf %50, %54 : vector<8x8xf32>
    %56 = arith.truncf %55 : vector<8x8xf32> to vector<8x8xbf16>
    %cst_34 = arith.constant dense<0.000000e+00> : vector<8x8xf32>
    %57 = tpu.matmul %56, %44, %cst_34 {dimension_numbers = #tpu.dot_dimension_numbers<[1], [0], [0], [1], [0, 0, 1, 1], [], []>} : vector<8x8xbf16>, vector<8x8xbf16>, vector<8x8xf32> -> vector<8x8xf32>
    %58 = vector.extract_strided_slice %38 {offsets = [0, 8], sizes = [8, 8], strides = [1, 1]} : vector<8x32xf32> to vector<8x8xf32>
    %59 = arith.truncf %58 : vector<8x8xf32> to vector<8x8xbf16>
    %60 = vector.extract_strided_slice %28 {offsets = [0, 8], sizes = [8, 8], strides = [1, 1]} : vector<8x32xf32> to vector<8x8xf32>
    %61 = arith.truncf %60 : vector<8x8xf32> to vector<8x8xbf16>
    %62 = vector.extract_strided_slice %34 {offsets = [0, 8], sizes = [8, 8], strides = [1, 1]} : vector<8x32xf32> to vector<8x8xf32>
    %63 = arith.truncf %62 : vector<8x8xf32> to vector<8x8xbf16>
    %cst_35 = arith.constant dense<0.000000e+00> : vector<8x8xf32>
    %64 = tpu.matmul %59, %61, %cst_35 {dimension_numbers = #tpu.dot_dimension_numbers<[1], [1], [0], [0], [0, 0, 1, 0], [], []>} : vector<8x8xbf16>, vector<8x8xbf16>, vector<8x8xf32> -> vector<8x8xf32>
    %cst_36 = arith.constant dense<0xFF800000> : vector<8xf32>
    %65 = vector.multi_reduction <maximumf>, %64, %cst_36 [1] : vector<8x8xf32> to vector<8xf32>
    %66 = vector.shape_cast %65 : vector<8xf32> to vector<8x1xf32>
    %67 = vector.broadcast %66 : vector<8x1xf32> to vector<8x8xf32>
    %68 = arith.subf %64, %67 : vector<8x8xf32>
    %69 = math.exp %68 : vector<8x8xf32>
    %cst_37 = arith.constant dense<0.000000e+00> : vector<8xf32>
    %70 = vector.multi_reduction <add>, %69, %cst_37 [1] : vector<8x8xf32> to vector<8xf32>
    %71 = vector.shape_cast %70 : vector<8xf32> to vector<8x1xf32>
    %72 = tpu.reciprocal %71 {approx = true} : vector<8x1xf32> -> vector<8x1xf32>
    %73 = vector.broadcast %72 : vector<8x1xf32> to vector<8x8xf32>
    %74 = arith.mulf %69, %73 : vector<8x8xf32>
    %75 = arith.truncf %74 : vector<8x8xf32> to vector<8x8xbf16>
    %cst_38 = arith.constant dense<0.000000e+00> : vector<8x8xf32>
    %76 = tpu.matmul %75, %63, %cst_38 {dimension_numbers = #tpu.dot_dimension_numbers<[1], [0], [0], [1], [0, 0, 1, 1], [], []>} : vector<8x8xbf16>, vector<8x8xbf16>, vector<8x8xf32> -> vector<8x8xf32>
    %77 = vector.extract_strided_slice %38 {offsets = [0, 16], sizes = [8, 8], strides = [1, 1]} : vector<8x32xf32> to vector<8x8xf32>
    %78 = arith.truncf %77 : vector<8x8xf32> to vector<8x8xbf16>
    %79 = vector.extract_strided_slice %28 {offsets = [0, 16], sizes = [8, 8], strides = [1, 1]} : vector<8x32xf32> to vector<8x8xf32>
    %80 = arith.truncf %79 : vector<8x8xf32> to vector<8x8xbf16>
    %81 = vector.extract_strided_slice %34 {offsets = [0, 16], sizes = [8, 8], strides = [1, 1]} : vector<8x32xf32> to vector<8x8xf32>
    %82 = arith.truncf %81 : vector<8x8xf32> to vector<8x8xbf16>
    %cst_39 = arith.constant dense<0.000000e+00> : vector<8x8xf32>
    %83 = tpu.matmul %78, %80, %cst_39 {dimension_numbers = #tpu.dot_dimension_numbers<[1], [1], [0], [0], [0, 0, 1, 0], [], []>} : vector<8x8xbf16>, vector<8x8xbf16>, vector<8x8xf32> -> vector<8x8xf32>
    %cst_40 = arith.constant dense<0xFF800000> : vector<8xf32>
    %84 = vector.multi_reduction <maximumf>, %83, %cst_40 [1] : vector<8x8xf32> to vector<8xf32>
    %85 = vector.shape_cast %84 : vector<8xf32> to vector<8x1xf32>
    %86 = vector.broadcast %85 : vector<8x1xf32> to vector<8x8xf32>
    %87 = arith.subf %83, %86 : vector<8x8xf32>
    %88 = math.exp %87 : vector<8x8xf32>
    %cst_41 = arith.constant dense<0.000000e+00> : vector<8xf32>
    %89 = vector.multi_reduction <add>, %88, %cst_41 [1] : vector<8x8xf32> to vector<8xf32>
    %90 = vector.shape_cast %89 : vector<8xf32> to vector<8x1xf32>
    %91 = tpu.reciprocal %90 {approx = true} : vector<8x1xf32> -> vector<8x1xf32>
    %92 = vector.broadcast %91 : vector<8x1xf32> to vector<8x8xf32>
    %93 = arith.mulf %88, %92 : vector<8x8xf32>
    %94 = arith.truncf %93 : vector<8x8xf32> to vector<8x8xbf16>
    %cst_42 = arith.constant dense<0.000000e+00> : vector<8x8xf32>
    %95 = tpu.matmul %94, %82, %cst_42 {dimension_numbers = #tpu.dot_dimension_numbers<[1], [0], [0], [1], [0, 0, 1, 1], [], []>} : vector<8x8xbf16>, vector<8x8xbf16>, vector<8x8xf32> -> vector<8x8xf32>
    %96 = vector.extract_strided_slice %38 {offsets = [0, 24], sizes = [8, 8], strides = [1, 1]} : vector<8x32xf32> to vector<8x8xf32>
    %97 = arith.truncf %96 : vector<8x8xf32> to vector<8x8xbf16>
    %98 = vector.extract_strided_slice %28 {offsets = [0, 24], sizes = [8, 8], strides = [1, 1]} : vector<8x32xf32> to vector<8x8xf32>
    %99 = arith.truncf %98 : vector<8x8xf32> to vector<8x8xbf16>
    %100 = vector.extract_strided_slice %34 {offsets = [0, 24], sizes = [8, 8], strides = [1, 1]} : vector<8x32xf32> to vector<8x8xf32>
    %101 = arith.truncf %100 : vector<8x8xf32> to vector<8x8xbf16>
    %cst_43 = arith.constant dense<0.000000e+00> : vector<8x8xf32>
    %102 = tpu.matmul %97, %99, %cst_43 {dimension_numbers = #tpu.dot_dimension_numbers<[1], [1], [0], [0], [0, 0, 1, 0], [], []>} : vector<8x8xbf16>, vector<8x8xbf16>, vector<8x8xf32> -> vector<8x8xf32>
    %cst_44 = arith.constant dense<0xFF800000> : vector<8xf32>
    %103 = vector.multi_reduction <maximumf>, %102, %cst_44 [1] : vector<8x8xf32> to vector<8xf32>
    %104 = vector.shape_cast %103 : vector<8xf32> to vector<8x1xf32>
    %105 = vector.broadcast %104 : vector<8x1xf32> to vector<8x8xf32>
    %106 = arith.subf %102, %105 : vector<8x8xf32>
    %107 = math.exp %106 : vector<8x8xf32>
    %cst_45 = arith.constant dense<0.000000e+00> : vector<8xf32>
    %108 = vector.multi_reduction <add>, %107, %cst_45 [1] : vector<8x8xf32> to vector<8xf32>
    %109 = vector.shape_cast %108 : vector<8xf32> to vector<8x1xf32>
    %110 = tpu.reciprocal %109 {approx = true} : vector<8x1xf32> -> vector<8x1xf32>
    %111 = vector.broadcast %110 : vector<8x1xf32> to vector<8x8xf32>
    %112 = arith.mulf %107, %111 : vector<8x8xf32>
    %113 = arith.truncf %112 : vector<8x8xf32> to vector<8x8xbf16>
    %cst_46 = arith.constant dense<0.000000e+00> : vector<8x8xf32>
    %114 = tpu.matmul %113, %101, %cst_46 {dimension_numbers = #tpu.dot_dimension_numbers<[1], [0], [0], [1], [0, 0, 1, 1], [], []>} : vector<8x8xbf16>, vector<8x8xbf16>, vector<8x8xf32> -> vector<8x8xf32>
    %115 = tpu.concatenate %57, %76, %95, %114 in 1 : vector<8x8xf32>, vector<8x8xf32>, vector<8x8xf32>, vector<8x8xf32> -> vector<8x32xf32>
    %116 = arith.truncf %115 : vector<8x32xf32> to vector<8x32xbf16>
    %117 = arith.truncf %35 : vector<32x32xf32> to vector<32x32xbf16>
    %cst_47 = arith.constant dense<0.000000e+00> : vector<8x32xf32>
    %118 = tpu.matmul %116, %117, %cst_47 {dimension_numbers = #tpu.dot_dimension_numbers<[1], [0], [0], [1], [0, 0, 1, 1], [], []>} : vector<8x32xbf16>, vector<32x32xbf16>, vector<8x32xf32> -> vector<8x32xf32>
    %119 = vector.broadcast %36 : vector<1x32xf32> to vector<8x32xf32>
    %120 = arith.addf %118, %119 : vector<8x32xf32>
    %121 = arith.addf %8, %120 : vector<8x32xf32>
    %c0_48 = arith.constant 0 : index
    %c0_49 = arith.constant 0 : index
    %122 = vector.load %arg13[%c0_48, %c0_49] : memref<1x32xf32, #tpu.memory_space<vmem>>, vector<1x32xf32>
    %c0_50 = arith.constant 0 : index
    %c0_51 = arith.constant 0 : index
    %123 = vector.load %arg14[%c0_50, %c0_51] : memref<1x32xf32, #tpu.memory_space<vmem>>, vector<1x32xf32>
    %cst_52 = arith.constant dense<0.000000e+00> : vector<8xf32>
    %124 = vector.multi_reduction <add>, %121, %cst_52 [1] : vector<8x32xf32> to vector<8xf32>
    %125 = vector.shape_cast %124 : vector<8xf32> to vector<8x1xf32>
    %cst_53 = arith.constant 3.200000e+01 : f32
    %126 = vector.broadcast %cst_53 : f32 to vector<8x1xf32>
    %127 = arith.divf %125, %126 : vector<8x1xf32>
    %128 = vector.broadcast %127 : vector<8x1xf32> to vector<8x32xf32>
    %129 = arith.subf %121, %128 : vector<8x32xf32>
    %130 = arith.mulf %129, %129 : vector<8x32xf32>
    %cst_54 = arith.constant dense<0.000000e+00> : vector<8xf32>
    %131 = vector.multi_reduction <add>, %130, %cst_54 [1] : vector<8x32xf32> to vector<8xf32>
    %132 = vector.shape_cast %131 : vector<8xf32> to vector<8x1xf32>
    %cst_55 = arith.constant 3.200000e+01 : f32
    %133 = vector.broadcast %cst_55 : f32 to vector<8x1xf32>
    %134 = arith.divf %132, %133 : vector<8x1xf32>
    %135 = vector.broadcast %127 : vector<8x1xf32> to vector<8x32xf32>
    %136 = arith.subf %121, %135 : vector<8x32xf32>
    %cst_56 = arith.constant 9.99999974E-6 : f32
    %137 = vector.broadcast %cst_56 : f32 to vector<8x1xf32>
    %138 = arith.addf %134, %137 : vector<8x1xf32>
    %139 = math.rsqrt %138 : vector<8x1xf32>
    %140 = vector.broadcast %139 : vector<8x1xf32> to vector<8x32xf32>
    %141 = arith.mulf %136, %140 : vector<8x32xf32>
    %142 = vector.broadcast %122 : vector<1x32xf32> to vector<8x32xf32>
    %143 = arith.mulf %141, %142 : vector<8x32xf32>
    %144 = vector.broadcast %123 : vector<1x32xf32> to vector<8x32xf32>
    %145 = arith.addf %143, %144 : vector<8x32xf32>
    %c0_57 = arith.constant 0 : index
    %c0_58 = arith.constant 0 : index
    %146 = vector.load %arg15[%c0_57, %c0_58] : memref<128x32xf32, #tpu.memory_space<vmem>>, vector<128x32xf32>
    %147 = arith.truncf %15 : vector<8x128xf32> to vector<8x128xbf16>
    %148 = arith.truncf %146 : vector<128x32xf32> to vector<128x32xbf16>
    %cst_59 = arith.constant dense<0.000000e+00> : vector<8x32xf32>
    %149 = tpu.matmul %147, %148, %cst_59 {dimension_numbers = #tpu.dot_dimension_numbers<[1], [0], [0], [1], [0, 0, 1, 1], [], []>} : vector<8x128xbf16>, vector<128x32xbf16>, vector<8x32xf32> -> vector<8x32xf32>
    %c0_60 = arith.constant 0 : index
    %c0_61 = arith.constant 0 : index
    %150 = vector.load %arg16[%c0_60, %c0_61] : memref<1x32xf32, #tpu.memory_space<vmem>>, vector<1x32xf32>
    %151 = vector.broadcast %150 : vector<1x32xf32> to vector<8x32xf32>
    %152 = arith.addf %149, %151 : vector<8x32xf32>
    %153 = arith.extf %3 : vector<8x32xbf16> to vector<8x32xf32>
    %154 = arith.addf %145, %153 : vector<8x32xf32>
    %155 = arith.addf %154, %152 : vector<8x32xf32>
    %c0_62 = arith.constant 0 : index
    %c0_63 = arith.constant 0 : index
    %156 = vector.load %arg17[%c0_62, %c0_63] : memref<32x32xf32, #tpu.memory_space<vmem>>, vector<32x32xf32>
    %157 = arith.truncf %155 : vector<8x32xf32> to vector<8x32xbf16>
    %158 = arith.truncf %156 : vector<32x32xf32> to vector<32x32xbf16>
    %cst_64 = arith.constant dense<0.000000e+00> : vector<8x32xf32>
    %159 = tpu.matmul %157, %158, %cst_64 {dimension_numbers = #tpu.dot_dimension_numbers<[1], [0], [0], [1], [0, 0, 1, 1], [], []>} : vector<8x32xbf16>, vector<32x32xbf16>, vector<8x32xf32> -> vector<8x32xf32>
    %c0_65 = arith.constant 0 : index
    %c0_66 = arith.constant 0 : index
    %160 = vector.load %arg18[%c0_65, %c0_66] : memref<1x32xf32, #tpu.memory_space<vmem>>, vector<1x32xf32>
    %161 = vector.broadcast %160 : vector<1x32xf32> to vector<8x32xf32>
    %162 = arith.addf %159, %161 : vector<8x32xf32>
    %c0_67 = arith.constant 0 : index
    %c0_68 = arith.constant 0 : index
    %163 = vector.load %arg19[%c0_67, %c0_68] : memref<32x32xf32, #tpu.memory_space<vmem>>, vector<32x32xf32>
    %164 = arith.truncf %163 : vector<32x32xf32> to vector<32x32xbf16>
    %cst_69 = arith.constant dense<0.000000e+00> : vector<16x32xf32>
    %165 = tpu.matmul %5, %164, %cst_69 {dimension_numbers = #tpu.dot_dimension_numbers<[1], [0], [0], [1], [0, 0, 1, 1], [], []>} : vector<16x32xbf16>, vector<32x32xbf16>, vector<16x32xf32> -> vector<16x32xf32>
    %c0_70 = arith.constant 0 : index
    %c0_71 = arith.constant 0 : index
    %166 = vector.load %arg20[%c0_70, %c0_71] : memref<1x32xf32, #tpu.memory_space<vmem>>, vector<1x32xf32>
    %167 = vector.broadcast %166 : vector<1x32xf32> to vector<16x32xf32>
    %168 = arith.addf %165, %167 : vector<16x32xf32>
    %c0_72 = arith.constant 0 : index
    %c0_73 = arith.constant 0 : index
    %169 = vector.load %arg21[%c0_72, %c0_73] : memref<32x32xf32, #tpu.memory_space<vmem>>, vector<32x32xf32>
    %170 = arith.truncf %169 : vector<32x32xf32> to vector<32x32xbf16>
    %cst_74 = arith.constant dense<0.000000e+00> : vector<16x32xf32>
    %171 = tpu.matmul %5, %170, %cst_74 {dimension_numbers = #tpu.dot_dimension_numbers<[1], [0], [0], [1], [0, 0, 1, 1], [], []>} : vector<16x32xbf16>, vector<32x32xbf16>, vector<16x32xf32> -> vector<16x32xf32>
    %c0_75 = arith.constant 0 : index
    %c0_76 = arith.constant 0 : index
    %172 = vector.load %arg22[%c0_75, %c0_76] : memref<1x32xf32, #tpu.memory_space<vmem>>, vector<1x32xf32>
    %173 = vector.broadcast %172 : vector<1x32xf32> to vector<16x32xf32>
    %174 = arith.addf %171, %173 : vector<16x32xf32>
    %c0_77 = arith.constant 0 : index
    %c0_78 = arith.constant 0 : index
    %175 = vector.load %arg23[%c0_77, %c0_78] : memref<32x32xf32, #tpu.memory_space<vmem>>, vector<32x32xf32>
    %c0_79 = arith.constant 0 : index
    %c0_80 = arith.constant 0 : index
    %176 = vector.load %arg24[%c0_79, %c0_80] : memref<1x32xf32, #tpu.memory_space<vmem>>, vector<1x32xf32>
    %cst_81 = arith.constant 0.353553385 : f32
    %177 = vector.broadcast %cst_81 : f32 to vector<8x32xf32>
    %178 = arith.mulf %162, %177 : vector<8x32xf32>
    %179 = vector.extract_strided_slice %178 {offsets = [0, 0], sizes = [8, 8], strides = [1, 1]} : vector<8x32xf32> to vector<8x8xf32>
    %180 = arith.truncf %179 : vector<8x8xf32> to vector<8x8xbf16>
    %181 = vector.extract_strided_slice %168 {offsets = [0, 0], sizes = [16, 8], strides = [1, 1]} : vector<16x32xf32> to vector<16x8xf32>
    %182 = arith.truncf %181 : vector<16x8xf32> to vector<16x8xbf16>
    %183 = vector.extract_strided_slice %174 {offsets = [0, 0], sizes = [16, 8], strides = [1, 1]} : vector<16x32xf32> to vector<16x8xf32>
    %184 = arith.truncf %183 : vector<16x8xf32> to vector<16x8xbf16>
    %cst_82 = arith.constant dense<0.000000e+00> : vector<8x16xf32>
    %185 = tpu.matmul %180, %182, %cst_82 {dimension_numbers = #tpu.dot_dimension_numbers<[1], [1], [0], [0], [0, 0, 1, 0], [], []>} : vector<8x8xbf16>, vector<16x8xbf16>, vector<8x16xf32> -> vector<8x16xf32>
    %cst_83 = arith.constant dense<0xFF800000> : vector<8xf32>
    %186 = vector.multi_reduction <maximumf>, %185, %cst_83 [1] : vector<8x16xf32> to vector<8xf32>
    %187 = vector.shape_cast %186 : vector<8xf32> to vector<8x1xf32>
    %188 = vector.broadcast %187 : vector<8x1xf32> to vector<8x16xf32>
    %189 = arith.subf %185, %188 : vector<8x16xf32>
    %190 = math.exp %189 : vector<8x16xf32>
    %cst_84 = arith.constant dense<0.000000e+00> : vector<8xf32>
    %191 = vector.multi_reduction <add>, %190, %cst_84 [1] : vector<8x16xf32> to vector<8xf32>
    %192 = vector.shape_cast %191 : vector<8xf32> to vector<8x1xf32>
    %193 = tpu.reciprocal %192 {approx = true} : vector<8x1xf32> -> vector<8x1xf32>
    %194 = vector.broadcast %193 : vector<8x1xf32> to vector<8x16xf32>
    %195 = arith.mulf %190, %194 : vector<8x16xf32>
    %196 = arith.truncf %195 : vector<8x16xf32> to vector<8x16xbf16>
    %cst_85 = arith.constant dense<0.000000e+00> : vector<8x8xf32>
    %197 = tpu.matmul %196, %184, %cst_85 {dimension_numbers = #tpu.dot_dimension_numbers<[1], [0], [0], [1], [0, 0, 1, 1], [], []>} : vector<8x16xbf16>, vector<16x8xbf16>, vector<8x8xf32> -> vector<8x8xf32>
    %198 = vector.extract_strided_slice %178 {offsets = [0, 8], sizes = [8, 8], strides = [1, 1]} : vector<8x32xf32> to vector<8x8xf32>
    %199 = arith.truncf %198 : vector<8x8xf32> to vector<8x8xbf16>
    %200 = vector.extract_strided_slice %168 {offsets = [0, 8], sizes = [16, 8], strides = [1, 1]} : vector<16x32xf32> to vector<16x8xf32>
    %201 = arith.truncf %200 : vector<16x8xf32> to vector<16x8xbf16>
    %202 = vector.extract_strided_slice %174 {offsets = [0, 8], sizes = [16, 8], strides = [1, 1]} : vector<16x32xf32> to vector<16x8xf32>
    %203 = arith.truncf %202 : vector<16x8xf32> to vector<16x8xbf16>
    %cst_86 = arith.constant dense<0.000000e+00> : vector<8x16xf32>
    %204 = tpu.matmul %199, %201, %cst_86 {dimension_numbers = #tpu.dot_dimension_numbers<[1], [1], [0], [0], [0, 0, 1, 0], [], []>} : vector<8x8xbf16>, vector<16x8xbf16>, vector<8x16xf32> -> vector<8x16xf32>
    %cst_87 = arith.constant dense<0xFF800000> : vector<8xf32>
    %205 = vector.multi_reduction <maximumf>, %204, %cst_87 [1] : vector<8x16xf32> to vector<8xf32>
    %206 = vector.shape_cast %205 : vector<8xf32> to vector<8x1xf32>
    %207 = vector.broadcast %206 : vector<8x1xf32> to vector<8x16xf32>
    %208 = arith.subf %204, %207 : vector<8x16xf32>
    %209 = math.exp %208 : vector<8x16xf32>
    %cst_88 = arith.constant dense<0.000000e+00> : vector<8xf32>
    %210 = vector.multi_reduction <add>, %209, %cst_88 [1] : vector<8x16xf32> to vector<8xf32>
    %211 = vector.shape_cast %210 : vector<8xf32> to vector<8x1xf32>
    %212 = tpu.reciprocal %211 {approx = true} : vector<8x1xf32> -> vector<8x1xf32>
    %213 = vector.broadcast %212 : vector<8x1xf32> to vector<8x16xf32>
    %214 = arith.mulf %209, %213 : vector<8x16xf32>
    %215 = arith.truncf %214 : vector<8x16xf32> to vector<8x16xbf16>
    %cst_89 = arith.constant dense<0.000000e+00> : vector<8x8xf32>
    %216 = tpu.matmul %215, %203, %cst_89 {dimension_numbers = #tpu.dot_dimension_numbers<[1], [0], [0], [1], [0, 0, 1, 1], [], []>} : vector<8x16xbf16>, vector<16x8xbf16>, vector<8x8xf32> -> vector<8x8xf32>
    %217 = vector.extract_strided_slice %178 {offsets = [0, 16], sizes = [8, 8], strides = [1, 1]} : vector<8x32xf32> to vector<8x8xf32>
    %218 = arith.truncf %217 : vector<8x8xf32> to vector<8x8xbf16>
    %219 = vector.extract_strided_slice %168 {offsets = [0, 16], sizes = [16, 8], strides = [1, 1]} : vector<16x32xf32> to vector<16x8xf32>
    %220 = arith.truncf %219 : vector<16x8xf32> to vector<16x8xbf16>
    %221 = vector.extract_strided_slice %174 {offsets = [0, 16], sizes = [16, 8], strides = [1, 1]} : vector<16x32xf32> to vector<16x8xf32>
    %222 = arith.truncf %221 : vector<16x8xf32> to vector<16x8xbf16>
    %cst_90 = arith.constant dense<0.000000e+00> : vector<8x16xf32>
    %223 = tpu.matmul %218, %220, %cst_90 {dimension_numbers = #tpu.dot_dimension_numbers<[1], [1], [0], [0], [0, 0, 1, 0], [], []>} : vector<8x8xbf16>, vector<16x8xbf16>, vector<8x16xf32> -> vector<8x16xf32>
    %cst_91 = arith.constant dense<0xFF800000> : vector<8xf32>
    %224 = vector.multi_reduction <maximumf>, %223, %cst_91 [1] : vector<8x16xf32> to vector<8xf32>
    %225 = vector.shape_cast %224 : vector<8xf32> to vector<8x1xf32>
    %226 = vector.broadcast %225 : vector<8x1xf32> to vector<8x16xf32>
    %227 = arith.subf %223, %226 : vector<8x16xf32>
    %228 = math.exp %227 : vector<8x16xf32>
    %cst_92 = arith.constant dense<0.000000e+00> : vector<8xf32>
    %229 = vector.multi_reduction <add>, %228, %cst_92 [1] : vector<8x16xf32> to vector<8xf32>
    %230 = vector.shape_cast %229 : vector<8xf32> to vector<8x1xf32>
    %231 = tpu.reciprocal %230 {approx = true} : vector<8x1xf32> -> vector<8x1xf32>
    %232 = vector.broadcast %231 : vector<8x1xf32> to vector<8x16xf32>
    %233 = arith.mulf %228, %232 : vector<8x16xf32>
    %234 = arith.truncf %233 : vector<8x16xf32> to vector<8x16xbf16>
    %cst_93 = arith.constant dense<0.000000e+00> : vector<8x8xf32>
    %235 = tpu.matmul %234, %222, %cst_93 {dimension_numbers = #tpu.dot_dimension_numbers<[1], [0], [0], [1], [0, 0, 1, 1], [], []>} : vector<8x16xbf16>, vector<16x8xbf16>, vector<8x8xf32> -> vector<8x8xf32>
    %236 = vector.extract_strided_slice %178 {offsets = [0, 24], sizes = [8, 8], strides = [1, 1]} : vector<8x32xf32> to vector<8x8xf32>
    %237 = arith.truncf %236 : vector<8x8xf32> to vector<8x8xbf16>
    %238 = vector.extract_strided_slice %168 {offsets = [0, 24], sizes = [16, 8], strides = [1, 1]} : vector<16x32xf32> to vector<16x8xf32>
    %239 = arith.truncf %238 : vector<16x8xf32> to vector<16x8xbf16>
    %240 = vector.extract_strided_slice %174 {offsets = [0, 24], sizes = [16, 8], strides = [1, 1]} : vector<16x32xf32> to vector<16x8xf32>
    %241 = arith.truncf %240 : vector<16x8xf32> to vector<16x8xbf16>
    %cst_94 = arith.constant dense<0.000000e+00> : vector<8x16xf32>
    %242 = tpu.matmul %237, %239, %cst_94 {dimension_numbers = #tpu.dot_dimension_numbers<[1], [1], [0], [0], [0, 0, 1, 0], [], []>} : vector<8x8xbf16>, vector<16x8xbf16>, vector<8x16xf32> -> vector<8x16xf32>
    %cst_95 = arith.constant dense<0xFF800000> : vector<8xf32>
    %243 = vector.multi_reduction <maximumf>, %242, %cst_95 [1] : vector<8x16xf32> to vector<8xf32>
    %244 = vector.shape_cast %243 : vector<8xf32> to vector<8x1xf32>
    %245 = vector.broadcast %244 : vector<8x1xf32> to vector<8x16xf32>
    %246 = arith.subf %242, %245 : vector<8x16xf32>
    %247 = math.exp %246 : vector<8x16xf32>
    %cst_96 = arith.constant dense<0.000000e+00> : vector<8xf32>
    %248 = vector.multi_reduction <add>, %247, %cst_96 [1] : vector<8x16xf32> to vector<8xf32>
    %249 = vector.shape_cast %248 : vector<8xf32> to vector<8x1xf32>
    %250 = tpu.reciprocal %249 {approx = true} : vector<8x1xf32> -> vector<8x1xf32>
    %251 = vector.broadcast %250 : vector<8x1xf32> to vector<8x16xf32>
    %252 = arith.mulf %247, %251 : vector<8x16xf32>
    %253 = arith.truncf %252 : vector<8x16xf32> to vector<8x16xbf16>
    %cst_97 = arith.constant dense<0.000000e+00> : vector<8x8xf32>
    %254 = tpu.matmul %253, %241, %cst_97 {dimension_numbers = #tpu.dot_dimension_numbers<[1], [0], [0], [1], [0, 0, 1, 1], [], []>} : vector<8x16xbf16>, vector<16x8xbf16>, vector<8x8xf32> -> vector<8x8xf32>
    %255 = tpu.concatenate %197, %216, %235, %254 in 1 : vector<8x8xf32>, vector<8x8xf32>, vector<8x8xf32>, vector<8x8xf32> -> vector<8x32xf32>
    %256 = arith.truncf %255 : vector<8x32xf32> to vector<8x32xbf16>
    %257 = arith.truncf %175 : vector<32x32xf32> to vector<32x32xbf16>
    %cst_98 = arith.constant dense<0.000000e+00> : vector<8x32xf32>
    %258 = tpu.matmul %256, %257, %cst_98 {dimension_numbers = #tpu.dot_dimension_numbers<[1], [0], [0], [1], [0, 0, 1, 1], [], []>} : vector<8x32xbf16>, vector<32x32xbf16>, vector<8x32xf32> -> vector<8x32xf32>
    %259 = vector.broadcast %176 : vector<1x32xf32> to vector<8x32xf32>
    %260 = arith.addf %258, %259 : vector<8x32xf32>
    %261 = arith.addf %145, %260 : vector<8x32xf32>
    %c0_99 = arith.constant 0 : index
    %c0_100 = arith.constant 0 : index
    %262 = vector.load %arg25[%c0_99, %c0_100] : memref<1x32xf32, #tpu.memory_space<vmem>>, vector<1x32xf32>
    %c0_101 = arith.constant 0 : index
    %c0_102 = arith.constant 0 : index
    %263 = vector.load %arg26[%c0_101, %c0_102] : memref<1x32xf32, #tpu.memory_space<vmem>>, vector<1x32xf32>
    %cst_103 = arith.constant dense<0.000000e+00> : vector<8xf32>
    %264 = vector.multi_reduction <add>, %261, %cst_103 [1] : vector<8x32xf32> to vector<8xf32>
    %265 = vector.shape_cast %264 : vector<8xf32> to vector<8x1xf32>
    %cst_104 = arith.constant 3.200000e+01 : f32
    %266 = vector.broadcast %cst_104 : f32 to vector<8x1xf32>
    %267 = arith.divf %265, %266 : vector<8x1xf32>
    %268 = vector.broadcast %267 : vector<8x1xf32> to vector<8x32xf32>
    %269 = arith.subf %261, %268 : vector<8x32xf32>
    %270 = arith.mulf %269, %269 : vector<8x32xf32>
    %cst_105 = arith.constant dense<0.000000e+00> : vector<8xf32>
    %271 = vector.multi_reduction <add>, %270, %cst_105 [1] : vector<8x32xf32> to vector<8xf32>
    %272 = vector.shape_cast %271 : vector<8xf32> to vector<8x1xf32>
    %cst_106 = arith.constant 3.200000e+01 : f32
    %273 = vector.broadcast %cst_106 : f32 to vector<8x1xf32>
    %274 = arith.divf %272, %273 : vector<8x1xf32>
    %275 = vector.broadcast %267 : vector<8x1xf32> to vector<8x32xf32>
    %276 = arith.subf %261, %275 : vector<8x32xf32>
    %cst_107 = arith.constant 9.99999974E-6 : f32
    %277 = vector.broadcast %cst_107 : f32 to vector<8x1xf32>
    %278 = arith.addf %274, %277 : vector<8x1xf32>
    %279 = math.rsqrt %278 : vector<8x1xf32>
    %280 = vector.broadcast %279 : vector<8x1xf32> to vector<8x32xf32>
    %281 = arith.mulf %276, %280 : vector<8x32xf32>
    %282 = vector.broadcast %262 : vector<1x32xf32> to vector<8x32xf32>
    %283 = arith.mulf %281, %282 : vector<8x32xf32>
    %284 = vector.broadcast %263 : vector<1x32xf32> to vector<8x32xf32>
    %285 = arith.addf %283, %284 : vector<8x32xf32>
    %c0_108 = arith.constant 0 : index
    %c0_109 = arith.constant 0 : index
    %286 = vector.load %arg27[%c0_108, %c0_109] : memref<32x64xf32, #tpu.memory_space<vmem>>, vector<32x64xf32>
    %287 = arith.truncf %285 : vector<8x32xf32> to vector<8x32xbf16>
    %288 = arith.truncf %286 : vector<32x64xf32> to vector<32x64xbf16>
    %cst_110 = arith.constant dense<0.000000e+00> : vector<8x64xf32>
    %289 = tpu.matmul %287, %288, %cst_110 {dimension_numbers = #tpu.dot_dimension_numbers<[1], [0], [0], [1], [0, 0, 1, 1], [], []>} : vector<8x32xbf16>, vector<32x64xbf16>, vector<8x64xf32> -> vector<8x64xf32>
    %c0_111 = arith.constant 0 : index
    %c0_112 = arith.constant 0 : index
    %290 = vector.load %arg28[%c0_111, %c0_112] : memref<1x64xf32, #tpu.memory_space<vmem>>, vector<1x64xf32>
    %291 = vector.broadcast %290 : vector<1x64xf32> to vector<8x64xf32>
    %292 = arith.addf %289, %291 : vector<8x64xf32>
    %cst_113 = arith.constant 0.000000e+00 : f32
    %293 = vector.broadcast %cst_113 : f32 to vector<8x64xf32>
    %294 = arith.maximumf %292, %293 : vector<8x64xf32>
    %c0_114 = arith.constant 0 : index
    %c0_115 = arith.constant 0 : index
    %295 = vector.load %arg29[%c0_114, %c0_115] : memref<64x32xf32, #tpu.memory_space<vmem>>, vector<64x32xf32>
    %296 = arith.truncf %294 : vector<8x64xf32> to vector<8x64xbf16>
    %297 = arith.truncf %295 : vector<64x32xf32> to vector<64x32xbf16>
    %cst_116 = arith.constant dense<0.000000e+00> : vector<8x32xf32>
    %298 = tpu.matmul %296, %297, %cst_116 {dimension_numbers = #tpu.dot_dimension_numbers<[1], [0], [0], [1], [0, 0, 1, 1], [], []>} : vector<8x64xbf16>, vector<64x32xbf16>, vector<8x32xf32> -> vector<8x32xf32>
    %c0_117 = arith.constant 0 : index
    %c0_118 = arith.constant 0 : index
    %299 = vector.load %arg30[%c0_117, %c0_118] : memref<1x32xf32, #tpu.memory_space<vmem>>, vector<1x32xf32>
    %300 = vector.broadcast %299 : vector<1x32xf32> to vector<8x32xf32>
    %301 = arith.addf %298, %300 : vector<8x32xf32>
    %302 = arith.addf %285, %301 : vector<8x32xf32>
    %c0_119 = arith.constant 0 : index
    %c0_120 = arith.constant 0 : index
    %303 = vector.load %arg31[%c0_119, %c0_120] : memref<1x32xf32, #tpu.memory_space<vmem>>, vector<1x32xf32>
    %c0_121 = arith.constant 0 : index
    %c0_122 = arith.constant 0 : index
    %304 = vector.load %arg32[%c0_121, %c0_122] : memref<1x32xf32, #tpu.memory_space<vmem>>, vector<1x32xf32>
    %cst_123 = arith.constant dense<0.000000e+00> : vector<8xf32>
    %305 = vector.multi_reduction <add>, %302, %cst_123 [1] : vector<8x32xf32> to vector<8xf32>
    %306 = vector.shape_cast %305 : vector<8xf32> to vector<8x1xf32>
    %cst_124 = arith.constant 3.200000e+01 : f32
    %307 = vector.broadcast %cst_124 : f32 to vector<8x1xf32>
    %308 = arith.divf %306, %307 : vector<8x1xf32>
    %309 = vector.broadcast %308 : vector<8x1xf32> to vector<8x32xf32>
    %310 = arith.subf %302, %309 : vector<8x32xf32>
    %311 = arith.mulf %310, %310 : vector<8x32xf32>
    %cst_125 = arith.constant dense<0.000000e+00> : vector<8xf32>
    %312 = vector.multi_reduction <add>, %311, %cst_125 [1] : vector<8x32xf32> to vector<8xf32>
    %313 = vector.shape_cast %312 : vector<8xf32> to vector<8x1xf32>
    %cst_126 = arith.constant 3.200000e+01 : f32
    %314 = vector.broadcast %cst_126 : f32 to vector<8x1xf32>
    %315 = arith.divf %313, %314 : vector<8x1xf32>
    %316 = vector.broadcast %308 : vector<8x1xf32> to vector<8x32xf32>
    %317 = arith.subf %302, %316 : vector<8x32xf32>
    %cst_127 = arith.constant 9.99999974E-6 : f32
    %318 = vector.broadcast %cst_127 : f32 to vector<8x1xf32>
    %319 = arith.addf %315, %318 : vector<8x1xf32>
    %320 = math.rsqrt %319 : vector<8x1xf32>
    %321 = vector.broadcast %320 : vector<8x1xf32> to vector<8x32xf32>
    %322 = arith.mulf %317, %321 : vector<8x32xf32>
    %323 = vector.broadcast %303 : vector<1x32xf32> to vector<8x32xf32>
    %324 = arith.mulf %322, %323 : vector<8x32xf32>
    %325 = vector.broadcast %304 : vector<1x32xf32> to vector<8x32xf32>
    %326 = arith.addf %324, %325 : vector<8x32xf32>
    %327 = arith.truncf %326 : vector<8x32xf32> to vector<8x32xbf16>
    %c0_128 = arith.constant 0 : index
    %c0_129 = arith.constant 0 : index
    %c0_130 = arith.constant 0 : index
    %328 = vector.load %arg38[%c0_128, %c0_129, %c0_130] : memref<1x8x32xbf16, #tpu.memory_space<vmem>>, vector<1x8x32xbf16>
    %329 = vector.shape_cast %328 : vector<1x8x32xbf16> to vector<8x32xbf16>
    %330 = vector.shape_cast %327 : vector<8x32xbf16> to vector<1x8x32xbf16>
    tpu.vector_store %arg38[%c0_128, %c0_129, %c0_130], %330 {strides = array<i32>} : memref<1x8x32xbf16, #tpu.memory_space<vmem>>, vector<1x8x32xbf16>,
    %c0_131 = arith.constant 0 : index
    %c0_132 = arith.constant 0 : index
    %331 = vector.load %arg33[%c0_131, %c0_132] : memref<32x32xf32, #tpu.memory_space<vmem>>, vector<32x32xf32>
    %cst_133 = arith.constant dense<0.000000e+00> : vector<8x32xf32>
    %332 = tpu.matmul %326, %331, %cst_133 {dimension_numbers = #tpu.dot_dimension_numbers<[1], [0], [0], [1], [0, 0, 1, 1], [], []>} : vector<8x32xf32>, vector<32x32xf32>, vector<8x32xf32> -> vector<8x32xf32>
    %c0_134 = arith.constant 0 : index
    %c0_135 = arith.constant 0 : index
    %333 = vector.load %arg34[%c0_134, %c0_135] : memref<1x32xf32, #tpu.memory_space<vmem>>, vector<1x32xf32>
    %334 = vector.broadcast %333 : vector<1x32xf32> to vector<8x32xf32>
    %335 = arith.addf %332, %334 : vector<8x32xf32>
    %cst_136 = arith.constant 0.000000e+00 : f32
    %336 = vector.broadcast %cst_136 : f32 to vector<8x32xf32>
    %337 = arith.maximumf %335, %336 : vector<8x32xf32>
    %c0_137 = arith.constant 0 : index
    %c0_138 = arith.constant 0 : index
    %338 = vector.load %arg35[%c0_137, %c0_138] : memref<32x128xf32, #tpu.memory_space<vmem>>, vector<32x128xf32>
    %cst_139 = arith.constant dense<0.000000e+00> : vector<8x128xf32>
    %339 = tpu.matmul %326, %338, %cst_139 {dimension_numbers = #tpu.dot_dimension_numbers<[1], [0], [0], [1], [0, 0, 1, 1], [], []>} : vector<8x32xf32>, vector<32x128xf32>, vector<8x128xf32> -> vector<8x128xf32>
    %c0_140 = arith.constant 0 : index
    %c0_141 = arith.constant 0 : index
    %340 = vector.load %arg36[%c0_140, %c0_141] : memref<32x128xf32, #tpu.memory_space<vmem>>, vector<32x128xf32>
    %cst_142 = arith.constant dense<0.000000e+00> : vector<8x128xf32>
    %341 = tpu.matmul %337, %340, %cst_142 {dimension_numbers = #tpu.dot_dimension_numbers<[1], [0], [0], [1], [0, 0, 1, 1], [], []>} : vector<8x32xf32>, vector<32x128xf32>, vector<8x128xf32> -> vector<8x128xf32>
    %342 = arith.addf %339, %341 : vector<8x128xf32>
    %c0_143 = arith.constant 0 : index
    %c0_144 = arith.constant 0 : index
    %343 = vector.load %arg37[%c0_143, %c0_144] : memref<1x128xf32, #tpu.memory_space<vmem>>, vector<1x128xf32>
    %344 = vector.broadcast %343 : vector<1x128xf32> to vector<8x128xf32>
    %345 = arith.addf %342, %344 : vector<8x128xf32>
    %346 = arith.addf %345, %15 : vector<8x128xf32>
    %c0_145 = arith.constant 0 : index
    %c0_146 = arith.constant 0 : index
    %c0_147 = arith.constant 0 : index
    %347 = vector.load %arg39[%c0_145, %c0_146, %c0_147] : memref<1x8x128xf32, #tpu.memory_space<vmem>>, vector<1x8x128xf32>
    %348 = vector.shape_cast %347 : vector<1x8x128xf32> to vector<8x128xf32>
    %349 = vector.shape_cast %346 : vector<8x128xf32> to vector<1x8x128xf32>
    tpu.vector_store %arg39[%c0_145, %c0_146, %c0_147], %349 {strides = array<i32>} : memref<1x8x128xf32, #tpu.memory_space<vmem>>, vector<1x8x128xf32>,
    return
  }
  func.func @transform_0(%arg0: i32) -> (i32, i32, i32) {
    %c0_i32 = arith.constant 0 : i32
    %c0_i32_0 = arith.constant 0 : i32
    %c0_i32_1 = arith.constant 0 : i32
    return %arg0, %c0_i32, %c0_i32_0 : i32, i32, i32
  }
  func.func @transform_1(%arg0: i32) -> (i32, i32, i32) {
    %c0_i32 = arith.constant 0 : i32
    %c0_i32_0 = arith.constant 0 : i32
    %c0_i32_1 = arith.constant 0 : i32
    return %arg0, %c0_i32, %c0_i32_0 : i32, i32, i32
  }
  func.func @transform_2(%arg0: i32) -> (i32, i32, i32) {
    %c0_i32 = arith.constant 0 : i32
    %c0_i32_0 = arith.constant 0 : i32
    %c0_i32_1 = arith.constant 0 : i32
    return %arg0, %c0_i32, %c0_i32_0 : i32, i32, i32
  }
  func.func @transform_3(%arg0: i32) -> (i32, i32, i32) {
    %c0_i32 = arith.constant 0 : i32
    %c0_i32_0 = arith.constant 0 : i32
    %c0_i32_1 = arith.constant 0 : i32
    return %arg0, %c0_i32, %c0_i32_0 : i32, i32, i32
  }
  func.func @transform_4(%arg0: i32) -> (i32, i32) {
    %c0_i32 = arith.constant 0 : i32
    %c0_i32_0 = arith.constant 0 : i32
    %c0_i32_1 = arith.constant 0 : i32
    return %c0_i32, %c0_i32_0 : i32, i32
  }
  func.func @transform_5(%arg0: i32) -> (i32, i32) {
    %c0_i32 = arith.constant 0 : i32
    %c0_i32_0 = arith.constant 0 : i32
    %c0_i32_1 = arith.constant 0 : i32
    return %c0_i32, %c0_i32_0 : i32, i32
  }
  func.func @transform_6(%arg0: i32) -> (i32, i32) {
    %c0_i32 = arith.constant 0 : i32
    %c0_i32_0 = arith.constant 0 : i32
    %c0_i32_1 = arith.constant 0 : i32
    return %c0_i32, %c0_i32_0 : i32, i32
  }
  func.func @transform_7(%arg0: i32) -> (i32, i32) {
    %c0_i32 = arith.constant 0 : i32
    %c0_i32_0 = arith.constant 0 : i32
    %c0_i32_1 = arith.constant 0 : i32
    return %c0_i32, %c0_i32_0 : i32, i32
  }
  func.func @transform_8(%arg0: i32) -> (i32, i32) {
    %c0_i32 = arith.constant 0 : i32
    %c0_i32_0 = arith.constant 0 : i32
    %c0_i32_1 = arith.constant 0 : i32
    return %c0_i32, %c0_i32_0 : i32, i32
  }
  func.func @transform_9(%arg0: i32) -> (i32, i32) {
    %c0_i32 = arith.constant 0 : i32
    %c0_i32_0 = arith.constant 0 : i32
    %c0_i32_1 = arith.constant 0 : i32
    return %c0_i32, %c0_i32_0 : i32, i32
  }
  func.func @transform_10(%arg0: i32) -> (i32, i32) {
    %c0_i32 = arith.constant 0 : i32
    %c0_i32_0 = arith.constant 0 : i32
    %c0_i32_1 = arith.constant 0 : i32
    return %c0_i32, %c0_i32_0 : i32, i32
  }
  func.func @transform_11(%arg0: i32) -> (i32, i32) {
    %c0_i32 = arith.constant 0 : i32
    %c0_i32_0 = arith.constant 0 : i32
    %c0_i32_1 = arith.constant 0 : i32
    return %c0_i32, %c0_i32_0 : i32, i32
  }
  func.func @transform_12(%arg0: i32) -> (i32, i32) {
    %c0_i32 = arith.constant 0 : i32
    %c0_i32_0 = arith.constant 0 : i32
    %c0_i32_1 = arith.constant 0 : i32
    return %c0_i32, %c0_i32_0 : i32, i32
  }
  func.func @transform_13(%arg0: i32) -> (i32, i32) {
    %c0_i32 = arith.constant 0 : i32
    %c0_i32_0 = arith.constant 0 : i32
    %c0_i32_1 = arith.constant 0 : i32
    return %c0_i32, %c0_i32_0 : i32, i32
  }
  func.func @transform_14(%arg0: i32) -> (i32, i32) {
    %c0_i32 = arith.constant 0 : i32
    %c0_i32_0 = arith.constant 0 : i32
    %c0_i32_1 = arith.constant 0 : i32
    return %c0_i32, %c0_i32_0 : i32, i32
  }
  func.func @transform_15(%arg0: i32) -> (i32, i32) {
    %c0_i32 = arith.constant 0 : i32
    %c0_i32_0 = arith.constant 0 : i32
    %c0_i32_1 = arith.constant 0 : i32
    return %c0_i32, %c0_i32_0 : i32, i32
  }
  func.func @transform_16(%arg0: i32) -> (i32, i32) {
    %c0_i32 = arith.constant 0 : i32
    %c0_i32_0 = arith.constant 0 : i32
    %c0_i32_1 = arith.constant 0 : i32
    return %c0_i32, %c0_i32_0 : i32, i32
  }
  func.func @transform_17(%arg0: i32) -> (i32, i32) {
    %c0_i32 = arith.constant 0 : i32
    %c0_i32_0 = arith.constant 0 : i32
    %c0_i32_1 = arith.constant 0 : i32
    return %c0_i32, %c0_i32_0 : i32, i32
  }
  func.func @transform_18(%arg0: i32) -> (i32, i32) {
    %c0_i32 = arith.constant 0 : i32
    %c0_i32_0 = arith.constant 0 : i32
    %c0_i32_1 = arith.constant 0 : i32
    return %c0_i32, %c0_i32_0 : i32, i32
  }
  func.func @transform_19(%arg0: i32) -> (i32, i32) {
    %c0_i32 = arith.constant 0 : i32
    %c0_i32_0 = arith.constant 0 : i32
    %c0_i32_1 = arith.constant 0 : i32
    return %c0_i32, %c0_i32_0 : i32, i32
  }
  func.func @transform_20(%arg0: i32) -> (i32, i32) {
    %c0_i32 = arith.constant 0 : i32
    %c0_i32_0 = arith.constant 0 : i32
    %c0_i32_1 = arith.constant 0 : i32
    return %c0_i32, %c0_i32_0 : i32, i32
  }
  func.func @transform_21(%arg0: i32) -> (i32, i32) {
    %c0_i32 = arith.constant 0 : i32
    %c0_i32_0 = arith.constant 0 : i32
    %c0_i32_1 = arith.constant 0 : i32
    return %c0_i32, %c0_i32_0 : i32, i32
  }
  func.func @transform_22(%arg0: i32) -> (i32, i32) {
    %c0_i32 = arith.constant 0 : i32
    %c0_i32_0 = arith.constant 0 : i32
    %c0_i32_1 = arith.constant 0 : i32
    return %c0_i32, %c0_i32_0 : i32, i32
  }
  func.func @transform_23(%arg0: i32) -> (i32, i32) {
    %c0_i32 = arith.constant 0 : i32
    %c0_i32_0 = arith.constant 0 : i32
    %c0_i32_1 = arith.constant 0 : i32
    return %c0_i32, %c0_i32_0 : i32, i32
  }
  func.func @transform_24(%arg0: i32) -> (i32, i32) {
    %c0_i32 = arith.constant 0 : i32
    %c0_i32_0 = arith.constant 0 : i32
    %c0_i32_1 = arith.constant 0 : i32
    return %c0_i32, %c0_i32_0 : i32, i32
  }
  func.func @transform_25(%arg0: i32) -> (i32, i32) {
    %c0_i32 = arith.constant 0 : i32
    %c0_i32_0 = arith.constant 0 : i32
    %c0_i32_1 = arith.constant 0 : i32
    return %c0_i32, %c0_i32_0 : i32, i32
  }
  func.func @transform_26(%arg0: i32) -> (i32, i32) {
    %c0_i32 = arith.constant 0 : i32
    %c0_i32_0 = arith.constant 0 : i32
    %c0_i32_1 = arith.constant 0 : i32
    return %c0_i32, %c0_i32_0 : i32, i32
  }
  func.func @transform_27(%arg0: i32) -> (i32, i32) {
    %c0_i32 = arith.constant 0 : i32
    %c0_i32_0 = arith.constant 0 : i32
    %c0_i32_1 = arith.constant 0 : i32
    return %c0_i32, %c0_i32_0 : i32, i32
  }
  func.func @transform_28(%arg0: i32) -> (i32, i32) {
    %c0_i32 = arith.constant 0 : i32
    %c0_i32_0 = arith.constant 0 : i32
    %c0_i32_1 = arith.constant 0 : i32
    return %c0_i32, %c0_i32_0 : i32, i32
  }
  func.func @transform_29(%arg0: i32) -> (i32, i32) {
    %c0_i32 = arith.constant 0 : i32
    %c0_i32_0 = arith.constant 0 : i32
    %c0_i32_1 = arith.constant 0 : i32
    return %c0_i32, %c0_i32_0 : i32, i32
  }
  func.func @transform_30(%arg0: i32) -> (i32, i32) {
    %c0_i32 = arith.constant 0 : i32
    %c0_i32_0 = arith.constant 0 : i32
    %c0_i32_1 = arith.constant 0 : i32
    return %c0_i32, %c0_i32_0 : i32, i32
  }
  func.func @transform_31(%arg0: i32) -> (i32, i32) {
    %c0_i32 = arith.constant 0 : i32
    %c0_i32_0 = arith.constant 0 : i32
    %c0_i32_1 = arith.constant 0 : i32
    return %c0_i32, %c0_i32_0 : i32, i32
  }
  func.func @transform_32(%arg0: i32) -> (i32, i32) {
    %c0_i32 = arith.constant 0 : i32
    %c0_i32_0 = arith.constant 0 : i32
    %c0_i32_1 = arith.constant 0 : i32
    return %c0_i32, %c0_i32_0 : i32, i32
  }
  func.func @transform_33(%arg0: i32) -> (i32, i32) {
    %c0_i32 = arith.constant 0 : i32
    %c0_i32_0 = arith.constant 0 : i32
    %c0_i32_1 = arith.constant 0 : i32
    return %c0_i32, %c0_i32_0 : i32, i32
  }
  func.func @transform_34(%arg0: i32) -> (i32, i32) {
    %c0_i32 = arith.constant 0 : i32
    %c0_i32_0 = arith.constant 0 : i32
    %c0_i32_1 = arith.constant 0 : i32
    return %c0_i32, %c0_i32_0 : i32, i32
  }
  func.func @transform_35(%arg0: i32) -> (i32, i32) {
    %c0_i32 = arith.constant 0 : i32
    %c0_i32_0 = arith.constant 0 : i32
    %c0_i32_1 = arith.constant 0 : i32
    return %c0_i32, %c0_i32_0 : i32, i32
  }
  func.func @transform_36(%arg0: i32) -> (i32, i32) {
    %c0_i32 = arith.constant 0 : i32
    %c0_i32_0 = arith.constant 0 : i32
    %c0_i32_1 = arith.constant 0 : i32
    return %c0_i32, %c0_i32_0 : i32, i32
  }
  func.func @transform_37(%arg0: i32) -> (i32, i32, i32) {
    %c0_i32 = arith.constant 0 : i32
    %c0_i32_0 = arith.constant 0 : i32
    %c0_i32_1 = arith.constant 0 : i32
    return %arg0, %c0_i32, %c0_i32_0 : i32, i32, i32
  }
  func.func @transform_38(%arg0: i32) -> (i32, i32, i32) {
    %c0_i32 = arith.constant 0 : i32
    %c0_i32_0 = arith.constant 0 : i32
    %c0_i32_1 = arith.constant 0 : i32
    return %arg0, %c0_i32, %c0_i32_0 : i32, i32, i32
  }
}

module attributes {stable_mosaic.version = 11 : i64} {
  func.func @_decoder_layer_kernel(%arg0: i32, %arg1: memref<1x8x32xbf16, #tpu.memory_space<vmem>>, %arg2: memref<1x8x32xbf16, #tpu.memory_space<vmem>>, %arg3: memref<1x8x128xf32, #tpu.memory_space<vmem>>, %arg4: memref<1x16x32xbf16, #tpu.memory_space<vmem>>, %arg5: memref<32x32xf32, #tpu.memory_space<vmem>>, %arg6: memref<1x32xf32, #tpu.memory_space<vmem>>, %arg7: memref<32x32xf32, #tpu.memory_space<vmem>>, %arg8: memref<1x32xf32, #tpu.memory_space<vmem>>, %arg9: memref<32x32xf32, #tpu.memory_space<vmem>>, %arg10: memref<1x32xf32, #tpu.memory_space<vmem>>, %arg11: memref<32x32xf32, #tpu.memory_space<vmem>>, %arg12: memref<1x32xf32, #tpu.memory_space<vmem>>, %arg13: memref<1x32xf32, #tpu.memory_space<vmem>>, %arg14: memref<1x32xf32, #tpu.memory_space<vmem>>, %arg15: memref<128x32xf32, #tpu.memory_space<vmem>>, %arg16: memref<1x32xf32, #tpu.memory_space<vmem>>, %arg17: memref<32x32xf32, #tpu.memory_space<vmem>>, %arg18: memref<1x32xf32, #tpu.memory_space<vmem>>, %arg19: memref<32x32xf32, #tpu.memory_space<vmem>>, %arg20: memref<1x32xf32, #tpu.memory_space<vmem>>, %arg21: memref<32x32xf32, #tpu.memory_space<vmem>>, %arg22: memref<1x32xf32, #tpu.memory_space<vmem>>, %arg23: memref<32x32xf32, #tpu.memory_space<vmem>>, %arg24: memref<1x32xf32, #tpu.memory_space<vmem>>, %arg25: memref<1x32xf32, #tpu.memory_space<vmem>>, %arg26: memref<1x32xf32, #tpu.memory_space<vmem>>, %arg27: memref<32x64xf32, #tpu.memory_space<vmem>>, %arg28: memref<1x64xf32, #tpu.memory_space<vmem>>, %arg29: memref<64x32xf32, #tpu.memory_space<vmem>>, %arg30: memref<1x32xf32, #tpu.memory_space<vmem>>, %arg31: memref<1x32xf32, #tpu.memory_space<vmem>>, %arg32: memref<1x32xf32, #tpu.memory_space<vmem>>, %arg33: memref<32x32xf32, #tpu.memory_space<vmem>>, %arg34: memref<1x32xf32, #tpu.memory_space<vmem>>, %arg35: memref<32x128xf32, #tpu.memory_space<vmem>>, %arg36: memref<32x128xf32, #tpu.memory_space<vmem>>, %arg37: memref<1x128xf32, #tpu.memory_space<vmem>>, %arg38: memref<1x8x32xbf16, #tpu.memory_space<vmem>>, %arg39: memref<1x8x128xf32, #tpu.memory_space<vmem>>) attributes {dimension_semantics = [#tpu.dimension_semantics<parallel>], iteration_bounds = array<i64: 2>, scalar_prefetch = 0 : i64, scratch_operands = 0 : i64, tpu.core_type = #tpu.core_type<tc>, window_params = [{transform_indices = @transform_0, window_bounds = array<i64: 1, 8, 32>}, {transform_indices = @transform_1, window_bounds = array<i64: 1, 8, 32>}, {transform_indices = @transform_2, window_bounds = array<i64: 1, 8, 128>}, {transform_indices = @transform_3, window_bounds = array<i64: 1, 16, 32>}, {pipeline_mode = #tpu.pipeline_mode<synchronous>, transform_indices = @transform_4, window_bounds = array<i64: 32, 32>}, {pipeline_mode = #tpu.pipeline_mode<synchronous>, transform_indices = @transform_5, window_bounds = array<i64: 1, 32>}, {pipeline_mode = #tpu.pipeline_mode<synchronous>, transform_indices = @transform_6, window_bounds = array<i64: 32, 32>}, {pipeline_mode = #tpu.pipeline_mode<synchronous>, transform_indices = @transform_7, window_bounds = array<i64: 1, 32>}, {pipeline_mode = #tpu.pipeline_mode<synchronous>, transform_indices = @transform_8, window_bounds = array<i64: 32, 32>}, {pipeline_mode = #tpu.pipeline_mode<synchronous>, transform_indices = @transform_9, window_bounds = array<i64: 1, 32>}, {pipeline_mode = #tpu.pipeline_mode<synchronous>, transform_indices = @transform_10, window_bounds = array<i64: 32, 32>}, {pipeline_mode = #tpu.pipeline_mode<synchronous>, transform_indices = @transform_11, window_bounds = array<i64: 1, 32>}, {pipeline_mode = #tpu.pipeline_mode<synchronous>, transform_indices = @transform_12, window_bounds = array<i64: 1, 32>}, {pipeline_mode = #tpu.pipeline_mode<synchronous>, transform_indices = @transform_13, window_bounds = array<i64: 1, 32>}, {pipeline_mode = #tpu.pipeline_mode<synchronous>, transform_indices = @transform_14, window_bounds = array<i64: 128, 32>}, {pipeline_mode = #tpu.pipeline_mode<synchronous>, transform_indices = @transform_15, window_bounds = array<i64: 1, 32>}, {pipeline_mode = #tpu.pipeline_mode<synchronous>, transform_indices = @transform_16, window_bounds = array<i64: 32, 32>}, {pipeline_mode = #tpu.pipeline_mode<synchronous>, transform_indices = @transform_17, window_bounds = array<i64: 1, 32>}, {pipeline_mode = #tpu.pipeline_mode<synchronous>, transform_indices = @transform_18, window_bounds = array<i64: 32, 32>}, {pipeline_mode = #tpu.pipeline_mode<synchronous>, transform_indices = @transform_19, window_bounds = array<i64: 1, 32>}, {pipeline_mode = #tpu.pipeline_mode<synchronous>, transform_indices = @transform_20, window_bounds = array<i64: 32, 32>}, {pipeline_mode = #tpu.pipeline_mode<synchronous>, transform_indices = @transform_21, window_bounds = array<i64: 1, 32>}, {pipeline_mode = #tpu.pipeline_mode<synchronous>, transform_indices = @transform_22, window_bounds = array<i64: 32, 32>}, {pipeline_mode = #tpu.pipeline_mode<synchronous>, transform_indices = @transform_23, window_bounds = array<i64: 1, 32>}, {pipeline_mode = #tpu.pipeline_mode<synchronous>, transform_indices = @transform_24, window_bounds = array<i64: 1, 32>}, {pipeline_mode = #tpu.pipeline_mode<synchronous>, transform_indices = @transform_25, window_bounds = array<i64: 1, 32>}, {pipeline_mode = #tpu.pipeline_mode<synchronous>, transform_indices = @transform_26, window_bounds = array<i64: 32, 64>}, {pipeline_mode = #tpu.pipeline_mode<synchronous>, transform_indices = @transform_27, window_bounds = array<i64: 1, 64>}, {pipeline_mode = #tpu.pipeline_mode<synchronous>, transform_indices = @transform_28, window_bounds = array<i64: 64, 32>}, {pipeline_mode = #tpu.pipeline_mode<synchronous>, transform_indices = @transform_29, window_bounds = array<i64: 1, 32>}, {pipeline_mode = #tpu.pipeline_mode<synchronous>, transform_indices = @transform_30, window_bounds = array<i64: 1, 32>}, {pipeline_mode = #tpu.pipeline_mode<synchronous>, transform_indices = @transform_31, window_bounds = array<i64: 1, 32>}, {pipeline_mode = #tpu.pipeline_mode<synchronous>, transform_indices = @transform_32, window_bounds = array<i64: 32, 32>}, {pipeline_mode = #tpu.pipeline_mode<synchronous>, transform_indices = @transform_33, window_bounds = array<i64: 1, 32>}, {pipeline_mode = #tpu.pipeline_mode<synchronous>, transform_indices = @transform_34, window_bounds = array<i64: 32, 128>}, {pipeline_mode = #tpu.pipeline_mode<synchronous>, transform_indices = @transform_35, window_bounds = array<i64: 32, 128>}, {pipeline_mode = #tpu.pipeline_mode<synchronous>, transform_indices = @transform_36, window_bounds = array<i64: 1, 128>}, {transform_indices = @transform_37, window_bounds = array<i64: 1, 8, 32>}, {transform_indices = @transform_38, window_bounds = array<i64: 1, 8, 128>}]} {
    %c0 = arith.constant 0 : index
    %c0_0 = arith.constant 0 : index
    %c0_1 = arith.constant 0 : index
    %0 = vector.load %arg1[%c0, %c0_0, %c0_1] : memref<1x8x32xbf16, #tpu.memory_space<vmem>>, vector<1x8x32xbf16>
    %1 = vector.shape_cast %0 : vector<1x8x32xbf16> to vector<8x32xbf16>
    %c0_2 = arith.constant 0 : index
    %c0_3 = arith.constant 0 : index
    %c0_4 = arith.constant 0 : index
    %2 = vector.load %arg2[%c0_2, %c0_3, %c0_4] : memref<1x8x32xbf16, #tpu.memory_space<vmem>>, vector<1x8x32xbf16>
    %3 = vector.shape_cast %2 : vector<1x8x32xbf16> to vector<8x32xbf16>
    %c0_5 = arith.constant 0 : index
    %c0_6 = arith.constant 0 : index
    %c0_7 = arith.constant 0 : index
    %4 = vector.load %arg4[%c0_5, %c0_6, %c0_7] : memref<1x16x32xbf16, #tpu.memory_space<vmem>>, vector<1x16x32xbf16>
    %5 = vector.shape_cast %4 : vector<1x16x32xbf16> to vector<16x32xbf16>
    %c0_8 = arith.constant 0 : index
    %c0_9 = arith.constant 0 : index
    %c0_10 = arith.constant 0 : index
    %6 = vector.load %arg3[%c0_8, %c0_9, %c0_10] : memref<1x8x128xf32, #tpu.memory_space<vmem>>, vector<1x8x128xf32>
    %7 = vector.shape_cast %6 : vector<1x8x128xf32> to vector<8x128xf32>
    %8 = arith.extf %1 : vector<8x32xbf16> to vector<8x32xf32>
    %9 = tpu.iota {dimensions = array<i32: 1>} : vector<1x128xi32>
    %c8_i32 = arith.constant 8 : i32
    %10 = vector.broadcast %c8_i32 : i32 to vector<1x128xi32>
    %11 = arith.cmpi slt, %9, %10 : vector<1x128xi32>
    %cst = arith.constant 0.000000e+00 : f32
    %12 = vector.shape_cast %11 : vector<1x128xi1> to vector<1x128xi1>
    %13 = vector.broadcast %12 : vector<1x128xi1> to vector<8x128xi1>
    %14 = vector.broadcast %cst : f32 to vector<8x128xf32>
    %15 = arith.select %13, %7, %14 : vector<8x128xi1>, vector<8x128xf32>
    %16 = arith.addf %1, %3 : vector<8x32xbf16>
    %c0_11 = arith.constant 0 : index
    %c0_12 = arith.constant 0 : index
    %17 = vector.load %arg5[%c0_11, %c0_12] : memref<32x32xf32, #tpu.memory_space<vmem>>, vector<32x32xf32>
    %18 = arith.truncf %17 : vector<32x32xf32> to vector<32x32xbf16>
    %cst_13 = arith.constant dense<0.000000e+00> : vector<8x32xf32>
    %19 = tpu.matmul %16, %18, %cst_13 {dimension_numbers = #tpu.dot_dimension_numbers<[1], [0], [0], [1], [0, 0, 1, 1], [], []>} : vector<8x32xbf16>, vector<32x32xbf16>, vector<8x32xf32> -> vector<8x32xf32>
    %c0_14 = arith.constant 0 : index
    %c0_15 = arith.constant 0 : index
    %20 = vector.load %arg6[%c0_14, %c0_15] : memref<1x32xf32, #tpu.memory_space<vmem>>, vector<1x32xf32>
    %21 = vector.broadcast %20 : vector<1x32xf32> to vector<8x32xf32>
    %22 = arith.addf %19, %21 : vector<8x32xf32>
    %c0_16 = arith.constant 0 : index
    %c0_17 = arith.constant 0 : index
    %23 = vector.load %arg7[%c0_16, %c0_17] : memref<32x32xf32, #tpu.memory_space<vmem>>, vector<32x32xf32>
    %24 = arith.truncf %23 : vector<32x32xf32> to vector<32x32xbf16>
    %cst_18 = arith.constant dense<0.000000e+00> : vector<8x32xf32>
    %25 = tpu.matmul %16, %24, %cst_18 {dimension_numbers = #tpu.dot_dimension_numbers<[1], [0], [0], [1], [0, 0, 1, 1], [], []>} : vector<8x32xbf16>, vector<32x32xbf16>, vector<8x32xf32> -> vector<8x32xf32>
    %c0_19 = arith.constant 0 : index
    %c0_20 = arith.constant 0 : index
    %26 = vector.load %arg8[%c0_19, %c0_20] : memref<1x32xf32, #tpu.memory_space<vmem>>, vector<1x32xf32>
    %27 = vector.broadcast %26 : vector<1x32xf32> to vector<8x32xf32>
    %28 = arith.addf %25, %27 : vector<8x32xf32>
    %c0_21 = arith.constant 0 : index
    %c0_22 = arith.constant 0 : index
    %29 = vector.load %arg9[%c0_21, %c0_22] : memref<32x32xf32, #tpu.memory_space<vmem>>, vector<32x32xf32>
    %30 = arith.truncf %29 : vector<32x32xf32> to vector<32x32xbf16>
    %cst_23 = arith.constant dense<0.000000e+00> : vector<8x32xf32>
    %31 = tpu.matmul %1, %30, %cst_23 {dimension_numbers = #tpu.dot_dimension_numbers<[1], [0], [0], [1], [0, 0, 1, 1], [], []>} : vector<8x32xbf16>, vector<32x32xbf16>, vector<8x32xf32> -> vector<8x32xf32>
    %c0_24 = arith.constant 0 : index
    %c0_25 = arith.constant 0 : index
    %32 = vector.load %arg10[%c0_24, %c0_25] : memref<1x32xf32, #tpu.memory_space<vmem>>, vector<1x32xf32>
    %33 = vector.broadcast %32 : vector<1x32xf32> to vector<8x32xf32>
    %34 = arith.addf %31, %33 : vector<8x32xf32>
    %c0_26 = arith.constant 0 : index
    %c0_27 = arith.constant 0 : index
    %35 = vector.load %arg11[%c0_26, %c0_27] : memref<32x32xf32, #tpu.memory_space<vmem>>, vector<32x32xf32>
    %c0_28 = arith.constant 0 : index
    %c0_29 = arith.constant 0 : index
    %36 = vector.load %arg12[%c0_28, %c0_29] : memref<1x32xf32, #tpu.memory_space<vmem>>, vector<1x32xf32>
    %cst_30 = arith.constant 0.353553385 : f32
    %37 = vector.broadcast %cst_30 : f32 to vector<8x32xf32>
    %38 = arith.mulf %22, %37 : vector<8x32xf32>
    %39 = vector.extract_strided_slice %38 {offsets = [0, 0], sizes = [8, 8], strides = [1, 1]} : vector<8x32xf32> to vector<8x8xf32>
    %40 = arith.truncf %39 : vector<8x8xf32> to vector<8x8xbf16>
    %41 = vector.extract_strided_slice %28 {offsets = [0, 0], sizes = [8, 8], strides = [1, 1]} : vector<8x32xf32> to vector<8x8xf32>
    %42 = arith.truncf %41 : vector<8x8xf32> to vector<8x8xbf16>
    %43 = vector.extract_strided_slice %34 {offsets = [0, 0], sizes = [8, 8], strides = [1, 1]} : vector<8x32xf32> to vector<8x8xf32>
    %44 = arith.truncf %43 : vector<8x8xf32> to vector<8x8xbf16>
    %cst_31 = arith.constant dense<0.000000e+00> : vector<8x8xf32>
    %45 = tpu.matmul %40, %42, %cst_31 {dimension_numbers = #tpu.dot_dimension_numbers<[1], [1], [0], [0], [0, 0, 1, 0], [], []>} : vector<8x8xbf16>, vector<8x8xbf16>, vector<8x8xf32> -> vector<8x8xf32>
    %cst_32 = arith.constant dense<0xFF800000> : vector<8xf32>
    %46 = vector.multi_reduction <maximumf>, %45, %cst_32 [1] : vector<8x8xf32> to vector<8xf32>
    %47 = vector.shape_cast %46 : vector<8xf32> to vector<8x1xf32>
    %48 = vector.broadcast %47 : vector<8x1xf32> to vector<8x8xf32>
    %49 = arith.subf %45, %48 : vector<8x8xf32>
    %50 = math.exp %49 : vector<8x8xf32>
    %cst_33 = arith.constant dense<0.000000e+00> : vector<8xf32>
    %51 = vector.multi_reduction <add>, %50, %cst_33 [1] : vector<8x8xf32> to vector<8xf32>
    %52 = vector.shape_cast %51 : vector<8xf32> to vector<8x1xf32>
    %53 = tpu.reciprocal %52 {approx = true} : vector<8x1xf32> -> vector<8x1xf32>
    %54 = vector.broadcast %53 : vector<8x1xf32> to vector<8x8xf32>
    %55 = arith.mulf %50, %54 : vector<8x8xf32>
    %56 = arith.truncf %55 : vector<8x8xf32> to vector<8x8xbf16>
    %cst_34 = arith.constant dense<0.000000e+00> : vector<8x8xf32>
    %57 = tpu.matmul %56, %44, %cst_34 {dimension_numbers = #tpu.dot_dimension_numbers<[1], [0], [0], [1], [0, 0, 1, 1], [], []>} : vector<8x8xbf16>, vector<8x8xbf16>, vector<8x8xf32> -> vector<8x8xf32>
    %58 = vector.extract_strided_slice %38 {offsets = [0, 8], sizes = [8, 8], strides = [1, 1]} : vector<8x32xf32> to vector<8x8xf32>
    %59 = arith.truncf %58 : vector<8x8xf32> to vector<8x8xbf16>
    %60 = vector.extract_strided_slice %28 {offsets = [0, 8], sizes = [8, 8], strides = [1, 1]} : vector<8x32xf32> to vector<8x8xf32>
    %61 = arith.truncf %60 : vector<8x8xf32> to vector<8x8xbf16>
    %62 = vector.extract_strided_slice %34 {offsets = [0, 8], sizes = [8, 8], strides = [1, 1]} : vector<8x32xf32> to vector<8x8xf32>
    %63 = arith.truncf %62 : vector<8x8xf32> to vector<8x8xbf16>
    %cst_35 = arith.constant dense<0.000000e+00> : vector<8x8xf32>
    %64 = tpu.matmul %59, %61, %cst_35 {dimension_numbers = #tpu.dot_dimension_numbers<[1], [1], [0], [0], [0, 0, 1, 0], [], []>} : vector<8x8xbf16>, vector<8x8xbf16>, vector<8x8xf32> -> vector<8x8xf32>
    %cst_36 = arith.constant dense<0xFF800000> : vector<8xf32>
    %65 = vector.multi_reduction <maximumf>, %64, %cst_36 [1] : vector<8x8xf32> to vector<8xf32>
    %66 = vector.shape_cast %65 : vector<8xf32> to vector<8x1xf32>
    %67 = vector.broadcast %66 : vector<8x1xf32> to vector<8x8xf32>
    %68 = arith.subf %64, %67 : vector<8x8xf32>
    %69 = math.exp %68 : vector<8x8xf32>
    %cst_37 = arith.constant dense<0.000000e+00> : vector<8xf32>
    %70 = vector.multi_reduction <add>, %69, %cst_37 [1] : vector<8x8xf32> to vector<8xf32>
    %71 = vector.shape_cast %70 : vector<8xf32> to vector<8x1xf32>
    %72 = tpu.reciprocal %71 {approx = true} : vector<8x1xf32> -> vector<8x1xf32>
    %73 = vector.broadcast %72 : vector<8x1xf32> to vector<8x8xf32>
    %74 = arith.mulf %69, %73 : vector<8x8xf32>
    %75 = arith.truncf %74 : vector<8x8xf32> to vector<8x8xbf16>
    %cst_38 = arith.constant dense<0.000000e+00> : vector<8x8xf32>
    %76 = tpu.matmul %75, %63, %cst_38 {dimension_numbers = #tpu.dot_dimension_numbers<[1], [0], [0], [1], [0, 0, 1, 1], [], []>} : vector<8x8xbf16>, vector<8x8xbf16>, vector<8x8xf32> -> vector<8x8xf32>
    %77 = vector.extract_strided_slice %38 {offsets = [0, 16], sizes = [8, 8], strides = [1, 1]} : vector<8x32xf32> to vector<8x8xf32>
    %78 = arith.truncf %77 : vector<8x8xf32> to vector<8x8xbf16>
    %79 = vector.extract_strided_slice %28 {offsets = [0, 16], sizes = [8, 8], strides = [1, 1]} : vector<8x32xf32> to vector<8x8xf32>
    %80 = arith.truncf %79 : vector<8x8xf32> to vector<8x8xbf16>
    %81 = vector.extract_strided_slice %34 {offsets = [0, 16], sizes = [8, 8], strides = [1, 1]} : vector<8x32xf32> to vector<8x8xf32>
    %82 = arith.truncf %81 : vector<8x8xf32> to vector<8x8xbf16>
    %cst_39 = arith.constant dense<0.000000e+00> : vector<8x8xf32>
    %83 = tpu.matmul %78, %80, %cst_39 {dimension_numbers = #tpu.dot_dimension_numbers<[1], [1], [0], [0], [0, 0, 1, 0], [], []>} : vector<8x8xbf16>, vector<8x8xbf16>, vector<8x8xf32> -> vector<8x8xf32>
    %cst_40 = arith.constant dense<0xFF800000> : vector<8xf32>
    %84 = vector.multi_reduction <maximumf>, %83, %cst_40 [1] : vector<8x8xf32> to vector<8xf32>
    %85 = vector.shape_cast %84 : vector<8xf32> to vector<8x1xf32>
    %86 = vector.broadcast %85 : vector<8x1xf32> to vector<8x8xf32>
    %87 = arith.subf %83, %86 : vector<8x8xf32>
    %88 = math.exp %87 : vector<8x8xf32>
    %cst_41 = arith.constant dense<0.000000e+00> : vector<8xf32>
    %89 = vector.multi_reduction <add>, %88, %cst_41 [1] : vector<8x8xf32> to vector<8xf32>
    %90 = vector.shape_cast %89 : vector<8xf32> to vector<8x1xf32>
    %91 = tpu.reciprocal %90 {approx = true} : vector<8x1xf32> -> vector<8x1xf32>
    %92 = vector.broadcast %91 : vector<8x1xf32> to vector<8x8xf32>
    %93 = arith.mulf %88, %92 : vector<8x8xf32>
    %94 = arith.truncf %93 : vector<8x8xf32> to vector<8x8xbf16>
    %cst_42 = arith.constant dense<0.000000e+00> : vector<8x8xf32>
    %95 = tpu.matmul %94, %82, %cst_42 {dimension_numbers = #tpu.dot_dimension_numbers<[1], [0], [0], [1], [0, 0, 1, 1], [], []>} : vector<8x8xbf16>, vector<8x8xbf16>, vector<8x8xf32> -> vector<8x8xf32>
    %96 = vector.extract_strided_slice %38 {offsets = [0, 24], sizes = [8, 8], strides = [1, 1]} : vector<8x32xf32> to vector<8x8xf32>
    %97 = arith.truncf %96 : vector<8x8xf32> to vector<8x8xbf16>
    %98 = vector.extract_strided_slice %28 {offsets = [0, 24], sizes = [8, 8], strides = [1, 1]} : vector<8x32xf32> to vector<8x8xf32>
    %99 = arith.truncf %98 : vector<8x8xf32> to vector<8x8xbf16>
    %100 = vector.extract_strided_slice %34 {offsets = [0, 24], sizes = [8, 8], strides = [1, 1]} : vector<8x32xf32> to vector<8x8xf32>
    %101 = arith.truncf %100 : vector<8x8xf32> to vector<8x8xbf16>
    %cst_43 = arith.constant dense<0.000000e+00> : vector<8x8xf32>
    %102 = tpu.matmul %97, %99, %cst_43 {dimension_numbers = #tpu.dot_dimension_numbers<[1], [1], [0], [0], [0, 0, 1, 0], [], []>} : vector<8x8xbf16>, vector<8x8xbf16>, vector<8x8xf32> -> vector<8x8xf32>
    %cst_44 = arith.constant dense<0xFF800000> : vector<8xf32>
    %103 = vector.multi_reduction <maximumf>, %102, %cst_44 [1] : vector<8x8xf32> to vector<8xf32>
    %104 = vector.shape_cast %103 : vector<8xf32> to vector<8x1xf32>
    %105 = vector.broadcast %104 : vector<8x1xf32> to vector<8x8xf32>
    %106 = arith.subf %102, %105 : vector<8x8xf32>
    %107 = math.exp %106 : vector<8x8xf32>
    %cst_45 = arith.constant dense<0.000000e+00> : vector<8xf32>
    %108 = vector.multi_reduction <add>, %107, %cst_45 [1] : vector<8x8xf32> to vector<8xf32>
    %109 = vector.shape_cast %108 : vector<8xf32> to vector<8x1xf32>
    %110 = tpu.reciprocal %109 {approx = true} : vector<8x1xf32> -> vector<8x1xf32>
    %111 = vector.broadcast %110 : vector<8x1xf32> to vector<8x8xf32>
    %112 = arith.mulf %107, %111 : vector<8x8xf32>
    %113 = arith.truncf %112 : vector<8x8xf32> to vector<8x8xbf16>
    %cst_46 = arith.constant dense<0.000000e+00> : vector<8x8xf32>
    %114 = tpu.matmul %113, %101, %cst_46 {dimension_numbers = #tpu.dot_dimension_numbers<[1], [0], [0], [1], [0, 0, 1, 1], [], []>} : vector<8x8xbf16>, vector<8x8xbf16>, vector<8x8xf32> -> vector<8x8xf32>
    %115 = tpu.concatenate %57, %76, %95, %114 in 1 : vector<8x8xf32>, vector<8x8xf32>, vector<8x8xf32>, vector<8x8xf32> -> vector<8x32xf32>
    %116 = arith.truncf %115 : vector<8x32xf32> to vector<8x32xbf16>
    %117 = arith.truncf %35 : vector<32x32xf32> to vector<32x32xbf16>
    %cst_47 = arith.constant dense<0.000000e+00> : vector<8x32xf32>
    %118 = tpu.matmul %116, %117, %cst_47 {dimension_numbers = #tpu.dot_dimension_numbers<[1], [0], [0], [1], [0, 0, 1, 1], [], []>} : vector<8x32xbf16>, vector<32x32xbf16>, vector<8x32xf32> -> vector<8x32xf32>
    %119 = vector.broadcast %36 : vector<1x32xf32> to vector<8x32xf32>
    %120 = arith.addf %118, %119 : vector<8x32xf32>
    %121 = arith.addf %8, %120 : vector<8x32xf32>
    %c0_48 = arith.constant 0 : index
    %c0_49 = arith.constant 0 : index
    %122 = vector.load %arg13[%c0_48, %c0_49] : memref<1x32xf32, #tpu.memory_space<vmem>>, vector<1x32xf32>
    %c0_50 = arith.constant 0 : index
    %c0_51 = arith.constant 0 : index
    %123 = vector.load %arg14[%c0_50, %c0_51] : memref<1x32xf32, #tpu.memory_space<vmem>>, vector<1x32xf32>
    %cst_52 = arith.constant dense<0.000000e+00> : vector<8xf32>
    %124 = vector.multi_reduction <add>, %121, %cst_52 [1] : vector<8x32xf32> to vector<8xf32>
    %125 = vector.shape_cast %124 : vector<8xf32> to vector<8x1xf32>
    %cst_53 = arith.constant 3.200000e+01 : f32
    %126 = vector.broadcast %cst_53 : f32 to vector<8x1xf32>
    %127 = arith.divf %125, %126 : vector<8x1xf32>
    %128 = vector.broadcast %127 : vector<8x1xf32> to vector<8x32xf32>
    %129 = arith.subf %121, %128 : vector<8x32xf32>
    %130 = arith.mulf %129, %129 : vector<8x32xf32>
    %cst_54 = arith.constant dense<0.000000e+00> : vector<8xf32>
    %131 = vector.multi_reduction <add>, %130, %cst_54 [1] : vector<8x32xf32> to vector<8xf32>
    %132 = vector.shape_cast %131 : vector<8xf32> to vector<8x1xf32>
    %cst_55 = arith.constant 3.200000e+01 : f32
    %133 = vector.broadcast %cst_55 : f32 to vector<8x1xf32>
    %134 = arith.divf %132, %133 : vector<8x1xf32>
    %135 = vector.broadcast %127 : vector<8x1xf32> to vector<8x32xf32>
    %136 = arith.subf %121, %135 : vector<8x32xf32>
    %cst_56 = arith.constant 9.99999974E-6 : f32
    %137 = vector.broadcast %cst_56 : f32 to vector<8x1xf32>
    %138 = arith.addf %134, %137 : vector<8x1xf32>
    %139 = math.rsqrt %138 : vector<8x1xf32>
    %140 = vector.broadcast %139 : vector<8x1xf32> to vector<8x32xf32>
    %141 = arith.mulf %136, %140 : vector<8x32xf32>
    %142 = vector.broadcast %122 : vector<1x32xf32> to vector<8x32xf32>
    %143 = arith.mulf %141, %142 : vector<8x32xf32>
    %144 = vector.broadcast %123 : vector<1x32xf32> to vector<8x32xf32>
    %145 = arith.addf %143, %144 : vector<8x32xf32>
    %c0_57 = arith.constant 0 : index
    %c0_58 = arith.constant 0 : index
    %146 = vector.load %arg15[%c0_57, %c0_58] : memref<128x32xf32, #tpu.memory_space<vmem>>, vector<128x32xf32>
    %147 = arith.truncf %15 : vector<8x128xf32> to vector<8x128xbf16>
    %148 = arith.truncf %146 : vector<128x32xf32> to vector<128x32xbf16>
    %cst_59 = arith.constant dense<0.000000e+00> : vector<8x32xf32>
    %149 = tpu.matmul %147, %148, %cst_59 {dimension_numbers = #tpu.dot_dimension_numbers<[1], [0], [0], [1], [0, 0, 1, 1], [], []>} : vector<8x128xbf16>, vector<128x32xbf16>, vector<8x32xf32> -> vector<8x32xf32>
    %c0_60 = arith.constant 0 : index
    %c0_61 = arith.constant 0 : index
    %150 = vector.load %arg16[%c0_60, %c0_61] : memref<1x32xf32, #tpu.memory_space<vmem>>, vector<1x32xf32>
    %151 = vector.broadcast %150 : vector<1x32xf32> to vector<8x32xf32>
    %152 = arith.addf %149, %151 : vector<8x32xf32>
    %153 = arith.extf %3 : vector<8x32xbf16> to vector<8x32xf32>
    %154 = arith.addf %145, %153 : vector<8x32xf32>
    %155 = arith.addf %154, %152 : vector<8x32xf32>
    %c0_62 = arith.constant 0 : index
    %c0_63 = arith.constant 0 : index
    %156 = vector.load %arg17[%c0_62, %c0_63] : memref<32x32xf32, #tpu.memory_space<vmem>>, vector<32x32xf32>
    %157 = arith.truncf %155 : vector<8x32xf32> to vector<8x32xbf16>
    %158 = arith.truncf %156 : vector<32x32xf32> to vector<32x32xbf16>
    %cst_64 = arith.constant dense<0.000000e+00> : vector<8x32xf32>
    %159 = tpu.matmul %157, %158, %cst_64 {dimension_numbers = #tpu.dot_dimension_numbers<[1], [0], [0], [1], [0, 0, 1, 1], [], []>} : vector<8x32xbf16>, vector<32x32xbf16>, vector<8x32xf32> -> vector<8x32xf32>
    %c0_65 = arith.constant 0 : index
    %c0_66 = arith.constant 0 : index
    %160 = vector.load %arg18[%c0_65, %c0_66] : memref<1x32xf32, #tpu.memory_space<vmem>>, vector<1x32xf32>
    %161 = vector.broadcast %160 : vector<1x32xf32> to vector<8x32xf32>
    %162 = arith.addf %159, %161 : vector<8x32xf32>
    %c0_67 = arith.constant 0 : index
    %c0_68 = arith.constant 0 : index
    %163 = vector.load %arg19[%c0_67, %c0_68] : memref<32x32xf32, #tpu.memory_space<vmem>>, vector<32x32xf32>
    %164 = arith.truncf %163 : vector<32x32xf32> to vector<32x32xbf16>
    %cst_69 = arith.constant dense<0.000000e+00> : vector<16x32xf32>
    %165 = tpu.matmul %5, %164, %cst_69 {dimension_numbers = #tpu.dot_dimension_numbers<[1], [0], [0], [1], [0, 0, 1, 1], [], []>} : vector<16x32xbf16>, vector<32x32xbf16>, vector<16x32xf32> -> vector<16x32xf32>
    %c0_70 = arith.constant 0 : index
    %c0_71 = arith.constant 0 : index
    %166 = vector.load %arg20[%c0_70, %c0_71] : memref<1x32xf32, #tpu.memory_space<vmem>>, vector<1x32xf32>
    %167 = vector.broadcast %166 : vector<1x32xf32> to vector<16x32xf32>
    %168 = arith.addf %165, %167 : vector<16x32xf32>
    %c0_72 = arith.constant 0 : index
    %c0_73 = arith.constant 0 : index
    %169 = vector.load %arg21[%c0_72, %c0_73] : memref<32x32xf32, #tpu.memory_space<vmem>>, vector<32x32xf32>
    %170 = arith.truncf %169 : vector<32x32xf32> to vector<32x32xbf16>
    %cst_74 = arith.constant dense<0.000000e+00> : vector<16x32xf32>
    %171 = tpu.matmul %5, %170, %cst_74 {dimension_numbers = #tpu.dot_dimension_numbers<[1], [0], [0], [1], [0, 0, 1, 1], [], []>} : vector<16x32xbf16>, vector<32x32xbf16>, vector<16x32xf32> -> vector<16x32xf32>
    %c0_75 = arith.constant 0 : index
    %c0_76 = arith.constant 0 : index
    %172 = vector.load %arg22[%c0_75, %c0_76] : memref<1x32xf32, #tpu.memory_space<vmem>>, vector<1x32xf32>
    %173 = vector.broadcast %172 : vector<1x32xf32> to vector<16x32xf32>
    %174 = arith.addf %171, %173 : vector<16x32xf32>
    %c0_77 = arith.constant 0 : index
    %c0_78 = arith.constant 0 : index
    %175 = vector.load %arg23[%c0_77, %c0_78] : memref<32x32xf32, #tpu.memory_space<vmem>>, vector<32x32xf32>
    %c0_79 = arith.constant 0 : index
    %c0_80 = arith.constant 0 : index
    %176 = vector.load %arg24[%c0_79, %c0_80] : memref<1x32xf32, #tpu.memory_space<vmem>>, vector<1x32xf32>
    %cst_81 = arith.constant 0.353553385 : f32
    %177 = vector.broadcast %cst_81 : f32 to vector<8x32xf32>
    %178 = arith.mulf %162, %177 : vector<8x32xf32>
    %179 = vector.extract_strided_slice %178 {offsets = [0, 0], sizes = [8, 8], strides = [1, 1]} : vector<8x32xf32> to vector<8x8xf32>
    %180 = arith.truncf %179 : vector<8x8xf32> to vector<8x8xbf16>
    %181 = vector.extract_strided_slice %168 {offsets = [0, 0], sizes = [16, 8], strides = [1, 1]} : vector<16x32xf32> to vector<16x8xf32>
    %182 = arith.truncf %181 : vector<16x8xf32> to vector<16x8xbf16>
    %183 = vector.extract_strided_slice %174 {offsets = [0, 0], sizes = [16, 8], strides = [1, 1]} : vector<16x32xf32> to vector<16x8xf32>
    %184 = arith.truncf %183 : vector<16x8xf32> to vector<16x8xbf16>
    %cst_82 = arith.constant dense<0.000000e+00> : vector<8x16xf32>
    %185 = tpu.matmul %180, %182, %cst_82 {dimension_numbers = #tpu.dot_dimension_numbers<[1], [1], [0], [0], [0, 0, 1, 0], [], []>} : vector<8x8xbf16>, vector<16x8xbf16>, vector<8x16xf32> -> vector<8x16xf32>
    %cst_83 = arith.constant dense<0xFF800000> : vector<8xf32>
    %186 = vector.multi_reduction <maximumf>, %185, %cst_83 [1] : vector<8x16xf32> to vector<8xf32>
    %187 = vector.shape_cast %186 : vector<8xf32> to vector<8x1xf32>
    %188 = vector.broadcast %187 : vector<8x1xf32> to vector<8x16xf32>
    %189 = arith.subf %185, %188 : vector<8x16xf32>
    %190 = math.exp %189 : vector<8x16xf32>
    %cst_84 = arith.constant dense<0.000000e+00> : vector<8xf32>
    %191 = vector.multi_reduction <add>, %190, %cst_84 [1] : vector<8x16xf32> to vector<8xf32>
    %192 = vector.shape_cast %191 : vector<8xf32> to vector<8x1xf32>
    %193 = tpu.reciprocal %192 {approx = true} : vector<8x1xf32> -> vector<8x1xf32>
    %194 = vector.broadcast %193 : vector<8x1xf32> to vector<8x16xf32>
    %195 = arith.mulf %190, %194 : vector<8x16xf32>
    %196 = arith.truncf %195 : vector<8x16xf32> to vector<8x16xbf16>
    %cst_85 = arith.constant dense<0.000000e+00> : vector<8x8xf32>
    %197 = tpu.matmul %196, %184, %cst_85 {dimension_numbers = #tpu.dot_dimension_numbers<[1], [0], [0], [1], [0, 0, 1, 1], [], []>} : vector<8x16xbf16>, vector<16x8xbf16>, vector<8x8xf32> -> vector<8x8xf32>
    %198 = vector.extract_strided_slice %178 {offsets = [0, 8], sizes = [8, 8], strides = [1, 1]} : vector<8x32xf32> to vector<8x8xf32>
    %199 = arith.truncf %198 : vector<8x8xf32> to vector<8x8xbf16>
    %200 = vector.extract_strided_slice %168 {offsets = [0, 8], sizes = [16, 8], strides = [1, 1]} : vector<16x32xf32> to vector<16x8xf32>
    %201 = arith.truncf %200 : vector<16x8xf32> to vector<16x8xbf16>
    %202 = vector.extract_strided_slice %174 {offsets = [0, 8], sizes = [16, 8], strides = [1, 1]} : vector<16x32xf32> to vector<16x8xf32>
    %203 = arith.truncf %202 : vector<16x8xf32> to vector<16x8xbf16>
    %cst_86 = arith.constant dense<0.000000e+00> : vector<8x16xf32>
    %204 = tpu.matmul %199, %201, %cst_86 {dimension_numbers = #tpu.dot_dimension_numbers<[1], [1], [0], [0], [0, 0, 1, 0], [], []>} : vector<8x8xbf16>, vector<16x8xbf16>, vector<8x16xf32> -> vector<8x16xf32>
    %cst_87 = arith.constant dense<0xFF800000> : vector<8xf32>
    %205 = vector.multi_reduction <maximumf>, %204, %cst_87 [1] : vector<8x16xf32> to vector<8xf32>
    %206 = vector.shape_cast %205 : vector<8xf32> to vector<8x1xf32>
    %207 = vector.broadcast %206 : vector<8x1xf32> to vector<8x16xf32>
    %208 = arith.subf %204, %207 : vector<8x16xf32>
    %209 = math.exp %208 : vector<8x16xf32>
    %cst_88 = arith.constant dense<0.000000e+00> : vector<8xf32>
    %210 = vector.multi_reduction <add>, %209, %cst_88 [1] : vector<8x16xf32> to vector<8xf32>
    %211 = vector.shape_cast %210 : vector<8xf32> to vector<8x1xf32>
    %212 = tpu.reciprocal %211 {approx = true} : vector<8x1xf32> -> vector<8x1xf32>
    %213 = vector.broadcast %212 : vector<8x1xf32> to vector<8x16xf32>
    %214 = arith.mulf %209, %213 : vector<8x16xf32>
    %215 = arith.truncf %214 : vector<8x16xf32> to vector<8x16xbf16>
    %cst_89 = arith.constant dense<0.000000e+00> : vector<8x8xf32>
    %216 = tpu.matmul %215, %203, %cst_89 {dimension_numbers = #tpu.dot_dimension_numbers<[1], [0], [0], [1], [0, 0, 1, 1], [], []>} : vector<8x16xbf16>, vector<16x8xbf16>, vector<8x8xf32> -> vector<8x8xf32>
    %217 = vector.extract_strided_slice %178 {offsets = [0, 16], sizes = [8, 8], strides = [1, 1]} : vector<8x32xf32> to vector<8x8xf32>
    %218 = arith.truncf %217 : vector<8x8xf32> to vector<8x8xbf16>
    %219 = vector.extract_strided_slice %168 {offsets = [0, 16], sizes = [16, 8], strides = [1, 1]} : vector<16x32xf32> to vector<16x8xf32>
    %220 = arith.truncf %219 : vector<16x8xf32> to vector<16x8xbf16>
    %221 = vector.extract_strided_slice %174 {offsets = [0, 16], sizes = [16, 8], strides = [1, 1]} : vector<16x32xf32> to vector<16x8xf32>
    %222 = arith.truncf %221 : vector<16x8xf32> to vector<16x8xbf16>
    %cst_90 = arith.constant dense<0.000000e+00> : vector<8x16xf32>
    %223 = tpu.matmul %218, %220, %cst_90 {dimension_numbers = #tpu.dot_dimension_numbers<[1], [1], [0], [0], [0, 0, 1, 0], [], []>} : vector<8x8xbf16>, vector<16x8xbf16>, vector<8x16xf32> -> vector<8x16xf32>
    %cst_91 = arith.constant dense<0xFF800000> : vector<8xf32>
    %224 = vector.multi_reduction <maximumf>, %223, %cst_91 [1] : vector<8x16xf32> to vector<8xf32>
    %225 = vector.shape_cast %224 : vector<8xf32> to vector<8x1xf32>
    %226 = vector.broadcast %225 : vector<8x1xf32> to vector<8x16xf32>
    %227 = arith.subf %223, %226 : vector<8x16xf32>
    %228 = math.exp %227 : vector<8x16xf32>
    %cst_92 = arith.constant dense<0.000000e+00> : vector<8xf32>
    %229 = vector.multi_reduction <add>, %228, %cst_92 [1] : vector<8x16xf32> to vector<8xf32>
    %230 = vector.shape_cast %229 : vector<8xf32> to vector<8x1xf32>
    %231 = tpu.reciprocal %230 {approx = true} : vector<8x1xf32> -> vector<8x1xf32>
    %232 = vector.broadcast %231 : vector<8x1xf32> to vector<8x16xf32>
    %233 = arith.mulf %228, %232 : vector<8x16xf32>
    %234 = arith.truncf %233 : vector<8x16xf32> to vector<8x16xbf16>
    %cst_93 = arith.constant dense<0.000000e+00> : vector<8x8xf32>
    %235 = tpu.matmul %234, %222, %cst_93 {dimension_numbers = #tpu.dot_dimension_numbers<[1], [0], [0], [1], [0, 0, 1, 1], [], []>} : vector<8x16xbf16>, vector<16x8xbf16>, vector<8x8xf32> -> vector<8x8xf32>
    %236 = vector.extract_strided_slice %178 {offsets = [0, 24], sizes = [8, 8], strides = [1, 1]} : vector<8x32xf32> to vector<8x8xf32>
    %237 = arith.truncf %236 : vector<8x8xf32> to vector<8x8xbf16>
    %238 = vector.extract_strided_slice %168 {offsets = [0, 24], sizes = [16, 8], strides = [1, 1]} : vector<16x32xf32> to vector<16x8xf32>
    %239 = arith.truncf %238 : vector<16x8xf32> to vector<16x8xbf16>
    %240 = vector.extract_strided_slice %174 {offsets = [0, 24], sizes = [16, 8], strides = [1, 1]} : vector<16x32xf32> to vector<16x8xf32>
    %241 = arith.truncf %240 : vector<16x8xf32> to vector<16x8xbf16>
    %cst_94 = arith.constant dense<0.000000e+00> : vector<8x16xf32>
    %242 = tpu.matmul %237, %239, %cst_94 {dimension_numbers = #tpu.dot_dimension_numbers<[1], [1], [0], [0], [0, 0, 1, 0], [], []>} : vector<8x8xbf16>, vector<16x8xbf16>, vector<8x16xf32> -> vector<8x16xf32>
    %cst_95 = arith.constant dense<0xFF800000> : vector<8xf32>
    %243 = vector.multi_reduction <maximumf>, %242, %cst_95 [1] : vector<8x16xf32> to vector<8xf32>
    %244 = vector.shape_cast %243 : vector<8xf32> to vector<8x1xf32>
    %245 = vector.broadcast %244 : vector<8x1xf32> to vector<8x16xf32>
    %246 = arith.subf %242, %245 : vector<8x16xf32>
    %247 = math.exp %246 : vector<8x16xf32>
    %cst_96 = arith.constant dense<0.000000e+00> : vector<8xf32>
    %248 = vector.multi_reduction <add>, %247, %cst_96 [1] : vector<8x16xf32> to vector<8xf32>
    %249 = vector.shape_cast %248 : vector<8xf32> to vector<8x1xf32>
    %250 = tpu.reciprocal %249 {approx = true} : vector<8x1xf32> -> vector<8x1xf32>
    %251 = vector.broadcast %250 : vector<8x1xf32> to vector<8x16xf32>
    %252 = arith.mulf %247, %251 : vector<8x16xf32>
    %253 = arith.truncf %252 : vector<8x16xf32> to vector<8x16xbf16>
    %cst_97 = arith.constant dense<0.000000e+00> : vector<8x8xf32>
    %254 = tpu.matmul %253, %241, %cst_97 {dimension_numbers = #tpu.dot_dimension_numbers<[1], [0], [0], [1], [0, 0, 1, 1], [], []>} : vector<8x16xbf16>, vector<16x8xbf16>, vector<8x8xf32> -> vector<8x8xf32>
    %255 = tpu.concatenate %197, %216, %235, %254 in 1 : vector<8x8xf32>, vector<8x8xf32>, vector<8x8xf32>, vector<8x8xf32> -> vector<8x32xf32>
    %256 = arith.truncf %255 : vector<8x32xf32> to vector<8x32xbf16>
    %257 = arith.truncf %175 : vector<32x32xf32> to vector<32x32xbf16>
    %cst_98 = arith.constant dense<0.000000e+00> : vector<8x32xf32>
    %258 = tpu.matmul %256, %257, %cst_98 {dimension_numbers = #tpu.dot_dimension_numbers<[1], [0], [0], [1], [0, 0, 1, 1], [], []>} : vector<8x32xbf16>, vector<32x32xbf16>, vector<8x32xf32> -> vector<8x32xf32>
    %259 = vector.broadcast %176 : vector<1x32xf32> to vector<8x32xf32>
    %260 = arith.addf %258, %259 : vector<8x32xf32>
    %261 = arith.addf %145, %260 : vector<8x32xf32>
    %c0_99 = arith.constant 0 : index
    %c0_100 = arith.constant 0 : index
    %262 = vector.load %arg25[%c0_99, %c0_100] : memref<1x32xf32, #tpu.memory_space<vmem>>, vector<1x32xf32>
    %c0_101 = arith.constant 0 : index
    %c0_102 = arith.constant 0 : index
    %263 = vector.load %arg26[%c0_101, %c0_102] : memref<1x32xf32, #tpu.memory_space<vmem>>, vector<1x32xf32>
    %cst_103 = arith.constant dense<0.000000e+00> : vector<8xf32>
    %264 = vector.multi_reduction <add>, %261, %cst_103 [1] : vector<8x32xf32> to vector<8xf32>
    %265 = vector.shape_cast %264 : vector<8xf32> to vector<8x1xf32>
    %cst_104 = arith.constant 3.200000e+01 : f32
    %266 = vector.broadcast %cst_104 : f32 to vector<8x1xf32>
    %267 = arith.divf %265, %266 : vector<8x1xf32>
    %268 = vector.broadcast %267 : vector<8x1xf32> to vector<8x32xf32>
    %269 = arith.subf %261, %268 : vector<8x32xf32>
    %270 = arith.mulf %269, %269 : vector<8x32xf32>
    %cst_105 = arith.constant dense<0.000000e+00> : vector<8xf32>
    %271 = vector.multi_reduction <add>, %270, %cst_105 [1] : vector<8x32xf32> to vector<8xf32>
    %272 = vector.shape_cast %271 : vector<8xf32> to vector<8x1xf32>
    %cst_106 = arith.constant 3.200000e+01 : f32
    %273 = vector.broadcast %cst_106 : f32 to vector<8x1xf32>
    %274 = arith.divf %272, %273 : vector<8x1xf32>
    %275 = vector.broadcast %267 : vector<8x1xf32> to vector<8x32xf32>
    %276 = arith.subf %261, %275 : vector<8x32xf32>
    %cst_107 = arith.constant 9.99999974E-6 : f32
    %277 = vector.broadcast %cst_107 : f32 to vector<8x1xf32>
    %278 = arith.addf %274, %277 : vector<8x1xf32>
    %279 = math.rsqrt %278 : vector<8x1xf32>
    %280 = vector.broadcast %279 : vector<8x1xf32> to vector<8x32xf32>
    %281 = arith.mulf %276, %280 : vector<8x32xf32>
    %282 = vector.broadcast %262 : vector<1x32xf32> to vector<8x32xf32>
    %283 = arith.mulf %281, %282 : vector<8x32xf32>
    %284 = vector.broadcast %263 : vector<1x32xf32> to vector<8x32xf32>
    %285 = arith.addf %283, %284 : vector<8x32xf32>
    %c0_108 = arith.constant 0 : index
    %c0_109 = arith.constant 0 : index
    %286 = vector.load %arg27[%c0_108, %c0_109] : memref<32x64xf32, #tpu.memory_space<vmem>>, vector<32x64xf32>
    %287 = arith.truncf %285 : vector<8x32xf32> to vector<8x32xbf16>
    %288 = arith.truncf %286 : vector<32x64xf32> to vector<32x64xbf16>
    %cst_110 = arith.constant dense<0.000000e+00> : vector<8x64xf32>
    %289 = tpu.matmul %287, %288, %cst_110 {dimension_numbers = #tpu.dot_dimension_numbers<[1], [0], [0], [1], [0, 0, 1, 1], [], []>} : vector<8x32xbf16>, vector<32x64xbf16>, vector<8x64xf32> -> vector<8x64xf32>
    %c0_111 = arith.constant 0 : index
    %c0_112 = arith.constant 0 : index
    %290 = vector.load %arg28[%c0_111, %c0_112] : memref<1x64xf32, #tpu.memory_space<vmem>>, vector<1x64xf32>
    %291 = vector.broadcast %290 : vector<1x64xf32> to vector<8x64xf32>
    %292 = arith.addf %289, %291 : vector<8x64xf32>
    %cst_113 = arith.constant 0.000000e+00 : f32
    %293 = vector.broadcast %cst_113 : f32 to vector<8x64xf32>
    %294 = arith.maximumf %292, %293 : vector<8x64xf32>
    %c0_114 = arith.constant 0 : index
    %c0_115 = arith.constant 0 : index
    %295 = vector.load %arg29[%c0_114, %c0_115] : memref<64x32xf32, #tpu.memory_space<vmem>>, vector<64x32xf32>
    %296 = arith.truncf %294 : vector<8x64xf32> to vector<8x64xbf16>
    %297 = arith.truncf %295 : vector<64x32xf32> to vector<64x32xbf16>
    %cst_116 = arith.constant dense<0.000000e+00> : vector<8x32xf32>
    %298 = tpu.matmul %296, %297, %cst_116 {dimension_numbers = #tpu.dot_dimension_numbers<[1], [0], [0], [1], [0, 0, 1, 1], [], []>} : vector<8x64xbf16>, vector<64x32xbf16>, vector<8x32xf32> -> vector<8x32xf32>
    %c0_117 = arith.constant 0 : index
    %c0_118 = arith.constant 0 : index
    %299 = vector.load %arg30[%c0_117, %c0_118] : memref<1x32xf32, #tpu.memory_space<vmem>>, vector<1x32xf32>
    %300 = vector.broadcast %299 : vector<1x32xf32> to vector<8x32xf32>
    %301 = arith.addf %298, %300 : vector<8x32xf32>
    %302 = arith.addf %285, %301 : vector<8x32xf32>
    %c0_119 = arith.constant 0 : index
    %c0_120 = arith.constant 0 : index
    %303 = vector.load %arg31[%c0_119, %c0_120] : memref<1x32xf32, #tpu.memory_space<vmem>>, vector<1x32xf32>
    %c0_121 = arith.constant 0 : index
    %c0_122 = arith.constant 0 : index
    %304 = vector.load %arg32[%c0_121, %c0_122] : memref<1x32xf32, #tpu.memory_space<vmem>>, vector<1x32xf32>
    %cst_123 = arith.constant dense<0.000000e+00> : vector<8xf32>
    %305 = vector.multi_reduction <add>, %302, %cst_123 [1] : vector<8x32xf32> to vector<8xf32>
    %306 = vector.shape_cast %305 : vector<8xf32> to vector<8x1xf32>
    %cst_124 = arith.constant 3.200000e+01 : f32
    %307 = vector.broadcast %cst_124 : f32 to vector<8x1xf32>
    %308 = arith.divf %306, %307 : vector<8x1xf32>
    %309 = vector.broadcast %308 : vector<8x1xf32> to vector<8x32xf32>
    %310 = arith.subf %302, %309 : vector<8x32xf32>
    %311 = arith.mulf %310, %310 : vector<8x32xf32>
    %cst_125 = arith.constant dense<0.000000e+00> : vector<8xf32>
    %312 = vector.multi_reduction <add>, %311, %cst_125 [1] : vector<8x32xf32> to vector<8xf32>
    %313 = vector.shape_cast %312 : vector<8xf32> to vector<8x1xf32>
    %cst_126 = arith.constant 3.200000e+01 : f32
    %314 = vector.broadcast %cst_126 : f32 to vector<8x1xf32>
    %315 = arith.divf %313, %314 : vector<8x1xf32>
    %316 = vector.broadcast %308 : vector<8x1xf32> to vector<8x32xf32>
    %317 = arith.subf %302, %316 : vector<8x32xf32>
    %cst_127 = arith.constant 9.99999974E-6 : f32
    %318 = vector.broadcast %cst_127 : f32 to vector<8x1xf32>
    %319 = arith.addf %315, %318 : vector<8x1xf32>
    %320 = math.rsqrt %319 : vector<8x1xf32>
    %321 = vector.broadcast %320 : vector<8x1xf32> to vector<8x32xf32>
    %322 = arith.mulf %317, %321 : vector<8x32xf32>
    %323 = vector.broadcast %303 : vector<1x32xf32> to vector<8x32xf32>
    %324 = arith.mulf %322, %323 : vector<8x32xf32>
    %325 = vector.broadcast %304 : vector<1x32xf32> to vector<8x32xf32>
    %326 = arith.addf %324, %325 : vector<8x32xf32>
    %327 = arith.truncf %326 : vector<8x32xf32> to vector<8x32xbf16>
    %c0_128 = arith.constant 0 : index
    %c0_129 = arith.constant 0 : index
    %c0_130 = arith.constant 0 : index
    %328 = vector.load %arg38[%c0_128, %c0_129, %c0_130] : memref<1x8x32xbf16, #tpu.memory_space<vmem>>, vector<1x8x32xbf16>
    %329 = vector.shape_cast %328 : vector<1x8x32xbf16> to vector<8x32xbf16>
    %330 = vector.shape_cast %327 : vector<8x32xbf16> to vector<1x8x32xbf16>
    tpu.vector_store %arg38[%c0_128, %c0_129, %c0_130], %330 {strides = array<i32>} : memref<1x8x32xbf16, #tpu.memory_space<vmem>>, vector<1x8x32xbf16>,
    %c0_131 = arith.constant 0 : index
    %c0_132 = arith.constant 0 : index
    %331 = vector.load %arg33[%c0_131, %c0_132] : memref<32x32xf32, #tpu.memory_space<vmem>>, vector<32x32xf32>
    %cst_133 = arith.constant dense<0.000000e+00> : vector<8x32xf32>
    %332 = tpu.matmul %326, %331, %cst_133 {dimension_numbers = #tpu.dot_dimension_numbers<[1], [0], [0], [1], [0, 0, 1, 1], [], []>} : vector<8x32xf32>, vector<32x32xf32>, vector<8x32xf32> -> vector<8x32xf32>
    %c0_134 = arith.constant 0 : index
    %c0_135 = arith.constant 0 : index
    %333 = vector.load %arg34[%c0_134, %c0_135] : memref<1x32xf32, #tpu.memory_space<vmem>>, vector<1x32xf32>
    %334 = vector.broadcast %333 : vector<1x32xf32> to vector<8x32xf32>
    %335 = arith.addf %332, %334 : vector<8x32xf32>
    %cst_136 = arith.constant 0.000000e+00 : f32
    %336 = vector.broadcast %cst_136 : f32 to vector<8x32xf32>
    %337 = arith.maximumf %335, %336 : vector<8x32xf32>
    %c0_137 = arith.constant 0 : index
    %c0_138 = arith.constant 0 : index
    %338 = vector.load %arg35[%c0_137, %c0_138] : memref<32x128xf32, #tpu.memory_space<vmem>>, vector<32x128xf32>
    %cst_139 = arith.constant dense<0.000000e+00> : vector<8x128xf32>
    %339 = tpu.matmul %326, %338, %cst_139 {dimension_numbers = #tpu.dot_dimension_numbers<[1], [0], [0], [1], [0, 0, 1, 1], [], []>} : vector<8x32xf32>, vector<32x128xf32>, vector<8x128xf32> -> vector<8x128xf32>
    %c0_140 = arith.constant 0 : index
    %c0_141 = arith.constant 0 : index
    %340 = vector.load %arg36[%c0_140, %c0_141] : memref<32x128xf32, #tpu.memory_space<vmem>>, vector<32x128xf32>
    %cst_142 = arith.constant dense<0.000000e+00> : vector<8x128xf32>
    %341 = tpu.matmul %337, %340, %cst_142 {dimension_numbers = #tpu.dot_dimension_numbers<[1], [0], [0], [1], [0, 0, 1, 1], [], []>} : vector<8x32xf32>, vector<32x128xf32>, vector<8x128xf32> -> vector<8x128xf32>
    %342 = arith.addf %339, %341 : vector<8x128xf32>
    %c0_143 = arith.constant 0 : index
    %c0_144 = arith.constant 0 : index
    %343 = vector.load %arg37[%c0_143, %c0_144] : memref<1x128xf32, #tpu.memory_space<vmem>>, vector<1x128xf32>
    %344 = vector.broadcast %343 : vector<1x128xf32> to vector<8x128xf32>
    %345 = arith.addf %342, %344 : vector<8x128xf32>
    %346 = arith.addf %345, %15 : vector<8x128xf32>
    %c0_145 = arith.constant 0 : index
    %c0_146 = arith.constant 0 : index
    %c0_147 = arith.constant 0 : index
    %347 = vector.load %arg39[%c0_145, %c0_146, %c0_147] : memref<1x8x128xf32, #tpu.memory_space<vmem>>, vector<1x8x128xf32>
    %348 = vector.shape_cast %347 : vector<1x8x128xf32> to vector<8x128xf32>
    %349 = vector.shape_cast %346 : vector<8x128xf32> to vector<1x8x128xf32>
    tpu.vector_store %arg39[%c0_145, %c0_146, %c0_147], %349 {strides = array<i32>} : memref<1x8x128xf32, #tpu.memory_space<vmem>>, vector<1x8x128xf32>,
    return
  }
  func.func @transform_0(%arg0: i32) -> (i32, i32, i32) {
    %c0_i32 = arith.constant 0 : i32
    %c0_i32_0 = arith.constant 0 : i32
    %c0_i32_1 = arith.constant 0 : i32
    return %arg0, %c0_i32, %c0_i32_0 : i32, i32, i32
  }
  func.func @transform_1(%arg0: i32) -> (i32, i32, i32) {
    %c0_i32 = arith.constant 0 : i32
    %c0_i32_0 = arith.constant 0 : i32
    %c0_i32_1 = arith.constant 0 : i32
    return %arg0, %c0_i32, %c0_i32_0 : i32, i32, i32
  }
  func.func @transform_2(%arg0: i32) -> (i32, i32, i32) {
    %c0_i32 = arith.constant 0 : i32
    %c0_i32_0 = arith.constant 0 : i32
    %c0_i32_1 = arith.constant 0 : i32
    return %arg0, %c0_i32, %c0_i32_0 : i32, i32, i32
  }
  func.func @transform_3(%arg0: i32) -> (i32, i32, i32) {
    %c0_i32 = arith.constant 0 : i32
    %c0_i32_0 = arith.constant 0 : i32
    %c0_i32_1 = arith.constant 0 : i32
    return %arg0, %c0_i32, %c0_i32_0 : i32, i32, i32
  }
  func.func @transform_4(%arg0: i32) -> (i32, i32) {
    %c0_i32 = arith.constant 0 : i32
    %c0_i32_0 = arith.constant 0 : i32
    %c0_i32_1 = arith.constant 0 : i32
    return %c0_i32, %c0_i32_0 : i32, i32
  }
  func.func @transform_5(%arg0: i32) -> (i32, i32) {
    %c0_i32 = arith.constant 0 : i32
    %c0_i32_0 = arith.constant 0 : i32
    %c0_i32_1 = arith.constant 0 : i32
    return %c0_i32, %c0_i32_0 : i32, i32
  }
  func.func @transform_6(%arg0: i32) -> (i32, i32) {
    %c0_i32 = arith.constant 0 : i32
    %c0_i32_0 = arith.constant 0 : i32
    %c0_i32_1 = arith.constant 0 : i32
    return %c0_i32, %c0_i32_0 : i32, i32
  }
  func.func @transform_7(%arg0: i32) -> (i32, i32) {
    %c0_i32 = arith.constant 0 : i32
    %c0_i32_0 = arith.constant 0 : i32
    %c0_i32_1 = arith.constant 0 : i32
    return %c0_i32, %c0_i32_0 : i32, i32
  }
  func.func @transform_8(%arg0: i32) -> (i32, i32) {
    %c0_i32 = arith.constant 0 : i32
    %c0_i32_0 = arith.constant 0 : i32
    %c0_i32_1 = arith.constant 0 : i32
    return %c0_i32, %c0_i32_0 : i32, i32
  }
  func.func @transform_9(%arg0: i32) -> (i32, i32) {
    %c0_i32 = arith.constant 0 : i32
    %c0_i32_0 = arith.constant 0 : i32
    %c0_i32_1 = arith.constant 0 : i32
    return %c0_i32, %c0_i32_0 : i32, i32
  }
  func.func @transform_10(%arg0: i32) -> (i32, i32) {
    %c0_i32 = arith.constant 0 : i32
    %c0_i32_0 = arith.constant 0 : i32
    %c0_i32_1 = arith.constant 0 : i32
    return %c0_i32, %c0_i32_0 : i32, i32
  }
  func.func @transform_11(%arg0: i32) -> (i32, i32) {
    %c0_i32 = arith.constant 0 : i32
    %c0_i32_0 = arith.constant 0 : i32
    %c0_i32_1 = arith.constant 0 : i32
    return %c0_i32, %c0_i32_0 : i32, i32
  }
  func.func @transform_12(%arg0: i32) -> (i32, i32) {
    %c0_i32 = arith.constant 0 : i32
    %c0_i32_0 = arith.constant 0 : i32
    %c0_i32_1 = arith.constant 0 : i32
    return %c0_i32, %c0_i32_0 : i32, i32
  }
  func.func @transform_13(%arg0: i32) -> (i32, i32) {
    %c0_i32 = arith.constant 0 : i32
    %c0_i32_0 = arith.constant 0 : i32
    %c0_i32_1 = arith.constant 0 : i32
    return %c0_i32, %c0_i32_0 : i32, i32
  }
  func.func @transform_14(%arg0: i32) -> (i32, i32) {
    %c0_i32 = arith.constant 0 : i32
    %c0_i32_0 = arith.constant 0 : i32
    %c0_i32_1 = arith.constant 0 : i32
    return %c0_i32, %c0_i32_0 : i32, i32
  }
  func.func @transform_15(%arg0: i32) -> (i32, i32) {
    %c0_i32 = arith.constant 0 : i32
    %c0_i32_0 = arith.constant 0 : i32
    %c0_i32_1 = arith.constant 0 : i32
    return %c0_i32, %c0_i32_0 : i32, i32
  }
  func.func @transform_16(%arg0: i32) -> (i32, i32) {
    %c0_i32 = arith.constant 0 : i32
    %c0_i32_0 = arith.constant 0 : i32
    %c0_i32_1 = arith.constant 0 : i32
    return %c0_i32, %c0_i32_0 : i32, i32
  }
  func.func @transform_17(%arg0: i32) -> (i32, i32) {
    %c0_i32 = arith.constant 0 : i32
    %c0_i32_0 = arith.constant 0 : i32
    %c0_i32_1 = arith.constant 0 : i32
    return %c0_i32, %c0_i32_0 : i32, i32
  }
  func.func @transform_18(%arg0: i32) -> (i32, i32) {
    %c0_i32 = arith.constant 0 : i32
    %c0_i32_0 = arith.constant 0 : i32
    %c0_i32_1 = arith.constant 0 : i32
    return %c0_i32, %c0_i32_0 : i32, i32
  }
  func.func @transform_19(%arg0: i32) -> (i32, i32) {
    %c0_i32 = arith.constant 0 : i32
    %c0_i32_0 = arith.constant 0 : i32
    %c0_i32_1 = arith.constant 0 : i32
    return %c0_i32, %c0_i32_0 : i32, i32
  }
  func.func @transform_20(%arg0: i32) -> (i32, i32) {
    %c0_i32 = arith.constant 0 : i32
    %c0_i32_0 = arith.constant 0 : i32
    %c0_i32_1 = arith.constant 0 : i32
    return %c0_i32, %c0_i32_0 : i32, i32
  }
  func.func @transform_21(%arg0: i32) -> (i32, i32) {
    %c0_i32 = arith.constant 0 : i32
    %c0_i32_0 = arith.constant 0 : i32
    %c0_i32_1 = arith.constant 0 : i32
    return %c0_i32, %c0_i32_0 : i32, i32
  }
  func.func @transform_22(%arg0: i32) -> (i32, i32) {
    %c0_i32 = arith.constant 0 : i32
    %c0_i32_0 = arith.constant 0 : i32
    %c0_i32_1 = arith.constant 0 : i32
    return %c0_i32, %c0_i32_0 : i32, i32
  }
  func.func @transform_23(%arg0: i32) -> (i32, i32) {
    %c0_i32 = arith.constant 0 : i32
    %c0_i32_0 = arith.constant 0 : i32
    %c0_i32_1 = arith.constant 0 : i32
    return %c0_i32, %c0_i32_0 : i32, i32
  }
  func.func @transform_24(%arg0: i32) -> (i32, i32) {
    %c0_i32 = arith.constant 0 : i32
    %c0_i32_0 = arith.constant 0 : i32
    %c0_i32_1 = arith.constant 0 : i32
    return %c0_i32, %c0_i32_0 : i32, i32
  }
  func.func @transform_25(%arg0: i32) -> (i32, i32) {
    %c0_i32 = arith.constant 0 : i32
    %c0_i32_0 = arith.constant 0 : i32
    %c0_i32_1 = arith.constant 0 : i32
    return %c0_i32, %c0_i32_0 : i32, i32
  }
  func.func @transform_26(%arg0: i32) -> (i32, i32) {
    %c0_i32 = arith.constant 0 : i32
    %c0_i32_0 = arith.constant 0 : i32
    %c0_i32_1 = arith.constant 0 : i32
    return %c0_i32, %c0_i32_0 : i32, i32
  }
  func.func @transform_27(%arg0: i32) -> (i32, i32) {
    %c0_i32 = arith.constant 0 : i32
    %c0_i32_0 = arith.constant 0 : i32
    %c0_i32_1 = arith.constant 0 : i32
    return %c0_i32, %c0_i32_0 : i32, i32
  }
  func.func @transform_28(%arg0: i32) -> (i32, i32) {
    %c0_i32 = arith.constant 0 : i32
    %c0_i32_0 = arith.constant 0 : i32
    %c0_i32_1 = arith.constant 0 : i32
    return %c0_i32, %c0_i32_0 : i32, i32
  }
  func.func @transform_29(%arg0: i32) -> (i32, i32) {
    %c0_i32 = arith.constant 0 : i32
    %c0_i32_0 = arith.constant 0 : i32
    %c0_i32_1 = arith.constant 0 : i32
    return %c0_i32, %c0_i32_0 : i32, i32
  }
  func.func @transform_30(%arg0: i32) -> (i32, i32) {
    %c0_i32 = arith.constant 0 : i32
    %c0_i32_0 = arith.constant 0 : i32
    %c0_i32_1 = arith.constant 0 : i32
    return %c0_i32, %c0_i32_0 : i32, i32
  }
  func.func @transform_31(%arg0: i32) -> (i32, i32) {
    %c0_i32 = arith.constant 0 : i32
    %c0_i32_0 = arith.constant 0 : i32
    %c0_i32_1 = arith.constant 0 : i32
    return %c0_i32, %c0_i32_0 : i32, i32
  }
  func.func @transform_32(%arg0: i32) -> (i32, i32) {
    %c0_i32 = arith.constant 0 : i32
    %c0_i32_0 = arith.constant 0 : i32
    %c0_i32_1 = arith.constant 0 : i32
    return %c0_i32, %c0_i32_0 : i32, i32
  }
  func.func @transform_33(%arg0: i32) -> (i32, i32) {
    %c0_i32 = arith.constant 0 : i32
    %c0_i32_0 = arith.constant 0 : i32
    %c0_i32_1 = arith.constant 0 : i32
    return %c0_i32, %c0_i32_0 : i32, i32
  }
  func.func @transform_34(%arg0: i32) -> (i32, i32) {
    %c0_i32 = arith.constant 0 : i32
    %c0_i32_0 = arith.constant 0 : i32
    %c0_i32_1 = arith.constant 0 : i32
    return %c0_i32, %c0_i32_0 : i32, i32
  }
  func.func @transform_35(%arg0: i32) -> (i32, i32) {
    %c0_i32 = arith.constant 0 : i32
    %c0_i32_0 = arith.constant 0 : i32
    %c0_i32_1 = arith.constant 0 : i32
    return %c0_i32, %c0_i32_0 : i32, i32
  }
  func.func @transform_36(%arg0: i32) -> (i32, i32) {
    %c0_i32 = arith.constant 0 : i32
    %c0_i32_0 = arith.constant 0 : i32
    %c0_i32_1 = arith.constant 0 : i32
    return %c0_i32, %c0_i32_0 : i32, i32
  }
  func.func @transform_37(%arg0: i32) -> (i32, i32, i32) {
    %c0_i32 = arith.constant 0 : i32
    %c0_i32_0 = arith.constant 0 : i32
    %c0_i32_1 = arith.constant 0 : i32
    return %arg0, %c0_i32, %c0_i32_0 : i32, i32, i32
  }
  func.func @transform_38(%arg0: i32) -> (i32, i32, i32) {
    %c0_i32 = arith.constant 0 : i32
    %c0_i32_0 = arith.constant 0 : i32
    %c0_i32_1 = arith.constant 0 : i32
    return %arg0, %c0_i32, %c0_i32_0 : i32, i32, i32
  }
}

</mosaic_0001>

<llo_original>
// kernel: transformer_decoder.3
$region0: #{transformer_decoder.3}
  #allocation0 [shape = 'u32[]', space=smem, size = 0x4, offset = 0x4, fixed_abs, tag = 'smem constant byte address 0x4 - core index']
  #allocation1 [shape = 'u32[144,128]{1,0:T(1,128)}', space=vmem, size = 0x12000, scoped, tag = 'internal scratch']
  %s0 = inlined_call_operand.smem [shape: u32[39], index: -1, kind: input, shape index: {}]
  %s1 = sld [smem:[%s0]]
  %s2 = scalar_lea.smem %s0, 1
  %s3 = sld [smem:[%s2]]
  %s4 = scalar_lea.smem %s0, 2
  %s5 = sld [smem:[%s4]]
  %s6 = scalar_lea.smem %s0, 3
  %s7 = sld [smem:[%s6]]
  %s8 = scalar_lea.smem %s0, 4
  %s9 = sld [smem:[%s8]]
  %s10 = scalar_lea.smem %s0, 5
  %s11 = sld [smem:[%s10]]
  %s12 = scalar_lea.smem %s0, 6
  %s13 = sld [smem:[%s12]]
  %s14 = scalar_lea.smem %s0, 7
  %s15 = sld [smem:[%s14]]
  %s16 = scalar_lea.smem %s0, 8
  %s17 = sld [smem:[%s16]]
  %s18 = scalar_lea.smem %s0, 9
  %s19 = sld [smem:[%s18]]
  %s20 = scalar_lea.smem %s0, 10
  %s21 = sld [smem:[%s20]]
  %s22 = scalar_lea.smem %s0, 11
  %s23 = sld [smem:[%s22]]
  %s24 = scalar_lea.smem %s0, 12
  %s25 = sld [smem:[%s24]]
  %s26 = scalar_lea.smem %s0, 13
  %s27 = sld [smem:[%s26]]
  %s28 = scalar_lea.smem %s0, 14
  %s29 = sld [smem:[%s28]]
  %s30 = scalar_lea.smem %s0, 15
  %s31 = sld [smem:[%s30]]
  %s32 = scalar_lea.smem %s0, 16
  %s33 = sld [smem:[%s32]]
  %s34 = scalar_lea.smem %s0, 17
  %s35 = sld [smem:[%s34]]
  %s36 = scalar_lea.smem %s0, 18
  %s37 = sld [smem:[%s36]]
  %s38 = scalar_lea.smem %s0, 19
  %s39 = sld [smem:[%s38]]
  %s40 = scalar_lea.smem %s0, 20
  %s41 = sld [smem:[%s40]]
  %s42 = scalar_lea.smem %s0, 21
  %s43 = sld [smem:[%s42]]
  %s44 = scalar_lea.smem %s0, 22
  %s45 = sld [smem:[%s44]]
  %s46 = scalar_lea.smem %s0, 23
  %s47 = sld [smem:[%s46]]
  %s48 = scalar_lea.smem %s0, 24
  %s49 = sld [smem:[%s48]]
  %s50 = scalar_lea.smem %s0, 25
  %s51 = sld [smem:[%s50]]
  %s52 = scalar_lea.smem %s0, 26
  %s53 = sld [smem:[%s52]]
  %s54 = scalar_lea.smem %s0, 27
  %s55 = sld [smem:[%s54]]
  %s56 = scalar_lea.smem %s0, 28
  %s57 = sld [smem:[%s56]]
  %s58 = scalar_lea.smem %s0, 29
  %s59 = sld [smem:[%s58]]
  %s60 = scalar_lea.smem %s0, 30
  %s61 = sld [smem:[%s60]]
  %s62 = scalar_lea.smem %s0, 31
  %s63 = sld [smem:[%s62]]
  %s64 = scalar_lea.smem %s0, 32
  %s65 = sld [smem:[%s64]]
  %s66 = scalar_lea.smem %s0, 33
  %s67 = sld [smem:[%s66]]
  %s68 = scalar_lea.smem %s0, 34
  %s69 = sld [smem:[%s68]]
  %s70 = scalar_lea.smem %s0, 35
  %s71 = sld [smem:[%s70]]
  %s72 = scalar_lea.smem %s0, 36
  %s73 = sld [smem:[%s72]]
  %s74 = scalar_lea.smem %s0, 37
  %s75 = sld [smem:[%s74]]
  %s76 = scalar_lea.smem %s0, 38
  %s77 = sld [smem:[%s76]]
  %78 = xla_tuple %s75, %s77
  %s79 = sld [smem:[#allocation0]]
  $region213: #{transformer_decoder.3} parent=0
    _
  %s81 = ssub.s32 1, %s79
  %s82 = scalar_select 0, %s81, %s79
  $region1: #{transformer_decoder.3} parent=0
    #allocation2 [shape = 'u8[512]{0}', space=vmem, size = 0x400, scoped, tag = 'input window, operand 27, single buffered']
    #allocation3 [shape = 's32[2]{0}', space=sflag, size = 0x8, scoped, tag = 'scoped memory for transformer_decoder.3']
    #allocation4 [shape = 'u8[512]{0}', space=vmem, size = 0x400, scoped, tag = 'input window, operand 29, single buffered']
    #allocation5 [shape = 's32[1]{0}', space=sflag, size = 0x4, scoped, tag = 'scoped memory for transformer_decoder.3']
    #allocation6 [shape = 'u8[512]{0}', space=vmem, size = 0x400, scoped, tag = 'input window, operand 30, single buffered']
    #allocation7 [shape = 'u8[512]{0}', space=vmem, size = 0x400, scoped, tag = 'input window, operand 31, single buffered']
    #allocation8 [shape = 's32[1]{0}', space=sflag, size = 0x4, scoped, tag = 'scoped memory for transformer_decoder.3']
    #allocation9 [shape = 'u8[512]{0}', space=vmem, size = 0x400, scoped, tag = 'input window, operand 33, single buffered']
    #allocation10 [shape = 'u8[512]{0}', space=vmem, size = 0x400, scoped, tag = 'input window, operand 36, single buffered']
    #allocation11 [shape = 's32[1]{0}', space=sflag, size = 0x4, scoped, tag = 'scoped memory for transformer_decoder.3']
    %83 = vsyncpa [#allocation3], 0
    %84 = vsyncpa [#allocation5], 0
    %85 = vsyncpa [#allocation8], 0
    %86 = vsyncpa [#allocation11], 0
    loop: start=0, step=1, limit=4
    $region2: #{transformer_decoder.3} parent=1 // loop_pre_header
      _
    $region3: #{transformer_decoder.3} parent=1 // loop_header
      %s88 = sphi 0, %s92
      %p89 = scmp.ge.s32.totalorder %s88, 4
      %s98 = sphi 0, %s100
      %s101 = sphi 0, %s98
      %s102 = sphi 0, %s101
      %s118 = sphi 0, %s102
      %s124 = sphi 0, %s126
      %s127 = sphi 0, %s124
      %s128 = sphi 0, %s127
      %s144 = sphi 0, %s128
      %s150 = sphi 0, %s152
      %s153 = sphi 0, %s150
      %s154 = sphi 0, %s153
      %s170 = sphi 0, %s154
      %s176 = sphi 0, %s178
      %s179 = sphi 0, %s176
      %s180 = sphi 0, %s179
      %s196 = sphi 0, %s180
      %s200 = sphi 0, %s200
      %s202 = sphi 0, %s200
      %s203 = sphi 0, %s202
      %s217 = sphi 0, %s203
      %s221 = sphi 0, %s221
      %s223 = sphi 0, %s221
      %s224 = sphi 0, %s223
      %s238 = sphi 0, %s224
      %s242 = sphi 0, %s242
      %s244 = sphi 0, %s242
      %s245 = sphi 0, %s244
      %s259 = sphi 0, %s245
      %s263 = sphi 0, %s263
      %s265 = sphi 0, %s263
      %s266 = sphi 0, %s265
      %s280 = sphi 0, %s266
      %s284 = sphi 0, %s284
      %s286 = sphi 0, %s284
      %s287 = sphi 0, %s286
      %s301 = sphi 0, %s287
      %s305 = sphi 0, %s305
      %s307 = sphi 0, %s305
      %s308 = sphi 0, %s307
      %s322 = sphi 0, %s308
      %s326 = sphi 0, %s326
      %s328 = sphi 0, %s326
      %s329 = sphi 0, %s328
      %s343 = sphi 0, %s329
      %s347 = sphi 0, %s347
      %s349 = sphi 0, %s347
      %s350 = sphi 0, %s349
      %s364 = sphi 0, %s350
      %s368 = sphi 0, %s368
      %s370 = sphi 0, %s368
      %s371 = sphi 0, %s370
      %s385 = sphi 0, %s371
      %s389 = sphi 0, %s389
      %s391 = sphi 0, %s389
      %s392 = sphi 0, %s391
      %s406 = sphi 0, %s392
      %s410 = sphi 0, %s410
      %s412 = sphi 0, %s410
      %s413 = sphi 0, %s412
      %s427 = sphi 0, %s413
      %s431 = sphi 0, %s431
      %s433 = sphi 0, %s431
      %s434 = sphi 0, %s433
      %s448 = sphi 0, %s434
      %s452 = sphi 0, %s452
      %s454 = sphi 0, %s452
      %s455 = sphi 0, %s454
      %s469 = sphi 0, %s455
      %s473 = sphi 0, %s473
      %s475 = sphi 0, %s473
      %s476 = sphi 0, %s475
      %s490 = sphi 0, %s476
      %s494 = sphi 0, %s494
      %s496 = sphi 0, %s494
      %s497 = sphi 0, %s496
      %s511 = sphi 0, %s497
      %s515 = sphi 0, %s515
      %s517 = sphi 0, %s515
      %s518 = sphi 0, %s517
      %s532 = sphi 0, %s518
      %s536 = sphi 0, %s536
      %s538 = sphi 0, %s536
      %s539 = sphi 0, %s538
      %s553 = sphi 0, %s539
      %s557 = sphi 0, %s557
      %s559 = sphi 0, %s557
      %s560 = sphi 0, %s559
      %s574 = sphi 0, %s560
      %s578 = sphi 0, %s578
      %s580 = sphi 0, %s578
      %s581 = sphi 0, %s580
      %s595 = sphi 0, %s581
      %s599 = sphi 0, %s599
      %s601 = sphi 0, %s599
      %s602 = sphi 0, %s601
      %s616 = sphi 0, %s602
      %s620 = sphi 0, %s620
      %s622 = sphi 0, %s620
      %s623 = sphi 0, %s622
      %s637 = sphi 0, %s623
      %s641 = sphi 0, %s641
      %s643 = sphi 0, %s641
      %s644 = sphi 0, %s643
      %s658 = sphi 0, %s644
      %s662 = sphi 0, %s662
      %s664 = sphi 0, %s662
      %s665 = sphi 0, %s664
      %s679 = sphi 0, %s665
      %s683 = sphi 0, %s683
      %s685 = sphi 0, %s683
      %s686 = sphi 0, %s685
      %s700 = sphi 0, %s686
      %s704 = sphi 0, %s704
      %s706 = sphi 0, %s704
      %s707 = sphi 0, %s706
      %s721 = sphi 0, %s707
      %s725 = sphi 0, %s725
      %s727 = sphi 0, %s725
      %s728 = sphi 0, %s727
      %s742 = sphi 0, %s728
      %s746 = sphi 0, %s746
      %s748 = sphi 0, %s746
      %s749 = sphi 0, %s748
      %s763 = sphi 0, %s749
      %s767 = sphi 0, %s767
      %s769 = sphi 0, %s767
      %s770 = sphi 0, %s769
      %s784 = sphi 0, %s770
      %s788 = sphi 0, %s788
      %s790 = sphi 0, %s788
      %s791 = sphi 0, %s790
      %s805 = sphi 0, %s791
      %s809 = sphi 0, %s809
      %s811 = sphi 0, %s809
      %s812 = sphi 0, %s811
      %s826 = sphi 0, %s812
      %s830 = sphi 0, %s830
      %s832 = sphi 0, %s830
      %s833 = sphi 0, %s832
      %s847 = sphi 0, %s833
      %s851 = sphi 0, %s851
      %s853 = sphi 0, %s851
      %s854 = sphi 0, %s853
      %s868 = sphi 0, %s854
      %s872 = sphi 0, %s872
      %s874 = sphi 0, %s872
      %s875 = sphi 0, %s874
      %s889 = sphi 0, %s875
      %s895 = sphi 0, %s897
      %s898 = sphi 0, %s895
      %s899 = sphi 0, %s898
      %s915 = sphi 0, %s899
      %s921 = sphi 0, %s923
      %s924 = sphi 0, %s921
      %s925 = sphi 0, %s924
      %s941 = sphi 0, %s925
    $region4: #{transformer_decoder.3} parent=1 // loop_header_branch
      %91 = sbr.rel (%p89) target = $region8
    $region5: #{transformer_decoder.3} parent=1 // loop_body
      %s93 = ssub.s32 %s88, 1
      %s94 = ssub.s32 %s88, 2
      %s95 = sadd.s32 %s88, 1
      %s96 = ssub.s32 %s88, %s95
      %p97 = scmp.eq.s32.totalorder %s96, 0
      %s99 = sadd.s32 %s98, 1
      %s100 = scalar_select %p97, %s98, %s99
      %p103 = pneg %p97
      %p104 = scmp.eq.s32.totalorder %s88, 1
      %p105 = por %p103, %p104
      %p106 = scmp.ne.s32.totalorder %s98, %s101
      %p107 = scmp.eq.s32.totalorder %s88, 0
      %p108 = por %p106, %p107
      %p109 = scmp.ne.s32.totalorder %s98, %s101
      %p110 = scmp.eq.s32.totalorder %s93, 1
      %p111 = por %p109, %p110
      %p112 = scmp.ne.s32.totalorder %s101, %s102
      %p113 = scmp.eq.s32.totalorder %s93, 0
      %p114 = por %p112, %p113
      %p115 = scmp.ne.s32.totalorder %s101, %s102
      %p116 = scmp.eq.s32.totalorder %s94, 1
      %p117 = por %p115, %p116
      %p119 = scmp.ne.s32.totalorder %s102, %s118
      %p120 = scmp.eq.s32.totalorder %s94, 0
      %p121 = por %p119, %p120
      %s122 = ssub.s32 %s88, %s95
      %p123 = scmp.eq.s32.totalorder %s122, 0
      %s125 = sadd.s32 %s124, 1
      %s126 = scalar_select %p123, %s124, %s125
      %p129 = pneg %p123
      %p130 = scmp.eq.s32.totalorder %s88, 1
      %p131 = por %p129, %p130
      %p132 = scmp.ne.s32.totalorder %s124, %s127
      %p133 = scmp.eq.s32.totalorder %s88, 0
      %p134 = por %p132, %p133
      %p135 = scmp.ne.s32.totalorder %s124, %s127
      %p136 = scmp.eq.s32.totalorder %s93, 1
      %p137 = por %p135, %p136
      %p138 = scmp.ne.s32.totalorder %s127, %s128
      %p139 = scmp.eq.s32.totalorder %s93, 0
      %p140 = por %p138, %p139
      %p141 = scmp.ne.s32.totalorder %s127, %s128
      %p142 = scmp.eq.s32.totalorder %s94, 1
      %p143 = por %p141, %p142
      %p145 = scmp.ne.s32.totalorder %s128, %s144
      %p146 = scmp.eq.s32.totalorder %s94, 0
      %p147 = por %p145, %p146
      %s148 = ssub.s32 %s88, %s95
      %p149 = scmp.eq.s32.totalorder %s148, 0
      %s151 = sadd.s32 %s150, 1
      %s152 = scalar_select %p149, %s150, %s151
      %p155 = pneg %p149
      %p156 = scmp.eq.s32.totalorder %s88, 1
      %p157 = por %p155, %p156
      %p158 = scmp.ne.s32.totalorder %s150, %s153
      %p159 = scmp.eq.s32.totalorder %s88, 0
      %p160 = por %p158, %p159
      %p161 = scmp.ne.s32.totalorder %s150, %s153
      %p162 = scmp.eq.s32.totalorder %s93, 1
      %p163 = por %p161, %p162
      %p164 = scmp.ne.s32.totalorder %s153, %s154
      %p165 = scmp.eq.s32.totalorder %s93, 0
      %p166 = por %p164, %p165
      %p167 = scmp.ne.s32.totalorder %s153, %s154
      %p168 = scmp.eq.s32.totalorder %s94, 1
      %p169 = por %p167, %p168
      %p171 = scmp.ne.s32.totalorder %s154, %s170
      %p172 = scmp.eq.s32.totalorder %s94, 0
      %p173 = por %p171, %p172
      %s174 = ssub.s32 %s88, %s95
      %p175 = scmp.eq.s32.totalorder %s174, 0
      %s177 = sadd.s32 %s176, 1
      %s178 = scalar_select %p175, %s176, %s177
      %p181 = pneg %p175
      %p182 = scmp.eq.s32.totalorder %s88, 1
      %p183 = por %p181, %p182
      %p184 = scmp.ne.s32.totalorder %s176, %s179
      %p185 = scmp.eq.s32.totalorder %s88, 0
      %p186 = por %p184, %p185
      %p187 = scmp.ne.s32.totalorder %s176, %s179
      %p188 = scmp.eq.s32.totalorder %s93, 1
      %p189 = por %p187, %p188
      %p190 = scmp.ne.s32.totalorder %s179, %s180
      %p191 = scmp.eq.s32.totalorder %s93, 0
      %p192 = por %p190, %p191
      %p193 = scmp.ne.s32.totalorder %s179, %s180
      %p194 = scmp.eq.s32.totalorder %s94, 1
      %p195 = por %p193, %p194
      %p197 = scmp.ne.s32.totalorder %s180, %s196
      %p198 = scmp.eq.s32.totalorder %s94, 0
      %p199 = por %p197, %p198
      %s201 = sadd.s32 %s200, 1
      %p204 = scmp.eq.s32.totalorder %s88, 1
      %p205 = scmp.ne.s32.totalorder %s200, %s202
      %p206 = scmp.eq.s32.totalorder %s88, 0
      %p207 = por %p205, %p206
      %p208 = scmp.ne.s32.totalorder %s200, %s202
      %p209 = scmp.eq.s32.totalorder %s93, 1
      %p210 = por %p208, %p209
      %p211 = scmp.ne.s32.totalorder %s202, %s203
      %p212 = scmp.eq.s32.totalorder %s93, 0
      %p213 = por %p211, %p212
      %p214 = scmp.ne.s32.totalorder %s202, %s203
      %p215 = scmp.eq.s32.totalorder %s94, 1
      %p216 = por %p214, %p215
      %p218 = scmp.ne.s32.totalorder %s203, %s217
      %p219 = scmp.eq.s32.totalorder %s94, 0
      %p220 = por %p218, %p219
      %s222 = sadd.s32 %s221, 1
      %p225 = scmp.eq.s32.totalorder %s88, 1
      %p226 = scmp.ne.s32.totalorder %s221, %s223
      %p227 = scmp.eq.s32.totalorder %s88, 0
      %p228 = por %p226, %p227
      %p229 = scmp.ne.s32.totalorder %s221, %s223
      %p230 = scmp.eq.s32.totalorder %s93, 1
      %p231 = por %p229, %p230
      %p232 = scmp.ne.s32.totalorder %s223, %s224
      %p233 = scmp.eq.s32.totalorder %s93, 0
      %p234 = por %p232, %p233
      %p235 = scmp.ne.s32.totalorder %s223, %s224
      %p236 = scmp.eq.s32.totalorder %s94, 1
      %p237 = por %p235, %p236
      %p239 = scmp.ne.s32.totalorder %s224, %s238
      %p240 = scmp.eq.s32.totalorder %s94, 0
      %p241 = por %p239, %p240
      %s243 = sadd.s32 %s242, 1
      %p246 = scmp.eq.s32.totalorder %s88, 1
      %p247 = scmp.ne.s32.totalorder %s242, %s244
      %p248 = scmp.eq.s32.totalorder %s88, 0
      %p249 = por %p247, %p248
      %p250 = scmp.ne.s32.totalorder %s242, %s244
      %p251 = scmp.eq.s32.totalorder %s93, 1
      %p252 = por %p250, %p251
      %p253 = scmp.ne.s32.totalorder %s244, %s245
      %p254 = scmp.eq.s32.totalorder %s93, 0
      %p255 = por %p253, %p254
      %p256 = scmp.ne.s32.totalorder %s244, %s245
      %p257 = scmp.eq.s32.totalorder %s94, 1
      %p258 = por %p256, %p257
      %p260 = scmp.ne.s32.totalorder %s245, %s259
      %p261 = scmp.eq.s32.totalorder %s94, 0
      %p262 = por %p260, %p261
      %s264 = sadd.s32 %s263, 1
      %p267 = scmp.eq.s32.totalorder %s88, 1
      %p268 = scmp.ne.s32.totalorder %s263, %s265
      %p269 = scmp.eq.s32.totalorder %s88, 0
      %p270 = por %p268, %p269
      %p271 = scmp.ne.s32.totalorder %s263, %s265
      %p272 = scmp.eq.s32.totalorder %s93, 1
      %p273 = por %p271, %p272
      %p274 = scmp.ne.s32.totalorder %s265, %s266
      %p275 = scmp.eq.s32.totalorder %s93, 0
      %p276 = por %p274, %p275
      %p277 = scmp.ne.s32.totalorder %s265, %s266
      %p278 = scmp.eq.s32.totalorder %s94, 1
      %p279 = por %p277, %p278
      %p281 = scmp.ne.s32.totalorder %s266, %s280
      %p282 = scmp.eq.s32.totalorder %s94, 0
      %p283 = por %p281, %p282
      %s285 = sadd.s32 %s284, 1
      %p288 = scmp.eq.s32.totalorder %s88, 1
      %p289 = scmp.ne.s32.totalorder %s284, %s286
      %p290 = scmp.eq.s32.totalorder %s88, 0
      %p291 = por %p289, %p290
      %p292 = scmp.ne.s32.totalorder %s284, %s286
      %p293 = scmp.eq.s32.totalorder %s93, 1
      %p294 = por %p292, %p293
      %p295 = scmp.ne.s32.totalorder %s286, %s287
      %p296 = scmp.eq.s32.totalorder %s93, 0
      %p297 = por %p295, %p296
      %p298 = scmp.ne.s32.totalorder %s286, %s287
      %p299 = scmp.eq.s32.totalorder %s94, 1
      %p300 = por %p298, %p299
      %p302 = scmp.ne.s32.totalorder %s287, %s301
      %p303 = scmp.eq.s32.totalorder %s94, 0
      %p304 = por %p302, %p303
      %s306 = sadd.s32 %s305, 1
      %p309 = scmp.eq.s32.totalorder %s88, 1
      %p310 = scmp.ne.s32.totalorder %s305, %s307
      %p311 = scmp.eq.s32.totalorder %s88, 0
      %p312 = por %p310, %p311
      %p313 = scmp.ne.s32.totalorder %s305, %s307
      %p314 = scmp.eq.s32.totalorder %s93, 1
      %p315 = por %p313, %p314
      %p316 = scmp.ne.s32.totalorder %s307, %s308
      %p317 = scmp.eq.s32.totalorder %s93, 0
      %p318 = por %p316, %p317
      %p319 = scmp.ne.s32.totalorder %s307, %s308
      %p320 = scmp.eq.s32.totalorder %s94, 1
      %p321 = por %p319, %p320
      %p323 = scmp.ne.s32.totalorder %s308, %s322
      %p324 = scmp.eq.s32.totalorder %s94, 0
      %p325 = por %p323, %p324
      %s327 = sadd.s32 %s326, 1
      %p330 = scmp.eq.s32.totalorder %s88, 1
      %p331 = scmp.ne.s32.totalorder %s326, %s328
      %p332 = scmp.eq.s32.totalorder %s88, 0
      %p333 = por %p331, %p332
      %p334 = scmp.ne.s32.totalorder %s326, %s328
      %p335 = scmp.eq.s32.totalorder %s93, 1
      %p336 = por %p334, %p335
      %p337 = scmp.ne.s32.totalorder %s328, %s329
      %p338 = scmp.eq.s32.totalorder %s93, 0
      %p339 = por %p337, %p338
      %p340 = scmp.ne.s32.totalorder %s328, %s329
      %p341 = scmp.eq.s32.totalorder %s94, 1
      %p342 = por %p340, %p341
      %p344 = scmp.ne.s32.totalorder %s329, %s343
      %p345 = scmp.eq.s32.totalorder %s94, 0
      %p346 = por %p344, %p345
      %s348 = sadd.s32 %s347, 1
      %p351 = scmp.eq.s32.totalorder %s88, 1
      %p352 = scmp.ne.s32.totalorder %s347, %s349
      %p353 = scmp.eq.s32.totalorder %s88, 0
      %p354 = por %p352, %p353
      %p355 = scmp.ne.s32.totalorder %s347, %s349
      %p356 = scmp.eq.s32.totalorder %s93, 1
      %p357 = por %p355, %p356
      %p358 = scmp.ne.s32.totalorder %s349, %s350
      %p359 = scmp.eq.s32.totalorder %s93, 0
      %p360 = por %p358, %p359
      %p361 = scmp.ne.s32.totalorder %s349, %s350
      %p362 = scmp.eq.s32.totalorder %s94, 1
      %p363 = por %p361, %p362
      %p365 = scmp.ne.s32.totalorder %s350, %s364
      %p366 = scmp.eq.s32.totalorder %s94, 0
      %p367 = por %p365, %p366
      %s369 = sadd.s32 %s368, 1
      %p372 = scmp.eq.s32.totalorder %s88, 1
      %p373 = scmp.ne.s32.totalorder %s368, %s370
      %p374 = scmp.eq.s32.totalorder %s88, 0
      %p375 = por %p373, %p374
      %p376 = scmp.ne.s32.totalorder %s368, %s370
      %p377 = scmp.eq.s32.totalorder %s93, 1
      %p378 = por %p376, %p377
      %p379 = scmp.ne.s32.totalorder %s370, %s371
      %p380 = scmp.eq.s32.totalorder %s93, 0
      %p381 = por %p379, %p380
      %p382 = scmp.ne.s32.totalorder %s370, %s371
      %p383 = scmp.eq.s32.totalorder %s94, 1
      %p384 = por %p382, %p383
      %p386 = scmp.ne.s32.totalorder %s371, %s385
      %p387 = scmp.eq.s32.totalorder %s94, 0
      %p388 = por %p386, %p387
      %s390 = sadd.s32 %s389, 1
      %p393 = scmp.eq.s32.totalorder %s88, 1
      %p394 = scmp.ne.s32.totalorder %s389, %s391
      %p395 = scmp.eq.s32.totalorder %s88, 0
      %p396 = por %p394, %p395
      %p397 = scmp.ne.s32.totalorder %s389, %s391
      %p398 = scmp.eq.s32.totalorder %s93, 1
      %p399 = por %p397, %p398
      %p400 = scmp.ne.s32.totalorder %s391, %s392
      %p401 = scmp.eq.s32.totalorder %s93, 0
      %p402 = por %p400, %p401
      %p403 = scmp.ne.s32.totalorder %s391, %s392
      %p404 = scmp.eq.s32.totalorder %s94, 1
      %p405 = por %p403, %p404
      %p407 = scmp.ne.s32.totalorder %s392, %s406
      %p408 = scmp.eq.s32.totalorder %s94, 0
      %p409 = por %p407, %p408
      %s411 = sadd.s32 %s410, 1
      %p414 = scmp.eq.s32.totalorder %s88, 1
      %p415 = scmp.ne.s32.totalorder %s410, %s412
      %p416 = scmp.eq.s32.totalorder %s88, 0
      %p417 = por %p415, %p416
      %p418 = scmp.ne.s32.totalorder %s410, %s412
      %p419 = scmp.eq.s32.totalorder %s93, 1
      %p420 = por %p418, %p419
      %p421 = scmp.ne.s32.totalorder %s412, %s413
      %p422 = scmp.eq.s32.totalorder %s93, 0
      %p423 = por %p421, %p422
      %p424 = scmp.ne.s32.totalorder %s412, %s413
      %p425 = scmp.eq.s32.totalorder %s94, 1
      %p426 = por %p424, %p425
      %p428 = scmp.ne.s32.totalorder %s413, %s427
      %p429 = scmp.eq.s32.totalorder %s94, 0
      %p430 = por %p428, %p429
      %s432 = sadd.s32 %s431, 1
      %p435 = scmp.eq.s32.totalorder %s88, 1
      %p436 = scmp.ne.s32.totalorder %s431, %s433
      %p437 = scmp.eq.s32.totalorder %s88, 0
      %p438 = por %p436, %p437
      %p439 = scmp.ne.s32.totalorder %s431, %s433
      %p440 = scmp.eq.s32.totalorder %s93, 1
      %p441 = por %p439, %p440
      %p442 = scmp.ne.s32.totalorder %s433, %s434
      %p443 = scmp.eq.s32.totalorder %s93, 0
      %p444 = por %p442, %p443
      %p445 = scmp.ne.s32.totalorder %s433, %s434
      %p446 = scmp.eq.s32.totalorder %s94, 1
      %p447 = por %p445, %p446
      %p449 = scmp.ne.s32.totalorder %s434, %s448
      %p450 = scmp.eq.s32.totalorder %s94, 0
      %p451 = por %p449, %p450
      %s453 = sadd.s32 %s452, 1
      %p456 = scmp.eq.s32.totalorder %s88, 1
      %p457 = scmp.ne.s32.totalorder %s452, %s454
      %p458 = scmp.eq.s32.totalorder %s88, 0
      %p459 = por %p457, %p458
      %p460 = scmp.ne.s32.totalorder %s452, %s454
      %p461 = scmp.eq.s32.totalorder %s93, 1
      %p462 = por %p460, %p461
      %p463 = scmp.ne.s32.totalorder %s454, %s455
      %p464 = scmp.eq.s32.totalorder %s93, 0
      %p465 = por %p463, %p464
      %p466 = scmp.ne.s32.totalorder %s454, %s455
      %p467 = scmp.eq.s32.totalorder %s94, 1
      %p468 = por %p466, %p467
      %p470 = scmp.ne.s32.totalorder %s455, %s469
      %p471 = scmp.eq.s32.totalorder %s94, 0
      %p472 = por %p470, %p471
      %s474 = sadd.s32 %s473, 1
      %p477 = scmp.eq.s32.totalorder %s88, 1
      %p478 = scmp.ne.s32.totalorder %s473, %s475
      %p479 = scmp.eq.s32.totalorder %s88, 0
      %p480 = por %p478, %p479
      %p481 = scmp.ne.s32.totalorder %s473, %s475
      %p482 = scmp.eq.s32.totalorder %s93, 1
      %p483 = por %p481, %p482
      %p484 = scmp.ne.s32.totalorder %s475, %s476
      %p485 = scmp.eq.s32.totalorder %s93, 0
      %p486 = por %p484, %p485
      %p487 = scmp.ne.s32.totalorder %s475, %s476
      %p488 = scmp.eq.s32.totalorder %s94, 1
      %p489 = por %p487, %p488
      %p491 = scmp.ne.s32.totalorder %s476, %s490
      %p492 = scmp.eq.s32.totalorder %s94, 0
      %p493 = por %p491, %p492
      %s495 = sadd.s32 %s494, 1
      %p498 = scmp.eq.s32.totalorder %s88, 1
      %p499 = scmp.ne.s32.totalorder %s494, %s496
      %p500 = scmp.eq.s32.totalorder %s88, 0
      %p501 = por %p499, %p500
      %p502 = scmp.ne.s32.totalorder %s494, %s496
      %p503 = scmp.eq.s32.totalorder %s93, 1
      %p504 = por %p502, %p503
      %p505 = scmp.ne.s32.totalorder %s496, %s497
      %p506 = scmp.eq.s32.totalorder %s93, 0
      %p507 = por %p505, %p506
      %p508 = scmp.ne.s32.totalorder %s496, %s497
      %p509 = scmp.eq.s32.totalorder %s94, 1
      %p510 = por %p508, %p509
      %p512 = scmp.ne.s32.totalorder %s497, %s511
      %p513 = scmp.eq.s32.totalorder %s94, 0
      %p514 = por %p512, %p513
      %s516 = sadd.s32 %s515, 1
      %p519 = scmp.eq.s32.totalorder %s88, 1
      %p520 = scmp.ne.s32.totalorder %s515, %s517
      %p521 = scmp.eq.s32.totalorder %s88, 0
      %p522 = por %p520, %p521
      %p523 = scmp.ne.s32.totalorder %s515, %s517
      %p524 = scmp.eq.s32.totalorder %s93, 1
      %p525 = por %p523, %p524
      %p526 = scmp.ne.s32.totalorder %s517, %s518
      %p527 = scmp.eq.s32.totalorder %s93, 0
      %p528 = por %p526, %p527
      %p529 = scmp.ne.s32.totalorder %s517, %s518
      %p530 = scmp.eq.s32.totalorder %s94, 1
      %p531 = por %p529, %p530
      %p533 = scmp.ne.s32.totalorder %s518, %s532
      %p534 = scmp.eq.s32.totalorder %s94, 0
      %p535 = por %p533, %p534
      %s537 = sadd.s32 %s536, 1
      %p540 = scmp.eq.s32.totalorder %s88, 1
      %p541 = scmp.ne.s32.totalorder %s536, %s538
      %p542 = scmp.eq.s32.totalorder %s88, 0
      %p543 = por %p541, %p542
      %p544 = scmp.ne.s32.totalorder %s536, %s538
      %p545 = scmp.eq.s32.totalorder %s93, 1
      %p546 = por %p544, %p545
      %p547 = scmp.ne.s32.totalorder %s538, %s539
      %p548 = scmp.eq.s32.totalorder %s93, 0
      %p549 = por %p547, %p548
      %p550 = scmp.ne.s32.totalorder %s538, %s539
      %p551 = scmp.eq.s32.totalorder %s94, 1
      %p552 = por %p550, %p551
      %p554 = scmp.ne.s32.totalorder %s539, %s553
      %p555 = scmp.eq.s32.totalorder %s94, 0
      %p556 = por %p554, %p555
      %s558 = sadd.s32 %s557, 1
      %p561 = scmp.eq.s32.totalorder %s88, 1
      %p562 = scmp.ne.s32.totalorder %s557, %s559
      %p563 = scmp.eq.s32.totalorder %s88, 0
      %p564 = por %p562, %p563
      %p565 = scmp.ne.s32.totalorder %s557, %s559
      %p566 = scmp.eq.s32.totalorder %s93, 1
      %p567 = por %p565, %p566
      %p568 = scmp.ne.s32.totalorder %s559, %s560
      %p569 = scmp.eq.s32.totalorder %s93, 0
      %p570 = por %p568, %p569
      %p571 = scmp.ne.s32.totalorder %s559, %s560
      %p572 = scmp.eq.s32.totalorder %s94, 1
      %p573 = por %p571, %p572
      %p575 = scmp.ne.s32.totalorder %s560, %s574
      %p576 = scmp.eq.s32.totalorder %s94, 0
      %p577 = por %p575, %p576
      %s579 = sadd.s32 %s578, 1
      %p582 = scmp.eq.s32.totalorder %s88, 1
      %p583 = scmp.ne.s32.totalorder %s578, %s580
      %p584 = scmp.eq.s32.totalorder %s88, 0
      %p585 = por %p583, %p584
      %p586 = scmp.ne.s32.totalorder %s578, %s580
      %p587 = scmp.eq.s32.totalorder %s93, 1
      %p588 = por %p586, %p587
      %p589 = scmp.ne.s32.totalorder %s580, %s581
      %p590 = scmp.eq.s32.totalorder %s93, 0
      %p591 = por %p589, %p590
      %p592 = scmp.ne.s32.totalorder %s580, %s581
      %p593 = scmp.eq.s32.totalorder %s94, 1
      %p594 = por %p592, %p593
      %p596 = scmp.ne.s32.totalorder %s581, %s595
      %p597 = scmp.eq.s32.totalorder %s94, 0
      %p598 = por %p596, %p597
      %s600 = sadd.s32 %s599, 1
      %p603 = scmp.eq.s32.totalorder %s88, 1
      %p604 = scmp.ne.s32.totalorder %s599, %s601
      %p605 = scmp.eq.s32.totalorder %s88, 0
      %p606 = por %p604, %p605
      %p607 = scmp.ne.s32.totalorder %s599, %s601
      %p608 = scmp.eq.s32.totalorder %s93, 1
      %p609 = por %p607, %p608
      %p610 = scmp.ne.s32.totalorder %s601, %s602
      %p611 = scmp.eq.s32.totalorder %s93, 0
      %p612 = por %p610, %p611
      %p613 = scmp.ne.s32.totalorder %s601, %s602
      %p614 = scmp.eq.s32.totalorder %s94, 1
      %p615 = por %p613, %p614
      %p617 = scmp.ne.s32.totalorder %s602, %s616
      %p618 = scmp.eq.s32.totalorder %s94, 0
      %p619 = por %p617, %p618
      %s621 = sadd.s32 %s620, 1
      %p624 = scmp.eq.s32.totalorder %s88, 1
      %p625 = scmp.ne.s32.totalorder %s620, %s622
      %p626 = scmp.eq.s32.totalorder %s88, 0
      %p627 = por %p625, %p626
      %p628 = scmp.ne.s32.totalorder %s620, %s622
      %p629 = scmp.eq.s32.totalorder %s93, 1
      %p630 = por %p628, %p629
      %p631 = scmp.ne.s32.totalorder %s622, %s623
      %p632 = scmp.eq.s32.totalorder %s93, 0
      %p633 = por %p631, %p632
      %p634 = scmp.ne.s32.totalorder %s622, %s623
      %p635 = scmp.eq.s32.totalorder %s94, 1
      %p636 = por %p634, %p635
      %p638 = scmp.ne.s32.totalorder %s623, %s637
      %p639 = scmp.eq.s32.totalorder %s94, 0
      %p640 = por %p638, %p639
      %s642 = sadd.s32 %s641, 1
      %p645 = scmp.eq.s32.totalorder %s88, 1
      %p646 = scmp.ne.s32.totalorder %s641, %s643
      %p647 = scmp.eq.s32.totalorder %s88, 0
      %p648 = por %p646, %p647
      %p649 = scmp.ne.s32.totalorder %s641, %s643
      %p650 = scmp.eq.s32.totalorder %s93, 1
      %p651 = por %p649, %p650
      %p652 = scmp.ne.s32.totalorder %s643, %s644
      %p653 = scmp.eq.s32.totalorder %s93, 0
      %p654 = por %p652, %p653
      %p655 = scmp.ne.s32.totalorder %s643, %s644
      %p656 = scmp.eq.s32.totalorder %s94, 1
      %p657 = por %p655, %p656
      %p659 = scmp.ne.s32.totalorder %s644, %s658
      %p660 = scmp.eq.s32.totalorder %s94, 0
      %p661 = por %p659, %p660
      %s663 = sadd.s32 %s662, 1
      %p666 = scmp.eq.s32.totalorder %s88, 1
      %p667 = scmp.ne.s32.totalorder %s662, %s664
      %p668 = scmp.eq.s32.totalorder %s88, 0
      %p669 = por %p667, %p668
      %p670 = scmp.ne.s32.totalorder %s662, %s664
      %p671 = scmp.eq.s32.totalorder %s93, 1
      %p672 = por %p670, %p671
      %p673 = scmp.ne.s32.totalorder %s664, %s665
      %p674 = scmp.eq.s32.totalorder %s93, 0
      %p675 = por %p673, %p674
      %p676 = scmp.ne.s32.totalorder %s664, %s665
      %p677 = scmp.eq.s32.totalorder %s94, 1
      %p678 = por %p676, %p677
      %p680 = scmp.ne.s32.totalorder %s665, %s679
      %p681 = scmp.eq.s32.totalorder %s94, 0
      %p682 = por %p680, %p681
      %s684 = sadd.s32 %s683, 1
      %p687 = scmp.eq.s32.totalorder %s88, 1
      %p688 = scmp.ne.s32.totalorder %s683, %s685
      %p689 = scmp.eq.s32.totalorder %s88, 0
      %p690 = por %p688, %p689
      %p691 = scmp.ne.s32.totalorder %s683, %s685
      %p692 = scmp.eq.s32.totalorder %s93, 1
      %p693 = por %p691, %p692
      %p694 = scmp.ne.s32.totalorder %s685, %s686
      %p695 = scmp.eq.s32.totalorder %s93, 0
      %p696 = por %p694, %p695
      %p697 = scmp.ne.s32.totalorder %s685, %s686
      %p698 = scmp.eq.s32.totalorder %s94, 1
      %p699 = por %p697, %p698
      %p701 = scmp.ne.s32.totalorder %s686, %s700
      %p702 = scmp.eq.s32.totalorder %s94, 0
      %p703 = por %p701, %p702
      %s705 = sadd.s32 %s704, 1
      %p708 = scmp.eq.s32.totalorder %s88, 1
      %p709 = scmp.ne.s32.totalorder %s704, %s706
      %p710 = scmp.eq.s32.totalorder %s88, 0
      %p711 = por %p709, %p710
      %p712 = scmp.ne.s32.totalorder %s704, %s706
      %p713 = scmp.eq.s32.totalorder %s93, 1
      %p714 = por %p712, %p713
      %p715 = scmp.ne.s32.totalorder %s706, %s707
      %p716 = scmp.eq.s32.totalorder %s93, 0
      %p717 = por %p715, %p716
      %p718 = scmp.ne.s32.totalorder %s706, %s707
      %p719 = scmp.eq.s32.totalorder %s94, 1
      %p720 = por %p718, %p719
      %p722 = scmp.ne.s32.totalorder %s707, %s721
      %p723 = scmp.eq.s32.totalorder %s94, 0
      %p724 = por %p722, %p723
      %s726 = sadd.s32 %s725, 1
      %p729 = scmp.eq.s32.totalorder %s88, 1
      %p730 = scmp.ne.s32.totalorder %s725, %s727
      %p731 = scmp.eq.s32.totalorder %s88, 0
      %p732 = por %p730, %p731
      %p733 = scmp.ne.s32.totalorder %s725, %s727
      %p734 = scmp.eq.s32.totalorder %s93, 1
      %p735 = por %p733, %p734
      %p736 = scmp.ne.s32.totalorder %s727, %s728
      %p737 = scmp.eq.s32.totalorder %s93, 0
      %p738 = por %p736, %p737
      %p739 = scmp.ne.s32.totalorder %s727, %s728
      %p740 = scmp.eq.s32.totalorder %s94, 1
      %p741 = por %p739, %p740
      %p743 = scmp.ne.s32.totalorder %s728, %s742
      %p744 = scmp.eq.s32.totalorder %s94, 0
      %p745 = por %p743, %p744
      %s747 = sadd.s32 %s746, 1
      %p750 = scmp.eq.s32.totalorder %s88, 1
      %p751 = scmp.ne.s32.totalorder %s746, %s748
      %p752 = scmp.eq.s32.totalorder %s88, 0
      %p753 = por %p751, %p752
      %p754 = scmp.ne.s32.totalorder %s746, %s748
      %p755 = scmp.eq.s32.totalorder %s93, 1
      %p756 = por %p754, %p755
      %p757 = scmp.ne.s32.totalorder %s748, %s749
      %p758 = scmp.eq.s32.totalorder %s93, 0
      %p759 = por %p757, %p758
      %p760 = scmp.ne.s32.totalorder %s748, %s749
      %p761 = scmp.eq.s32.totalorder %s94, 1
      %p762 = por %p760, %p761
      %p764 = scmp.ne.s32.totalorder %s749, %s763
      %p765 = scmp.eq.s32.totalorder %s94, 0
      %p766 = por %p764, %p765
      %s768 = sadd.s32 %s767, 1
      %p771 = scmp.eq.s32.totalorder %s88, 1
      %p772 = scmp.ne.s32.totalorder %s767, %s769
      %p773 = scmp.eq.s32.totalorder %s88, 0
      %p774 = por %p772, %p773
      %p775 = scmp.ne.s32.totalorder %s767, %s769
      %p776 = scmp.eq.s32.totalorder %s93, 1
      %p777 = por %p775, %p776
      %p778 = scmp.ne.s32.totalorder %s769, %s770
      %p779 = scmp.eq.s32.totalorder %s93, 0
      %p780 = por %p778, %p779
      %p781 = scmp.ne.s32.totalorder %s769, %s770
      %p782 = scmp.eq.s32.totalorder %s94, 1
      %p783 = por %p781, %p782
      %p785 = scmp.ne.s32.totalorder %s770, %s784
      %p786 = scmp.eq.s32.totalorder %s94, 0
      %p787 = por %p785, %p786
      %s789 = sadd.s32 %s788, 1
      %p792 = scmp.eq.s32.totalorder %s88, 1
      %p793 = scmp.ne.s32.totalorder %s788, %s790
      %p794 = scmp.eq.s32.totalorder %s88, 0
      %p795 = por %p793, %p794
      %p796 = scmp.ne.s32.totalorder %s788, %s790
      %p797 = scmp.eq.s32.totalorder %s93, 1
      %p798 = por %p796, %p797
      %p799 = scmp.ne.s32.totalorder %s790, %s791
      %p800 = scmp.eq.s32.totalorder %s93, 0
      %p801 = por %p799, %p800
      %p802 = scmp.ne.s32.totalorder %s790, %s791
      %p803 = scmp.eq.s32.totalorder %s94, 1
      %p804 = por %p802, %p803
      %p806 = scmp.ne.s32.totalorder %s791, %s805
      %p807 = scmp.eq.s32.totalorder %s94, 0
      %p808 = por %p806, %p807
      %s810 = sadd.s32 %s809, 1
      %p813 = scmp.eq.s32.totalorder %s88, 1
      %p814 = scmp.ne.s32.totalorder %s809, %s811
      %p815 = scmp.eq.s32.totalorder %s88, 0
      %p816 = por %p814, %p815
      %p817 = scmp.ne.s32.totalorder %s809, %s811
      %p818 = scmp.eq.s32.totalorder %s93, 1
      %p819 = por %p817, %p818
      %p820 = scmp.ne.s32.totalorder %s811, %s812
      %p821 = scmp.eq.s32.totalorder %s93, 0
      %p822 = por %p820, %p821
      %p823 = scmp.ne.s32.totalorder %s811, %s812
      %p824 = scmp.eq.s32.totalorder %s94, 1
      %p825 = por %p823, %p824
      %p827 = scmp.ne.s32.totalorder %s812, %s826
      %p828 = scmp.eq.s32.totalorder %s94, 0
      %p829 = por %p827, %p828
      %s831 = sadd.s32 %s830, 1
      %p834 = scmp.eq.s32.totalorder %s88, 1
      %p835 = scmp.ne.s32.totalorder %s830, %s832
      %p836 = scmp.eq.s32.totalorder %s88, 0
      %p837 = por %p835, %p836
      %p838 = scmp.ne.s32.totalorder %s830, %s832
      %p839 = scmp.eq.s32.totalorder %s93, 1
      %p840 = por %p838, %p839
      %p841 = scmp.ne.s32.totalorder %s832, %s833
      %p842 = scmp.eq.s32.totalorder %s93, 0
      %p843 = por %p841, %p842
      %p844 = scmp.ne.s32.totalorder %s832, %s833
      %p845 = scmp.eq.s32.totalorder %s94, 1
      %p846 = por %p844, %p845
      %p848 = scmp.ne.s32.totalorder %s833, %s847
      %p849 = scmp.eq.s32.totalorder %s94, 0
      %p850 = por %p848, %p849
      %s852 = sadd.s32 %s851, 1
      %p855 = scmp.eq.s32.totalorder %s88, 1
      %p856 = scmp.ne.s32.totalorder %s851, %s853
      %p857 = scmp.eq.s32.totalorder %s88, 0
      %p858 = por %p856, %p857
      %p859 = scmp.ne.s32.totalorder %s851, %s853
      %p860 = scmp.eq.s32.totalorder %s93, 1
      %p861 = por %p859, %p860
      %p862 = scmp.ne.s32.totalorder %s853, %s854
      %p863 = scmp.eq.s32.totalorder %s93, 0
      %p864 = por %p862, %p863
      %p865 = scmp.ne.s32.totalorder %s853, %s854
      %p866 = scmp.eq.s32.totalorder %s94, 1
      %p867 = por %p865, %p866
      %p869 = scmp.ne.s32.totalorder %s854, %s868
      %p870 = scmp.eq.s32.totalorder %s94, 0
      %p871 = por %p869, %p870
      %s873 = sadd.s32 %s872, 1
      %p876 = scmp.eq.s32.totalorder %s88, 1
      %p877 = scmp.ne.s32.totalorder %s872, %s874
      %p878 = scmp.eq.s32.totalorder %s88, 0
      %p879 = por %p877, %p878
      %p880 = scmp.ne.s32.totalorder %s872, %s874
      %p881 = scmp.eq.s32.totalorder %s93, 1
      %p882 = por %p880, %p881
      %p883 = scmp.ne.s32.totalorder %s874, %s875
      %p884 = scmp.eq.s32.totalorder %s93, 0
      %p885 = por %p883, %p884
      %p886 = scmp.ne.s32.totalorder %s874, %s875
      %p887 = scmp.eq.s32.totalorder %s94, 1
      %p888 = por %p886, %p887
      %p890 = scmp.ne.s32.totalorder %s875, %s889
      %p891 = scmp.eq.s32.totalorder %s94, 0
      %p892 = por %p890, %p891
      %s893 = ssub.s32 %s88, %s95
      %p894 = scmp.eq.s32.totalorder %s893, 0
      %s896 = sadd.s32 %s895, 1
      %s897 = scalar_select %p894, %s895, %s896
      %p900 = pneg %p894
      %p901 = scmp.eq.s32.totalorder %s88, 1
      %p902 = por %p900, %p901
      %p903 = scmp.ne.s32.totalorder %s895, %s898
      %p904 = scmp.eq.s32.totalorder %s88, 0
      %p905 = por %p903, %p904
      %p906 = scmp.ne.s32.totalorder %s895, %s898
      %p907 = scmp.eq.s32.totalorder %s93, 1
      %p908 = por %p906, %p907
      %p909 = scmp.ne.s32.totalorder %s898, %s899
      %p910 = scmp.eq.s32.totalorder %s93, 0
      %p911 = por %p909, %p910
      %p912 = scmp.ne.s32.totalorder %s898, %s899
      %p913 = scmp.eq.s32.totalorder %s94, 1
      %p914 = por %p912, %p913
      %p916 = scmp.ne.s32.totalorder %s899, %s915
      %p917 = scmp.eq.s32.totalorder %s94, 0
      %p918 = por %p916, %p917
      %s919 = ssub.s32 %s88, %s95
      %p920 = scmp.eq.s32.totalorder %s919, 0
      %s922 = sadd.s32 %s921, 1
      %s923 = scalar_select %p920, %s921, %s922
      %p926 = pneg %p920
      %p927 = scmp.eq.s32.totalorder %s88, 1
      %p928 = por %p926, %p927
      %p929 = scmp.ne.s32.totalorder %s921, %s924
      %p930 = scmp.eq.s32.totalorder %s88, 0
      %p931 = por %p929, %p930
      %p932 = scmp.ne.s32.totalorder %s921, %s924
      %p933 = scmp.eq.s32.totalorder %s93, 1
      %p934 = por %p932, %p933
      %p935 = scmp.ne.s32.totalorder %s924, %s925
      %p936 = scmp.eq.s32.totalorder %s93, 0
      %p937 = por %p935, %p936
      %p938 = scmp.ne.s32.totalorder %s924, %s925
      %p939 = scmp.eq.s32.totalorder %s94, 1
      %p940 = por %p938, %p939
      %p942 = scmp.ne.s32.totalorder %s925, %s941
      %p943 = scmp.eq.s32.totalorder %s94, 0
      %p944 = por %p942, %p943
      %p945 = scmp.le.s32.totalorder 1, %s88
      %p946 = scmp.lt.s32.totalorder %s88, 3
      %p947 = pnand %p945, %p946
      %p948 = pneg %p947
      // Predicated region
      $region9: #{transformer_decoder.3} parent=5 // pred_check
        _
      $region10: #{transformer_decoder.3} parent=5 // pred_check_branch
        %950 = sbr.rel (%p947) target = $region12
      $region11: #{transformer_decoder.3} parent=5 // pred_region
        %s951 = ssub.s32 %s88, 1
        // Predicated region
        $region13: #{transformer_decoder.3} parent=11 // pred_check
          %p952 = pneg %p213
        $region14: #{transformer_decoder.3} parent=11 // pred_check_branch
          %954 = sbr.rel (%p952) target = $region16
        $region15: #{transformer_decoder.3} parent=11 // pred_region
          _
        $region16: #{transformer_decoder.3} parent=11 // pred_fallthru
          _
        // Predicated region
        $region17: #{transformer_decoder.3} parent=11 // pred_check
          %p955 = pneg %p234
        $region18: #{transformer_decoder.3} parent=11 // pred_check_branch
          %957 = sbr.rel (%p955) target = $region20
        $region19: #{transformer_decoder.3} parent=11 // pred_region
          _
        $region20: #{transformer_decoder.3} parent=11 // pred_fallthru
          _
        // Predicated region
        $region21: #{transformer_decoder.3} parent=11 // pred_check
          %p958 = pneg %p255
        $region22: #{transformer_decoder.3} parent=11 // pred_check_branch
          %960 = sbr.rel (%p958) target = $region24
        $region23: #{transformer_decoder.3} parent=11 // pred_region
          _
        $region24: #{transformer_decoder.3} parent=11 // pred_fallthru
          _
        // Predicated region
        $region25: #{transformer_decoder.3} parent=11 // pred_check
          %p961 = pneg %p276
        $region26: #{transformer_decoder.3} parent=11 // pred_check_branch
          %963 = sbr.rel (%p961) target = $region28
        $region27: #{transformer_decoder.3} parent=11 // pred_region
          _
        $region28: #{transformer_decoder.3} parent=11 // pred_fallthru
          _
        // Predicated region
        $region29: #{transformer_decoder.3} parent=11 // pred_check
          %p964 = pneg %p297
        $region30: #{transformer_decoder.3} parent=11 // pred_check_branch
          %966 = sbr.rel (%p964) target = $region32
        $region31: #{transformer_decoder.3} parent=11 // pred_region
          _
        $region32: #{transformer_decoder.3} parent=11 // pred_fallthru
          _
        // Predicated region
        $region33: #{transformer_decoder.3} parent=11 // pred_check
          %p967 = pneg %p318
        $region34: #{transformer_decoder.3} parent=11 // pred_check_branch
          %969 = sbr.rel (%p967) target = $region36
        $region35: #{transformer_decoder.3} parent=11 // pred_region
          _
        $region36: #{transformer_decoder.3} parent=11 // pred_fallthru
          _
        // Predicated region
        $region37: #{transformer_decoder.3} parent=11 // pred_check
          %p970 = pneg %p339
        $region38: #{transformer_decoder.3} parent=11 // pred_check_branch
          %972 = sbr.rel (%p970) target = $region40
        $region39: #{transformer_decoder.3} parent=11 // pred_region
          _
        $region40: #{transformer_decoder.3} parent=11 // pred_fallthru
          _
        // Predicated region
        $region41: #{transformer_decoder.3} parent=11 // pred_check
          %p973 = pneg %p360
        $region42: #{transformer_decoder.3} parent=11 // pred_check_branch
          %975 = sbr.rel (%p973) target = $region44
        $region43: #{transformer_decoder.3} parent=11 // pred_region
          _
        $region44: #{transformer_decoder.3} parent=11 // pred_fallthru
          _
        // Predicated region
        $region45: #{transformer_decoder.3} parent=11 // pred_check
          %p976 = pneg %p381
        $region46: #{transformer_decoder.3} parent=11 // pred_check_branch
          %978 = sbr.rel (%p976) target = $region48
        $region47: #{transformer_decoder.3} parent=11 // pred_region
          _
        $region48: #{transformer_decoder.3} parent=11 // pred_fallthru
          _
        // Predicated region
        $region49: #{transformer_decoder.3} parent=11 // pred_check
          %p979 = pneg %p402
        $region50: #{transformer_decoder.3} parent=11 // pred_check_branch
          %981 = sbr.rel (%p979) target = $region52
        $region51: #{transformer_decoder.3} parent=11 // pred_region
          _
        $region52: #{transformer_decoder.3} parent=11 // pred_fallthru
          _
        // Predicated region
        $region53: #{transformer_decoder.3} parent=11 // pred_check
          %p982 = pneg %p423
        $region54: #{transformer_decoder.3} parent=11 // pred_check_branch
          %984 = sbr.rel (%p982) target = $region56
        $region55: #{transformer_decoder.3} parent=11 // pred_region
          _
        $region56: #{transformer_decoder.3} parent=11 // pred_fallthru
          _
        // Predicated region
        $region57: #{transformer_decoder.3} parent=11 // pred_check
          %p985 = pneg %p444
        $region58: #{transformer_decoder.3} parent=11 // pred_check_branch
          %987 = sbr.rel (%p985) target = $region60
        $region59: #{transformer_decoder.3} parent=11 // pred_region
          _
        $region60: #{transformer_decoder.3} parent=11 // pred_fallthru
          _
        // Predicated region
        $region61: #{transformer_decoder.3} parent=11 // pred_check
          %p988 = pneg %p465
        $region62: #{transformer_decoder.3} parent=11 // pred_check_branch
          %990 = sbr.rel (%p988) target = $region64
        $region63: #{transformer_decoder.3} parent=11 // pred_region
          _
        $region64: #{transformer_decoder.3} parent=11 // pred_fallthru
          _
        // Predicated region
        $region65: #{transformer_decoder.3} parent=11 // pred_check
          %p991 = pneg %p486
        $region66: #{transformer_decoder.3} parent=11 // pred_check_branch
          %993 = sbr.rel (%p991) target = $region68
        $region67: #{transformer_decoder.3} parent=11 // pred_region
          _
        $region68: #{transformer_decoder.3} parent=11 // pred_fallthru
          _
        // Predicated region
        $region69: #{transformer_decoder.3} parent=11 // pred_check
          %p994 = pneg %p507
        $region70: #{transformer_decoder.3} parent=11 // pred_check_branch
          %996 = sbr.rel (%p994) target = $region72
        $region71: #{transformer_decoder.3} parent=11 // pred_region
          _
        $region72: #{transformer_decoder.3} parent=11 // pred_fallthru
          _
        // Predicated region
        $region73: #{transformer_decoder.3} parent=11 // pred_check
          %p997 = pneg %p528
        $region74: #{transformer_decoder.3} parent=11 // pred_check_branch
          %999 = sbr.rel (%p997) target = $region76
        $region75: #{transformer_decoder.3} parent=11 // pred_region
          _
        $region76: #{transformer_decoder.3} parent=11 // pred_fallthru
          _
        // Predicated region
        $region77: #{transformer_decoder.3} parent=11 // pred_check
          %p1000 = pneg %p549
        $region78: #{transformer_decoder.3} parent=11 // pred_check_branch
          %1002 = sbr.rel (%p1000) target = $region80
        $region79: #{transformer_decoder.3} parent=11 // pred_region
          _
        $region80: #{transformer_decoder.3} parent=11 // pred_fallthru
          _
        // Predicated region
        $region81: #{transformer_decoder.3} parent=11 // pred_check
          %p1003 = pneg %p570
        $region82: #{transformer_decoder.3} parent=11 // pred_check_branch
          %1005 = sbr.rel (%p1003) target = $region84
        $region83: #{transformer_decoder.3} parent=11 // pred_region
          _
        $region84: #{transformer_decoder.3} parent=11 // pred_fallthru
          _
        // Predicated region
        $region85: #{transformer_decoder.3} parent=11 // pred_check
          %p1006 = pneg %p591
        $region86: #{transformer_decoder.3} parent=11 // pred_check_branch
          %1008 = sbr.rel (%p1006) target = $region88
        $region87: #{transformer_decoder.3} parent=11 // pred_region
          _
        $region88: #{transformer_decoder.3} parent=11 // pred_fallthru
          _
        // Predicated region
        $region89: #{transformer_decoder.3} parent=11 // pred_check
          %p1009 = pneg %p612
        $region90: #{transformer_decoder.3} parent=11 // pred_check_branch
          %1011 = sbr.rel (%p1009) target = $region92
        $region91: #{transformer_decoder.3} parent=11 // pred_region
          _
        $region92: #{transformer_decoder.3} parent=11 // pred_fallthru
          _
        // Predicated region
        $region93: #{transformer_decoder.3} parent=11 // pred_check
          %p1012 = pneg %p633
        $region94: #{transformer_decoder.3} parent=11 // pred_check_branch
          %1014 = sbr.rel (%p1012) target = $region96
        $region95: #{transformer_decoder.3} parent=11 // pred_region
          _
        $region96: #{transformer_decoder.3} parent=11 // pred_fallthru
          _
        // Predicated region
        $region97: #{transformer_decoder.3} parent=11 // pred_check
          %p1015 = pneg %p654
        $region98: #{transformer_decoder.3} parent=11 // pred_check_branch
          %1017 = sbr.rel (%p1015) target = $region100
        $region99: #{transformer_decoder.3} parent=11 // pred_region
          _
        $region100: #{transformer_decoder.3} parent=11 // pred_fallthru
          _
        // Predicated region
        $region101: #{transformer_decoder.3} parent=11 // pred_check
          %p1018 = pneg %p675
        $region102: #{transformer_decoder.3} parent=11 // pred_check_branch
          %1020 = sbr.rel (%p1018) target = $region104
        $region103: #{transformer_decoder.3} parent=11 // pred_region
          _
        $region104: #{transformer_decoder.3} parent=11 // pred_fallthru
          _
        // Predicated region
        $region105: #{transformer_decoder.3} parent=11 // pred_check
          %p1021 = pneg %p696
        $region106: #{transformer_decoder.3} parent=11 // pred_check_branch
          %1023 = sbr.rel (%p1021) target = $region108
        $region107: #{transformer_decoder.3} parent=11 // pred_region
          %s1025 = ssub.s32 16, 16
          %1026 = vsyncadd [#allocation3], %s1025
          %s1028 = sshll.u32 [#allocation2], 4
          %s1029 = int_to_ptr.vmem [resolvable:$true] %s1028
          %1031 = dma.hbm_to_vmem [thread:$0]  %s55, 16, %s1029, [#allocation3]
        $region108: #{transformer_decoder.3} parent=11 // pred_fallthru
          _
        // Predicated region
        $region109: #{transformer_decoder.3} parent=11 // pred_check
          %p1032 = pneg %p717
        $region110: #{transformer_decoder.3} parent=11 // pred_check_branch
          %1034 = sbr.rel (%p1032) target = $region112
        $region111: #{transformer_decoder.3} parent=11 // pred_region
          _
        $region112: #{transformer_decoder.3} parent=11 // pred_fallthru
          _
        // Predicated region
        $region113: #{transformer_decoder.3} parent=11 // pred_check
          %p1035 = pneg %p738
        $region114: #{transformer_decoder.3} parent=11 // pred_check_branch
          %1037 = sbr.rel (%p1035) target = $region116
        $region115: #{transformer_decoder.3} parent=11 // pred_region
          %s1039 = ssub.s32 16, 16
          %1040 = vsyncadd [#allocation5], %s1039
          %s1042 = sshll.u32 [#allocation4], 4
          %s1043 = int_to_ptr.vmem [resolvable:$true] %s1042
          %1045 = dma.hbm_to_vmem [thread:$0]  %s59, 16, %s1043, [#allocation5]
        $region116: #{transformer_decoder.3} parent=11 // pred_fallthru
          _
        // Predicated region
        $region117: #{transformer_decoder.3} parent=11 // pred_check
          %p1046 = pneg %p759
        $region118: #{transformer_decoder.3} parent=11 // pred_check_branch
          %1048 = sbr.rel (%p1046) target = $region120
        $region119: #{transformer_decoder.3} parent=11 // pred_region
          %s1050 = ssub.s32 16, 16
          %1051 = vsyncadd [#allocation5], %s1050
          %s1053 = sshll.u32 [#allocation6], 4
          %s1054 = int_to_ptr.vmem [resolvable:$true] %s1053
          %1056 = dma.hbm_to_vmem [thread:$0]  %s61, 16, %s1054, [#allocation5]
        $region120: #{transformer_decoder.3} parent=11 // pred_fallthru
          _
        // Predicated region
        $region121: #{transformer_decoder.3} parent=11 // pred_check
          %p1057 = pneg %p780
        $region122: #{transformer_decoder.3} parent=11 // pred_check_branch
          %1059 = sbr.rel (%p1057) target = $region124
        $region123: #{transformer_decoder.3} parent=11 // pred_region
          %s1061 = ssub.s32 16, 16
          %1062 = vsyncadd [#allocation8], %s1061
          %s1064 = sshll.u32 [#allocation7], 4
          %s1065 = int_to_ptr.vmem [resolvable:$true] %s1064
          %1067 = dma.hbm_to_vmem [thread:$0]  %s63, 16, %s1065, [#allocation8]
        $region124: #{transformer_decoder.3} parent=11 // pred_fallthru
          _
        // Predicated region
        $region125: #{transformer_decoder.3} parent=11 // pred_check
          %p1068 = pneg %p801
        $region126: #{transformer_decoder.3} parent=11 // pred_check_branch
          %1070 = sbr.rel (%p1068) target = $region128
        $region127: #{transformer_decoder.3} parent=11 // pred_region
          _
        $region128: #{transformer_decoder.3} parent=11 // pred_fallthru
          _
        // Predicated region
        $region129: #{transformer_decoder.3} parent=11 // pred_check
          %p1071 = pneg %p822
        $region130: #{transformer_decoder.3} parent=11 // pred_check_branch
          %1073 = sbr.rel (%p1071) target = $region132
        $region131: #{transformer_decoder.3} parent=11 // pred_region
          %s1075 = ssub.s32 16, 16
          %1076 = vsyncadd [#allocation8], %s1075
          %s1078 = sshll.u32 [#allocation9], 4
          %s1079 = int_to_ptr.vmem [resolvable:$true] %s1078
          %1081 = dma.hbm_to_vmem [thread:$0]  %s67, 16, %s1079, [#allocation8]
        $region132: #{transformer_decoder.3} parent=11 // pred_fallthru
          _
        // Predicated region
        $region133: #{transformer_decoder.3} parent=11 // pred_check
          %p1082 = pneg %p843
        $region134: #{transformer_decoder.3} parent=11 // pred_check_branch
          %1084 = sbr.rel (%p1082) target = $region136
        $region135: #{transformer_decoder.3} parent=11 // pred_region
          _
        $region136: #{transformer_decoder.3} parent=11 // pred_fallthru
          _
        // Predicated region
        $region137: #{transformer_decoder.3} parent=11 // pred_check
          %p1085 = pneg %p864
        $region138: #{transformer_decoder.3} parent=11 // pred_check_branch
          %1087 = sbr.rel (%p1085) target = $region140
        $region139: #{transformer_decoder.3} parent=11 // pred_region
          _
        $region140: #{transformer_decoder.3} parent=11 // pred_fallthru
          _
        // Predicated region
        $region141: #{transformer_decoder.3} parent=11 // pred_check
          %p1088 = pneg %p885
        $region142: #{transformer_decoder.3} parent=11 // pred_check_branch
          %1090 = sbr.rel (%p1088) target = $region144
        $region143: #{transformer_decoder.3} parent=11 // pred_region
          %s1092 = ssub.s32 16, 16
          %1093 = vsyncadd [#allocation11], %s1092
          %s1095 = sshll.u32 [#allocation10], 4
          %s1096 = int_to_ptr.vmem [resolvable:$true] %s1095
          %1098 = dma.hbm_to_vmem [thread:$0]  %s73, 16, %s1096, [#allocation11]
        $region144: #{transformer_decoder.3} parent=11 // pred_fallthru
          _
      $region12: #{transformer_decoder.3} parent=5 // pred_fallthru
        _
      %p1099 = scmp.lt.s32.totalorder %s88, 2
      // Predicated region
      $region145: #{transformer_decoder.3} parent=5 // pred_check
        %p1100 = pneg %p1099
      $region146: #{transformer_decoder.3} parent=5 // pred_check_branch
        %1102 = sbr.rel (%p1100) target = $region148
      $region147: #{transformer_decoder.3} parent=5 // pred_region
        // Predicated region
        $region149: #{transformer_decoder.3} parent=147 // pred_check
          %p1103 = pneg %p108
        $region150: #{transformer_decoder.3} parent=147 // pred_check_branch
          %1105 = sbr.rel (%p1103) target = $region152
        $region151: #{transformer_decoder.3} parent=147 // pred_region
          %p1106 = scmp.lt.s32.totalorder %s88, 1
          %s1107 = scalar_select %p1106, %s88, 1
          %s1108 = smul.addr %s1107, 4
          %s1109 = scalar_lea.vmem %s1, %s1108
        $region152: #{transformer_decoder.3} parent=147 // pred_fallthru
          _
        // Predicated region
        $region153: #{transformer_decoder.3} parent=147 // pred_check
          %p1110 = pneg %p134
        $region154: #{transformer_decoder.3} parent=147 // pred_check_branch
          %1112 = sbr.rel (%p1110) target = $region156
        $region155: #{transformer_decoder.3} parent=147 // pred_region
          %p1113 = scmp.lt.s32.totalorder %s88, 1
          %s1114 = scalar_select %p1113, %s88, 1
          %s1115 = smul.addr %s1114, 4
          %s1116 = scalar_lea.vmem %s3, %s1115
        $region156: #{transformer_decoder.3} parent=147 // pred_fallthru
          _
        // Predicated region
        $region157: #{transformer_decoder.3} parent=147 // pred_check
          %p1117 = pneg %p160
        $region158: #{transformer_decoder.3} parent=147 // pred_check_branch
          %1119 = sbr.rel (%p1117) target = $region160
        $region159: #{transformer_decoder.3} parent=147 // pred_region
          %p1120 = scmp.lt.s32.totalorder %s88, 1
          %s1121 = scalar_select %p1120, %s88, 1
          %s1122 = smul.addr %s1121, 8
          %s1123 = scalar_lea.vmem %s5, %s1122
        $region160: #{transformer_decoder.3} parent=147 // pred_fallthru
          _
        // Predicated region
        $region161: #{transformer_decoder.3} parent=147 // pred_check
          %p1124 = pneg %p186
        $region162: #{transformer_decoder.3} parent=147 // pred_check_branch
          %1126 = sbr.rel (%p1124) target = $region164
        $region163: #{transformer_decoder.3} parent=147 // pred_region
          %p1127 = scmp.lt.s32.totalorder %s88, 1
          %s1128 = scalar_select %p1127, %s88, 1
          %s1129 = smul.addr %s1128, 2
          %s1130 = smul.addr %s1129, 4
          %s1131 = scalar_lea.vmem %s7, %s1130
        $region164: #{transformer_decoder.3} parent=147 // pred_fallthru
          _
      $region148: #{transformer_decoder.3} parent=5 // pred_fallthru
        _
      %p1132 = scmp.le.s32.totalorder 1, %s88
      %p1133 = scmp.lt.s32.totalorder %s88, 3
      %p1134 = pnand %p1132, %p1133
      %p1135 = pneg %p1134
      // Predicated region
      $region165: #{transformer_decoder.3} parent=5 // pred_check
        _
      $region166: #{transformer_decoder.3} parent=5 // pred_check_branch
        %1137 = sbr.rel (%p1134) target = $region168
      $region167: #{transformer_decoder.3} parent=5 // pred_region
        %s1138 = ssub.s32 %s88, 1
        // Predicated region
        $region169: #{transformer_decoder.3} parent=167 // pred_check
          %p1139 = pneg %p696
        $region170: #{transformer_decoder.3} parent=167 // pred_check_branch
          %1141 = sbr.rel (%p1139) target = $region172
        $region171: #{transformer_decoder.3} parent=167 // pred_region
          %1142 = dma.done [#allocation3], 16
        $region172: #{transformer_decoder.3} parent=167 // pred_fallthru
          _
        // Predicated region
        $region173: #{transformer_decoder.3} parent=167 // pred_check
          %p1143 = pneg %p738
        $region174: #{transformer_decoder.3} parent=167 // pred_check_branch
          %1145 = sbr.rel (%p1143) target = $region176
        $region175: #{transformer_decoder.3} parent=167 // pred_region
          %1146 = dma.done [#allocation5], 16
        $region176: #{transformer_decoder.3} parent=167 // pred_fallthru
          _
        // Predicated region
        $region177: #{transformer_decoder.3} parent=167 // pred_check
          %p1147 = pneg %p759
        $region178: #{transformer_decoder.3} parent=167 // pred_check_branch
          %1149 = sbr.rel (%p1147) target = $region180
        $region179: #{transformer_decoder.3} parent=167 // pred_region
          %1150 = dma.done [#allocation5], 16
        $region180: #{transformer_decoder.3} parent=167 // pred_fallthru
          _
        // Predicated region
        $region181: #{transformer_decoder.3} parent=167 // pred_check
          %p1151 = pneg %p780
        $region182: #{transformer_decoder.3} parent=167 // pred_check_branch
          %1153 = sbr.rel (%p1151) target = $region184
        $region183: #{transformer_decoder.3} parent=167 // pred_region
          %1154 = dma.done [#allocation8], 16
        $region184: #{transformer_decoder.3} parent=167 // pred_fallthru
          _
        // Predicated region
        $region185: #{transformer_decoder.3} parent=167 // pred_check
          %p1155 = pneg %p822
        $region186: #{transformer_decoder.3} parent=167 // pred_check_branch
          %1157 = sbr.rel (%p1155) target = $region188
        $region187: #{transformer_decoder.3} parent=167 // pred_region
          %1158 = dma.done [#allocation8], 16
        $region188: #{transformer_decoder.3} parent=167 // pred_fallthru
          _
        // Predicated region
        $region189: #{transformer_decoder.3} parent=167 // pred_check
          %p1159 = pneg %p885
        $region190: #{transformer_decoder.3} parent=167 // pred_check_branch
          %1161 = sbr.rel (%p1159) target = $region192
        $region191: #{transformer_decoder.3} parent=167 // pred_region
          %1162 = dma.done [#allocation11], 16
        $region192: #{transformer_decoder.3} parent=167 // pred_fallthru
          _
        %p1163 = scmp.lt.s32.totalorder %s93, 1
        %s1164 = scalar_select %p1163, %s93, 1
        %s1165 = smul.addr %s1164, 4
        %s1166 = scalar_lea.vmem %s1, %s1165
        %p1167 = pneg %p114
        %p1168 = pneg %p111
        %p1169 = scmp.lt.s32.totalorder %s93, 1
        %s1170 = scalar_select %p1169, %s93, 1
        %s1171 = smul.addr %s1170, 4
        %s1172 = scalar_lea.vmem %s3, %s1171
        %p1173 = pneg %p140
        %p1174 = pneg %p137
        %p1175 = scmp.lt.s32.totalorder %s93, 1
        %s1176 = scalar_select %p1175, %s93, 1
        %s1177 = smul.addr %s1176, 8
        %s1178 = scalar_lea.vmem %s5, %s1177
        %p1179 = pneg %p166
        %p1180 = pneg %p163
        %p1181 = scmp.lt.s32.totalorder %s93, 1
        %s1182 = scalar_select %p1181, %s93, 1
        %s1183 = smul.addr %s1182, 2
        %s1184 = smul.addr %s1183, 4
        %s1185 = scalar_lea.vmem %s7, %s1184
        %p1186 = pneg %p192
        %p1187 = pneg %p189
        %p1188 = pneg %p213
        %p1189 = pneg %p210
        %p1190 = pneg %p234
        %p1191 = pneg %p231
        %p1192 = pneg %p255
        %p1193 = pneg %p252
        %p1194 = pneg %p276
        %p1195 = pneg %p273
        %p1196 = pneg %p297
        %p1197 = pneg %p294
        %p1198 = pneg %p318
        %p1199 = pneg %p315
        %p1200 = pneg %p339
        %p1201 = pneg %p336
        %p1202 = pneg %p360
        %p1203 = pneg %p357
        %p1204 = pneg %p381
        %p1205 = pneg %p378
        %p1206 = pneg %p402
        %p1207 = pneg %p399
        %p1208 = pneg %p423
        %p1209 = pneg %p420
        %p1210 = pneg %p444
        %p1211 = pneg %p441
        %p1212 = pneg %p465
        %p1213 = pneg %p462
        %p1214 = pneg %p486
        %p1215 = pneg %p483
        %p1216 = pneg %p507
        %p1217 = pneg %p504
        %p1218 = pneg %p528
        %p1219 = pneg %p525
        %p1220 = pneg %p549
        %p1221 = pneg %p546
        %p1222 = pneg %p570
        %p1223 = pneg %p567
        %p1224 = pneg %p591
        %p1225 = pneg %p588
        %p1226 = pneg %p612
        %p1227 = pneg %p609
        %p1228 = pneg %p633
        %p1229 = pneg %p630
        %p1230 = pneg %p654
        %p1231 = pneg %p651
        %p1232 = pneg %p675
        %p1233 = pneg %p672
        %p1234 = pneg %p696
        %p1235 = pneg %p693
        %p1236 = pneg %p717
        %p1237 = pneg %p714
        %p1238 = pneg %p738
        %p1239 = pneg %p735
        %p1240 = pneg %p759
        %p1241 = pneg %p756
        %p1242 = pneg %p780
        %p1243 = pneg %p777
        %p1244 = pneg %p801
        %p1245 = pneg %p798
        %p1246 = pneg %p822
        %p1247 = pneg %p819
        %p1248 = pneg %p843
        %p1249 = pneg %p840
        %p1250 = pneg %p864
        %p1251 = pneg %p861
        %p1252 = pneg %p885
        %p1253 = pneg %p882
        %p1254 = pneg %p911
        %p1255 = pneg %p908
        %p1256 = scmp.lt.s32.totalorder %s93, 1
        %s1257 = scalar_select %p1256, %s93, 1
        %s1258 = smul.addr %s1257, 4
        %s1259 = scalar_lea.vmem %s75, %s1258
        %p1260 = pneg %p937
        %p1261 = pneg %p934
        %p1262 = scmp.lt.s32.totalorder %s93, 1
        %s1263 = scalar_select %p1262, %s93, 1
        %s1264 = smul.addr %s1263, 8
        %s1265 = scalar_lea.vmem %s77, %s1264
        %p1266 = scmp.lt.s32.totalorder %s93, 1
        %s1267 = scalar_select %p1266, %s93, 1
        %s1268 = smul.addr %s1267, 4
        %s1269 = scalar_lea.vmem %s1, %s1268
        %p1270 = scmp.lt.s32.totalorder %s93, 1
        %s1271 = scalar_select %p1270, %s93, 1
        %s1272 = smul.addr %s1271, 4
        %s1273 = scalar_lea.vmem %s3, %s1272
        %p1274 = scmp.lt.s32.totalorder %s93, 1
        %s1275 = scalar_select %p1274, %s93, 1
        %s1276 = smul.addr %s1275, 8
        %s1277 = scalar_lea.vmem %s5, %s1276
        %p1278 = scmp.lt.s32.totalorder %s93, 1
        %s1279 = scalar_select %p1278, %s93, 1
        %s1280 = smul.addr %s1279, 2
        %s1281 = smul.addr %s1280, 4
        %s1282 = scalar_lea.vmem %s7, %s1281
        %p1283 = scmp.lt.s32.totalorder %s93, 1
        %s1284 = scalar_select %p1283, %s93, 1
        %s1285 = smul.addr %s1284, 4
        %s1286 = scalar_lea.vmem %s75, %s1285
        %p1287 = scmp.lt.s32.totalorder %s93, 1
        %s1288 = scalar_select %p1287, %s93, 1
        %s1289 = smul.addr %s1288, 8
        %s1290 = scalar_lea.vmem %s77, %s1289
        %v1292 = vld [vmem:[%s1269] sm:$0xf]
        %v1293 = vld [vmem:[%s1273] sm:$0xf]
        %v1294 = vld [vmem:[%s1282] sm:$0xf]
        %v1295 = vld [vmem:[%s1282 + $0x4] sm:$0xf]
        %v1296 = vld [vmem:[%s1277] sm:$0xff]
        %v1297 = vunpack.c.l.bf16 %v1292
        %v1298 = vlaneseq
        %v1299 = vand.u32 %v1298, 127
        %vm1300 = vcmp.lt.s32.totalorder %v1299, 8
        %v1301 = vsel %vm1300, 1, 0
        %vm1302 = vcmp.eq.s32.totalorder %v1301, 1
        %v1303 = vsel %vm1302, %v1296, 0.0
        %v1304 = vadd.bf16 %v1292, %v1293
        %v1305 = vld [vmem:[%s9] sm:$0xff]
        %v1306 = vld [vmem:[%s9 + $0x8] sm:$0xff]
        %v1307 = vld [vmem:[%s9 + $0x10] sm:$0xff]
        %v1308 = vld [vmem:[%s9 + $0x18] sm:$0xff]
        %v1309 = vpack.c.bf16 %v1306, %v1305
        %v1310 = vpack.c.bf16 %v1308, %v1307
        %v1311 = vld [vmem:[%s11] sm:$0x1]
        %v1313 = vlaneseq
        %v1314 = vshrl.u32 %v1313, 7
        %v1315 = vsub.s32 0, %v1314
        %v1316 = vrot.slane %v1311, %v1315
        %vm1318 = vcmask 261120
        %v1320 = vsel %vm1318, %v1304, 0
        %1322 = vmatprep.subr.bf16.mxu0 0
        %1323 = vmatpush1.bf16.msra.mxu0 0
        %1324 = vmatprep.subr.bf16.mxu0 0
        %1325 = vmatpush1.bf16.msra.mxu0 0
        %1326 = vmatprep.subr.bf16.mxu0 0
        %1327 = vmatpush1.bf16.msra.mxu0 0
        %1328 = vmatprep.subr.bf16.mxu0 0
        %1329 = vmatpush1.bf16.msra.mxu0 0
        %1330 = vmatprep.subr.bf16.mxu0 0
        %1331 = vmatpush1.bf16.msra.mxu0 0
        %1332 = vmatprep.subr.bf16.mxu0 0
        %1333 = vmatpush1.bf16.msra.mxu0 0
        %1334 = vmatprep.subr.bf16.mxu0 0
        %1335 = vmatpush1.bf16.msra.mxu0 %v1310
        %1336 = vmatprep.subr.bf16.mxu0 0
        %1337 = vmatpush1.bf16.msra.mxu0 %v1309
        %1338 = vmatprep.subr.bf16.mxu0 0
        %1339 = vmatpush2.bf16.msra.mxu0 0
        %1340 = vmatprep.subr.bf16.mxu0 0
        %1341 = vmatpush2.bf16.msra.mxu0 0
        %1342 = vmatprep.subr.bf16.mxu0 0
        %1343 = vmatpush2.bf16.msra.mxu0 0
        %1344 = vmatprep.subr.bf16.mxu0 0
        %1345 = vmatpush2.bf16.msra.mxu0 0
        %1346 = vmatprep.subr.bf16.mxu0 0
        %1347 = vmatpush2.bf16.msra.mxu0 0
        %1348 = vmatprep.subr.bf16.mxu0 0
        %1349 = vmatpush2.bf16.msra.mxu0 0
        %1350 = vmatprep.subr.bf16.mxu0 0
        %1351 = vmatpush2.bf16.msra.mxu0 0
        %1352 = vmatprep.subr.bf16.mxu0 0
        %1353 = vmatpush2.bf16.msra.mxu0 0
        %1354 = vmatprep.mubr.bf16.mxu0 0
        %1355 = vmatmul.mubr.bf16.gmra.mxu0 %v1320
        %v1356 = vpop.f32.mrf.mxu0
        %v1357 = vadd.f32 %v1316, %v1356
        %v1358 = vpop.f32.mrf.mxu0
        %v1359 = vpop.f32.mrf.mxu0
        %v1360 = vpop.f32.mrf.mxu0
        %1361 = vdwg.mxu0
        %v1362 = vld [vmem:[%s13] sm:$0xff]
        %v1363 = vld [vmem:[%s13 + $0x8] sm:$0xff]
        %v1364 = vld [vmem:[%s13 + $0x10] sm:$0xff]
        %v1365 = vld [vmem:[%s13 + $0x18] sm:$0xff]
        %v1366 = vpack.c.bf16 %v1363, %v1362
        %v1367 = vpack.c.bf16 %v1365, %v1364
        %v1368 = vld [vmem:[%s15] sm:$0x1]
        %v1370 = vlaneseq
        %v1371 = vshrl.u32 %v1370, 7
        %v1372 = vsub.s32 0, %v1371
        %v1373 = vrot.slane %v1368, %v1372
        %1375 = vmatprep.subr.bf16.mxu0 0
        %1376 = vmatpush1.bf16.msra.mxu0 0
        %1377 = vmatprep.subr.bf16.mxu0 0
        %1378 = vmatpush1.bf16.msra.mxu0 0
        %1379 = vmatprep.subr.bf16.mxu0 0
        %1380 = vmatpush1.bf16.msra.mxu0 0
        %1381 = vmatprep.subr.bf16.mxu0 0
        %1382 = vmatpush1.bf16.msra.mxu0 0
        %1383 = vmatprep.subr.bf16.mxu0 0
        %1384 = vmatpush1.bf16.msra.mxu0 0
        %1385 = vmatprep.subr.bf16.mxu0 0
        %1386 = vmatpush1.bf16.msra.mxu0 0
        %1387 = vmatprep.subr.bf16.mxu0 0
        %1388 = vmatpush1.bf16.msra.mxu0 %v1367
        %1389 = vmatprep.subr.bf16.mxu0 0
        %1390 = vmatpush1.bf16.msra.mxu0 %v1366
        %1391 = vmatprep.subr.bf16.mxu0 0
        %1392 = vmatpush2.bf16.msra.mxu0 0
        %1393 = vmatprep.subr.bf16.mxu0 0
        %1394 = vmatpush2.bf16.msra.mxu0 0
        %1395 = vmatprep.subr.bf16.mxu0 0
        %1396 = vmatpush2.bf16.msra.mxu0 0
        %1397 = vmatprep.subr.bf16.mxu0 0
        %1398 = vmatpush2.bf16.msra.mxu0 0
        %1399 = vmatprep.subr.bf16.mxu0 0
        %1400 = vmatpush2.bf16.msra.mxu0 0
        %1401 = vmatprep.subr.bf16.mxu0 0
        %1402 = vmatpush2.bf16.msra.mxu0 0
        %1403 = vmatprep.subr.bf16.mxu0 0
        %1404 = vmatpush2.bf16.msra.mxu0 0
        %1405 = vmatprep.subr.bf16.mxu0 0
        %1406 = vmatpush2.bf16.msra.mxu0 0
        %1407 = vmatprep.mubr.bf16.mxu0 0
        %1408 = vmatmul.mubr.bf16.gmra.mxu0 %v1320
        %v1409 = vpop.f32.mrf.mxu0
        %v1410 = vadd.f32 %v1373, %v1409
        %v1411 = vpop.f32.mrf.mxu0
        %v1412 = vpop.f32.mrf.mxu0
        %v1413 = vpop.f32.mrf.mxu0
        %1414 = vdwg.mxu0
        %v1415 = vld [vmem:[%s17] sm:$0xff]
        %v1416 = vld [vmem:[%s17 + $0x8] sm:$0xff]
        %v1417 = vld [vmem:[%s17 + $0x10] sm:$0xff]
        %v1418 = vld [vmem:[%s17 + $0x18] sm:$0xff]
        %v1419 = vpack.c.bf16 %v1416, %v1415
        %v1420 = vpack.c.bf16 %v1418, %v1417
        %v1421 = vld [vmem:[%s19] sm:$0x1]
        %v1423 = vlaneseq
        %v1424 = vshrl.u32 %v1423, 7
        %v1425 = vsub.s32 0, %v1424
        %v1426 = vrot.slane %v1421, %v1425
        %v1429 = vsel %vm1318, %v1292, 0
        %1431 = vmatprep.subr.bf16.mxu0 0
        %1432 = vmatpush1.bf16.msra.mxu0 0
        %1433 = vmatprep.subr.bf16.mxu0 0
        %1434 = vmatpush1.bf16.msra.mxu0 0
        %1435 = vmatprep.subr.bf16.mxu0 0
        %1436 = vmatpush1.bf16.msra.mxu0 0
        %1437 = vmatprep.subr.bf16.mxu0 0
        %1438 = vmatpush1.bf16.msra.mxu0 0
        %1439 = vmatprep.subr.bf16.mxu0 0
        %1440 = vmatpush1.bf16.msra.mxu0 0
        %1441 = vmatprep.subr.bf16.mxu0 0
        %1442 = vmatpush1.bf16.msra.mxu0 0
        %1443 = vmatprep.subr.bf16.mxu0 0
        %1444 = vmatpush1.bf16.msra.mxu0 %v1420
        %1445 = vmatprep.subr.bf16.mxu0 0
        %1446 = vmatpush1.bf16.msra.mxu0 %v1419
        %1447 = vmatprep.subr.bf16.mxu0 0
        %1448 = vmatpush2.bf16.msra.mxu0 0
        %1449 = vmatprep.subr.bf16.mxu0 0
        %1450 = vmatpush2.bf16.msra.mxu0 0
        %1451 = vmatprep.subr.bf16.mxu0 0
        %1452 = vmatpush2.bf16.msra.mxu0 0
        %1453 = vmatprep.subr.bf16.mxu0 0
        %1454 = vmatpush2.bf16.msra.mxu0 0
        %1455 = vmatprep.subr.bf16.mxu0 0
        %1456 = vmatpush2.bf16.msra.mxu0 0
        %1457 = vmatprep.subr.bf16.mxu0 0
        %1458 = vmatpush2.bf16.msra.mxu0 0
        %1459 = vmatprep.subr.bf16.mxu0 0
        %1460 = vmatpush2.bf16.msra.mxu0 0
        %1461 = vmatprep.subr.bf16.mxu0 0
        %1462 = vmatpush2.bf16.msra.mxu0 0
        %1463 = vmatprep.mubr.bf16.mxu0 0
        %1464 = vmatmul.mubr.bf16.gmra.mxu0 %v1429
        %v1465 = vpop.f32.mrf.mxu0
        %v1466 = vadd.f32 %v1426, %v1465
        %v1467 = vpop.f32.mrf.mxu0
        %v1468 = vpop.f32.mrf.mxu0
        %v1469 = vpop.f32.mrf.mxu0
        %1470 = vdwg.mxu0
        %v1471 = vld [vmem:[%s21] sm:$0xff]
        %v1472 = vld [vmem:[%s21 + $0x8] sm:$0xff]
        %v1473 = vld [vmem:[%s21 + $0x10] sm:$0xff]
        %v1474 = vld [vmem:[%s21 + $0x18] sm:$0xff]
        %v1475 = vld [vmem:[%s23] sm:$0x1]
        %v1476 = vmul.f32 %v1357, 0.35355338
        %v1477 = vpack.c.bf16 %v1476, %v1476
        %v1478 = vpack.c.bf16 %v1410, %v1410
        %v1479 = vpack.c.bf16 %v1466, %v1466
        %vm1480 = vcmask 64512
        %v1482 = vsel %vm1480, %v1477, 0
        %v1485 = vsel %vm1480, %v1478, 0
        %1487 = vmatprep.subr.bf16.mxu0 0
        %1488 = vmatpush1.bf16.xpose.msra.mxu0 0
        %1489 = vmatprep.subr.bf16.mxu0 0
        %1490 = vmatpush1.bf16.xpose.msra.mxu0 0
        %1491 = vmatprep.subr.bf16.mxu0 0
        %1492 = vmatpush1.bf16.xpose.msra.mxu0 0
        %1493 = vmatprep.subr.bf16.mxu0 0
        %1494 = vmatpush1.bf16.xpose.msra.mxu0 0
        %1495 = vmatprep.subr.bf16.mxu0 0
        %1496 = vmatpush1.bf16.xpose.msra.mxu0 0
        %1497 = vmatprep.subr.bf16.mxu0 0
        %1498 = vmatpush1.bf16.xpose.msra.mxu0 0
        %1499 = vmatprep.subr.bf16.mxu0 0
        %1500 = vmatpush1.bf16.xpose.msra.mxu0 0
        %1501 = vmatprep.subr.bf16.mxu0 0
        %1502 = vmatpush1.bf16.xpose.msra.mxu0 %v1485
        %1503 = vmatprep.subr.bf16.mxu0 0
        %1504 = vmatpush2.bf16.xpose.msra.mxu0 0
        %1505 = vmatprep.subr.bf16.mxu0 0
        %1506 = vmatpush2.bf16.xpose.msra.mxu0 0
        %1507 = vmatprep.subr.bf16.mxu0 0
        %1508 = vmatpush2.bf16.xpose.msra.mxu0 0
        %1509 = vmatprep.subr.bf16.mxu0 0
        %1510 = vmatpush2.bf16.xpose.msra.mxu0 0
        %1511 = vmatprep.subr.bf16.mxu0 0
        %1512 = vmatpush2.bf16.xpose.msra.mxu0 0
        %1513 = vmatprep.subr.bf16.mxu0 0
        %1514 = vmatpush2.bf16.xpose.msra.mxu0 0
        %1515 = vmatprep.subr.bf16.mxu0 0
        %1516 = vmatpush2.bf16.xpose.msra.mxu0 0
        %1517 = vmatprep.subr.bf16.mxu0 0
        %1518 = vmatpush2.bf16.xpose.msra.mxu0 0
        %1519 = vmatprep.mubr.bf16.mxu0 0
        %1520 = vmatmul.mubr.bf16.gmra.mxu0 %v1482
        %v1521 = vpop.f32.mrf.mxu0
        %v1522 = vadd.f32 0.0, %v1521
        %v1523 = vpop.f32.mrf.mxu0
        %v1524 = vpop.f32.mrf.mxu0
        %v1525 = vpop.f32.mrf.mxu0
        %1526 = vdwg.mxu0
        %v1527 = vsel %vm1480, %v1522, -inf
        %1528 = vmax.xlane.f32.xlu0 %v1527
        %v1529 = vpop.xlane.xlu0 %1528
        %v1530 = vsub.f32 %v1522, %v1529
        %v1531 = vmul.f32 %v1530, 1.442695
        %v1532 = vpow.pop %v1531
        %v1533 = vsel %vm1480, %v1532, 0.0
        %1534 = vadd.xlane.f32.xlu0 %v1533
        %v1535 = vpop.xlane.xlu0 %1534
        %v1536 = vrcp.pop %v1535
        %v1537 = vmul.f32 %v1532, %v1536
        %v1538 = vpack.c.bf16 %v1537, %v1537
        %v1540 = vsel %vm1480, %v1538, 0
        %vm1542 = vcmask 1043456
        %v1544 = vsel %vm1542, %v1479, 0
        %1546 = vmatprep.subr.bf16.mxu0 0
        %1547 = vmatpush1.bf16.msra.mxu0 0
        %1548 = vmatprep.subr.bf16.mxu0 0
        %1549 = vmatpush1.bf16.msra.mxu0 0
        %1550 = vmatprep.subr.bf16.mxu0 0
        %1551 = vmatpush1.bf16.msra.mxu0 0
        %1552 = vmatprep.subr.bf16.mxu0 0
        %1553 = vmatpush1.bf16.msra.mxu0 0
        %1554 = vmatprep.subr.bf16.mxu0 0
        %1555 = vmatpush1.bf16.msra.mxu0 0
        %1556 = vmatprep.subr.bf16.mxu0 0
        %1557 = vmatpush1.bf16.msra.mxu0 0
        %1558 = vmatprep.subr.bf16.mxu0 0
        %1559 = vmatpush1.bf16.msra.mxu0 0
        %1560 = vmatprep.subr.bf16.mxu0 0
        %1561 = vmatpush1.bf16.msra.mxu0 %v1544
        %1562 = vmatprep.subr.bf16.mxu0 0
        %1563 = vmatpush2.bf16.msra.mxu0 0
        %1564 = vmatprep.subr.bf16.mxu0 0
        %1565 = vmatpush2.bf16.msra.mxu0 0
        %1566 = vmatprep.subr.bf16.mxu0 0
        %1567 = vmatpush2.bf16.msra.mxu0 0
        %1568 = vmatprep.subr.bf16.mxu0 0
        %1569 = vmatpush2.bf16.msra.mxu0 0
        %1570 = vmatprep.subr.bf16.mxu0 0
        %1571 = vmatpush2.bf16.msra.mxu0 0
        %1572 = vmatprep.subr.bf16.mxu0 0
        %1573 = vmatpush2.bf16.msra.mxu0 0
        %1574 = vmatprep.subr.bf16.mxu0 0
        %1575 = vmatpush2.bf16.msra.mxu0 0
        %1576 = vmatprep.subr.bf16.mxu0 0
        %1577 = vmatpush2.bf16.msra.mxu0 0
        %1578 = vmatprep.mubr.bf16.mxu0 0
        %1579 = vmatmul.mubr.bf16.gmra.mxu0 %v1540
        %v1580 = vpop.f32.mrf.mxu0
        %v1581 = vadd.f32 0.0, %v1580
        %v1582 = vpop.f32.mrf.mxu0
        %v1583 = vpop.f32.mrf.mxu0
        %v1584 = vpop.f32.mrf.mxu0
        %1585 = vdwg.mxu0
        %1587 = vrot.lane.b32.xlu0 %v1477, 120
        %v1588 = vpop.permute.xlu0 %1587
        %1590 = vrot.lane.b32.xlu0 %v1478, 120
        %v1591 = vpop.permute.xlu0 %1590
        %v1593 = vsel %vm1480, %v1588, 0
        %v1596 = vsel %vm1480, %v1591, 0
        %1598 = vmatprep.subr.bf16.mxu0 0
        %1599 = vmatpush1.bf16.xpose.msra.mxu0 0
        %1600 = vmatprep.subr.bf16.mxu0 0
        %1601 = vmatpush1.bf16.xpose.msra.mxu0 0
        %1602 = vmatprep.subr.bf16.mxu0 0
        %1603 = vmatpush1.bf16.xpose.msra.mxu0 0
        %1604 = vmatprep.subr.bf16.mxu0 0
        %1605 = vmatpush1.bf16.xpose.msra.mxu0 0
        %1606 = vmatprep.subr.bf16.mxu0 0
        %1607 = vmatpush1.bf16.xpose.msra.mxu0 0
        %1608 = vmatprep.subr.bf16.mxu0 0
        %1609 = vmatpush1.bf16.xpose.msra.mxu0 0
        %1610 = vmatprep.subr.bf16.mxu0 0
        %1611 = vmatpush1.bf16.xpose.msra.mxu0 0
        %1612 = vmatprep.subr.bf16.mxu0 0
        %1613 = vmatpush1.bf16.xpose.msra.mxu0 %v1596
        %1614 = vmatprep.subr.bf16.mxu0 0
        %1615 = vmatpush2.bf16.xpose.msra.mxu0 0
        %1616 = vmatprep.subr.bf16.mxu0 0
        %1617 = vmatpush2.bf16.xpose.msra.mxu0 0
        %1618 = vmatprep.subr.bf16.mxu0 0
        %1619 = vmatpush2.bf16.xpose.msra.mxu0 0
        %1620 = vmatprep.subr.bf16.mxu0 0
        %1621 = vmatpush2.bf16.xpose.msra.mxu0 0
        %1622 = vmatprep.subr.bf16.mxu0 0
        %1623 = vmatpush2.bf16.xpose.msra.mxu0 0
        %1624 = vmatprep.subr.bf16.mxu0 0
        %1625 = vmatpush2.bf16.xpose.msra.mxu0 0
        %1626 = vmatprep.subr.bf16.mxu0 0
        %1627 = vmatpush2.bf16.xpose.msra.mxu0 0
        %1628 = vmatprep.subr.bf16.mxu0 0
        %1629 = vmatpush2.bf16.xpose.msra.mxu0 0
        %1630 = vmatprep.mubr.bf16.mxu0 0
        %1631 = vmatmul.mubr.bf16.gmra.mxu0 %v1593
        %v1632 = vpop.f32.mrf.mxu0
        %v1633 = vadd.f32 0.0, %v1632
        %v1634 = vpop.f32.mrf.mxu0
        %v1635 = vpop.f32.mrf.mxu0
        %v1636 = vpop.f32.mrf.mxu0
        %1637 = vdwg.mxu0
        %v1638 = vsel %vm1480, %v1633, -inf
        %1639 = vmax.xlane.f32.xlu0 %v1638
        %v1640 = vpop.xlane.xlu0 %1639
        %v1641 = vsub.f32 %v1633, %v1640
        %v1642 = vmul.f32 %v1641, 1.442695
        %v1643 = vpow.pop %v1642
        %v1644 = vsel %vm1480, %v1643, 0.0
        %1645 = vadd.xlane.f32.xlu0 %v1644
        %v1646 = vpop.xlane.xlu0 %1645
        %v1647 = vrcp.pop %v1646
        %v1648 = vmul.f32 %v1643, %v1647
        %v1649 = vpack.c.bf16 %v1648, %v1648
        %1651 = vrot.lane.b32.xlu0 %v1479, 120
        %v1652 = vpop.permute.xlu0 %1651
        %v1654 = vsel %vm1480, %v1649, 0
        %v1657 = vsel %vm1542, %v1652, 0
        %1659 = vmatprep.subr.bf16.mxu0 0
        %1660 = vmatpush1.bf16.msra.mxu0 0
        %1661 = vmatprep.subr.bf16.mxu0 0
        %1662 = vmatpush1.bf16.msra.mxu0 0
        %1663 = vmatprep.subr.bf16.mxu0 0
        %1664 = vmatpush1.bf16.msra.mxu0 0
        %1665 = vmatprep.subr.bf16.mxu0 0
        %1666 = vmatpush1.bf16.msra.mxu0 0
        %1667 = vmatprep.subr.bf16.mxu0 0
        %1668 = vmatpush1.bf16.msra.mxu0 0
        %1669 = vmatprep.subr.bf16.mxu0 0
        %1670 = vmatpush1.bf16.msra.mxu0 0
        %1671 = vmatprep.subr.bf16.mxu0 0
        %1672 = vmatpush1.bf16.msra.mxu0 0
        %1673 = vmatprep.subr.bf16.mxu0 0
        %1674 = vmatpush1.bf16.msra.mxu0 %v1657
        %1675 = vmatprep.subr.bf16.mxu0 0
        %1676 = vmatpush2.bf16.msra.mxu0 0
        %1677 = vmatprep.subr.bf16.mxu0 0
        %1678 = vmatpush2.bf16.msra.mxu0 0
        %1679 = vmatprep.subr.bf16.mxu0 0
        %1680 = vmatpush2.bf16.msra.mxu0 0
        %1681 = vmatprep.subr.bf16.mxu0 0
        %1682 = vmatpush2.bf16.msra.mxu0 0
        %1683 = vmatprep.subr.bf16.mxu0 0
        %1684 = vmatpush2.bf16.msra.mxu0 0
        %1685 = vmatprep.subr.bf16.mxu0 0
        %1686 = vmatpush2.bf16.msra.mxu0 0
        %1687 = vmatprep.subr.bf16.mxu0 0
        %1688 = vmatpush2.bf16.msra.mxu0 0
        %1689 = vmatprep.subr.bf16.mxu0 0
        %1690 = vmatpush2.bf16.msra.mxu0 0
        %1691 = vmatprep.mubr.bf16.mxu0 0
        %1692 = vmatmul.mubr.bf16.gmra.mxu0 %v1654
        %v1693 = vpop.f32.mrf.mxu0
        %v1694 = vadd.f32 0.0, %v1693
        %v1695 = vpop.f32.mrf.mxu0
        %v1696 = vpop.f32.mrf.mxu0
        %v1697 = vpop.f32.mrf.mxu0
        %1698 = vdwg.mxu0
        %1699 = vrot.lane.b32.xlu0 %v1477, 112
        %v1700 = vpop.permute.xlu0 %1699
        %1701 = vrot.lane.b32.xlu0 %v1478, 112
        %v1702 = vpop.permute.xlu0 %1701
        %v1704 = vsel %vm1480, %v1700, 0
        %v1707 = vsel %vm1480, %v1702, 0
        %1709 = vmatprep.subr.bf16.mxu0 0
        %1710 = vmatpush1.bf16.xpose.msra.mxu0 0
        %1711 = vmatprep.subr.bf16.mxu0 0
        %1712 = vmatpush1.bf16.xpose.msra.mxu0 0
        %1713 = vmatprep.subr.bf16.mxu0 0
        %1714 = vmatpush1.bf16.xpose.msra.mxu0 0
        %1715 = vmatprep.subr.bf16.mxu0 0
        %1716 = vmatpush1.bf16.xpose.msra.mxu0 0
        %1717 = vmatprep.subr.bf16.mxu0 0
        %1718 = vmatpush1.bf16.xpose.msra.mxu0 0
        %1719 = vmatprep.subr.bf16.mxu0 0
        %1720 = vmatpush1.bf16.xpose.msra.mxu0 0
        %1721 = vmatprep.subr.bf16.mxu0 0
        %1722 = vmatpush1.bf16.xpose.msra.mxu0 0
        %1723 = vmatprep.subr.bf16.mxu0 0
        %1724 = vmatpush1.bf16.xpose.msra.mxu0 %v1707
        %1725 = vmatprep.subr.bf16.mxu0 0
        %1726 = vmatpush2.bf16.xpose.msra.mxu0 0
        %1727 = vmatprep.subr.bf16.mxu0 0
        %1728 = vmatpush2.bf16.xpose.msra.mxu0 0
        %1729 = vmatprep.subr.bf16.mxu0 0
        %1730 = vmatpush2.bf16.xpose.msra.mxu0 0
        %1731 = vmatprep.subr.bf16.mxu0 0
        %1732 = vmatpush2.bf16.xpose.msra.mxu0 0
        %1733 = vmatprep.subr.bf16.mxu0 0
        %1734 = vmatpush2.bf16.xpose.msra.mxu0 0
        %1735 = vmatprep.subr.bf16.mxu0 0
        %1736 = vmatpush2.bf16.xpose.msra.mxu0 0
        %1737 = vmatprep.subr.bf16.mxu0 0
        %1738 = vmatpush2.bf16.xpose.msra.mxu0 0
        %1739 = vmatprep.subr.bf16.mxu0 0
        %1740 = vmatpush2.bf16.xpose.msra.mxu0 0
        %1741 = vmatprep.mubr.bf16.mxu0 0
        %1742 = vmatmul.mubr.bf16.gmra.mxu0 %v1704
        %v1743 = vpop.f32.mrf.mxu0
        %v1744 = vadd.f32 0.0, %v1743
        %v1745 = vpop.f32.mrf.mxu0
        %v1746 = vpop.f32.mrf.mxu0
        %v1747 = vpop.f32.mrf.mxu0
        %1748 = vdwg.mxu0
        %v1749 = vsel %vm1480, %v1744, -inf
        %1750 = vmax.xlane.f32.xlu0 %v1749
        %v1751 = vpop.xlane.xlu0 %1750
        %v1752 = vsub.f32 %v1744, %v1751
        %v1753 = vmul.f32 %v1752, 1.442695
        %v1754 = vpow.pop %v1753
        %v1755 = vsel %vm1480, %v1754, 0.0
        %1756 = vadd.xlane.f32.xlu0 %v1755
        %v1757 = vpop.xlane.xlu0 %1756
        %v1758 = vrcp.pop %v1757
        %v1759 = vmul.f32 %v1754, %v1758
        %v1760 = vpack.c.bf16 %v1759, %v1759
        %1761 = vrot.lane.b32.xlu0 %v1479, 112
        %v1762 = vpop.permute.xlu0 %1761
        %v1764 = vsel %vm1480, %v1760, 0
        %v1767 = vsel %vm1542, %v1762, 0
        %1769 = vmatprep.subr.bf16.mxu0 0
        %1770 = vmatpush1.bf16.msra.mxu0 0
        %1771 = vmatprep.subr.bf16.mxu0 0
        %1772 = vmatpush1.bf16.msra.mxu0 0
        %1773 = vmatprep.subr.bf16.mxu0 0
        %1774 = vmatpush1.bf16.msra.mxu0 0
        %1775 = vmatprep.subr.bf16.mxu0 0
        %1776 = vmatpush1.bf16.msra.mxu0 0
        %1777 = vmatprep.subr.bf16.mxu0 0
        %1778 = vmatpush1.bf16.msra.mxu0 0
        %1779 = vmatprep.subr.bf16.mxu0 0
        %1780 = vmatpush1.bf16.msra.mxu0 0
        %1781 = vmatprep.subr.bf16.mxu0 0
        %1782 = vmatpush1.bf16.msra.mxu0 0
        %1783 = vmatprep.subr.bf16.mxu0 0
        %1784 = vmatpush1.bf16.msra.mxu0 %v1767
        %1785 = vmatprep.subr.bf16.mxu0 0
        %1786 = vmatpush2.bf16.msra.mxu0 0
        %1787 = vmatprep.subr.bf16.mxu0 0
        %1788 = vmatpush2.bf16.msra.mxu0 0
        %1789 = vmatprep.subr.bf16.mxu0 0
        %1790 = vmatpush2.bf16.msra.mxu0 0
        %1791 = vmatprep.subr.bf16.mxu0 0
        %1792 = vmatpush2.bf16.msra.mxu0 0
        %1793 = vmatprep.subr.bf16.mxu0 0
        %1794 = vmatpush2.bf16.msra.mxu0 0
        %1795 = vmatprep.subr.bf16.mxu0 0
        %1796 = vmatpush2.bf16.msra.mxu0 0
        %1797 = vmatprep.subr.bf16.mxu0 0
        %1798 = vmatpush2.bf16.msra.mxu0 0
        %1799 = vmatprep.subr.bf16.mxu0 0
        %1800 = vmatpush2.bf16.msra.mxu0 0
        %1801 = vmatprep.mubr.bf16.mxu0 0
        %1802 = vmatmul.mubr.bf16.gmra.mxu0 %v1764
        %v1803 = vpop.f32.mrf.mxu0
        %v1804 = vadd.f32 0.0, %v1803
        %v1805 = vpop.f32.mrf.mxu0
        %v1806 = vpop.f32.mrf.mxu0
        %v1807 = vpop.f32.mrf.mxu0
        %1808 = vdwg.mxu0
        %1809 = vrot.lane.b32.xlu0 %v1477, 104
        %v1810 = vpop.permute.xlu0 %1809
        %1811 = vrot.lane.b32.xlu0 %v1478, 104
        %v1812 = vpop.permute.xlu0 %1811
        %v1814 = vsel %vm1480, %v1810, 0
        %v1817 = vsel %vm1480, %v1812, 0
        %1819 = vmatprep.subr.bf16.mxu0 0
        %1820 = vmatpush1.bf16.xpose.msra.mxu0 0
        %1821 = vmatprep.subr.bf16.mxu0 0
        %1822 = vmatpush1.bf16.xpose.msra.mxu0 0
        %1823 = vmatprep.subr.bf16.mxu0 0
        %1824 = vmatpush1.bf16.xpose.msra.mxu0 0
        %1825 = vmatprep.subr.bf16.mxu0 0
        %1826 = vmatpush1.bf16.xpose.msra.mxu0 0
        %1827 = vmatprep.subr.bf16.mxu0 0
        %1828 = vmatpush1.bf16.xpose.msra.mxu0 0
        %1829 = vmatprep.subr.bf16.mxu0 0
        %1830 = vmatpush1.bf16.xpose.msra.mxu0 0
        %1831 = vmatprep.subr.bf16.mxu0 0
        %1832 = vmatpush1.bf16.xpose.msra.mxu0 0
        %1833 = vmatprep.subr.bf16.mxu0 0
        %1834 = vmatpush1.bf16.xpose.msra.mxu0 %v1817
        %1835 = vmatprep.subr.bf16.mxu0 0
        %1836 = vmatpush2.bf16.xpose.msra.mxu0 0
        %1837 = vmatprep.subr.bf16.mxu0 0
        %1838 = vmatpush2.bf16.xpose.msra.mxu0 0
        %1839 = vmatprep.subr.bf16.mxu0 0
        %1840 = vmatpush2.bf16.xpose.msra.mxu0 0
        %1841 = vmatprep.subr.bf16.mxu0 0
        %1842 = vmatpush2.bf16.xpose.msra.mxu0 0
        %1843 = vmatprep.subr.bf16.mxu0 0
        %1844 = vmatpush2.bf16.xpose.msra.mxu0 0
        %1845 = vmatprep.subr.bf16.mxu0 0
        %1846 = vmatpush2.bf16.xpose.msra.mxu0 0
        %1847 = vmatprep.subr.bf16.mxu0 0
        %1848 = vmatpush2.bf16.xpose.msra.mxu0 0
        %1849 = vmatprep.subr.bf16.mxu0 0
        %1850 = vmatpush2.bf16.xpose.msra.mxu0 0
        %1851 = vmatprep.mubr.bf16.mxu0 0
        %1852 = vmatmul.mubr.bf16.gmra.mxu0 %v1814
        %v1853 = vpop.f32.mrf.mxu0
        %v1854 = vadd.f32 0.0, %v1853
        %v1855 = vpop.f32.mrf.mxu0
        %v1856 = vpop.f32.mrf.mxu0
        %v1857 = vpop.f32.mrf.mxu0
        %1858 = vdwg.mxu0
        %v1859 = vsel %vm1480, %v1854, -inf
        %1860 = vmax.xlane.f32.xlu0 %v1859
        %v1861 = vpop.xlane.xlu0 %1860
        %v1862 = vsub.f32 %v1854, %v1861
        %v1863 = vmul.f32 %v1862, 1.442695
        %v1864 = vpow.pop %v1863
        %v1865 = vsel %vm1480, %v1864, 0.0
        %1866 = vadd.xlane.f32.xlu0 %v1865
        %v1867 = vpop.xlane.xlu0 %1866
        %v1868 = vrcp.pop %v1867
        %v1869 = vmul.f32 %v1864, %v1868
        %v1870 = vpack.c.bf16 %v1869, %v1869
        %1871 = vrot.lane.b32.xlu0 %v1479, 104
        %v1872 = vpop.permute.xlu0 %1871
        %v1874 = vsel %vm1480, %v1870, 0
        %v1877 = vsel %vm1542, %v1872, 0
        %1879 = vmatprep.subr.bf16.mxu0 0
        %1880 = vmatpush1.bf16.msra.mxu0 0
        %1881 = vmatprep.subr.bf16.mxu0 0
        %1882 = vmatpush1.bf16.msra.mxu0 0
        %1883 = vmatprep.subr.bf16.mxu0 0
        %1884 = vmatpush1.bf16.msra.mxu0 0
        %1885 = vmatprep.subr.bf16.mxu0 0
        %1886 = vmatpush1.bf16.msra.mxu0 0
        %1887 = vmatprep.subr.bf16.mxu0 0
        %1888 = vmatpush1.bf16.msra.mxu0 0
        %1889 = vmatprep.subr.bf16.mxu0 0
        %1890 = vmatpush1.bf16.msra.mxu0 0
        %1891 = vmatprep.subr.bf16.mxu0 0
        %1892 = vmatpush1.bf16.msra.mxu0 0
        %1893 = vmatprep.subr.bf16.mxu0 0
        %1894 = vmatpush1.bf16.msra.mxu0 %v1877
        %1895 = vmatprep.subr.bf16.mxu0 0
        %1896 = vmatpush2.bf16.msra.mxu0 0
        %1897 = vmatprep.subr.bf16.mxu0 0
        %1898 = vmatpush2.bf16.msra.mxu0 0
        %1899 = vmatprep.subr.bf16.mxu0 0
        %1900 = vmatpush2.bf16.msra.mxu0 0
        %1901 = vmatprep.subr.bf16.mxu0 0
        %1902 = vmatpush2.bf16.msra.mxu0 0
        %1903 = vmatprep.subr.bf16.mxu0 0
        %1904 = vmatpush2.bf16.msra.mxu0 0
        %1905 = vmatprep.subr.bf16.mxu0 0
        %1906 = vmatpush2.bf16.msra.mxu0 0
        %1907 = vmatprep.subr.bf16.mxu0 0
        %1908 = vmatpush2.bf16.msra.mxu0 0
        %1909 = vmatprep.subr.bf16.mxu0 0
        %1910 = vmatpush2.bf16.msra.mxu0 0
        %1911 = vmatprep.mubr.bf16.mxu0 0
        %1912 = vmatmul.mubr.bf16.gmra.mxu0 %v1874
        %v1913 = vpop.f32.mrf.mxu0
        %v1914 = vadd.f32 0.0, %v1913
        %v1915 = vpop.f32.mrf.mxu0
        %v1916 = vpop.f32.mrf.mxu0
        %v1917 = vpop.f32.mrf.mxu0
        %1918 = vdwg.mxu0
        %1920 = vrot.lane.b32.xlu0 %v1694, 8
        %v1921 = vpop.permute.xlu0 %1920
        %1924 = vrot.lane.b32.xlu0 %v1804, 16
        %v1925 = vpop.permute.xlu0 %1924
        %1928 = vrot.lane.b32.xlu0 %v1914, 24
        %v1929 = vpop.permute.xlu0 %1928
        %v1931 = vsel %vm1480, %v1581, %v1921
        %vm1932 = vcmask 130048
        %v1933 = vsel %vm1932, %v1931, %v1925
        %vm1934 = vcmask 195584
        %v1935 = vsel %vm1934, %v1933, %v1929
        %v1936 = vpack.c.bf16 %v1935, %v1935
        %v1937 = vpack.c.bf16 %v1472, %v1471
        %v1938 = vpack.c.bf16 %v1474, %v1473
        %v1940 = vlaneseq
        %v1941 = vshrl.u32 %v1940, 7
        %v1942 = vsub.s32 0, %v1941
        %v1943 = vrot.slane %v1475, %v1942
        %v1946 = vsel %vm1318, %v1936, 0
        %1948 = vmatprep.subr.bf16.mxu0 0
        %1949 = vmatpush1.bf16.msra.mxu0 0
        %1950 = vmatprep.subr.bf16.mxu0 0
        %1951 = vmatpush1.bf16.msra.mxu0 0
        %1952 = vmatprep.subr.bf16.mxu0 0
        %1953 = vmatpush1.bf16.msra.mxu0 0
        %1954 = vmatprep.subr.bf16.mxu0 0
        %1955 = vmatpush1.bf16.msra.mxu0 0
        %1956 = vmatprep.subr.bf16.mxu0 0
        %1957 = vmatpush1.bf16.msra.mxu0 0
        %1958 = vmatprep.subr.bf16.mxu0 0
        %1959 = vmatpush1.bf16.msra.mxu0 0
        %1960 = vmatprep.subr.bf16.mxu0 0
        %1961 = vmatpush1.bf16.msra.mxu0 %v1938
        %1962 = vmatprep.subr.bf16.mxu0 0
        %1963 = vmatpush1.bf16.msra.mxu0 %v1937
        %1964 = vmatprep.subr.bf16.mxu0 0
        %1965 = vmatpush2.bf16.msra.mxu0 0
        %1966 = vmatprep.subr.bf16.mxu0 0
        %1967 = vmatpush2.bf16.msra.mxu0 0
        %1968 = vmatprep.subr.bf16.mxu0 0
        %1969 = vmatpush2.bf16.msra.mxu0 0
        %1970 = vmatprep.subr.bf16.mxu0 0
        %1971 = vmatpush2.bf16.msra.mxu0 0
        %1972 = vmatprep.subr.bf16.mxu0 0
        %1973 = vmatpush2.bf16.msra.mxu0 0
        %1974 = vmatprep.subr.bf16.mxu0 0
        %1975 = vmatpush2.bf16.msra.mxu0 0
        %1976 = vmatprep.subr.bf16.mxu0 0
        %1977 = vmatpush2.bf16.msra.mxu0 0
        %1978 = vmatprep.subr.bf16.mxu0 0
        %1979 = vmatpush2.bf16.msra.mxu0 0
        %1980 = vmatprep.mubr.bf16.mxu0 0
        %1981 = vmatmul.mubr.bf16.gmra.mxu0 %v1946
        %v1982 = vpop.f32.mrf.mxu0
        %v1983 = vadd.f32 %v1943, %v1982
        %v1984 = vpop.f32.mrf.mxu0
        %v1985 = vpop.f32.mrf.mxu0
        %v1986 = vpop.f32.mrf.mxu0
        %1987 = vdwg.mxu0
        %v1988 = vadd.f32 %v1297, %v1983
        %v1989 = vld [vmem:[%s25] sm:$0x1]
        %v1990 = vld [vmem:[%s27] sm:$0x1]
        %v1991 = vsel %vm1318, %v1988, 0.0
        %1992 = vadd.xlane.f32.xlu0 %v1991
        %v1993 = vpop.xlane.xlu0 %1992
        %v1994 = vrcp.pop 32.0
        %v1995 = vmul.f32 %v1993, %v1994
        %v1996 = vsub.f32 %v1988, %v1995
        %v1997 = vmul.f32 %v1996, %v1996
        %v1998 = vsel %vm1318, %v1997, 0.0
        %1999 = vadd.xlane.f32.xlu0 %v1998
        %v2000 = vpop.xlane.xlu0 %1999
        %v2001 = vmul.f32 %v2000, %v1994
        %v2002 = vadd.f32 %v2001, 1e-05
        %v2003 = vrsqrt.pop %v2002
        %v2004 = vmul.f32 %v1996, %v2003
        %v2006 = vlaneseq
        %v2007 = vshrl.u32 %v2006, 7
        %v2008 = vsub.s32 0, %v2007
        %v2009 = vrot.slane %v1989, %v2008
        %v2011 = vmul.f32 %v2004, %v2009
        %v2013 = vlaneseq
        %v2014 = vshrl.u32 %v2013, 7
        %v2015 = vsub.s32 0, %v2014
        %v2016 = vrot.slane %v1990, %v2015
        %v2018 = vadd.f32 %v2011, %v2016
        %v2019 = vld [vmem:[%s29] sm:$0xff]
        %v2020 = vld [vmem:[%s29 + $0x8] sm:$0xff]
        %v2021 = vld [vmem:[%s29 + $0x10] sm:$0xff]
        %v2022 = vld [vmem:[%s29 + $0x18] sm:$0xff]
        %v2023 = vld [vmem:[%s29 + $0x20] sm:$0xff]
        %v2024 = vld [vmem:[%s29 + $0x28] sm:$0xff]
        %v2025 = vld [vmem:[%s29 + $0x30] sm:$0xff]
        %v2026 = vld [vmem:[%s29 + $0x38] sm:$0xff]
        %v2027 = vld [vmem:[%s29 + $0x40] sm:$0xff]
        %v2028 = vld [vmem:[%s29 + $0x48] sm:$0xff]
        %v2029 = vld [vmem:[%s29 + $0x50] sm:$0xff]
        %v2030 = vld [vmem:[%s29 + $0x58] sm:$0xff]
        %v2031 = vld [vmem:[%s29 + $0x60] sm:$0xff]
        %v2032 = vld [vmem:[%s29 + $0x68] sm:$0xff]
        %v2033 = vld [vmem:[%s29 + $0x70] sm:$0xff]
        %v2034 = vld [vmem:[%s29 + $0x78] sm:$0xff]
        %v2035 = vpack.c.bf16 %v1303, %v1303
        %v2036 = vpack.c.bf16 %v2020, %v2019
        %v2037 = vpack.c.bf16 %v2022, %v2021
        %v2038 = vpack.c.bf16 %v2024, %v2023
        %v2039 = vpack.c.bf16 %v2026, %v2025
        %v2040 = vpack.c.bf16 %v2028, %v2027
        %v2041 = vpack.c.bf16 %v2030, %v2029
        %v2042 = vpack.c.bf16 %v2032, %v2031
        %v2043 = vpack.c.bf16 %v2034, %v2033
        %v2044 = vld [vmem:[%s31] sm:$0x1]
        %v2046 = vlaneseq
        %v2047 = vshrl.u32 %v2046, 7
        %v2048 = vsub.s32 0, %v2047
        %v2049 = vrot.slane %v2044, %v2048
        %2051 = vmatprep.subr.bf16.mxu0 0
        %2052 = vmatpush1.bf16.msra.mxu0 %v2043
        %2053 = vmatprep.subr.bf16.mxu0 0
        %2054 = vmatpush1.bf16.msra.mxu0 %v2042
        %2055 = vmatprep.subr.bf16.mxu0 0
        %2056 = vmatpush1.bf16.msra.mxu0 %v2041
        %2057 = vmatprep.subr.bf16.mxu0 0
        %2058 = vmatpush1.bf16.msra.mxu0 %v2040
        %2059 = vmatprep.subr.bf16.mxu0 0
        %2060 = vmatpush1.bf16.msra.mxu0 %v2039
        %2061 = vmatprep.subr.bf16.mxu0 0
        %2062 = vmatpush1.bf16.msra.mxu0 %v2038
        %2063 = vmatprep.subr.bf16.mxu0 0
        %2064 = vmatpush1.bf16.msra.mxu0 %v2037
        %2065 = vmatprep.subr.bf16.mxu0 0
        %2066 = vmatpush1.bf16.msra.mxu0 %v2036
        %2067 = vmatprep.subr.bf16.mxu0 0
        %2068 = vmatpush2.bf16.msra.mxu0 0
        %2069 = vmatprep.subr.bf16.mxu0 0
        %2070 = vmatpush2.bf16.msra.mxu0 0
        %2071 = vmatprep.subr.bf16.mxu0 0
        %2072 = vmatpush2.bf16.msra.mxu0 0
        %2073 = vmatprep.subr.bf16.mxu0 0
        %2074 = vmatpush2.bf16.msra.mxu0 0
        %2075 = vmatprep.subr.bf16.mxu0 0
        %2076 = vmatpush2.bf16.msra.mxu0 0
        %2077 = vmatprep.subr.bf16.mxu0 0
        %2078 = vmatpush2.bf16.msra.mxu0 0
        %2079 = vmatprep.subr.bf16.mxu0 0
        %2080 = vmatpush2.bf16.msra.mxu0 0
        %2081 = vmatprep.subr.bf16.mxu0 0
        %2082 = vmatpush2.bf16.msra.mxu0 0
        %2083 = vmatprep.mubr.bf16.mxu0 0
        %2084 = vmatmul.mubr.bf16.gmra.mxu0 %v2035
        %v2085 = vpop.f32.mrf.mxu0
        %v2086 = vadd.f32 %v2049, %v2085
        %v2087 = vpop.f32.mrf.mxu0
        %v2088 = vpop.f32.mrf.mxu0
        %v2089 = vpop.f32.mrf.mxu0
        %2090 = vdwg.mxu0
        %v2091 = vunpack.c.l.bf16 %v1293
        %v2092 = vadd.f32 %v2018, %v2091
        %v2093 = vadd.f32 %v2092, %v2086
        %v2094 = vld [vmem:[%s33] sm:$0xff]
        %v2095 = vld [vmem:[%s33 + $0x8] sm:$0xff]
        %v2096 = vld [vmem:[%s33 + $0x10] sm:$0xff]
        %v2097 = vld [vmem:[%s33 + $0x18] sm:$0xff]
        %v2098 = vpack.c.bf16 %v2093, %v2093
        %v2099 = vpack.c.bf16 %v2095, %v2094
        %v2100 = vpack.c.bf16 %v2097, %v2096
        %v2101 = vld [vmem:[%s35] sm:$0x1]
        %v2103 = vlaneseq
        %v2104 = vshrl.u32 %v2103, 7
        %v2105 = vsub.s32 0, %v2104
        %v2106 = vrot.slane %v2101, %v2105
        %v2109 = vsel %vm1318, %v2098, 0
        %2111 = vmatprep.subr.bf16.mxu0 0
        %2112 = vmatpush1.bf16.msra.mxu0 0
        %2113 = vmatprep.subr.bf16.mxu0 0
        %2114 = vmatpush1.bf16.msra.mxu0 0
        %2115 = vmatprep.subr.bf16.mxu0 0
        %2116 = vmatpush1.bf16.msra.mxu0 0
        %2117 = vmatprep.subr.bf16.mxu0 0
        %2118 = vmatpush1.bf16.msra.mxu0 0
        %2119 = vmatprep.subr.bf16.mxu0 0
        %2120 = vmatpush1.bf16.msra.mxu0 0
        %2121 = vmatprep.subr.bf16.mxu0 0
        %2122 = vmatpush1.bf16.msra.mxu0 0
        %2123 = vmatprep.subr.bf16.mxu0 0
        %2124 = vmatpush1.bf16.msra.mxu0 %v2100
        %2125 = vmatprep.subr.bf16.mxu0 0
        %2126 = vmatpush1.bf16.msra.mxu0 %v2099
        %2127 = vmatprep.subr.bf16.mxu0 0
        %2128 = vmatpush2.bf16.msra.mxu0 0
        %2129 = vmatprep.subr.bf16.mxu0 0
        %2130 = vmatpush2.bf16.msra.mxu0 0
        %2131 = vmatprep.subr.bf16.mxu0 0
        %2132 = vmatpush2.bf16.msra.mxu0 0
        %2133 = vmatprep.subr.bf16.mxu0 0
        %2134 = vmatpush2.bf16.msra.mxu0 0
        %2135 = vmatprep.subr.bf16.mxu0 0
        %2136 = vmatpush2.bf16.msra.mxu0 0
        %2137 = vmatprep.subr.bf16.mxu0 0
        %2138 = vmatpush2.bf16.msra.mxu0 0
        %2139 = vmatprep.subr.bf16.mxu0 0
        %2140 = vmatpush2.bf16.msra.mxu0 0
        %2141 = vmatprep.subr.bf16.mxu0 0
        %2142 = vmatpush2.bf16.msra.mxu0 0
        %2143 = vmatprep.mubr.bf16.mxu0 0
        %2144 = vmatmul.mubr.bf16.gmra.mxu0 %v2109
        %v2145 = vpop.f32.mrf.mxu0
        %v2146 = vadd.f32 %v2106, %v2145
        %v2147 = vpop.f32.mrf.mxu0
        %v2148 = vpop.f32.mrf.mxu0
        %v2149 = vpop.f32.mrf.mxu0
        %2150 = vdwg.mxu0
        %v2151 = vld [vmem:[%s37] sm:$0xff]
        %v2152 = vld [vmem:[%s37 + $0x8] sm:$0xff]
        %v2153 = vld [vmem:[%s37 + $0x10] sm:$0xff]
        %v2154 = vld [vmem:[%s37 + $0x18] sm:$0xff]
        %v2155 = vpack.c.bf16 %v2152, %v2151
        %v2156 = vpack.c.bf16 %v2154, %v2153
        %v2157 = vld [vmem:[%s39] sm:$0x1]
        %v2159 = vlaneseq
        %v2160 = vshrl.u32 %v2159, 7
        %v2161 = vsub.s32 0, %v2160
        %v2162 = vrot.slane %v2157, %v2161
        %v2166 = vunpack.c.l.b16 %v1294
        %v2167 = vunpack.c.l.b16 %v1295
        %v2168 = vpack.c.b16 %v2167, %v2166
        %v2170 = vsel %vm1318, %v2168, 0
        %2172 = vmatprep.subr.bf16.mxu0 0
        %2173 = vmatpush1.bf16.msra.mxu0 0
        %2174 = vmatprep.subr.bf16.mxu0 0
        %2175 = vmatpush1.bf16.msra.mxu0 0
        %2176 = vmatprep.subr.bf16.mxu0 0
        %2177 = vmatpush1.bf16.msra.mxu0 0
        %2178 = vmatprep.subr.bf16.mxu0 0
        %2179 = vmatpush1.bf16.msra.mxu0 0
        %2180 = vmatprep.subr.bf16.mxu0 0
        %2181 = vmatpush1.bf16.msra.mxu0 0
        %2182 = vmatprep.subr.bf16.mxu0 0
        %2183 = vmatpush1.bf16.msra.mxu0 0
        %2184 = vmatprep.subr.bf16.mxu0 0
        %2185 = vmatpush1.bf16.msra.mxu0 %v2156
        %2186 = vmatprep.subr.bf16.mxu0 0
        %2187 = vmatpush1.bf16.msra.mxu0 %v2155
        %2188 = vmatprep.subr.bf16.mxu0 0
        %2189 = vmatpush2.bf16.msra.mxu0 0
        %2190 = vmatprep.subr.bf16.mxu0 0
        %2191 = vmatpush2.bf16.msra.mxu0 0
        %2192 = vmatprep.subr.bf16.mxu0 0
        %2193 = vmatpush2.bf16.msra.mxu0 0
        %2194 = vmatprep.subr.bf16.mxu0 0
        %2195 = vmatpush2.bf16.msra.mxu0 0
        %2196 = vmatprep.subr.bf16.mxu0 0
        %2197 = vmatpush2.bf16.msra.mxu0 0
        %2198 = vmatprep.subr.bf16.mxu0 0
        %2199 = vmatpush2.bf16.msra.mxu0 0
        %2200 = vmatprep.subr.bf16.mxu0 0
        %2201 = vmatpush2.bf16.msra.mxu0 0
        %2202 = vmatprep.subr.bf16.mxu0 0
        %2203 = vmatpush2.bf16.msra.mxu0 0
        %2204 = vmatprep.mubr.bf16.mxu0 0
        %2205 = vmatmul.mubr.bf16.gmra.mxu0 %v2170
        %v2206 = vpop.f32.mrf.mxu0
        %v2207 = vadd.f32 %v2162, %v2206
        %v2208 = vpop.f32.mrf.mxu0
        %v2209 = vpop.f32.mrf.mxu0
        %v2210 = vadd.f32 %v2162, %v2209
        %v2211 = vpop.f32.mrf.mxu0
        %2212 = vdwg.mxu0
        %v2213 = vld [vmem:[%s41] sm:$0xff]
        %v2214 = vld [vmem:[%s41 + $0x8] sm:$0xff]
        %v2215 = vld [vmem:[%s41 + $0x10] sm:$0xff]
        %v2216 = vld [vmem:[%s41 + $0x18] sm:$0xff]
        %v2217 = vpack.c.bf16 %v2214, %v2213
        %v2218 = vpack.c.bf16 %v2216, %v2215
        %v2219 = vld [vmem:[%s43] sm:$0x1]
        %v2221 = vlaneseq
        %v2222 = vshrl.u32 %v2221, 7
        %v2223 = vsub.s32 0, %v2222
        %v2224 = vrot.slane %v2219, %v2223
        %2226 = vmatprep.subr.bf16.mxu0 0
        %2227 = vmatpush1.bf16.msra.mxu0 0
        %2228 = vmatprep.subr.bf16.mxu0 0
        %2229 = vmatpush1.bf16.msra.mxu0 0
        %2230 = vmatprep.subr.bf16.mxu0 0
        %2231 = vmatpush1.bf16.msra.mxu0 0
        %2232 = vmatprep.subr.bf16.mxu0 0
        %2233 = vmatpush1.bf16.msra.mxu0 0
        %2234 = vmatprep.subr.bf16.mxu0 0
        %2235 = vmatpush1.bf16.msra.mxu0 0
        %2236 = vmatprep.subr.bf16.mxu0 0
        %2237 = vmatpush1.bf16.msra.mxu0 0
        %2238 = vmatprep.subr.bf16.mxu0 0
        %2239 = vmatpush1.bf16.msra.mxu0 %v2218
        %2240 = vmatprep.subr.bf16.mxu0 0
        %2241 = vmatpush1.bf16.msra.mxu0 %v2217
        %2242 = vmatprep.subr.bf16.mxu0 0
        %2243 = vmatpush2.bf16.msra.mxu0 0
        %2244 = vmatprep.subr.bf16.mxu0 0
        %2245 = vmatpush2.bf16.msra.mxu0 0
        %2246 = vmatprep.subr.bf16.mxu0 0
        %2247 = vmatpush2.bf16.msra.mxu0 0
        %2248 = vmatprep.subr.bf16.mxu0 0
        %2249 = vmatpush2.bf16.msra.mxu0 0
        %2250 = vmatprep.subr.bf16.mxu0 0
        %2251 = vmatpush2.bf16.msra.mxu0 0
        %2252 = vmatprep.subr.bf16.mxu0 0
        %2253 = vmatpush2.bf16.msra.mxu0 0
        %2254 = vmatprep.subr.bf16.mxu0 0
        %2255 = vmatpush2.bf16.msra.mxu0 0
        %2256 = vmatprep.subr.bf16.mxu0 0
        %2257 = vmatpush2.bf16.msra.mxu0 0
        %2258 = vmatprep.mubr.bf16.mxu0 0
        %2259 = vmatmul.mubr.bf16.gmra.mxu0 %v2170
        %v2260 = vpop.f32.mrf.mxu0
        %v2261 = vadd.f32 %v2224, %v2260
        %v2262 = vpop.f32.mrf.mxu0
        %v2263 = vpop.f32.mrf.mxu0
        %v2264 = vadd.f32 %v2224, %v2263
        %v2265 = vpop.f32.mrf.mxu0
        %2266 = vdwg.mxu0
        %v2267 = vld [vmem:[%s45] sm:$0xff]
        %v2268 = vld [vmem:[%s45 + $0x8] sm:$0xff]
        %v2269 = vld [vmem:[%s45 + $0x10] sm:$0xff]
        %v2270 = vld [vmem:[%s45 + $0x18] sm:$0xff]
        %v2271 = vld [vmem:[%s47] sm:$0x1]
        %v2272 = vmul.f32 %v2146, 0.35355338
        %v2273 = vpack.c.bf16 %v2272, %v2272
        %v2274 = vpack.c.bf16 %v2210, %v2207
        %v2275 = vpack.c.bf16 %v2264, %v2261
        %v2277 = vsel %vm1480, %v2273, 0
        %v2280 = vsel %vm1480, %v2274, 0
        %2282 = vmatprep.subr.bf16.mxu0 0
        %2283 = vmatpush1.bf16.xpose.msra.mxu0 0
        %2284 = vmatprep.subr.bf16.mxu0 0
        %2285 = vmatpush1.bf16.xpose.msra.mxu0 0
        %2286 = vmatprep.subr.bf16.mxu0 0
        %2287 = vmatpush1.bf16.xpose.msra.mxu0 0
        %2288 = vmatprep.subr.bf16.mxu0 0
        %2289 = vmatpush1.bf16.xpose.msra.mxu0 0
        %2290 = vmatprep.subr.bf16.mxu0 0
        %2291 = vmatpush1.bf16.xpose.msra.mxu0 0
        %2292 = vmatprep.subr.bf16.mxu0 0
        %2293 = vmatpush1.bf16.xpose.msra.mxu0 0
        %2294 = vmatprep.subr.bf16.mxu0 0
        %2295 = vmatpush1.bf16.xpose.msra.mxu0 0
        %2296 = vmatprep.subr.bf16.mxu0 0
        %2297 = vmatpush1.bf16.xpose.msra.mxu0 %v2280
        %2298 = vmatprep.subr.bf16.mxu0 0
        %2299 = vmatpush2.bf16.xpose.msra.mxu0 0
        %2300 = vmatprep.subr.bf16.mxu0 0
        %2301 = vmatpush2.bf16.xpose.msra.mxu0 0
        %2302 = vmatprep.subr.bf16.mxu0 0
        %2303 = vmatpush2.bf16.xpose.msra.mxu0 0
        %2304 = vmatprep.subr.bf16.mxu0 0
        %2305 = vmatpush2.bf16.xpose.msra.mxu0 0
        %2306 = vmatprep.subr.bf16.mxu0 0
        %2307 = vmatpush2.bf16.xpose.msra.mxu0 0
        %2308 = vmatprep.subr.bf16.mxu0 0
        %2309 = vmatpush2.bf16.xpose.msra.mxu0 0
        %2310 = vmatprep.subr.bf16.mxu0 0
        %2311 = vmatpush2.bf16.xpose.msra.mxu0 0
        %2312 = vmatprep.subr.bf16.mxu0 0
        %2313 = vmatpush2.bf16.xpose.msra.mxu0 0
        %2314 = vmatprep.mubr.bf16.mxu0 0
        %2315 = vmatmul.mubr.bf16.gmra.mxu0 %v2277
        %v2316 = vpop.f32.mrf.mxu0
        %v2317 = vadd.f32 0.0, %v2316
        %v2318 = vpop.f32.mrf.mxu0
        %v2319 = vpop.f32.mrf.mxu0
        %v2320 = vpop.f32.mrf.mxu0
        %2321 = vdwg.mxu0
        %v2322 = vsel %vm1932, %v2317, -inf
        %2323 = vmax.xlane.f32.xlu0 %v2322
        %v2324 = vpop.xlane.xlu0 %2323
        %v2325 = vsub.f32 %v2317, %v2324
        %v2326 = vmul.f32 %v2325, 1.442695
        %v2327 = vpow.pop %v2326
        %v2328 = vsel %vm1932, %v2327, 0.0
        %2329 = vadd.xlane.f32.xlu0 %v2328
        %v2330 = vpop.xlane.xlu0 %2329
        %v2331 = vrcp.pop %v2330
        %v2332 = vmul.f32 %v2327, %v2331
        %v2333 = vpack.c.bf16 %v2332, %v2332
        %v2335 = vsel %vm1932, %v2333, 0
        %2337 = vmatprep.subr.bf16.mxu0 0
        %2338 = vmatpush1.bf16.msra.mxu0 0
        %2339 = vmatprep.subr.bf16.mxu0 0
        %2340 = vmatpush1.bf16.msra.mxu0 0
        %2341 = vmatprep.subr.bf16.mxu0 0
        %2342 = vmatpush1.bf16.msra.mxu0 0
        %2343 = vmatprep.subr.bf16.mxu0 0
        %2344 = vmatpush1.bf16.msra.mxu0 0
        %2345 = vmatprep.subr.bf16.mxu0 0
        %2346 = vmatpush1.bf16.msra.mxu0 0
        %2347 = vmatprep.subr.bf16.mxu0 0
        %2348 = vmatpush1.bf16.msra.mxu0 0
        %2349 = vmatprep.subr.bf16.mxu0 0
        %2350 = vmatpush1.bf16.msra.mxu0 0
        %2351 = vmatprep.subr.bf16.mxu0 0
        %2352 = vmatpush1.bf16.msra.mxu0 %v2275
        %2353 = vmatprep.subr.bf16.mxu0 0
        %2354 = vmatpush2.bf16.msra.mxu0 0
        %2355 = vmatprep.subr.bf16.mxu0 0
        %2356 = vmatpush2.bf16.msra.mxu0 0
        %2357 = vmatprep.subr.bf16.mxu0 0
        %2358 = vmatpush2.bf16.msra.mxu0 0
        %2359 = vmatprep.subr.bf16.mxu0 0
        %2360 = vmatpush2.bf16.msra.mxu0 0
        %2361 = vmatprep.subr.bf16.mxu0 0
        %2362 = vmatpush2.bf16.msra.mxu0 0
        %2363 = vmatprep.subr.bf16.mxu0 0
        %2364 = vmatpush2.bf16.msra.mxu0 0
        %2365 = vmatprep.subr.bf16.mxu0 0
        %2366 = vmatpush2.bf16.msra.mxu0 0
        %2367 = vmatprep.subr.bf16.mxu0 0
        %2368 = vmatpush2.bf16.msra.mxu0 0
        %2369 = vmatprep.mubr.bf16.mxu0 0
        %2370 = vmatmul.mubr.bf16.gmra.mxu0 %v2335
        %v2371 = vpop.f32.mrf.mxu0
        %v2372 = vadd.f32 0.0, %v2371
        %v2373 = vpop.f32.mrf.mxu0
        %v2374 = vpop.f32.mrf.mxu0
        %v2375 = vpop.f32.mrf.mxu0
        %2376 = vdwg.mxu0
        %2378 = vrot.lane.b32.xlu0 %v2273, 120
        %v2379 = vpop.permute.xlu0 %2378
        %2381 = vrot.lane.b32.xlu0 %v2274, 120
        %v2382 = vpop.permute.xlu0 %2381
        %v2384 = vsel %vm1480, %v2379, 0
        %v2387 = vsel %vm1480, %v2382, 0
        %2389 = vmatprep.subr.bf16.mxu0 0
        %2390 = vmatpush1.bf16.xpose.msra.mxu0 0
        %2391 = vmatprep.subr.bf16.mxu0 0
        %2392 = vmatpush1.bf16.xpose.msra.mxu0 0
        %2393 = vmatprep.subr.bf16.mxu0 0
        %2394 = vmatpush1.bf16.xpose.msra.mxu0 0
        %2395 = vmatprep.subr.bf16.mxu0 0
        %2396 = vmatpush1.bf16.xpose.msra.mxu0 0
        %2397 = vmatprep.subr.bf16.mxu0 0
        %2398 = vmatpush1.bf16.xpose.msra.mxu0 0
        %2399 = vmatprep.subr.bf16.mxu0 0
        %2400 = vmatpush1.bf16.xpose.msra.mxu0 0
        %2401 = vmatprep.subr.bf16.mxu0 0
        %2402 = vmatpush1.bf16.xpose.msra.mxu0 0
        %2403 = vmatprep.subr.bf16.mxu0 0
        %2404 = vmatpush1.bf16.xpose.msra.mxu0 %v2387
        %2405 = vmatprep.subr.bf16.mxu0 0
        %2406 = vmatpush2.bf16.xpose.msra.mxu0 0
        %2407 = vmatprep.subr.bf16.mxu0 0
        %2408 = vmatpush2.bf16.xpose.msra.mxu0 0
        %2409 = vmatprep.subr.bf16.mxu0 0
        %2410 = vmatpush2.bf16.xpose.msra.mxu0 0
        %2411 = vmatprep.subr.bf16.mxu0 0
        %2412 = vmatpush2.bf16.xpose.msra.mxu0 0
        %2413 = vmatprep.subr.bf16.mxu0 0
        %2414 = vmatpush2.bf16.xpose.msra.mxu0 0
        %2415 = vmatprep.subr.bf16.mxu0 0
        %2416 = vmatpush2.bf16.xpose.msra.mxu0 0
        %2417 = vmatprep.subr.bf16.mxu0 0
        %2418 = vmatpush2.bf16.xpose.msra.mxu0 0
        %2419 = vmatprep.subr.bf16.mxu0 0
        %2420 = vmatpush2.bf16.xpose.msra.mxu0 0
        %2421 = vmatprep.mubr.bf16.mxu0 0
        %2422 = vmatmul.mubr.bf16.gmra.mxu0 %v2384
        %v2423 = vpop.f32.mrf.mxu0
        %v2424 = vadd.f32 0.0, %v2423
        %v2425 = vpop.f32.mrf.mxu0
        %v2426 = vpop.f32.mrf.mxu0
        %v2427 = vpop.f32.mrf.mxu0
        %2428 = vdwg.mxu0
        %v2429 = vsel %vm1932, %v2424, -inf
        %2430 = vmax.xlane.f32.xlu0 %v2429
        %v2431 = vpop.xlane.xlu0 %2430
        %v2432 = vsub.f32 %v2424, %v2431
        %v2433 = vmul.f32 %v2432, 1.442695
        %v2434 = vpow.pop %v2433
        %v2435 = vsel %vm1932, %v2434, 0.0
        %2436 = vadd.xlane.f32.xlu0 %v2435
        %v2437 = vpop.xlane.xlu0 %2436
        %v2438 = vrcp.pop %v2437
        %v2439 = vmul.f32 %v2434, %v2438
        %v2440 = vpack.c.bf16 %v2439, %v2439
        %2442 = vrot.lane.b32.xlu0 %v2275, 120
        %v2443 = vpop.permute.xlu0 %2442
        %v2446 = vsel %vm1932, %v2440, 0
        %2448 = vmatprep.subr.bf16.mxu0 0
        %2449 = vmatpush1.bf16.msra.mxu0 0
        %2450 = vmatprep.subr.bf16.mxu0 0
        %2451 = vmatpush1.bf16.msra.mxu0 0
        %2452 = vmatprep.subr.bf16.mxu0 0
        %2453 = vmatpush1.bf16.msra.mxu0 0
        %2454 = vmatprep.subr.bf16.mxu0 0
        %2455 = vmatpush1.bf16.msra.mxu0 0
        %2456 = vmatprep.subr.bf16.mxu0 0
        %2457 = vmatpush1.bf16.msra.mxu0 0
        %2458 = vmatprep.subr.bf16.mxu0 0
        %2459 = vmatpush1.bf16.msra.mxu0 0
        %2460 = vmatprep.subr.bf16.mxu0 0
        %2461 = vmatpush1.bf16.msra.mxu0 0
        %2462 = vmatprep.subr.bf16.mxu0 0
        %2463 = vmatpush1.bf16.msra.mxu0 %v2443
        %2464 = vmatprep.subr.bf16.mxu0 0
        %2465 = vmatpush2.bf16.msra.mxu0 0
        %2466 = vmatprep.subr.bf16.mxu0 0
        %2467 = vmatpush2.bf16.msra.mxu0 0
        %2468 = vmatprep.subr.bf16.mxu0 0
        %2469 = vmatpush2.bf16.msra.mxu0 0
        %2470 = vmatprep.subr.bf16.mxu0 0
        %2471 = vmatpush2.bf16.msra.mxu0 0
        %2472 = vmatprep.subr.bf16.mxu0 0
        %2473 = vmatpush2.bf16.msra.mxu0 0
        %2474 = vmatprep.subr.bf16.mxu0 0
        %2475 = vmatpush2.bf16.msra.mxu0 0
        %2476 = vmatprep.subr.bf16.mxu0 0
        %2477 = vmatpush2.bf16.msra.mxu0 0
        %2478 = vmatprep.subr.bf16.mxu0 0
        %2479 = vmatpush2.bf16.msra.mxu0 0
        %2480 = vmatprep.mubr.bf16.mxu0 0
        %2481 = vmatmul.mubr.bf16.gmra.mxu0 %v2446
        %v2482 = vpop.f32.mrf.mxu0
        %v2483 = vadd.f32 0.0, %v2482
        %v2484 = vpop.f32.mrf.mxu0
        %v2485 = vpop.f32.mrf.mxu0
        %v2486 = vpop.f32.mrf.mxu0
        %2487 = vdwg.mxu0
        %2488 = vrot.lane.b32.xlu0 %v2273, 112
        %v2489 = vpop.permute.xlu0 %2488
        %2490 = vrot.lane.b32.xlu0 %v2274, 112
        %v2491 = vpop.permute.xlu0 %2490
        %v2493 = vsel %vm1480, %v2489, 0
        %v2496 = vsel %vm1480, %v2491, 0
        %2498 = vmatprep.subr.bf16.mxu0 0
        %2499 = vmatpush1.bf16.xpose.msra.mxu0 0
        %2500 = vmatprep.subr.bf16.mxu0 0
        %2501 = vmatpush1.bf16.xpose.msra.mxu0 0
        %2502 = vmatprep.subr.bf16.mxu0 0
        %2503 = vmatpush1.bf16.xpose.msra.mxu0 0
        %2504 = vmatprep.subr.bf16.mxu0 0
        %2505 = vmatpush1.bf16.xpose.msra.mxu0 0
        %2506 = vmatprep.subr.bf16.mxu0 0
        %2507 = vmatpush1.bf16.xpose.msra.mxu0 0
        %2508 = vmatprep.subr.bf16.mxu0 0
        %2509 = vmatpush1.bf16.xpose.msra.mxu0 0
        %2510 = vmatprep.subr.bf16.mxu0 0
        %2511 = vmatpush1.bf16.xpose.msra.mxu0 0
        %2512 = vmatprep.subr.bf16.mxu0 0
        %2513 = vmatpush1.bf16.xpose.msra.mxu0 %v2496
        %2514 = vmatprep.subr.bf16.mxu0 0
        %2515 = vmatpush2.bf16.xpose.msra.mxu0 0
        %2516 = vmatprep.subr.bf16.mxu0 0
        %2517 = vmatpush2.bf16.xpose.msra.mxu0 0
        %2518 = vmatprep.subr.bf16.mxu0 0
        %2519 = vmatpush2.bf16.xpose.msra.mxu0 0
        %2520 = vmatprep.subr.bf16.mxu0 0
        %2521 = vmatpush2.bf16.xpose.msra.mxu0 0
        %2522 = vmatprep.subr.bf16.mxu0 0
        %2523 = vmatpush2.bf16.xpose.msra.mxu0 0
        %2524 = vmatprep.subr.bf16.mxu0 0
        %2525 = vmatpush2.bf16.xpose.msra.mxu0 0
        %2526 = vmatprep.subr.bf16.mxu0 0
        %2527 = vmatpush2.bf16.xpose.msra.mxu0 0
        %2528 = vmatprep.subr.bf16.mxu0 0
        %2529 = vmatpush2.bf16.xpose.msra.mxu0 0
        %2530 = vmatprep.mubr.bf16.mxu0 0
        %2531 = vmatmul.mubr.bf16.gmra.mxu0 %v2493
        %v2532 = vpop.f32.mrf.mxu0
        %v2533 = vadd.f32 0.0, %v2532
        %v2534 = vpop.f32.mrf.mxu0
        %v2535 = vpop.f32.mrf.mxu0
        %v2536 = vpop.f32.mrf.mxu0
        %2537 = vdwg.mxu0
        %v2538 = vsel %vm1932, %v2533, -inf
        %2539 = vmax.xlane.f32.xlu0 %v2538
        %v2540 = vpop.xlane.xlu0 %2539
        %v2541 = vsub.f32 %v2533, %v2540
        %v2542 = vmul.f32 %v2541, 1.442695
        %v2543 = vpow.pop %v2542
        %v2544 = vsel %vm1932, %v2543, 0.0
        %2545 = vadd.xlane.f32.xlu0 %v2544
        %v2546 = vpop.xlane.xlu0 %2545
        %v2547 = vrcp.pop %v2546
        %v2548 = vmul.f32 %v2543, %v2547
        %v2549 = vpack.c.bf16 %v2548, %v2548
        %2550 = vrot.lane.b32.xlu0 %v2275, 112
        %v2551 = vpop.permute.xlu0 %2550
        %v2554 = vsel %vm1932, %v2549, 0
        %2556 = vmatprep.subr.bf16.mxu0 0
        %2557 = vmatpush1.bf16.msra.mxu0 0
        %2558 = vmatprep.subr.bf16.mxu0 0
        %2559 = vmatpush1.bf16.msra.mxu0 0
        %2560 = vmatprep.subr.bf16.mxu0 0
        %2561 = vmatpush1.bf16.msra.mxu0 0
        %2562 = vmatprep.subr.bf16.mxu0 0
        %2563 = vmatpush1.bf16.msra.mxu0 0
        %2564 = vmatprep.subr.bf16.mxu0 0
        %2565 = vmatpush1.bf16.msra.mxu0 0
        %2566 = vmatprep.subr.bf16.mxu0 0
        %2567 = vmatpush1.bf16.msra.mxu0 0
        %2568 = vmatprep.subr.bf16.mxu0 0
        %2569 = vmatpush1.bf16.msra.mxu0 0
        %2570 = vmatprep.subr.bf16.mxu0 0
        %2571 = vmatpush1.bf16.msra.mxu0 %v2551
        %2572 = vmatprep.subr.bf16.mxu0 0
        %2573 = vmatpush2.bf16.msra.mxu0 0
        %2574 = vmatprep.subr.bf16.mxu0 0
        %2575 = vmatpush2.bf16.msra.mxu0 0
        %2576 = vmatprep.subr.bf16.mxu0 0
        %2577 = vmatpush2.bf16.msra.mxu0 0
        %2578 = vmatprep.subr.bf16.mxu0 0
        %2579 = vmatpush2.bf16.msra.mxu0 0
        %2580 = vmatprep.subr.bf16.mxu0 0
        %2581 = vmatpush2.bf16.msra.mxu0 0
        %2582 = vmatprep.subr.bf16.mxu0 0
        %2583 = vmatpush2.bf16.msra.mxu0 0
        %2584 = vmatprep.subr.bf16.mxu0 0
        %2585 = vmatpush2.bf16.msra.mxu0 0
        %2586 = vmatprep.subr.bf16.mxu0 0
        %2587 = vmatpush2.bf16.msra.mxu0 0
        %2588 = vmatprep.mubr.bf16.mxu0 0
        %2589 = vmatmul.mubr.bf16.gmra.mxu0 %v2554
        %v2590 = vpop.f32.mrf.mxu0
        %v2591 = vadd.f32 0.0, %v2590
        %v2592 = vpop.f32.mrf.mxu0
        %v2593 = vpop.f32.mrf.mxu0
        %v2594 = vpop.f32.mrf.mxu0
        %2595 = vdwg.mxu0
        %2596 = vrot.lane.b32.xlu0 %v2273, 104
        %v2597 = vpop.permute.xlu0 %2596
        %2598 = vrot.lane.b32.xlu0 %v2274, 104
        %v2599 = vpop.permute.xlu0 %2598
        %v2601 = vsel %vm1480, %v2597, 0
        %v2604 = vsel %vm1480, %v2599, 0
        %2606 = vmatprep.subr.bf16.mxu0 0
        %2607 = vmatpush1.bf16.xpose.msra.mxu0 0
        %2608 = vmatprep.subr.bf16.mxu0 0
        %2609 = vmatpush1.bf16.xpose.msra.mxu0 0
        %2610 = vmatprep.subr.bf16.mxu0 0
        %2611 = vmatpush1.bf16.xpose.msra.mxu0 0
        %2612 = vmatprep.subr.bf16.mxu0 0
        %2613 = vmatpush1.bf16.xpose.msra.mxu0 0
        %2614 = vmatprep.subr.bf16.mxu0 0
        %2615 = vmatpush1.bf16.xpose.msra.mxu0 0
        %2616 = vmatprep.subr.bf16.mxu0 0
        %2617 = vmatpush1.bf16.xpose.msra.mxu0 0
        %2618 = vmatprep.subr.bf16.mxu0 0
        %2619 = vmatpush1.bf16.xpose.msra.mxu0 0
        %2620 = vmatprep.subr.bf16.mxu0 0
        %2621 = vmatpush1.bf16.xpose.msra.mxu0 %v2604
        %2622 = vmatprep.subr.bf16.mxu0 0
        %2623 = vmatpush2.bf16.xpose.msra.mxu0 0
        %2624 = vmatprep.subr.bf16.mxu0 0
        %2625 = vmatpush2.bf16.xpose.msra.mxu0 0
        %2626 = vmatprep.subr.bf16.mxu0 0
        %2627 = vmatpush2.bf16.xpose.msra.mxu0 0
        %2628 = vmatprep.subr.bf16.mxu0 0
        %2629 = vmatpush2.bf16.xpose.msra.mxu0 0
        %2630 = vmatprep.subr.bf16.mxu0 0
        %2631 = vmatpush2.bf16.xpose.msra.mxu0 0
        %2632 = vmatprep.subr.bf16.mxu0 0
        %2633 = vmatpush2.bf16.xpose.msra.mxu0 0
        %2634 = vmatprep.subr.bf16.mxu0 0
        %2635 = vmatpush2.bf16.xpose.msra.mxu0 0
        %2636 = vmatprep.subr.bf16.mxu0 0
        %2637 = vmatpush2.bf16.xpose.msra.mxu0 0
        %2638 = vmatprep.mubr.bf16.mxu0 0
        %2639 = vmatmul.mubr.bf16.gmra.mxu0 %v2601
        %v2640 = vpop.f32.mrf.mxu0
        %v2641 = vadd.f32 0.0, %v2640
        %v2642 = vpop.f32.mrf.mxu0
        %v2643 = vpop.f32.mrf.mxu0
        %v2644 = vpop.f32.mrf.mxu0
        %2645 = vdwg.mxu0
        %v2646 = vsel %vm1932, %v2641, -inf
        %2647 = vmax.xlane.f32.xlu0 %v2646
        %v2648 = vpop.xlane.xlu0 %2647
        %v2649 = vsub.f32 %v2641, %v2648
        %v2650 = vmul.f32 %v2649, 1.442695
        %v2651 = vpow.pop %v2650
        %v2652 = vsel %vm1932, %v2651, 0.0
        %2653 = vadd.xlane.f32.xlu0 %v2652
        %v2654 = vpop.xlane.xlu0 %2653
        %v2655 = vrcp.pop %v2654
        %v2656 = vmul.f32 %v2651, %v2655
        %v2657 = vpack.c.bf16 %v2656, %v2656
        %2658 = vrot.lane.b32.xlu0 %v2275, 104
        %v2659 = vpop.permute.xlu0 %2658
        %v2662 = vsel %vm1932, %v2657, 0
        %2664 = vmatprep.subr.bf16.mxu0 0
        %2665 = vmatpush1.bf16.msra.mxu0 0
        %2666 = vmatprep.subr.bf16.mxu0 0
        %2667 = vmatpush1.bf16.msra.mxu0 0
        %2668 = vmatprep.subr.bf16.mxu0 0
        %2669 = vmatpush1.bf16.msra.mxu0 0
        %2670 = vmatprep.subr.bf16.mxu0 0
        %2671 = vmatpush1.bf16.msra.mxu0 0
        %2672 = vmatprep.subr.bf16.mxu0 0
        %2673 = vmatpush1.bf16.msra.mxu0 0
        %2674 = vmatprep.subr.bf16.mxu0 0
        %2675 = vmatpush1.bf16.msra.mxu0 0
        %2676 = vmatprep.subr.bf16.mxu0 0
        %2677 = vmatpush1.bf16.msra.mxu0 0
        %2678 = vmatprep.subr.bf16.mxu0 0
        %2679 = vmatpush1.bf16.msra.mxu0 %v2659
        %2680 = vmatprep.subr.bf16.mxu0 0
        %2681 = vmatpush2.bf16.msra.mxu0 0
        %2682 = vmatprep.subr.bf16.mxu0 0
        %2683 = vmatpush2.bf16.msra.mxu0 0
        %2684 = vmatprep.subr.bf16.mxu0 0
        %2685 = vmatpush2.bf16.msra.mxu0 0
        %2686 = vmatprep.subr.bf16.mxu0 0
        %2687 = vmatpush2.bf16.msra.mxu0 0
        %2688 = vmatprep.subr.bf16.mxu0 0
        %2689 = vmatpush2.bf16.msra.mxu0 0
        %2690 = vmatprep.subr.bf16.mxu0 0
        %2691 = vmatpush2.bf16.msra.mxu0 0
        %2692 = vmatprep.subr.bf16.mxu0 0
        %2693 = vmatpush2.bf16.msra.mxu0 0
        %2694 = vmatprep.subr.bf16.mxu0 0
        %2695 = vmatpush2.bf16.msra.mxu0 0
        %2696 = vmatprep.mubr.bf16.mxu0 0
        %2697 = vmatmul.mubr.bf16.gmra.mxu0 %v2662
        %v2698 = vpop.f32.mrf.mxu0
        %v2699 = vadd.f32 0.0, %v2698
        %v2700 = vpop.f32.mrf.mxu0
        %v2701 = vpop.f32.mrf.mxu0
        %v2702 = vpop.f32.mrf.mxu0
        %2703 = vdwg.mxu0
        %2705 = vrot.lane.b32.xlu0 %v2483, 8
        %v2706 = vpop.permute.xlu0 %2705
        %2709 = vrot.lane.b32.xlu0 %v2591, 16
        %v2710 = vpop.permute.xlu0 %2709
        %2713 = vrot.lane.b32.xlu0 %v2699, 24
        %v2714 = vpop.permute.xlu0 %2713
        %v2716 = vsel %vm1480, %v2372, %v2706
        %v2717 = vsel %vm1932, %v2716, %v2710
        %v2718 = vsel %vm1934, %v2717, %v2714
        %v2719 = vpack.c.bf16 %v2718, %v2718
        %v2720 = vpack.c.bf16 %v2268, %v2267
        %v2721 = vpack.c.bf16 %v2270, %v2269
        %v2723 = vlaneseq
        %v2724 = vshrl.u32 %v2723, 7
        %v2725 = vsub.s32 0, %v2724
        %v2726 = vrot.slane %v2271, %v2725
        %v2729 = vsel %vm1318, %v2719, 0
        %2731 = vmatprep.subr.bf16.mxu0 0
        %2732 = vmatpush1.bf16.msra.mxu0 0
        %2733 = vmatprep.subr.bf16.mxu0 0
        %2734 = vmatpush1.bf16.msra.mxu0 0
        %2735 = vmatprep.subr.bf16.mxu0 0
        %2736 = vmatpush1.bf16.msra.mxu0 0
        %2737 = vmatprep.subr.bf16.mxu0 0
        %2738 = vmatpush1.bf16.msra.mxu0 0
        %2739 = vmatprep.subr.bf16.mxu0 0
        %2740 = vmatpush1.bf16.msra.mxu0 0
        %2741 = vmatprep.subr.bf16.mxu0 0
        %2742 = vmatpush1.bf16.msra.mxu0 0
        %2743 = vmatprep.subr.bf16.mxu0 0
        %2744 = vmatpush1.bf16.msra.mxu0 %v2721
        %2745 = vmatprep.subr.bf16.mxu0 0
        %2746 = vmatpush1.bf16.msra.mxu0 %v2720
        %2747 = vmatprep.subr.bf16.mxu0 0
        %2748 = vmatpush2.bf16.msra.mxu0 0
        %2749 = vmatprep.subr.bf16.mxu0 0
        %2750 = vmatpush2.bf16.msra.mxu0 0
        %2751 = vmatprep.subr.bf16.mxu0 0
        %2752 = vmatpush2.bf16.msra.mxu0 0
        %2753 = vmatprep.subr.bf16.mxu0 0
        %2754 = vmatpush2.bf16.msra.mxu0 0
        %2755 = vmatprep.subr.bf16.mxu0 0
        %2756 = vmatpush2.bf16.msra.mxu0 0
        %2757 = vmatprep.subr.bf16.mxu0 0
        %2758 = vmatpush2.bf16.msra.mxu0 0
        %2759 = vmatprep.subr.bf16.mxu0 0
        %2760 = vmatpush2.bf16.msra.mxu0 0
        %2761 = vmatprep.subr.bf16.mxu0 0
        %2762 = vmatpush2.bf16.msra.mxu0 0
        %2763 = vmatprep.mubr.bf16.mxu0 0
        %2764 = vmatmul.mubr.bf16.gmra.mxu0 %v2729
        %v2765 = vpop.f32.mrf.mxu0
        %v2766 = vadd.f32 %v2726, %v2765
        %v2767 = vpop.f32.mrf.mxu0
        %v2768 = vpop.f32.mrf.mxu0
        %v2769 = vpop.f32.mrf.mxu0
        %2770 = vdwg.mxu0
        %v2771 = vadd.f32 %v2018, %v2766
        %v2772 = vld [vmem:[%s49] sm:$0x1]
        %v2773 = vld [vmem:[%s51] sm:$0x1]
        %v2774 = vsel %vm1318, %v2771, 0.0
        %2775 = vadd.xlane.f32.xlu0 %v2774
        %v2776 = vpop.xlane.xlu0 %2775
        %v2777 = vmul.f32 %v2776, %v1994
        %v2778 = vsub.f32 %v2771, %v2777
        %v2779 = vmul.f32 %v2778, %v2778
        %v2780 = vsel %vm1318, %v2779, 0.0
        %2781 = vadd.xlane.f32.xlu0 %v2780
        %v2782 = vpop.xlane.xlu0 %2781
        %v2783 = vmul.f32 %v2782, %v1994
        %v2784 = vadd.f32 %v2783, 1e-05
        %v2785 = vrsqrt.pop %v2784
        %v2786 = vmul.f32 %v2778, %v2785
        %v2788 = vlaneseq
        %v2789 = vshrl.u32 %v2788, 7
        %v2790 = vsub.s32 0, %v2789
        %v2791 = vrot.slane %v2772, %v2790
        %v2793 = vmul.f32 %v2786, %v2791
        %v2795 = vlaneseq
        %v2796 = vshrl.u32 %v2795, 7
        %v2797 = vsub.s32 0, %v2796
        %v2798 = vrot.slane %v2773, %v2797
        %v2800 = vadd.f32 %v2793, %v2798
        %v2801 = vld [vmem:[%s53] sm:$0xff]
        %v2802 = vld [vmem:[%s53 + $0x8] sm:$0xff]
        %v2803 = vld [vmem:[%s53 + $0x10] sm:$0xff]
        %v2804 = vld [vmem:[%s53 + $0x18] sm:$0xff]
        %v2805 = vpack.c.bf16 %v2800, %v2800
        %v2806 = vpack.c.bf16 %v2802, %v2801
        %v2807 = vpack.c.bf16 %v2804, %v2803
        %v2808 = vld [vmem:[#allocation2] sm:$0x1]
        %v2810 = vlaneseq
        %v2811 = vshrl.u32 %v2810, 7
        %v2812 = vsub.s32 0, %v2811
        %v2813 = vrot.slane %v2808, %v2812
        %v2816 = vsel %vm1318, %v2805, 0
        %2818 = vmatprep.subr.bf16.mxu0 0
        %2819 = vmatpush1.bf16.msra.mxu0 0
        %2820 = vmatprep.subr.bf16.mxu0 0
        %2821 = vmatpush1.bf16.msra.mxu0 0
        %2822 = vmatprep.subr.bf16.mxu0 0
        %2823 = vmatpush1.bf16.msra.mxu0 0
        %2824 = vmatprep.subr.bf16.mxu0 0
        %2825 = vmatpush1.bf16.msra.mxu0 0
        %2826 = vmatprep.subr.bf16.mxu0 0
        %2827 = vmatpush1.bf16.msra.mxu0 0
        %2828 = vmatprep.subr.bf16.mxu0 0
        %2829 = vmatpush1.bf16.msra.mxu0 0
        %2830 = vmatprep.subr.bf16.mxu0 0
        %2831 = vmatpush1.bf16.msra.mxu0 %v2807
        %2832 = vmatprep.subr.bf16.mxu0 0
        %2833 = vmatpush1.bf16.msra.mxu0 %v2806
        %2834 = vmatprep.subr.bf16.mxu0 0
        %2835 = vmatpush2.bf16.msra.mxu0 0
        %2836 = vmatprep.subr.bf16.mxu0 0
        %2837 = vmatpush2.bf16.msra.mxu0 0
        %2838 = vmatprep.subr.bf16.mxu0 0
        %2839 = vmatpush2.bf16.msra.mxu0 0
        %2840 = vmatprep.subr.bf16.mxu0 0
        %2841 = vmatpush2.bf16.msra.mxu0 0
        %2842 = vmatprep.subr.bf16.mxu0 0
        %2843 = vmatpush2.bf16.msra.mxu0 0
        %2844 = vmatprep.subr.bf16.mxu0 0
        %2845 = vmatpush2.bf16.msra.mxu0 0
        %2846 = vmatprep.subr.bf16.mxu0 0
        %2847 = vmatpush2.bf16.msra.mxu0 0
        %2848 = vmatprep.subr.bf16.mxu0 0
        %2849 = vmatpush2.bf16.msra.mxu0 0
        %2850 = vmatprep.mubr.bf16.mxu0 0
        %2851 = vmatmul.mubr.bf16.gmra.mxu0 %v2816
        %v2852 = vpop.f32.mrf.mxu0
        %v2853 = vadd.f32 %v2813, %v2852
        %v2854 = vpop.f32.mrf.mxu0
        %v2855 = vpop.f32.mrf.mxu0
        %v2856 = vpop.f32.mrf.mxu0
        %2857 = vdwg.mxu0
        %v2858 = vmax.f32 %v2853, 0.0
        %v2859 = vld [vmem:[%s57] sm:$0xff]
        %v2860 = vld [vmem:[%s57 + $0x8] sm:$0xff]
        %v2861 = vld [vmem:[%s57 + $0x10] sm:$0xff]
        %v2862 = vld [vmem:[%s57 + $0x18] sm:$0xff]
        %v2863 = vld [vmem:[%s57 + $0x20] sm:$0xff]
        %v2864 = vld [vmem:[%s57 + $0x28] sm:$0xff]
        %v2865 = vld [vmem:[%s57 + $0x30] sm:$0xff]
        %v2866 = vld [vmem:[%s57 + $0x38] sm:$0xff]
        %v2867 = vpack.c.bf16 %v2858, %v2858
        %v2868 = vpack.c.bf16 %v2860, %v2859
        %v2869 = vpack.c.bf16 %v2862, %v2861
        %v2870 = vpack.c.bf16 %v2864, %v2863
        %v2871 = vpack.c.bf16 %v2866, %v2865
        %v2872 = vld [vmem:[#allocation4] sm:$0x1]
        %v2874 = vlaneseq
        %v2875 = vshrl.u32 %v2874, 7
        %v2876 = vsub.s32 0, %v2875
        %v2877 = vrot.slane %v2872, %v2876
        %vm2879 = vcmask 523264
        %v2881 = vsel %vm2879, %v2867, 0
        %2883 = vmatprep.subr.bf16.mxu0 0
        %2884 = vmatpush1.bf16.msra.mxu0 0
        %2885 = vmatprep.subr.bf16.mxu0 0
        %2886 = vmatpush1.bf16.msra.mxu0 0
        %2887 = vmatprep.subr.bf16.mxu0 0
        %2888 = vmatpush1.bf16.msra.mxu0 0
        %2889 = vmatprep.subr.bf16.mxu0 0
        %2890 = vmatpush1.bf16.msra.mxu0 0
        %2891 = vmatprep.subr.bf16.mxu0 0
        %2892 = vmatpush1.bf16.msra.mxu0 %v2871
        %2893 = vmatprep.subr.bf16.mxu0 0
        %2894 = vmatpush1.bf16.msra.mxu0 %v2870
        %2895 = vmatprep.subr.bf16.mxu0 0
        %2896 = vmatpush1.bf16.msra.mxu0 %v2869
        %2897 = vmatprep.subr.bf16.mxu0 0
        %2898 = vmatpush1.bf16.msra.mxu0 %v2868
        %2899 = vmatprep.subr.bf16.mxu0 0
        %2900 = vmatpush2.bf16.msra.mxu0 0
        %2901 = vmatprep.subr.bf16.mxu0 0
        %2902 = vmatpush2.bf16.msra.mxu0 0
        %2903 = vmatprep.subr.bf16.mxu0 0
        %2904 = vmatpush2.bf16.msra.mxu0 0
        %2905 = vmatprep.subr.bf16.mxu0 0
        %2906 = vmatpush2.bf16.msra.mxu0 0
        %2907 = vmatprep.subr.bf16.mxu0 0
        %2908 = vmatpush2.bf16.msra.mxu0 0
        %2909 = vmatprep.subr.bf16.mxu0 0
        %2910 = vmatpush2.bf16.msra.mxu0 0
        %2911 = vmatprep.subr.bf16.mxu0 0
        %2912 = vmatpush2.bf16.msra.mxu0 0
        %2913 = vmatprep.subr.bf16.mxu0 0
        %2914 = vmatpush2.bf16.msra.mxu0 0
        %2915 = vmatprep.mubr.bf16.mxu0 0
        %2916 = vmatmul.mubr.bf16.gmra.mxu0 %v2881
        %v2917 = vpop.f32.mrf.mxu0
        %v2918 = vadd.f32 %v2877, %v2917
        %v2919 = vpop.f32.mrf.mxu0
        %v2920 = vpop.f32.mrf.mxu0
        %v2921 = vpop.f32.mrf.mxu0
        %2922 = vdwg.mxu0
        %v2923 = vadd.f32 %v2800, %v2918
        %v2924 = vld [vmem:[#allocation6] sm:$0x1]
        %v2925 = vld [vmem:[#allocation7] sm:$0x1]
        %v2926 = vsel %vm1318, %v2923, 0.0
        %2927 = vadd.xlane.f32.xlu0 %v2926
        %v2928 = vpop.xlane.xlu0 %2927
        %v2929 = vmul.f32 %v2928, %v1994
        %v2930 = vsub.f32 %v2923, %v2929
        %v2931 = vmul.f32 %v2930, %v2930
        %v2932 = vsel %vm1318, %v2931, 0.0
        %2933 = vadd.xlane.f32.xlu0 %v2932
        %v2934 = vpop.xlane.xlu0 %2933
        %v2935 = vmul.f32 %v2934, %v1994
        %v2936 = vadd.f32 %v2935, 1e-05
        %v2937 = vrsqrt.pop %v2936
        %v2938 = vmul.f32 %v2930, %v2937
        %v2940 = vlaneseq
        %v2941 = vshrl.u32 %v2940, 7
        %v2942 = vsub.s32 0, %v2941
        %v2943 = vrot.slane %v2924, %v2942
        %v2945 = vmul.f32 %v2938, %v2943
        %v2947 = vlaneseq
        %v2948 = vshrl.u32 %v2947, 7
        %v2949 = vsub.s32 0, %v2948
        %v2950 = vrot.slane %v2925, %v2949
        %v2952 = vadd.f32 %v2945, %v2950
        %v2953 = vpack.c.bf16 %v2952, %v2952
        %vm2954 = vcmask 257024
        %2955 = vst.msk [vmem:[%s1286] sm:$0xf] %vm2954, %v2953
        %v2956 = vld [vmem:[%s65] sm:$0xff]
        %v2957 = vld [vmem:[%s65 + $0x8] sm:$0xff]
        %v2958 = vld [vmem:[%s65 + $0x10] sm:$0xff]
        %v2959 = vld [vmem:[%s65 + $0x18] sm:$0xff]
        %v2960 = vld [vmem:[#allocation9] sm:$0x1]
        %v2962 = vlaneseq
        %v2963 = vshrl.u32 %v2962, 7
        %v2964 = vsub.s32 0, %v2963
        %v2965 = vrot.slane %v2960, %v2964
        %v2968 = vsel %vm1318, %v2952, 0
        %2970 = vmatprep.subr.mxu0 0.0
        %2971 = vmatpush1.msra.mxu0 0.0
        %2972 = vmatprep.subr.mxu0 0.0
        %2973 = vmatpush1.msra.mxu0 0.0
        %2974 = vmatprep.subr.mxu0 0.0
        %2975 = vmatpush1.msra.mxu0 0.0
        %2976 = vmatprep.subr.mxu0 0.0
        %2977 = vmatpush1.msra.mxu0 0.0
        %2978 = vmatprep.subr.mxu0 0.0
        %2979 = vmatpush1.msra.mxu0 0.0
        %2980 = vmatprep.subr.mxu0 0.0
        %2981 = vmatpush1.msra.mxu0 0.0
        %2982 = vmatprep.subr.mxu0 0.0
        %2983 = vmatpush1.msra.mxu0 0.0
        %2984 = vmatprep.subr.mxu0 0.0
        %2985 = vmatpush1.msra.mxu0 0.0
        %2986 = vmatprep.subr.mxu0 0.0
        %2987 = vmatpush1.msra.mxu0 0.0
        %2988 = vmatprep.subr.mxu0 0.0
        %2989 = vmatpush1.msra.mxu0 0.0
        %2990 = vmatprep.subr.mxu0 0.0
        %2991 = vmatpush1.msra.mxu0 0.0
        %2992 = vmatprep.subr.mxu0 0.0
        %2993 = vmatpush1.msra.mxu0 0.0
        %2994 = vmatprep.subr.mxu0 0.0
        %2995 = vmatpush1.msra.mxu0 %v2959
        %2996 = vmatprep.subr.mxu0 0.0
        %2997 = vmatpush1.msra.mxu0 %v2958
        %2998 = vmatprep.subr.mxu0 0.0
        %2999 = vmatpush1.msra.mxu0 %v2957
        %3000 = vmatprep.subr.mxu0 0.0
        %3001 = vmatpush1.msra.mxu0 %v2956
        %3002 = vmatprep.subr.mxu0 0.0
        %3003 = vmatpush2.msra.mxu0 0.0
        %3004 = vmatprep.subr.mxu0 0.0
        %3005 = vmatpush2.msra.mxu0 0.0
        %3006 = vmatprep.subr.mxu0 0.0
        %3007 = vmatpush2.msra.mxu0 0.0
        %3008 = vmatprep.subr.mxu0 0.0
        %3009 = vmatpush2.msra.mxu0 0.0
        %3010 = vmatprep.subr.mxu0 0.0
        %3011 = vmatpush2.msra.mxu0 0.0
        %3012 = vmatprep.subr.mxu0 0.0
        %3013 = vmatpush2.msra.mxu0 0.0
        %3014 = vmatprep.subr.mxu0 0.0
        %3015 = vmatpush2.msra.mxu0 0.0
        %3016 = vmatprep.subr.mxu0 0.0
        %3017 = vmatpush2.msra.mxu0 0.0
        %3018 = vmatprep.subr.mxu0 0.0
        %3019 = vmatpush2.msra.mxu0 0.0
        %3020 = vmatprep.subr.mxu0 0.0
        %3021 = vmatpush2.msra.mxu0 0.0
        %3022 = vmatprep.subr.mxu0 0.0
        %3023 = vmatpush2.msra.mxu0 0.0
        %3024 = vmatprep.subr.mxu0 0.0
        %3025 = vmatpush2.msra.mxu0 0.0
        %3026 = vmatprep.subr.mxu0 0.0
        %3027 = vmatpush2.msra.mxu0 0.0
        %3028 = vmatprep.subr.mxu0 0.0
        %3029 = vmatpush2.msra.mxu0 0.0
        %3030 = vmatprep.subr.mxu0 0.0
        %3031 = vmatpush2.msra.mxu0 0.0
        %3032 = vmatprep.subr.mxu0 0.0
        %3033 = vmatpush2.msra.mxu0 0.0
        %3034 = vmatprep.mubr.f32.mxu0 0.0
        %3035 = vmatmul.mubr.f32.gmra.mxu0 %v2968
        %v3036 = vpop.f32.mrf.mxu0
        %v3037 = vadd.f32 %v2965, %v3036
        %v3038 = vpop.f32.mrf.mxu0
        %3039 = vdwg.mxu0
        %v3040 = vmax.f32 %v3037, 0.0
        %v3041 = vld [vmem:[%s69] sm:$0xff]
        %v3042 = vld [vmem:[%s69 + $0x8] sm:$0xff]
        %v3043 = vld [vmem:[%s69 + $0x10] sm:$0xff]
        %v3044 = vld [vmem:[%s69 + $0x18] sm:$0xff]
        %v3045 = vld [vmem:[%s71] sm:$0xff]
        %v3046 = vld [vmem:[%s71 + $0x8] sm:$0xff]
        %v3047 = vld [vmem:[%s71 + $0x10] sm:$0xff]
        %v3048 = vld [vmem:[%s71 + $0x18] sm:$0xff]
        %v3050 = vsel %vm1318, %v3040, 0
        %3052 = vmatprep.subr.mxu0 0.0
        %3053 = vmatpush1.msra.mxu0 0.0
        %3054 = vmatprep.subr.mxu0 0.0
        %3055 = vmatpush1.msra.mxu0 0.0
        %3056 = vmatprep.subr.mxu0 0.0
        %3057 = vmatpush1.msra.mxu0 0.0
        %3058 = vmatprep.subr.mxu0 0.0
        %3059 = vmatpush1.msra.mxu0 0.0
        %3060 = vmatprep.subr.mxu0 0.0
        %3061 = vmatpush1.msra.mxu0 0.0
        %3062 = vmatprep.subr.mxu0 0.0
        %3063 = vmatpush1.msra.mxu0 0.0
        %3064 = vmatprep.subr.mxu0 0.0
        %3065 = vmatpush1.msra.mxu0 0.0
        %3066 = vmatprep.subr.mxu0 0.0
        %3067 = vmatpush1.msra.mxu0 0.0
        %3068 = vmatprep.subr.mxu0 0.0
        %3069 = vmatpush1.msra.mxu0 0.0
        %3070 = vmatprep.subr.mxu0 0.0
        %3071 = vmatpush1.msra.mxu0 0.0
        %3072 = vmatprep.subr.mxu0 0.0
        %3073 = vmatpush1.msra.mxu0 0.0
        %3074 = vmatprep.subr.mxu0 0.0
        %3075 = vmatpush1.msra.mxu0 0.0
        %3076 = vmatprep.subr.mxu0 0.0
        %3077 = vmatpush1.msra.mxu0 %v3048
        %3078 = vmatprep.subr.mxu0 0.0
        %3079 = vmatpush1.msra.mxu0 %v3047
        %3080 = vmatprep.subr.mxu0 0.0
        %3081 = vmatpush1.msra.mxu0 %v3046
        %3082 = vmatprep.subr.mxu0 0.0
        %3083 = vmatpush1.msra.mxu0 %v3045
        %3084 = vmatprep.subr.mxu0 0.0
        %3085 = vmatpush2.msra.mxu0 0.0
        %3086 = vmatprep.subr.mxu0 0.0
        %3087 = vmatpush2.msra.mxu0 0.0
        %3088 = vmatprep.subr.mxu0 0.0
        %3089 = vmatpush2.msra.mxu0 0.0
        %3090 = vmatprep.subr.mxu0 0.0
        %3091 = vmatpush2.msra.mxu0 0.0
        %3092 = vmatprep.subr.mxu0 0.0
        %3093 = vmatpush2.msra.mxu0 0.0
        %3094 = vmatprep.subr.mxu0 0.0
        %3095 = vmatpush2.msra.mxu0 0.0
        %3096 = vmatprep.subr.mxu0 0.0
        %3097 = vmatpush2.msra.mxu0 0.0
        %3098 = vmatprep.subr.mxu0 0.0
        %3099 = vmatpush2.msra.mxu0 0.0
        %3100 = vmatprep.subr.mxu0 0.0
        %3101 = vmatpush2.msra.mxu0 0.0
        %3102 = vmatprep.subr.mxu0 0.0
        %3103 = vmatpush2.msra.mxu0 0.0
        %3104 = vmatprep.subr.mxu0 0.0
        %3105 = vmatpush2.msra.mxu0 0.0
        %3106 = vmatprep.subr.mxu0 0.0
        %3107 = vmatpush2.msra.mxu0 0.0
        %3108 = vmatprep.subr.mxu0 0.0
        %3109 = vmatpush2.msra.mxu0 0.0
        %3110 = vmatprep.subr.mxu0 0.0
        %3111 = vmatpush2.msra.mxu0 0.0
        %3112 = vmatprep.subr.mxu0 0.0
        %3113 = vmatpush2.msra.mxu0 0.0
        %3114 = vmatprep.subr.mxu0 0.0
        %3115 = vmatpush2.msra.mxu0 0.0
        %3116 = vmatprep.mubr.f32.mxu0 0.0
        %3117 = vmatmul.mubr.f32.gmra.mxu0 %v3050
        %v3118 = vpop.f32.mrf.mxu0
        %v3119 = vadd.f32 0.0, %v3118
        %v3120 = vpop.f32.mrf.mxu0
        %3121 = vdwg.mxu0
        %3122 = vmatprep.subr.mxu0 0.0
        %3123 = vmatpush1.msra.mxu0 0.0
        %3124 = vmatprep.subr.mxu0 0.0
        %3125 = vmatpush1.msra.mxu0 0.0
        %3126 = vmatprep.subr.mxu0 0.0
        %3127 = vmatpush1.msra.mxu0 0.0
        %3128 = vmatprep.subr.mxu0 0.0
        %3129 = vmatpush1.msra.mxu0 0.0
        %3130 = vmatprep.subr.mxu0 0.0
        %3131 = vmatpush1.msra.mxu0 0.0
        %3132 = vmatprep.subr.mxu0 0.0
        %3133 = vmatpush1.msra.mxu0 0.0
        %3134 = vmatprep.subr.mxu0 0.0
        %3135 = vmatpush1.msra.mxu0 0.0
        %3136 = vmatprep.subr.mxu0 0.0
        %3137 = vmatpush1.msra.mxu0 0.0
        %3138 = vmatprep.subr.mxu0 0.0
        %3139 = vmatpush1.msra.mxu0 0.0
        %3140 = vmatprep.subr.mxu0 0.0
        %3141 = vmatpush1.msra.mxu0 0.0
        %3142 = vmatprep.subr.mxu0 0.0
        %3143 = vmatpush1.msra.mxu0 0.0
        %3144 = vmatprep.subr.mxu0 0.0
        %3145 = vmatpush1.msra.mxu0 0.0
        %3146 = vmatprep.subr.mxu0 0.0
        %3147 = vmatpush1.msra.mxu0 %v3044
        %3148 = vmatprep.subr.mxu0 0.0
        %3149 = vmatpush1.msra.mxu0 %v3043
        %3150 = vmatprep.subr.mxu0 0.0
        %3151 = vmatpush1.msra.mxu0 %v3042
        %3152 = vmatprep.subr.mxu0 0.0
        %3153 = vmatpush1.msra.mxu0 %v3041
        %3154 = vmatprep.subr.mxu0 0.0
        %3155 = vmatpush2.msra.mxu0 0.0
        %3156 = vmatprep.subr.mxu0 0.0
        %3157 = vmatpush2.msra.mxu0 0.0
        %3158 = vmatprep.subr.mxu0 0.0
        %3159 = vmatpush2.msra.mxu0 0.0
        %3160 = vmatprep.subr.mxu0 0.0
        %3161 = vmatpush2.msra.mxu0 0.0
        %3162 = vmatprep.subr.mxu0 0.0
        %3163 = vmatpush2.msra.mxu0 0.0
        %3164 = vmatprep.subr.mxu0 0.0
        %3165 = vmatpush2.msra.mxu0 0.0
        %3166 = vmatprep.subr.mxu0 0.0
        %3167 = vmatpush2.msra.mxu0 0.0
        %3168 = vmatprep.subr.mxu0 0.0
        %3169 = vmatpush2.msra.mxu0 0.0
        %3170 = vmatprep.subr.mxu0 0.0
        %3171 = vmatpush2.msra.mxu0 0.0
        %3172 = vmatprep.subr.mxu0 0.0
        %3173 = vmatpush2.msra.mxu0 0.0
        %3174 = vmatprep.subr.mxu0 0.0
        %3175 = vmatpush2.msra.mxu0 0.0
        %3176 = vmatprep.subr.mxu0 0.0
        %3177 = vmatpush2.msra.mxu0 0.0
        %3178 = vmatprep.subr.mxu0 0.0
        %3179 = vmatpush2.msra.mxu0 0.0
        %3180 = vmatprep.subr.mxu0 0.0
        %3181 = vmatpush2.msra.mxu0 0.0
        %3182 = vmatprep.subr.mxu0 0.0
        %3183 = vmatpush2.msra.mxu0 0.0
        %3184 = vmatprep.subr.mxu0 0.0
        %3185 = vmatpush2.msra.mxu0 0.0
        %3186 = vmatprep.mubr.f32.mxu0 0.0
        %3187 = vmatmul.mubr.f32.gmra.mxu0 %v2968
        %v3188 = vpop.f32.mrf.mxu0
        %v3189 = vadd.f32 %v3119, %v3188
        %v3190 = vpop.f32.mrf.mxu0
        %3191 = vdwg.mxu0
        %v3192 = vld [vmem:[#allocation10] sm:$0x1]
        %v3194 = vlaneseq
        %v3195 = vshrl.u32 %v3194, 7
        %v3196 = vsub.s32 0, %v3195
        %v3197 = vrot.slane %v3192, %v3196
        %v3199 = vadd.f32 %v3189, %v3197
        %v3200 = vadd.f32 %v3199, %v1303
        %3201 = vst [vmem:[%s1290] sm:$0xff] %v3200
        %p3202 = scmp.lt.s32.totalorder %s93, 1
        %s3203 = scalar_select %p3202, %s93, 1
        %s3204 = smul.addr %s3203, 4
        %s3205 = scalar_lea.vmem %s75, %s3204
        %p3206 = scmp.lt.s32.totalorder %s93, 1
        %s3207 = scalar_select %p3206, %s93, 1
        %s3208 = smul.addr %s3207, 8
        %s3209 = scalar_lea.vmem %s77, %s3208
        // Predicated region
        $region193: #{transformer_decoder.3} parent=167 // pred_check
          %p3210 = pneg %p908
        $region194: #{transformer_decoder.3} parent=167 // pred_check_branch
          %3212 = sbr.rel (%p3210) target = $region196
        $region195: #{transformer_decoder.3} parent=167 // pred_region
          _
        $region196: #{transformer_decoder.3} parent=167 // pred_fallthru
          _
        // Predicated region
        $region197: #{transformer_decoder.3} parent=167 // pred_check
          %p3213 = pneg %p934
        $region198: #{transformer_decoder.3} parent=167 // pred_check_branch
          %3215 = sbr.rel (%p3213) target = $region200
        $region199: #{transformer_decoder.3} parent=167 // pred_region
          _
        $region200: #{transformer_decoder.3} parent=167 // pred_fallthru
          _
      $region168: #{transformer_decoder.3} parent=5 // pred_fallthru
        _
      %p3216 = scmp.le.s32.totalorder 2, %s88
      // Predicated region
      $region201: #{transformer_decoder.3} parent=5 // pred_check
        %p3217 = pneg %p3216
      $region202: #{transformer_decoder.3} parent=5 // pred_check_branch
        %3219 = sbr.rel (%p3217) target = $region204
      $region203: #{transformer_decoder.3} parent=5 // pred_region
        %s3220 = ssub.s32 %s88, 2
        // Predicated region
        $region205: #{transformer_decoder.3} parent=203 // pred_check
          %p3221 = pneg %p914
        $region206: #{transformer_decoder.3} parent=203 // pred_check_branch
          %3223 = sbr.rel (%p3221) target = $region208
        $region207: #{transformer_decoder.3} parent=203 // pred_region
          %p3224 = scmp.lt.s32.totalorder %s94, 1
          %s3225 = scalar_select %p3224, %s94, 1
          %s3226 = smul.addr %s3225, 4
          %s3227 = scalar_lea.vmem %s75, %s3226
        $region208: #{transformer_decoder.3} parent=203 // pred_fallthru
          _
        // Predicated region
        $region209: #{transformer_decoder.3} parent=203 // pred_check
          %p3228 = pneg %p940
        $region210: #{transformer_decoder.3} parent=203 // pred_check_branch
          %3230 = sbr.rel (%p3228) target = $region212
        $region211: #{transformer_decoder.3} parent=203 // pred_region
          %p3231 = scmp.lt.s32.totalorder %s94, 1
          %s3232 = scalar_select %p3231, %s94, 1
          %s3233 = smul.addr %s3232, 8
          %s3234 = scalar_lea.vmem %s77, %s3233
        $region212: #{transformer_decoder.3} parent=203 // pred_fallthru
          _
      $region204: #{transformer_decoder.3} parent=5 // pred_fallthru
        _
    $region6: #{transformer_decoder.3} parent=1 // loop_footer
      %s92 = sadd.s32 1, %s88
    $region7: #{transformer_decoder.3} parent=1 // loop_footer_branch
      %87 = sbr.rel target = $region3
    $region8: #{transformer_decoder.3} parent=1 // loop_exit
      _
    %3235 = vsyncpa [#allocation3], 1
    %s3236 = scalar_lea.sflag [#allocation3], 1
    %3237 = vsyncpa %s3236, 1
    %3238 = vsyncpa [#allocation5], 1
    %3239 = vsyncpa [#allocation8], 1
    %3240 = vsyncpa [#allocation11], 1

// kernel: transformer_decoder.2
$region0: #{transformer_decoder.2}
  #allocation0 [shape = 'u32[]', space=smem, size = 0x4, offset = 0x4, fixed_abs, tag = 'smem constant byte address 0x4 - core index']
  #allocation1 [shape = 'u32[144,128]{1,0:T(1,128)}', space=vmem, size = 0x12000, scoped, tag = 'internal scratch']
  %s0 = inlined_call_operand.smem [shape: u32[39], index: -1, kind: input, shape index: {}]
  %s1 = sld [smem:[%s0]]
  %s2 = scalar_lea.smem %s0, 1
  %s3 = sld [smem:[%s2]]
  %s4 = scalar_lea.smem %s0, 2
  %s5 = sld [smem:[%s4]]
  %s6 = scalar_lea.smem %s0, 3
  %s7 = sld [smem:[%s6]]
  %s8 = scalar_lea.smem %s0, 4
  %s9 = sld [smem:[%s8]]
  %s10 = scalar_lea.smem %s0, 5
  %s11 = sld [smem:[%s10]]
  %s12 = scalar_lea.smem %s0, 6
  %s13 = sld [smem:[%s12]]
  %s14 = scalar_lea.smem %s0, 7
  %s15 = sld [smem:[%s14]]
  %s16 = scalar_lea.smem %s0, 8
  %s17 = sld [smem:[%s16]]
  %s18 = scalar_lea.smem %s0, 9
  %s19 = sld [smem:[%s18]]
  %s20 = scalar_lea.smem %s0, 10
  %s21 = sld [smem:[%s20]]
  %s22 = scalar_lea.smem %s0, 11
  %s23 = sld [smem:[%s22]]
  %s24 = scalar_lea.smem %s0, 12
  %s25 = sld [smem:[%s24]]
  %s26 = scalar_lea.smem %s0, 13
  %s27 = sld [smem:[%s26]]
  %s28 = scalar_lea.smem %s0, 14
  %s29 = sld [smem:[%s28]]
  %s30 = scalar_lea.smem %s0, 15
  %s31 = sld [smem:[%s30]]
  %s32 = scalar_lea.smem %s0, 16
  %s33 = sld [smem:[%s32]]
  %s34 = scalar_lea.smem %s0, 17
  %s35 = sld [smem:[%s34]]
  %s36 = scalar_lea.smem %s0, 18
  %s37 = sld [smem:[%s36]]
  %s38 = scalar_lea.smem %s0, 19
  %s39 = sld [smem:[%s38]]
  %s40 = scalar_lea.smem %s0, 20
  %s41 = sld [smem:[%s40]]
  %s42 = scalar_lea.smem %s0, 21
  %s43 = sld [smem:[%s42]]
  %s44 = scalar_lea.smem %s0, 22
  %s45 = sld [smem:[%s44]]
  %s46 = scalar_lea.smem %s0, 23
  %s47 = sld [smem:[%s46]]
  %s48 = scalar_lea.smem %s0, 24
  %s49 = sld [smem:[%s48]]
  %s50 = scalar_lea.smem %s0, 25
  %s51 = sld [smem:[%s50]]
  %s52 = scalar_lea.smem %s0, 26
  %s53 = sld [smem:[%s52]]
  %s54 = scalar_lea.smem %s0, 27
  %s55 = sld [smem:[%s54]]
  %s56 = scalar_lea.smem %s0, 28
  %s57 = sld [smem:[%s56]]
  %s58 = scalar_lea.smem %s0, 29
  %s59 = sld [smem:[%s58]]
  %s60 = scalar_lea.smem %s0, 30
  %s61 = sld [smem:[%s60]]
  %s62 = scalar_lea.smem %s0, 31
  %s63 = sld [smem:[%s62]]
  %s64 = scalar_lea.smem %s0, 32
  %s65 = sld [smem:[%s64]]
  %s66 = scalar_lea.smem %s0, 33
  %s67 = sld [smem:[%s66]]
  %s68 = scalar_lea.smem %s0, 34
  %s69 = sld [smem:[%s68]]
  %s70 = scalar_lea.smem %s0, 35
  %s71 = sld [smem:[%s70]]
  %s72 = scalar_lea.smem %s0, 36
  %s73 = sld [smem:[%s72]]
  %s74 = scalar_lea.smem %s0, 37
  %s75 = sld [smem:[%s74]]
  %s76 = scalar_lea.smem %s0, 38
  %s77 = sld [smem:[%s76]]
  %78 = xla_tuple %s75, %s77
  %s79 = sld [smem:[#allocation0]]
  $region261: #{transformer_decoder.2} parent=0
    _
  %s81 = ssub.s32 1, %s79
  %s82 = scalar_select 0, %s81, %s79
  $region1: #{transformer_decoder.2} parent=0
    #allocation2 [shape = 'u8[512]{0}', space=vmem, size = 0x400, scoped, tag = 'input window, operand 5, single buffered']
    #allocation3 [shape = 's32[2]{0}', space=sflag, size = 0x8, scoped, tag = 'scoped memory for transformer_decoder.2']
    #allocation4 [shape = 'u8[512]{0}', space=vmem, size = 0x400, scoped, tag = 'input window, operand 7, single buffered']
    #allocation5 [shape = 's32[1]{0}', space=sflag, size = 0x4, scoped, tag = 'scoped memory for transformer_decoder.2']
    #allocation6 [shape = 'u8[512]{0}', space=vmem, size = 0x400, scoped, tag = 'input window, operand 9, single buffered']
    #allocation7 [shape = 'u8[512]{0}', space=vmem, size = 0x400, scoped, tag = 'input window, operand 11, single buffered']
    #allocation8 [shape = 's32[1]{0}', space=sflag, size = 0x4, scoped, tag = 'scoped memory for transformer_decoder.2']
    #allocation9 [shape = 'u8[512]{0}', space=vmem, size = 0x400, scoped, tag = 'input window, operand 12, single buffered']
    #allocation10 [shape = 'u8[512]{0}', space=vmem, size = 0x400, scoped, tag = 'input window, operand 13, single buffered']
    #allocation11 [shape = 's32[1]{0}', space=sflag, size = 0x4, scoped, tag = 'scoped memory for transformer_decoder.2']
    #allocation12 [shape = 'u8[512]{0}', space=vmem, size = 0x400, scoped, tag = 'input window, operand 15, single buffered']
    #allocation13 [shape = 'u8[512]{0}', space=vmem, size = 0x400, scoped, tag = 'input window, operand 17, single buffered']
    #allocation14 [shape = 's32[1]{0}', space=sflag, size = 0x4, scoped, tag = 'scoped memory for transformer_decoder.2']
    #allocation15 [shape = 'u8[512]{0}', space=vmem, size = 0x400, scoped, tag = 'input window, operand 19, single buffered']
    #allocation16 [shape = 'u8[512]{0}', space=vmem, size = 0x400, scoped, tag = 'input window, operand 21, single buffered']
    #allocation17 [shape = 's32[1]{0}', space=sflag, size = 0x4, scoped, tag = 'scoped memory for transformer_decoder.2']
    #allocation18 [shape = 'u8[512]{0}', space=vmem, size = 0x400, scoped, tag = 'input window, operand 23, single buffered']
    #allocation19 [shape = 'u8[512]{0}', space=vmem, size = 0x400, scoped, tag = 'input window, operand 24, single buffered']
    #allocation20 [shape = 's32[1]{0}', space=sflag, size = 0x4, scoped, tag = 'scoped memory for transformer_decoder.2']
    #allocation21 [shape = 'u8[512]{0}', space=vmem, size = 0x400, scoped, tag = 'input window, operand 25, single buffered']
    #allocation22 [shape = 'u8[512]{0}', space=vmem, size = 0x400, scoped, tag = 'input window, operand 27, single buffered']
    #allocation23 [shape = 's32[1]{0}', space=sflag, size = 0x4, scoped, tag = 'scoped memory for transformer_decoder.2']
    #allocation24 [shape = 'u8[512]{0}', space=vmem, size = 0x400, scoped, tag = 'input window, operand 29, single buffered']
    #allocation25 [shape = 'u8[512]{0}', space=vmem, size = 0x400, scoped, tag = 'input window, operand 30, single buffered']
    #allocation26 [shape = 's32[1]{0}', space=sflag, size = 0x4, scoped, tag = 'scoped memory for transformer_decoder.2']
    #allocation27 [shape = 'u8[512]{0}', space=vmem, size = 0x400, scoped, tag = 'input window, operand 31, single buffered']
    #allocation28 [shape = 'u8[512]{0}', space=vmem, size = 0x400, scoped, tag = 'input window, operand 36, single buffered']
    #allocation29 [shape = 's32[1]{0}', space=sflag, size = 0x4, scoped, tag = 'scoped memory for transformer_decoder.2']
    %83 = vsyncpa [#allocation3], 0
    %84 = vsyncpa [#allocation5], 0
    %85 = vsyncpa [#allocation8], 0
    %86 = vsyncpa [#allocation11], 0
    %87 = vsyncpa [#allocation14], 0
    %88 = vsyncpa [#allocation17], 0
    %89 = vsyncpa [#allocation20], 0
    %90 = vsyncpa [#allocation23], 0
    %91 = vsyncpa [#allocation26], 0
    %92 = vsyncpa [#allocation29], 0
    loop: start=0, step=1, limit=4
    $region2: #{transformer_decoder.2} parent=1 // loop_pre_header
      _
    $region3: #{transformer_decoder.2} parent=1 // loop_header
      %s94 = sphi 0, %s98
      %p95 = scmp.ge.s32.totalorder %s94, 4
      %s104 = sphi 0, %s106
      %s107 = sphi 0, %s104
      %s108 = sphi 0, %s107
      %s124 = sphi 0, %s108
      %s130 = sphi 0, %s132
      %s133 = sphi 0, %s130
      %s134 = sphi 0, %s133
      %s150 = sphi 0, %s134
      %s156 = sphi 0, %s158
      %s159 = sphi 0, %s156
      %s160 = sphi 0, %s159
      %s176 = sphi 0, %s160
      %s182 = sphi 0, %s184
      %s185 = sphi 0, %s182
      %s186 = sphi 0, %s185
      %s202 = sphi 0, %s186
      %s206 = sphi 0, %s206
      %s208 = sphi 0, %s206
      %s209 = sphi 0, %s208
      %s223 = sphi 0, %s209
      %s227 = sphi 0, %s227
      %s229 = sphi 0, %s227
      %s230 = sphi 0, %s229
      %s244 = sphi 0, %s230
      %s248 = sphi 0, %s248
      %s250 = sphi 0, %s248
      %s251 = sphi 0, %s250
      %s265 = sphi 0, %s251
      %s269 = sphi 0, %s269
      %s271 = sphi 0, %s269
      %s272 = sphi 0, %s271
      %s286 = sphi 0, %s272
      %s290 = sphi 0, %s290
      %s292 = sphi 0, %s290
      %s293 = sphi 0, %s292
      %s307 = sphi 0, %s293
      %s311 = sphi 0, %s311
      %s313 = sphi 0, %s311
      %s314 = sphi 0, %s313
      %s328 = sphi 0, %s314
      %s332 = sphi 0, %s332
      %s334 = sphi 0, %s332
      %s335 = sphi 0, %s334
      %s349 = sphi 0, %s335
      %s353 = sphi 0, %s353
      %s355 = sphi 0, %s353
      %s356 = sphi 0, %s355
      %s370 = sphi 0, %s356
      %s374 = sphi 0, %s374
      %s376 = sphi 0, %s374
      %s377 = sphi 0, %s376
      %s391 = sphi 0, %s377
      %s395 = sphi 0, %s395
      %s397 = sphi 0, %s395
      %s398 = sphi 0, %s397
      %s412 = sphi 0, %s398
      %s416 = sphi 0, %s416
      %s418 = sphi 0, %s416
      %s419 = sphi 0, %s418
      %s433 = sphi 0, %s419
      %s437 = sphi 0, %s437
      %s439 = sphi 0, %s437
      %s440 = sphi 0, %s439
      %s454 = sphi 0, %s440
      %s458 = sphi 0, %s458
      %s460 = sphi 0, %s458
      %s461 = sphi 0, %s460
      %s475 = sphi 0, %s461
      %s479 = sphi 0, %s479
      %s481 = sphi 0, %s479
      %s482 = sphi 0, %s481
      %s496 = sphi 0, %s482
      %s500 = sphi 0, %s500
      %s502 = sphi 0, %s500
      %s503 = sphi 0, %s502
      %s517 = sphi 0, %s503
      %s521 = sphi 0, %s521
      %s523 = sphi 0, %s521
      %s524 = sphi 0, %s523
      %s538 = sphi 0, %s524
      %s542 = sphi 0, %s542
      %s544 = sphi 0, %s542
      %s545 = sphi 0, %s544
      %s559 = sphi 0, %s545
      %s563 = sphi 0, %s563
      %s565 = sphi 0, %s563
      %s566 = sphi 0, %s565
      %s580 = sphi 0, %s566
      %s584 = sphi 0, %s584
      %s586 = sphi 0, %s584
      %s587 = sphi 0, %s586
      %s601 = sphi 0, %s587
      %s605 = sphi 0, %s605
      %s607 = sphi 0, %s605
      %s608 = sphi 0, %s607
      %s622 = sphi 0, %s608
      %s626 = sphi 0, %s626
      %s628 = sphi 0, %s626
      %s629 = sphi 0, %s628
      %s643 = sphi 0, %s629
      %s647 = sphi 0, %s647
      %s649 = sphi 0, %s647
      %s650 = sphi 0, %s649
      %s664 = sphi 0, %s650
      %s668 = sphi 0, %s668
      %s670 = sphi 0, %s668
      %s671 = sphi 0, %s670
      %s685 = sphi 0, %s671
      %s689 = sphi 0, %s689
      %s691 = sphi 0, %s689
      %s692 = sphi 0, %s691
      %s706 = sphi 0, %s692
      %s710 = sphi 0, %s710
      %s712 = sphi 0, %s710
      %s713 = sphi 0, %s712
      %s727 = sphi 0, %s713
      %s731 = sphi 0, %s731
      %s733 = sphi 0, %s731
      %s734 = sphi 0, %s733
      %s748 = sphi 0, %s734
      %s752 = sphi 0, %s752
      %s754 = sphi 0, %s752
      %s755 = sphi 0, %s754
      %s769 = sphi 0, %s755
      %s773 = sphi 0, %s773
      %s775 = sphi 0, %s773
      %s776 = sphi 0, %s775
      %s790 = sphi 0, %s776
      %s794 = sphi 0, %s794
      %s796 = sphi 0, %s794
      %s797 = sphi 0, %s796
      %s811 = sphi 0, %s797
      %s815 = sphi 0, %s815
      %s817 = sphi 0, %s815
      %s818 = sphi 0, %s817
      %s832 = sphi 0, %s818
      %s836 = sphi 0, %s836
      %s838 = sphi 0, %s836
      %s839 = sphi 0, %s838
      %s853 = sphi 0, %s839
      %s857 = sphi 0, %s857
      %s859 = sphi 0, %s857
      %s860 = sphi 0, %s859
      %s874 = sphi 0, %s860
      %s878 = sphi 0, %s878
      %s880 = sphi 0, %s878
      %s881 = sphi 0, %s880
      %s895 = sphi 0, %s881
      %s901 = sphi 0, %s903
      %s904 = sphi 0, %s901
      %s905 = sphi 0, %s904
      %s921 = sphi 0, %s905
      %s927 = sphi 0, %s929
      %s930 = sphi 0, %s927
      %s931 = sphi 0, %s930
      %s947 = sphi 0, %s931
    $region4: #{transformer_decoder.2} parent=1 // loop_header_branch
      %97 = sbr.rel (%p95) target = $region8
    $region5: #{transformer_decoder.2} parent=1 // loop_body
      %s99 = ssub.s32 %s94, 1
      %s100 = ssub.s32 %s94, 2
      %s101 = sadd.s32 %s94, 1
      %s102 = ssub.s32 %s94, %s101
      %p103 = scmp.eq.s32.totalorder %s102, 0
      %s105 = sadd.s32 %s104, 1
      %s106 = scalar_select %p103, %s104, %s105
      %p109 = pneg %p103
      %p110 = scmp.eq.s32.totalorder %s94, 1
      %p111 = por %p109, %p110
      %p112 = scmp.ne.s32.totalorder %s104, %s107
      %p113 = scmp.eq.s32.totalorder %s94, 0
      %p114 = por %p112, %p113
      %p115 = scmp.ne.s32.totalorder %s104, %s107
      %p116 = scmp.eq.s32.totalorder %s99, 1
      %p117 = por %p115, %p116
      %p118 = scmp.ne.s32.totalorder %s107, %s108
      %p119 = scmp.eq.s32.totalorder %s99, 0
      %p120 = por %p118, %p119
      %p121 = scmp.ne.s32.totalorder %s107, %s108
      %p122 = scmp.eq.s32.totalorder %s100, 1
      %p123 = por %p121, %p122
      %p125 = scmp.ne.s32.totalorder %s108, %s124
      %p126 = scmp.eq.s32.totalorder %s100, 0
      %p127 = por %p125, %p126
      %s128 = ssub.s32 %s94, %s101
      %p129 = scmp.eq.s32.totalorder %s128, 0
      %s131 = sadd.s32 %s130, 1
      %s132 = scalar_select %p129, %s130, %s131
      %p135 = pneg %p129
      %p136 = scmp.eq.s32.totalorder %s94, 1
      %p137 = por %p135, %p136
      %p138 = scmp.ne.s32.totalorder %s130, %s133
      %p139 = scmp.eq.s32.totalorder %s94, 0
      %p140 = por %p138, %p139
      %p141 = scmp.ne.s32.totalorder %s130, %s133
      %p142 = scmp.eq.s32.totalorder %s99, 1
      %p143 = por %p141, %p142
      %p144 = scmp.ne.s32.totalorder %s133, %s134
      %p145 = scmp.eq.s32.totalorder %s99, 0
      %p146 = por %p144, %p145
      %p147 = scmp.ne.s32.totalorder %s133, %s134
      %p148 = scmp.eq.s32.totalorder %s100, 1
      %p149 = por %p147, %p148
      %p151 = scmp.ne.s32.totalorder %s134, %s150
      %p152 = scmp.eq.s32.totalorder %s100, 0
      %p153 = por %p151, %p152
      %s154 = ssub.s32 %s94, %s101
      %p155 = scmp.eq.s32.totalorder %s154, 0
      %s157 = sadd.s32 %s156, 1
      %s158 = scalar_select %p155, %s156, %s157
      %p161 = pneg %p155
      %p162 = scmp.eq.s32.totalorder %s94, 1
      %p163 = por %p161, %p162
      %p164 = scmp.ne.s32.totalorder %s156, %s159
      %p165 = scmp.eq.s32.totalorder %s94, 0
      %p166 = por %p164, %p165
      %p167 = scmp.ne.s32.totalorder %s156, %s159
      %p168 = scmp.eq.s32.totalorder %s99, 1
      %p169 = por %p167, %p168
      %p170 = scmp.ne.s32.totalorder %s159, %s160
      %p171 = scmp.eq.s32.totalorder %s99, 0
      %p172 = por %p170, %p171
      %p173 = scmp.ne.s32.totalorder %s159, %s160
      %p174 = scmp.eq.s32.totalorder %s100, 1
      %p175 = por %p173, %p174
      %p177 = scmp.ne.s32.totalorder %s160, %s176
      %p178 = scmp.eq.s32.totalorder %s100, 0
      %p179 = por %p177, %p178
      %s180 = ssub.s32 %s94, %s101
      %p181 = scmp.eq.s32.totalorder %s180, 0
      %s183 = sadd.s32 %s182, 1
      %s184 = scalar_select %p181, %s182, %s183
      %p187 = pneg %p181
      %p188 = scmp.eq.s32.totalorder %s94, 1
      %p189 = por %p187, %p188
      %p190 = scmp.ne.s32.totalorder %s182, %s185
      %p191 = scmp.eq.s32.totalorder %s94, 0
      %p192 = por %p190, %p191
      %p193 = scmp.ne.s32.totalorder %s182, %s185
      %p194 = scmp.eq.s32.totalorder %s99, 1
      %p195 = por %p193, %p194
      %p196 = scmp.ne.s32.totalorder %s185, %s186
      %p197 = scmp.eq.s32.totalorder %s99, 0
      %p198 = por %p196, %p197
      %p199 = scmp.ne.s32.totalorder %s185, %s186
      %p200 = scmp.eq.s32.totalorder %s100, 1
      %p201 = por %p199, %p200
      %p203 = scmp.ne.s32.totalorder %s186, %s202
      %p204 = scmp.eq.s32.totalorder %s100, 0
      %p205 = por %p203, %p204
      %s207 = sadd.s32 %s206, 1
      %p210 = scmp.eq.s32.totalorder %s94, 1
      %p211 = scmp.ne.s32.totalorder %s206, %s208
      %p212 = scmp.eq.s32.totalorder %s94, 0
      %p213 = por %p211, %p212
      %p214 = scmp.ne.s32.totalorder %s206, %s208
      %p215 = scmp.eq.s32.totalorder %s99, 1
      %p216 = por %p214, %p215
      %p217 = scmp.ne.s32.totalorder %s208, %s209
      %p218 = scmp.eq.s32.totalorder %s99, 0
      %p219 = por %p217, %p218
      %p220 = scmp.ne.s32.totalorder %s208, %s209
      %p221 = scmp.eq.s32.totalorder %s100, 1
      %p222 = por %p220, %p221
      %p224 = scmp.ne.s32.totalorder %s209, %s223
      %p225 = scmp.eq.s32.totalorder %s100, 0
      %p226 = por %p224, %p225
      %s228 = sadd.s32 %s227, 1
      %p231 = scmp.eq.s32.totalorder %s94, 1
      %p232 = scmp.ne.s32.totalorder %s227, %s229
      %p233 = scmp.eq.s32.totalorder %s94, 0
      %p234 = por %p232, %p233
      %p235 = scmp.ne.s32.totalorder %s227, %s229
      %p236 = scmp.eq.s32.totalorder %s99, 1
      %p237 = por %p235, %p236
      %p238 = scmp.ne.s32.totalorder %s229, %s230
      %p239 = scmp.eq.s32.totalorder %s99, 0
      %p240 = por %p238, %p239
      %p241 = scmp.ne.s32.totalorder %s229, %s230
      %p242 = scmp.eq.s32.totalorder %s100, 1
      %p243 = por %p241, %p242
      %p245 = scmp.ne.s32.totalorder %s230, %s244
      %p246 = scmp.eq.s32.totalorder %s100, 0
      %p247 = por %p245, %p246
      %s249 = sadd.s32 %s248, 1
      %p252 = scmp.eq.s32.totalorder %s94, 1
      %p253 = scmp.ne.s32.totalorder %s248, %s250
      %p254 = scmp.eq.s32.totalorder %s94, 0
      %p255 = por %p253, %p254
      %p256 = scmp.ne.s32.totalorder %s248, %s250
      %p257 = scmp.eq.s32.totalorder %s99, 1
      %p258 = por %p256, %p257
      %p259 = scmp.ne.s32.totalorder %s250, %s251
      %p260 = scmp.eq.s32.totalorder %s99, 0
      %p261 = por %p259, %p260
      %p262 = scmp.ne.s32.totalorder %s250, %s251
      %p263 = scmp.eq.s32.totalorder %s100, 1
      %p264 = por %p262, %p263
      %p266 = scmp.ne.s32.totalorder %s251, %s265
      %p267 = scmp.eq.s32.totalorder %s100, 0
      %p268 = por %p266, %p267
      %s270 = sadd.s32 %s269, 1
      %p273 = scmp.eq.s32.totalorder %s94, 1
      %p274 = scmp.ne.s32.totalorder %s269, %s271
      %p275 = scmp.eq.s32.totalorder %s94, 0
      %p276 = por %p274, %p275
      %p277 = scmp.ne.s32.totalorder %s269, %s271
      %p278 = scmp.eq.s32.totalorder %s99, 1
      %p279 = por %p277, %p278
      %p280 = scmp.ne.s32.totalorder %s271, %s272
      %p281 = scmp.eq.s32.totalorder %s99, 0
      %p282 = por %p280, %p281
      %p283 = scmp.ne.s32.totalorder %s271, %s272
      %p284 = scmp.eq.s32.totalorder %s100, 1
      %p285 = por %p283, %p284
      %p287 = scmp.ne.s32.totalorder %s272, %s286
      %p288 = scmp.eq.s32.totalorder %s100, 0
      %p289 = por %p287, %p288
      %s291 = sadd.s32 %s290, 1
      %p294 = scmp.eq.s32.totalorder %s94, 1
      %p295 = scmp.ne.s32.totalorder %s290, %s292
      %p296 = scmp.eq.s32.totalorder %s94, 0
      %p297 = por %p295, %p296
      %p298 = scmp.ne.s32.totalorder %s290, %s292
      %p299 = scmp.eq.s32.totalorder %s99, 1
      %p300 = por %p298, %p299
      %p301 = scmp.ne.s32.totalorder %s292, %s293
      %p302 = scmp.eq.s32.totalorder %s99, 0
      %p303 = por %p301, %p302
      %p304 = scmp.ne.s32.totalorder %s292, %s293
      %p305 = scmp.eq.s32.totalorder %s100, 1
      %p306 = por %p304, %p305
      %p308 = scmp.ne.s32.totalorder %s293, %s307
      %p309 = scmp.eq.s32.totalorder %s100, 0
      %p310 = por %p308, %p309
      %s312 = sadd.s32 %s311, 1
      %p315 = scmp.eq.s32.totalorder %s94, 1
      %p316 = scmp.ne.s32.totalorder %s311, %s313
      %p317 = scmp.eq.s32.totalorder %s94, 0
      %p318 = por %p316, %p317
      %p319 = scmp.ne.s32.totalorder %s311, %s313
      %p320 = scmp.eq.s32.totalorder %s99, 1
      %p321 = por %p319, %p320
      %p322 = scmp.ne.s32.totalorder %s313, %s314
      %p323 = scmp.eq.s32.totalorder %s99, 0
      %p324 = por %p322, %p323
      %p325 = scmp.ne.s32.totalorder %s313, %s314
      %p326 = scmp.eq.s32.totalorder %s100, 1
      %p327 = por %p325, %p326
      %p329 = scmp.ne.s32.totalorder %s314, %s328
      %p330 = scmp.eq.s32.totalorder %s100, 0
      %p331 = por %p329, %p330
      %s333 = sadd.s32 %s332, 1
      %p336 = scmp.eq.s32.totalorder %s94, 1
      %p337 = scmp.ne.s32.totalorder %s332, %s334
      %p338 = scmp.eq.s32.totalorder %s94, 0
      %p339 = por %p337, %p338
      %p340 = scmp.ne.s32.totalorder %s332, %s334
      %p341 = scmp.eq.s32.totalorder %s99, 1
      %p342 = por %p340, %p341
      %p343 = scmp.ne.s32.totalorder %s334, %s335
      %p344 = scmp.eq.s32.totalorder %s99, 0
      %p345 = por %p343, %p344
      %p346 = scmp.ne.s32.totalorder %s334, %s335
      %p347 = scmp.eq.s32.totalorder %s100, 1
      %p348 = por %p346, %p347
      %p350 = scmp.ne.s32.totalorder %s335, %s349
      %p351 = scmp.eq.s32.totalorder %s100, 0
      %p352 = por %p350, %p351
      %s354 = sadd.s32 %s353, 1
      %p357 = scmp.eq.s32.totalorder %s94, 1
      %p358 = scmp.ne.s32.totalorder %s353, %s355
      %p359 = scmp.eq.s32.totalorder %s94, 0
      %p360 = por %p358, %p359
      %p361 = scmp.ne.s32.totalorder %s353, %s355
      %p362 = scmp.eq.s32.totalorder %s99, 1
      %p363 = por %p361, %p362
      %p364 = scmp.ne.s32.totalorder %s355, %s356
      %p365 = scmp.eq.s32.totalorder %s99, 0
      %p366 = por %p364, %p365
      %p367 = scmp.ne.s32.totalorder %s355, %s356
      %p368 = scmp.eq.s32.totalorder %s100, 1
      %p369 = por %p367, %p368
      %p371 = scmp.ne.s32.totalorder %s356, %s370
      %p372 = scmp.eq.s32.totalorder %s100, 0
      %p373 = por %p371, %p372
      %s375 = sadd.s32 %s374, 1
      %p378 = scmp.eq.s32.totalorder %s94, 1
      %p379 = scmp.ne.s32.totalorder %s374, %s376
      %p380 = scmp.eq.s32.totalorder %s94, 0
      %p381 = por %p379, %p380
      %p382 = scmp.ne.s32.totalorder %s374, %s376
      %p383 = scmp.eq.s32.totalorder %s99, 1
      %p384 = por %p382, %p383
      %p385 = scmp.ne.s32.totalorder %s376, %s377
      %p386 = scmp.eq.s32.totalorder %s99, 0
      %p387 = por %p385, %p386
      %p388 = scmp.ne.s32.totalorder %s376, %s377
      %p389 = scmp.eq.s32.totalorder %s100, 1
      %p390 = por %p388, %p389
      %p392 = scmp.ne.s32.totalorder %s377, %s391
      %p393 = scmp.eq.s32.totalorder %s100, 0
      %p394 = por %p392, %p393
      %s396 = sadd.s32 %s395, 1
      %p399 = scmp.eq.s32.totalorder %s94, 1
      %p400 = scmp.ne.s32.totalorder %s395, %s397
      %p401 = scmp.eq.s32.totalorder %s94, 0
      %p402 = por %p400, %p401
      %p403 = scmp.ne.s32.totalorder %s395, %s397
      %p404 = scmp.eq.s32.totalorder %s99, 1
      %p405 = por %p403, %p404
      %p406 = scmp.ne.s32.totalorder %s397, %s398
      %p407 = scmp.eq.s32.totalorder %s99, 0
      %p408 = por %p406, %p407
      %p409 = scmp.ne.s32.totalorder %s397, %s398
      %p410 = scmp.eq.s32.totalorder %s100, 1
      %p411 = por %p409, %p410
      %p413 = scmp.ne.s32.totalorder %s398, %s412
      %p414 = scmp.eq.s32.totalorder %s100, 0
      %p415 = por %p413, %p414
      %s417 = sadd.s32 %s416, 1
      %p420 = scmp.eq.s32.totalorder %s94, 1
      %p421 = scmp.ne.s32.totalorder %s416, %s418
      %p422 = scmp.eq.s32.totalorder %s94, 0
      %p423 = por %p421, %p422
      %p424 = scmp.ne.s32.totalorder %s416, %s418
      %p425 = scmp.eq.s32.totalorder %s99, 1
      %p426 = por %p424, %p425
      %p427 = scmp.ne.s32.totalorder %s418, %s419
      %p428 = scmp.eq.s32.totalorder %s99, 0
      %p429 = por %p427, %p428
      %p430 = scmp.ne.s32.totalorder %s418, %s419
      %p431 = scmp.eq.s32.totalorder %s100, 1
      %p432 = por %p430, %p431
      %p434 = scmp.ne.s32.totalorder %s419, %s433
      %p435 = scmp.eq.s32.totalorder %s100, 0
      %p436 = por %p434, %p435
      %s438 = sadd.s32 %s437, 1
      %p441 = scmp.eq.s32.totalorder %s94, 1
      %p442 = scmp.ne.s32.totalorder %s437, %s439
      %p443 = scmp.eq.s32.totalorder %s94, 0
      %p444 = por %p442, %p443
      %p445 = scmp.ne.s32.totalorder %s437, %s439
      %p446 = scmp.eq.s32.totalorder %s99, 1
      %p447 = por %p445, %p446
      %p448 = scmp.ne.s32.totalorder %s439, %s440
      %p449 = scmp.eq.s32.totalorder %s99, 0
      %p450 = por %p448, %p449
      %p451 = scmp.ne.s32.totalorder %s439, %s440
      %p452 = scmp.eq.s32.totalorder %s100, 1
      %p453 = por %p451, %p452
      %p455 = scmp.ne.s32.totalorder %s440, %s454
      %p456 = scmp.eq.s32.totalorder %s100, 0
      %p457 = por %p455, %p456
      %s459 = sadd.s32 %s458, 1
      %p462 = scmp.eq.s32.totalorder %s94, 1
      %p463 = scmp.ne.s32.totalorder %s458, %s460
      %p464 = scmp.eq.s32.totalorder %s94, 0
      %p465 = por %p463, %p464
      %p466 = scmp.ne.s32.totalorder %s458, %s460
      %p467 = scmp.eq.s32.totalorder %s99, 1
      %p468 = por %p466, %p467
      %p469 = scmp.ne.s32.totalorder %s460, %s461
      %p470 = scmp.eq.s32.totalorder %s99, 0
      %p471 = por %p469, %p470
      %p472 = scmp.ne.s32.totalorder %s460, %s461
      %p473 = scmp.eq.s32.totalorder %s100, 1
      %p474 = por %p472, %p473
      %p476 = scmp.ne.s32.totalorder %s461, %s475
      %p477 = scmp.eq.s32.totalorder %s100, 0
      %p478 = por %p476, %p477
      %s480 = sadd.s32 %s479, 1
      %p483 = scmp.eq.s32.totalorder %s94, 1
      %p484 = scmp.ne.s32.totalorder %s479, %s481
      %p485 = scmp.eq.s32.totalorder %s94, 0
      %p486 = por %p484, %p485
      %p487 = scmp.ne.s32.totalorder %s479, %s481
      %p488 = scmp.eq.s32.totalorder %s99, 1
      %p489 = por %p487, %p488
      %p490 = scmp.ne.s32.totalorder %s481, %s482
      %p491 = scmp.eq.s32.totalorder %s99, 0
      %p492 = por %p490, %p491
      %p493 = scmp.ne.s32.totalorder %s481, %s482
      %p494 = scmp.eq.s32.totalorder %s100, 1
      %p495 = por %p493, %p494
      %p497 = scmp.ne.s32.totalorder %s482, %s496
      %p498 = scmp.eq.s32.totalorder %s100, 0
      %p499 = por %p497, %p498
      %s501 = sadd.s32 %s500, 1
      %p504 = scmp.eq.s32.totalorder %s94, 1
      %p505 = scmp.ne.s32.totalorder %s500, %s502
      %p506 = scmp.eq.s32.totalorder %s94, 0
      %p507 = por %p505, %p506
      %p508 = scmp.ne.s32.totalorder %s500, %s502
      %p509 = scmp.eq.s32.totalorder %s99, 1
      %p510 = por %p508, %p509
      %p511 = scmp.ne.s32.totalorder %s502, %s503
      %p512 = scmp.eq.s32.totalorder %s99, 0
      %p513 = por %p511, %p512
      %p514 = scmp.ne.s32.totalorder %s502, %s503
      %p515 = scmp.eq.s32.totalorder %s100, 1
      %p516 = por %p514, %p515
      %p518 = scmp.ne.s32.totalorder %s503, %s517
      %p519 = scmp.eq.s32.totalorder %s100, 0
      %p520 = por %p518, %p519
      %s522 = sadd.s32 %s521, 1
      %p525 = scmp.eq.s32.totalorder %s94, 1
      %p526 = scmp.ne.s32.totalorder %s521, %s523
      %p527 = scmp.eq.s32.totalorder %s94, 0
      %p528 = por %p526, %p527
      %p529 = scmp.ne.s32.totalorder %s521, %s523
      %p530 = scmp.eq.s32.totalorder %s99, 1
      %p531 = por %p529, %p530
      %p532 = scmp.ne.s32.totalorder %s523, %s524
      %p533 = scmp.eq.s32.totalorder %s99, 0
      %p534 = por %p532, %p533
      %p535 = scmp.ne.s32.totalorder %s523, %s524
      %p536 = scmp.eq.s32.totalorder %s100, 1
      %p537 = por %p535, %p536
      %p539 = scmp.ne.s32.totalorder %s524, %s538
      %p540 = scmp.eq.s32.totalorder %s100, 0
      %p541 = por %p539, %p540
      %s543 = sadd.s32 %s542, 1
      %p546 = scmp.eq.s32.totalorder %s94, 1
      %p547 = scmp.ne.s32.totalorder %s542, %s544
      %p548 = scmp.eq.s32.totalorder %s94, 0
      %p549 = por %p547, %p548
      %p550 = scmp.ne.s32.totalorder %s542, %s544
      %p551 = scmp.eq.s32.totalorder %s99, 1
      %p552 = por %p550, %p551
      %p553 = scmp.ne.s32.totalorder %s544, %s545
      %p554 = scmp.eq.s32.totalorder %s99, 0
      %p555 = por %p553, %p554
      %p556 = scmp.ne.s32.totalorder %s544, %s545
      %p557 = scmp.eq.s32.totalorder %s100, 1
      %p558 = por %p556, %p557
      %p560 = scmp.ne.s32.totalorder %s545, %s559
      %p561 = scmp.eq.s32.totalorder %s100, 0
      %p562 = por %p560, %p561
      %s564 = sadd.s32 %s563, 1
      %p567 = scmp.eq.s32.totalorder %s94, 1
      %p568 = scmp.ne.s32.totalorder %s563, %s565
      %p569 = scmp.eq.s32.totalorder %s94, 0
      %p570 = por %p568, %p569
      %p571 = scmp.ne.s32.totalorder %s563, %s565
      %p572 = scmp.eq.s32.totalorder %s99, 1
      %p573 = por %p571, %p572
      %p574 = scmp.ne.s32.totalorder %s565, %s566
      %p575 = scmp.eq.s32.totalorder %s99, 0
      %p576 = por %p574, %p575
      %p577 = scmp.ne.s32.totalorder %s565, %s566
      %p578 = scmp.eq.s32.totalorder %s100, 1
      %p579 = por %p577, %p578
      %p581 = scmp.ne.s32.totalorder %s566, %s580
      %p582 = scmp.eq.s32.totalorder %s100, 0
      %p583 = por %p581, %p582
      %s585 = sadd.s32 %s584, 1
      %p588 = scmp.eq.s32.totalorder %s94, 1
      %p589 = scmp.ne.s32.totalorder %s584, %s586
      %p590 = scmp.eq.s32.totalorder %s94, 0
      %p591 = por %p589, %p590
      %p592 = scmp.ne.s32.totalorder %s584, %s586
      %p593 = scmp.eq.s32.totalorder %s99, 1
      %p594 = por %p592, %p593
      %p595 = scmp.ne.s32.totalorder %s586, %s587
      %p596 = scmp.eq.s32.totalorder %s99, 0
      %p597 = por %p595, %p596
      %p598 = scmp.ne.s32.totalorder %s586, %s587
      %p599 = scmp.eq.s32.totalorder %s100, 1
      %p600 = por %p598, %p599
      %p602 = scmp.ne.s32.totalorder %s587, %s601
      %p603 = scmp.eq.s32.totalorder %s100, 0
      %p604 = por %p602, %p603
      %s606 = sadd.s32 %s605, 1
      %p609 = scmp.eq.s32.totalorder %s94, 1
      %p610 = scmp.ne.s32.totalorder %s605, %s607
      %p611 = scmp.eq.s32.totalorder %s94, 0
      %p612 = por %p610, %p611
      %p613 = scmp.ne.s32.totalorder %s605, %s607
      %p614 = scmp.eq.s32.totalorder %s99, 1
      %p615 = por %p613, %p614
      %p616 = scmp.ne.s32.totalorder %s607, %s608
      %p617 = scmp.eq.s32.totalorder %s99, 0
      %p618 = por %p616, %p617
      %p619 = scmp.ne.s32.totalorder %s607, %s608
      %p620 = scmp.eq.s32.totalorder %s100, 1
      %p621 = por %p619, %p620
      %p623 = scmp.ne.s32.totalorder %s608, %s622
      %p624 = scmp.eq.s32.totalorder %s100, 0
      %p625 = por %p623, %p624
      %s627 = sadd.s32 %s626, 1
      %p630 = scmp.eq.s32.totalorder %s94, 1
      %p631 = scmp.ne.s32.totalorder %s626, %s628
      %p632 = scmp.eq.s32.totalorder %s94, 0
      %p633 = por %p631, %p632
      %p634 = scmp.ne.s32.totalorder %s626, %s628
      %p635 = scmp.eq.s32.totalorder %s99, 1
      %p636 = por %p634, %p635
      %p637 = scmp.ne.s32.totalorder %s628, %s629
      %p638 = scmp.eq.s32.totalorder %s99, 0
      %p639 = por %p637, %p638
      %p640 = scmp.ne.s32.totalorder %s628, %s629
      %p641 = scmp.eq.s32.totalorder %s100, 1
      %p642 = por %p640, %p641
      %p644 = scmp.ne.s32.totalorder %s629, %s643
      %p645 = scmp.eq.s32.totalorder %s100, 0
      %p646 = por %p644, %p645
      %s648 = sadd.s32 %s647, 1
      %p651 = scmp.eq.s32.totalorder %s94, 1
      %p652 = scmp.ne.s32.totalorder %s647, %s649
      %p653 = scmp.eq.s32.totalorder %s94, 0
      %p654 = por %p652, %p653
      %p655 = scmp.ne.s32.totalorder %s647, %s649
      %p656 = scmp.eq.s32.totalorder %s99, 1
      %p657 = por %p655, %p656
      %p658 = scmp.ne.s32.totalorder %s649, %s650
      %p659 = scmp.eq.s32.totalorder %s99, 0
      %p660 = por %p658, %p659
      %p661 = scmp.ne.s32.totalorder %s649, %s650
      %p662 = scmp.eq.s32.totalorder %s100, 1
      %p663 = por %p661, %p662
      %p665 = scmp.ne.s32.totalorder %s650, %s664
      %p666 = scmp.eq.s32.totalorder %s100, 0
      %p667 = por %p665, %p666
      %s669 = sadd.s32 %s668, 1
      %p672 = scmp.eq.s32.totalorder %s94, 1
      %p673 = scmp.ne.s32.totalorder %s668, %s670
      %p674 = scmp.eq.s32.totalorder %s94, 0
      %p675 = por %p673, %p674
      %p676 = scmp.ne.s32.totalorder %s668, %s670
      %p677 = scmp.eq.s32.totalorder %s99, 1
      %p678 = por %p676, %p677
      %p679 = scmp.ne.s32.totalorder %s670, %s671
      %p680 = scmp.eq.s32.totalorder %s99, 0
      %p681 = por %p679, %p680
      %p682 = scmp.ne.s32.totalorder %s670, %s671
      %p683 = scmp.eq.s32.totalorder %s100, 1
      %p684 = por %p682, %p683
      %p686 = scmp.ne.s32.totalorder %s671, %s685
      %p687 = scmp.eq.s32.totalorder %s100, 0
      %p688 = por %p686, %p687
      %s690 = sadd.s32 %s689, 1
      %p693 = scmp.eq.s32.totalorder %s94, 1
      %p694 = scmp.ne.s32.totalorder %s689, %s691
      %p695 = scmp.eq.s32.totalorder %s94, 0
      %p696 = por %p694, %p695
      %p697 = scmp.ne.s32.totalorder %s689, %s691
      %p698 = scmp.eq.s32.totalorder %s99, 1
      %p699 = por %p697, %p698
      %p700 = scmp.ne.s32.totalorder %s691, %s692
      %p701 = scmp.eq.s32.totalorder %s99, 0
      %p702 = por %p700, %p701
      %p703 = scmp.ne.s32.totalorder %s691, %s692
      %p704 = scmp.eq.s32.totalorder %s100, 1
      %p705 = por %p703, %p704
      %p707 = scmp.ne.s32.totalorder %s692, %s706
      %p708 = scmp.eq.s32.totalorder %s100, 0
      %p709 = por %p707, %p708
      %s711 = sadd.s32 %s710, 1
      %p714 = scmp.eq.s32.totalorder %s94, 1
      %p715 = scmp.ne.s32.totalorder %s710, %s712
      %p716 = scmp.eq.s32.totalorder %s94, 0
      %p717 = por %p715, %p716
      %p718 = scmp.ne.s32.totalorder %s710, %s712
      %p719 = scmp.eq.s32.totalorder %s99, 1
      %p720 = por %p718, %p719
      %p721 = scmp.ne.s32.totalorder %s712, %s713
      %p722 = scmp.eq.s32.totalorder %s99, 0
      %p723 = por %p721, %p722
      %p724 = scmp.ne.s32.totalorder %s712, %s713
      %p725 = scmp.eq.s32.totalorder %s100, 1
      %p726 = por %p724, %p725
      %p728 = scmp.ne.s32.totalorder %s713, %s727
      %p729 = scmp.eq.s32.totalorder %s100, 0
      %p730 = por %p728, %p729
      %s732 = sadd.s32 %s731, 1
      %p735 = scmp.eq.s32.totalorder %s94, 1
      %p736 = scmp.ne.s32.totalorder %s731, %s733
      %p737 = scmp.eq.s32.totalorder %s94, 0
      %p738 = por %p736, %p737
      %p739 = scmp.ne.s32.totalorder %s731, %s733
      %p740 = scmp.eq.s32.totalorder %s99, 1
      %p741 = por %p739, %p740
      %p742 = scmp.ne.s32.totalorder %s733, %s734
      %p743 = scmp.eq.s32.totalorder %s99, 0
      %p744 = por %p742, %p743
      %p745 = scmp.ne.s32.totalorder %s733, %s734
      %p746 = scmp.eq.s32.totalorder %s100, 1
      %p747 = por %p745, %p746
      %p749 = scmp.ne.s32.totalorder %s734, %s748
      %p750 = scmp.eq.s32.totalorder %s100, 0
      %p751 = por %p749, %p750
      %s753 = sadd.s32 %s752, 1
      %p756 = scmp.eq.s32.totalorder %s94, 1
      %p757 = scmp.ne.s32.totalorder %s752, %s754
      %p758 = scmp.eq.s32.totalorder %s94, 0
      %p759 = por %p757, %p758
      %p760 = scmp.ne.s32.totalorder %s752, %s754
      %p761 = scmp.eq.s32.totalorder %s99, 1
      %p762 = por %p760, %p761
      %p763 = scmp.ne.s32.totalorder %s754, %s755
      %p764 = scmp.eq.s32.totalorder %s99, 0
      %p765 = por %p763, %p764
      %p766 = scmp.ne.s32.totalorder %s754, %s755
      %p767 = scmp.eq.s32.totalorder %s100, 1
      %p768 = por %p766, %p767
      %p770 = scmp.ne.s32.totalorder %s755, %s769
      %p771 = scmp.eq.s32.totalorder %s100, 0
      %p772 = por %p770, %p771
      %s774 = sadd.s32 %s773, 1
      %p777 = scmp.eq.s32.totalorder %s94, 1
      %p778 = scmp.ne.s32.totalorder %s773, %s775
      %p779 = scmp.eq.s32.totalorder %s94, 0
      %p780 = por %p778, %p779
      %p781 = scmp.ne.s32.totalorder %s773, %s775
      %p782 = scmp.eq.s32.totalorder %s99, 1
      %p783 = por %p781, %p782
      %p784 = scmp.ne.s32.totalorder %s775, %s776
      %p785 = scmp.eq.s32.totalorder %s99, 0
      %p786 = por %p784, %p785
      %p787 = scmp.ne.s32.totalorder %s775, %s776
      %p788 = scmp.eq.s32.totalorder %s100, 1
      %p789 = por %p787, %p788
      %p791 = scmp.ne.s32.totalorder %s776, %s790
      %p792 = scmp.eq.s32.totalorder %s100, 0
      %p793 = por %p791, %p792
      %s795 = sadd.s32 %s794, 1
      %p798 = scmp.eq.s32.totalorder %s94, 1
      %p799 = scmp.ne.s32.totalorder %s794, %s796
      %p800 = scmp.eq.s32.totalorder %s94, 0
      %p801 = por %p799, %p800
      %p802 = scmp.ne.s32.totalorder %s794, %s796
      %p803 = scmp.eq.s32.totalorder %s99, 1
      %p804 = por %p802, %p803
      %p805 = scmp.ne.s32.totalorder %s796, %s797
      %p806 = scmp.eq.s32.totalorder %s99, 0
      %p807 = por %p805, %p806
      %p808 = scmp.ne.s32.totalorder %s796, %s797
      %p809 = scmp.eq.s32.totalorder %s100, 1
      %p810 = por %p808, %p809
      %p812 = scmp.ne.s32.totalorder %s797, %s811
      %p813 = scmp.eq.s32.totalorder %s100, 0
      %p814 = por %p812, %p813
      %s816 = sadd.s32 %s815, 1
      %p819 = scmp.eq.s32.totalorder %s94, 1
      %p820 = scmp.ne.s32.totalorder %s815, %s817
      %p821 = scmp.eq.s32.totalorder %s94, 0
      %p822 = por %p820, %p821
      %p823 = scmp.ne.s32.totalorder %s815, %s817
      %p824 = scmp.eq.s32.totalorder %s99, 1
      %p825 = por %p823, %p824
      %p826 = scmp.ne.s32.totalorder %s817, %s818
      %p827 = scmp.eq.s32.totalorder %s99, 0
      %p828 = por %p826, %p827
      %p829 = scmp.ne.s32.totalorder %s817, %s818
      %p830 = scmp.eq.s32.totalorder %s100, 1
      %p831 = por %p829, %p830
      %p833 = scmp.ne.s32.totalorder %s818, %s832
      %p834 = scmp.eq.s32.totalorder %s100, 0
      %p835 = por %p833, %p834
      %s837 = sadd.s32 %s836, 1
      %p840 = scmp.eq.s32.totalorder %s94, 1
      %p841 = scmp.ne.s32.totalorder %s836, %s838
      %p842 = scmp.eq.s32.totalorder %s94, 0
      %p843 = por %p841, %p842
      %p844 = scmp.ne.s32.totalorder %s836, %s838
      %p845 = scmp.eq.s32.totalorder %s99, 1
      %p846 = por %p844, %p845
      %p847 = scmp.ne.s32.totalorder %s838, %s839
      %p848 = scmp.eq.s32.totalorder %s99, 0
      %p849 = por %p847, %p848
      %p850 = scmp.ne.s32.totalorder %s838, %s839
      %p851 = scmp.eq.s32.totalorder %s100, 1
      %p852 = por %p850, %p851
      %p854 = scmp.ne.s32.totalorder %s839, %s853
      %p855 = scmp.eq.s32.totalorder %s100, 0
      %p856 = por %p854, %p855
      %s858 = sadd.s32 %s857, 1
      %p861 = scmp.eq.s32.totalorder %s94, 1
      %p862 = scmp.ne.s32.totalorder %s857, %s859
      %p863 = scmp.eq.s32.totalorder %s94, 0
      %p864 = por %p862, %p863
      %p865 = scmp.ne.s32.totalorder %s857, %s859
      %p866 = scmp.eq.s32.totalorder %s99, 1
      %p867 = por %p865, %p866
      %p868 = scmp.ne.s32.totalorder %s859, %s860
      %p869 = scmp.eq.s32.totalorder %s99, 0
      %p870 = por %p868, %p869
      %p871 = scmp.ne.s32.totalorder %s859, %s860
      %p872 = scmp.eq.s32.totalorder %s100, 1
      %p873 = por %p871, %p872
      %p875 = scmp.ne.s32.totalorder %s860, %s874
      %p876 = scmp.eq.s32.totalorder %s100, 0
      %p877 = por %p875, %p876
      %s879 = sadd.s32 %s878, 1
      %p882 = scmp.eq.s32.totalorder %s94, 1
      %p883 = scmp.ne.s32.totalorder %s878, %s880
      %p884 = scmp.eq.s32.totalorder %s94, 0
      %p885 = por %p883, %p884
      %p886 = scmp.ne.s32.totalorder %s878, %s880
      %p887 = scmp.eq.s32.totalorder %s99, 1
      %p888 = por %p886, %p887
      %p889 = scmp.ne.s32.totalorder %s880, %s881
      %p890 = scmp.eq.s32.totalorder %s99, 0
      %p891 = por %p889, %p890
      %p892 = scmp.ne.s32.totalorder %s880, %s881
      %p893 = scmp.eq.s32.totalorder %s100, 1
      %p894 = por %p892, %p893
      %p896 = scmp.ne.s32.totalorder %s881, %s895
      %p897 = scmp.eq.s32.totalorder %s100, 0
      %p898 = por %p896, %p897
      %s899 = ssub.s32 %s94, %s101
      %p900 = scmp.eq.s32.totalorder %s899, 0
      %s902 = sadd.s32 %s901, 1
      %s903 = scalar_select %p900, %s901, %s902
      %p906 = pneg %p900
      %p907 = scmp.eq.s32.totalorder %s94, 1
      %p908 = por %p906, %p907
      %p909 = scmp.ne.s32.totalorder %s901, %s904
      %p910 = scmp.eq.s32.totalorder %s94, 0
      %p911 = por %p909, %p910
      %p912 = scmp.ne.s32.totalorder %s901, %s904
      %p913 = scmp.eq.s32.totalorder %s99, 1
      %p914 = por %p912, %p913
      %p915 = scmp.ne.s32.totalorder %s904, %s905
      %p916 = scmp.eq.s32.totalorder %s99, 0
      %p917 = por %p915, %p916
      %p918 = scmp.ne.s32.totalorder %s904, %s905
      %p919 = scmp.eq.s32.totalorder %s100, 1
      %p920 = por %p918, %p919
      %p922 = scmp.ne.s32.totalorder %s905, %s921
      %p923 = scmp.eq.s32.totalorder %s100, 0
      %p924 = por %p922, %p923
      %s925 = ssub.s32 %s94, %s101
      %p926 = scmp.eq.s32.totalorder %s925, 0
      %s928 = sadd.s32 %s927, 1
      %s929 = scalar_select %p926, %s927, %s928
      %p932 = pneg %p926
      %p933 = scmp.eq.s32.totalorder %s94, 1
      %p934 = por %p932, %p933
      %p935 = scmp.ne.s32.totalorder %s927, %s930
      %p936 = scmp.eq.s32.totalorder %s94, 0
      %p937 = por %p935, %p936
      %p938 = scmp.ne.s32.totalorder %s927, %s930
      %p939 = scmp.eq.s32.totalorder %s99, 1
      %p940 = por %p938, %p939
      %p941 = scmp.ne.s32.totalorder %s930, %s931
      %p942 = scmp.eq.s32.totalorder %s99, 0
      %p943 = por %p941, %p942
      %p944 = scmp.ne.s32.totalorder %s930, %s931
      %p945 = scmp.eq.s32.totalorder %s100, 1
      %p946 = por %p944, %p945
      %p948 = scmp.ne.s32.totalorder %s931, %s947
      %p949 = scmp.eq.s32.totalorder %s100, 0
      %p950 = por %p948, %p949
      %p951 = scmp.le.s32.totalorder 1, %s94
      %p952 = scmp.lt.s32.totalorder %s94, 3
      %p953 = pnand %p951, %p952
      %p954 = pneg %p953
      // Predicated region
      $region9: #{transformer_decoder.2} parent=5 // pred_check
        _
      $region10: #{transformer_decoder.2} parent=5 // pred_check_branch
        %956 = sbr.rel (%p953) target = $region12
      $region11: #{transformer_decoder.2} parent=5 // pred_region
        %s957 = ssub.s32 %s94, 1
        // Predicated region
        $region13: #{transformer_decoder.2} parent=11 // pred_check
          %p958 = pneg %p219
        $region14: #{transformer_decoder.2} parent=11 // pred_check_branch
          %960 = sbr.rel (%p958) target = $region16
        $region15: #{transformer_decoder.2} parent=11 // pred_region
          _
        $region16: #{transformer_decoder.2} parent=11 // pred_fallthru
          _
        // Predicated region
        $region17: #{transformer_decoder.2} parent=11 // pred_check
          %p961 = pneg %p240
        $region18: #{transformer_decoder.2} parent=11 // pred_check_branch
          %963 = sbr.rel (%p961) target = $region20
        $region19: #{transformer_decoder.2} parent=11 // pred_region
          %s965 = ssub.s32 16, 16
          %966 = vsyncadd [#allocation3], %s965
          %s968 = sshll.u32 [#allocation2], 4
          %s969 = int_to_ptr.vmem [resolvable:$true] %s968
          %971 = dma.hbm_to_vmem [thread:$0]  %s11, 16, %s969, [#allocation3]
        $region20: #{transformer_decoder.2} parent=11 // pred_fallthru
          _
        // Predicated region
        $region21: #{transformer_decoder.2} parent=11 // pred_check
          %p972 = pneg %p261
        $region22: #{transformer_decoder.2} parent=11 // pred_check_branch
          %974 = sbr.rel (%p972) target = $region24
        $region23: #{transformer_decoder.2} parent=11 // pred_region
          _
        $region24: #{transformer_decoder.2} parent=11 // pred_fallthru
          _
        // Predicated region
        $region25: #{transformer_decoder.2} parent=11 // pred_check
          %p975 = pneg %p282
        $region26: #{transformer_decoder.2} parent=11 // pred_check_branch
          %977 = sbr.rel (%p975) target = $region28
        $region27: #{transformer_decoder.2} parent=11 // pred_region
          %s979 = ssub.s32 16, 16
          %980 = vsyncadd [#allocation5], %s979
          %s982 = sshll.u32 [#allocation4], 4
          %s983 = int_to_ptr.vmem [resolvable:$true] %s982
          %985 = dma.hbm_to_vmem [thread:$0]  %s15, 16, %s983, [#allocation5]
        $region28: #{transformer_decoder.2} parent=11 // pred_fallthru
          _
        // Predicated region
        $region29: #{transformer_decoder.2} parent=11 // pred_check
          %p986 = pneg %p303
        $region30: #{transformer_decoder.2} parent=11 // pred_check_branch
          %988 = sbr.rel (%p986) target = $region32
        $region31: #{transformer_decoder.2} parent=11 // pred_region
          _
        $region32: #{transformer_decoder.2} parent=11 // pred_fallthru
          _
        // Predicated region
        $region33: #{transformer_decoder.2} parent=11 // pred_check
          %p989 = pneg %p324
        $region34: #{transformer_decoder.2} parent=11 // pred_check_branch
          %991 = sbr.rel (%p989) target = $region36
        $region35: #{transformer_decoder.2} parent=11 // pred_region
          %s993 = ssub.s32 16, 16
          %994 = vsyncadd [#allocation5], %s993
          %s996 = sshll.u32 [#allocation6], 4
          %s997 = int_to_ptr.vmem [resolvable:$true] %s996
          %999 = dma.hbm_to_vmem [thread:$0]  %s19, 16, %s997, [#allocation5]
        $region36: #{transformer_decoder.2} parent=11 // pred_fallthru
          _
        // Predicated region
        $region37: #{transformer_decoder.2} parent=11 // pred_check
          %p1000 = pneg %p345
        $region38: #{transformer_decoder.2} parent=11 // pred_check_branch
          %1002 = sbr.rel (%p1000) target = $region40
        $region39: #{transformer_decoder.2} parent=11 // pred_region
          _
        $region40: #{transformer_decoder.2} parent=11 // pred_fallthru
          _
        // Predicated region
        $region41: #{transformer_decoder.2} parent=11 // pred_check
          %p1003 = pneg %p366
        $region42: #{transformer_decoder.2} parent=11 // pred_check_branch
          %1005 = sbr.rel (%p1003) target = $region44
        $region43: #{transformer_decoder.2} parent=11 // pred_region
          %s1007 = ssub.s32 16, 16
          %1008 = vsyncadd [#allocation8], %s1007
          %s1010 = sshll.u32 [#allocation7], 4
          %s1011 = int_to_ptr.vmem [resolvable:$true] %s1010
          %1013 = dma.hbm_to_vmem [thread:$0]  %s23, 16, %s1011, [#allocation8]
        $region44: #{transformer_decoder.2} parent=11 // pred_fallthru
          _
        // Predicated region
        $region45: #{transformer_decoder.2} parent=11 // pred_check
          %p1014 = pneg %p387
        $region46: #{transformer_decoder.2} parent=11 // pred_check_branch
          %1016 = sbr.rel (%p1014) target = $region48
        $region47: #{transformer_decoder.2} parent=11 // pred_region
          %s1018 = ssub.s32 16, 16
          %1019 = vsyncadd [#allocation8], %s1018
          %s1021 = sshll.u32 [#allocation9], 4
          %s1022 = int_to_ptr.vmem [resolvable:$true] %s1021
          %1024 = dma.hbm_to_vmem [thread:$0]  %s25, 16, %s1022, [#allocation8]
        $region48: #{transformer_decoder.2} parent=11 // pred_fallthru
          _
        // Predicated region
        $region49: #{transformer_decoder.2} parent=11 // pred_check
          %p1025 = pneg %p408
        $region50: #{transformer_decoder.2} parent=11 // pred_check_branch
          %1027 = sbr.rel (%p1025) target = $region52
        $region51: #{transformer_decoder.2} parent=11 // pred_region
          %s1029 = ssub.s32 16, 16
          %1030 = vsyncadd [#allocation11], %s1029
          %s1032 = sshll.u32 [#allocation10], 4
          %s1033 = int_to_ptr.vmem [resolvable:$true] %s1032
          %1035 = dma.hbm_to_vmem [thread:$0]  %s27, 16, %s1033, [#allocation11]
        $region52: #{transformer_decoder.2} parent=11 // pred_fallthru
          _
        // Predicated region
        $region53: #{transformer_decoder.2} parent=11 // pred_check
          %p1036 = pneg %p429
        $region54: #{transformer_decoder.2} parent=11 // pred_check_branch
          %1038 = sbr.rel (%p1036) target = $region56
        $region55: #{transformer_decoder.2} parent=11 // pred_region
          _
        $region56: #{transformer_decoder.2} parent=11 // pred_fallthru
          _
        // Predicated region
        $region57: #{transformer_decoder.2} parent=11 // pred_check
          %p1039 = pneg %p450
        $region58: #{transformer_decoder.2} parent=11 // pred_check_branch
          %1041 = sbr.rel (%p1039) target = $region60
        $region59: #{transformer_decoder.2} parent=11 // pred_region
          %s1043 = ssub.s32 16, 16
          %1044 = vsyncadd [#allocation11], %s1043
          %s1046 = sshll.u32 [#allocation12], 4
          %s1047 = int_to_ptr.vmem [resolvable:$true] %s1046
          %1049 = dma.hbm_to_vmem [thread:$0]  %s31, 16, %s1047, [#allocation11]
        $region60: #{transformer_decoder.2} parent=11 // pred_fallthru
          _
        // Predicated region
        $region61: #{transformer_decoder.2} parent=11 // pred_check
          %p1050 = pneg %p471
        $region62: #{transformer_decoder.2} parent=11 // pred_check_branch
          %1052 = sbr.rel (%p1050) target = $region64
        $region63: #{transformer_decoder.2} parent=11 // pred_region
          _
        $region64: #{transformer_decoder.2} parent=11 // pred_fallthru
          _
        // Predicated region
        $region65: #{transformer_decoder.2} parent=11 // pred_check
          %p1053 = pneg %p492
        $region66: #{transformer_decoder.2} parent=11 // pred_check_branch
          %1055 = sbr.rel (%p1053) target = $region68
        $region67: #{transformer_decoder.2} parent=11 // pred_region
          %s1057 = ssub.s32 16, 16
          %1058 = vsyncadd [#allocation14], %s1057
          %s1060 = sshll.u32 [#allocation13], 4
          %s1061 = int_to_ptr.vmem [resolvable:$true] %s1060
          %1063 = dma.hbm_to_vmem [thread:$0]  %s35, 16, %s1061, [#allocation14]
        $region68: #{transformer_decoder.2} parent=11 // pred_fallthru
          _
        // Predicated region
        $region69: #{transformer_decoder.2} parent=11 // pred_check
          %p1064 = pneg %p513
        $region70: #{transformer_decoder.2} parent=11 // pred_check_branch
          %1066 = sbr.rel (%p1064) target = $region72
        $region71: #{transformer_decoder.2} parent=11 // pred_region
          _
        $region72: #{transformer_decoder.2} parent=11 // pred_fallthru
          _
        // Predicated region
        $region73: #{transformer_decoder.2} parent=11 // pred_check
          %p1067 = pneg %p534
        $region74: #{transformer_decoder.2} parent=11 // pred_check_branch
          %1069 = sbr.rel (%p1067) target = $region76
        $region75: #{transformer_decoder.2} parent=11 // pred_region
          %s1071 = ssub.s32 16, 16
          %1072 = vsyncadd [#allocation14], %s1071
          %s1074 = sshll.u32 [#allocation15], 4
          %s1075 = int_to_ptr.vmem [resolvable:$true] %s1074
          %1077 = dma.hbm_to_vmem [thread:$0]  %s39, 16, %s1075, [#allocation14]
        $region76: #{transformer_decoder.2} parent=11 // pred_fallthru
          _
        // Predicated region
        $region77: #{transformer_decoder.2} parent=11 // pred_check
          %p1078 = pneg %p555
        $region78: #{transformer_decoder.2} parent=11 // pred_check_branch
          %1080 = sbr.rel (%p1078) target = $region80
        $region79: #{transformer_decoder.2} parent=11 // pred_region
          _
        $region80: #{transformer_decoder.2} parent=11 // pred_fallthru
          _
        // Predicated region
        $region81: #{transformer_decoder.2} parent=11 // pred_check
          %p1081 = pneg %p576
        $region82: #{transformer_decoder.2} parent=11 // pred_check_branch
          %1083 = sbr.rel (%p1081) target = $region84
        $region83: #{transformer_decoder.2} parent=11 // pred_region
          %s1085 = ssub.s32 16, 16
          %1086 = vsyncadd [#allocation17], %s1085
          %s1088 = sshll.u32 [#allocation16], 4
          %s1089 = int_to_ptr.vmem [resolvable:$true] %s1088
          %1091 = dma.hbm_to_vmem [thread:$0]  %s43, 16, %s1089, [#allocation17]
        $region84: #{transformer_decoder.2} parent=11 // pred_fallthru
          _
        // Predicated region
        $region85: #{transformer_decoder.2} parent=11 // pred_check
          %p1092 = pneg %p597
        $region86: #{transformer_decoder.2} parent=11 // pred_check_branch
          %1094 = sbr.rel (%p1092) target = $region88
        $region87: #{transformer_decoder.2} parent=11 // pred_region
          _
        $region88: #{transformer_decoder.2} parent=11 // pred_fallthru
          _
        // Predicated region
        $region89: #{transformer_decoder.2} parent=11 // pred_check
          %p1095 = pneg %p618
        $region90: #{transformer_decoder.2} parent=11 // pred_check_branch
          %1097 = sbr.rel (%p1095) target = $region92
        $region91: #{transformer_decoder.2} parent=11 // pred_region
          %s1099 = ssub.s32 16, 16
          %1100 = vsyncadd [#allocation17], %s1099
          %s1102 = sshll.u32 [#allocation18], 4
          %s1103 = int_to_ptr.vmem [resolvable:$true] %s1102
          %1105 = dma.hbm_to_vmem [thread:$0]  %s47, 16, %s1103, [#allocation17]
        $region92: #{transformer_decoder.2} parent=11 // pred_fallthru
          _
        // Predicated region
        $region93: #{transformer_decoder.2} parent=11 // pred_check
          %p1106 = pneg %p639
        $region94: #{transformer_decoder.2} parent=11 // pred_check_branch
          %1108 = sbr.rel (%p1106) target = $region96
        $region95: #{transformer_decoder.2} parent=11 // pred_region
          %s1110 = ssub.s32 16, 16
          %1111 = vsyncadd [#allocation20], %s1110
          %s1113 = sshll.u32 [#allocation19], 4
          %s1114 = int_to_ptr.vmem [resolvable:$true] %s1113
          %1116 = dma.hbm_to_vmem [thread:$0]  %s49, 16, %s1114, [#allocation20]
        $region96: #{transformer_decoder.2} parent=11 // pred_fallthru
          _
        // Predicated region
        $region97: #{transformer_decoder.2} parent=11 // pred_check
          %p1117 = pneg %p660
        $region98: #{transformer_decoder.2} parent=11 // pred_check_branch
          %1119 = sbr.rel (%p1117) target = $region100
        $region99: #{transformer_decoder.2} parent=11 // pred_region
          %s1121 = ssub.s32 16, 16
          %1122 = vsyncadd [#allocation20], %s1121
          %s1124 = sshll.u32 [#allocation21], 4
          %s1125 = int_to_ptr.vmem [resolvable:$true] %s1124
          %1127 = dma.hbm_to_vmem [thread:$0]  %s51, 16, %s1125, [#allocation20]
        $region100: #{transformer_decoder.2} parent=11 // pred_fallthru
          _
        // Predicated region
        $region101: #{transformer_decoder.2} parent=11 // pred_check
          %p1128 = pneg %p681
        $region102: #{transformer_decoder.2} parent=11 // pred_check_branch
          %1130 = sbr.rel (%p1128) target = $region104
        $region103: #{transformer_decoder.2} parent=11 // pred_region
          _
        $region104: #{transformer_decoder.2} parent=11 // pred_fallthru
          _
        // Predicated region
        $region105: #{transformer_decoder.2} parent=11 // pred_check
          %p1131 = pneg %p702
        $region106: #{transformer_decoder.2} parent=11 // pred_check_branch
          %1133 = sbr.rel (%p1131) target = $region108
        $region107: #{transformer_decoder.2} parent=11 // pred_region
          %s1135 = ssub.s32 16, 16
          %1136 = vsyncadd [#allocation23], %s1135
          %s1138 = sshll.u32 [#allocation22], 4
          %s1139 = int_to_ptr.vmem [resolvable:$true] %s1138
          %1141 = dma.hbm_to_vmem [thread:$0]  %s55, 16, %s1139, [#allocation23]
        $region108: #{transformer_decoder.2} parent=11 // pred_fallthru
          _
        // Predicated region
        $region109: #{transformer_decoder.2} parent=11 // pred_check
          %p1142 = pneg %p723
        $region110: #{transformer_decoder.2} parent=11 // pred_check_branch
          %1144 = sbr.rel (%p1142) target = $region112
        $region111: #{transformer_decoder.2} parent=11 // pred_region
          _
        $region112: #{transformer_decoder.2} parent=11 // pred_fallthru
          _
        // Predicated region
        $region113: #{transformer_decoder.2} parent=11 // pred_check
          %p1145 = pneg %p744
        $region114: #{transformer_decoder.2} parent=11 // pred_check_branch
          %1147 = sbr.rel (%p1145) target = $region116
        $region115: #{transformer_decoder.2} parent=11 // pred_region
          %s1149 = ssub.s32 16, 16
          %1150 = vsyncadd [#allocation23], %s1149
          %s1152 = sshll.u32 [#allocation24], 4
          %s1153 = int_to_ptr.vmem [resolvable:$true] %s1152
          %1155 = dma.hbm_to_vmem [thread:$0]  %s59, 16, %s1153, [#allocation23]
        $region116: #{transformer_decoder.2} parent=11 // pred_fallthru
          _
        // Predicated region
        $region117: #{transformer_decoder.2} parent=11 // pred_check
          %p1156 = pneg %p765
        $region118: #{transformer_decoder.2} parent=11 // pred_check_branch
          %1158 = sbr.rel (%p1156) target = $region120
        $region119: #{transformer_decoder.2} parent=11 // pred_region
          %s1160 = ssub.s32 16, 16
          %1161 = vsyncadd [#allocation26], %s1160
          %s1163 = sshll.u32 [#allocation25], 4
          %s1164 = int_to_ptr.vmem [resolvable:$true] %s1163
          %1166 = dma.hbm_to_vmem [thread:$0]  %s61, 16, %s1164, [#allocation26]
        $region120: #{transformer_decoder.2} parent=11 // pred_fallthru
          _
        // Predicated region
        $region121: #{transformer_decoder.2} parent=11 // pred_check
          %p1167 = pneg %p786
        $region122: #{transformer_decoder.2} parent=11 // pred_check_branch
          %1169 = sbr.rel (%p1167) target = $region124
        $region123: #{transformer_decoder.2} parent=11 // pred_region
          %s1171 = ssub.s32 16, 16
          %1172 = vsyncadd [#allocation26], %s1171
          %s1174 = sshll.u32 [#allocation27], 4
          %s1175 = int_to_ptr.vmem [resolvable:$true] %s1174
          %1177 = dma.hbm_to_vmem [thread:$0]  %s63, 16, %s1175, [#allocation26]
        $region124: #{transformer_decoder.2} parent=11 // pred_fallthru
          _
        // Predicated region
        $region125: #{transformer_decoder.2} parent=11 // pred_check
          %p1178 = pneg %p807
        $region126: #{transformer_decoder.2} parent=11 // pred_check_branch
          %1180 = sbr.rel (%p1178) target = $region128
        $region127: #{transformer_decoder.2} parent=11 // pred_region
          _
        $region128: #{transformer_decoder.2} parent=11 // pred_fallthru
          _
        // Predicated region
        $region129: #{transformer_decoder.2} parent=11 // pred_check
          %p1181 = pneg %p828
        $region130: #{transformer_decoder.2} parent=11 // pred_check_branch
          %1183 = sbr.rel (%p1181) target = $region132
        $region131: #{transformer_decoder.2} parent=11 // pred_region
          _
        $region132: #{transformer_decoder.2} parent=11 // pred_fallthru
          _
        // Predicated region
        $region133: #{transformer_decoder.2} parent=11 // pred_check
          %p1184 = pneg %p849
        $region134: #{transformer_decoder.2} parent=11 // pred_check_branch
          %1186 = sbr.rel (%p1184) target = $region136
        $region135: #{transformer_decoder.2} parent=11 // pred_region
          _
        $region136: #{transformer_decoder.2} parent=11 // pred_fallthru
          _
        // Predicated region
        $region137: #{transformer_decoder.2} parent=11 // pred_check
          %p1187 = pneg %p870
        $region138: #{transformer_decoder.2} parent=11 // pred_check_branch
          %1189 = sbr.rel (%p1187) target = $region140
        $region139: #{transformer_decoder.2} parent=11 // pred_region
          _
        $region140: #{transformer_decoder.2} parent=11 // pred_fallthru
          _
        // Predicated region
        $region141: #{transformer_decoder.2} parent=11 // pred_check
          %p1190 = pneg %p891
        $region142: #{transformer_decoder.2} parent=11 // pred_check_branch
          %1192 = sbr.rel (%p1190) target = $region144
        $region143: #{transformer_decoder.2} parent=11 // pred_region
          %s1194 = ssub.s32 16, 16
          %1195 = vsyncadd [#allocation29], %s1194
          %s1197 = sshll.u32 [#allocation28], 4
          %s1198 = int_to_ptr.vmem [resolvable:$true] %s1197
          %1200 = dma.hbm_to_vmem [thread:$0]  %s73, 16, %s1198, [#allocation29]
        $region144: #{transformer_decoder.2} parent=11 // pred_fallthru
          _
      $region12: #{transformer_decoder.2} parent=5 // pred_fallthru
        _
      %p1201 = scmp.lt.s32.totalorder %s94, 2
      // Predicated region
      $region145: #{transformer_decoder.2} parent=5 // pred_check
        %p1202 = pneg %p1201
      $region146: #{transformer_decoder.2} parent=5 // pred_check_branch
        %1204 = sbr.rel (%p1202) target = $region148
      $region147: #{transformer_decoder.2} parent=5 // pred_region
        // Predicated region
        $region149: #{transformer_decoder.2} parent=147 // pred_check
          %p1205 = pneg %p114
        $region150: #{transformer_decoder.2} parent=147 // pred_check_branch
          %1207 = sbr.rel (%p1205) target = $region152
        $region151: #{transformer_decoder.2} parent=147 // pred_region
          %p1208 = scmp.lt.s32.totalorder %s94, 1
          %s1209 = scalar_select %p1208, %s94, 1
          %s1210 = smul.addr %s1209, 4
          %s1211 = scalar_lea.vmem %s1, %s1210
        $region152: #{transformer_decoder.2} parent=147 // pred_fallthru
          _
        // Predicated region
        $region153: #{transformer_decoder.2} parent=147 // pred_check
          %p1212 = pneg %p140
        $region154: #{transformer_decoder.2} parent=147 // pred_check_branch
          %1214 = sbr.rel (%p1212) target = $region156
        $region155: #{transformer_decoder.2} parent=147 // pred_region
          %p1215 = scmp.lt.s32.totalorder %s94, 1
          %s1216 = scalar_select %p1215, %s94, 1
          %s1217 = smul.addr %s1216, 4
          %s1218 = scalar_lea.vmem %s3, %s1217
        $region156: #{transformer_decoder.2} parent=147 // pred_fallthru
          _
        // Predicated region
        $region157: #{transformer_decoder.2} parent=147 // pred_check
          %p1219 = pneg %p166
        $region158: #{transformer_decoder.2} parent=147 // pred_check_branch
          %1221 = sbr.rel (%p1219) target = $region160
        $region159: #{transformer_decoder.2} parent=147 // pred_region
          %p1222 = scmp.lt.s32.totalorder %s94, 1
          %s1223 = scalar_select %p1222, %s94, 1
          %s1224 = smul.addr %s1223, 8
          %s1225 = scalar_lea.vmem %s5, %s1224
        $region160: #{transformer_decoder.2} parent=147 // pred_fallthru
          _
        // Predicated region
        $region161: #{transformer_decoder.2} parent=147 // pred_check
          %p1226 = pneg %p192
        $region162: #{transformer_decoder.2} parent=147 // pred_check_branch
          %1228 = sbr.rel (%p1226) target = $region164
        $region163: #{transformer_decoder.2} parent=147 // pred_region
          %p1229 = scmp.lt.s32.totalorder %s94, 1
          %s1230 = scalar_select %p1229, %s94, 1
          %s1231 = smul.addr %s1230, 2
          %s1232 = smul.addr %s1231, 4
          %s1233 = scalar_lea.vmem %s7, %s1232
        $region164: #{transformer_decoder.2} parent=147 // pred_fallthru
          _
      $region148: #{transformer_decoder.2} parent=5 // pred_fallthru
        _
      %p1234 = scmp.le.s32.totalorder 1, %s94
      %p1235 = scmp.lt.s32.totalorder %s94, 3
      %p1236 = pnand %p1234, %p1235
      %p1237 = pneg %p1236
      // Predicated region
      $region165: #{transformer_decoder.2} parent=5 // pred_check
        _
      $region166: #{transformer_decoder.2} parent=5 // pred_check_branch
        %1239 = sbr.rel (%p1236) target = $region168
      $region167: #{transformer_decoder.2} parent=5 // pred_region
        %s1240 = ssub.s32 %s94, 1
        // Predicated region
        $region169: #{transformer_decoder.2} parent=167 // pred_check
          %p1241 = pneg %p240
        $region170: #{transformer_decoder.2} parent=167 // pred_check_branch
          %1243 = sbr.rel (%p1241) target = $region172
        $region171: #{transformer_decoder.2} parent=167 // pred_region
          %1244 = dma.done [#allocation3], 16
        $region172: #{transformer_decoder.2} parent=167 // pred_fallthru
          _
        // Predicated region
        $region173: #{transformer_decoder.2} parent=167 // pred_check
          %p1245 = pneg %p282
        $region174: #{transformer_decoder.2} parent=167 // pred_check_branch
          %1247 = sbr.rel (%p1245) target = $region176
        $region175: #{transformer_decoder.2} parent=167 // pred_region
          %1248 = dma.done [#allocation5], 16
        $region176: #{transformer_decoder.2} parent=167 // pred_fallthru
          _
        // Predicated region
        $region177: #{transformer_decoder.2} parent=167 // pred_check
          %p1249 = pneg %p324
        $region178: #{transformer_decoder.2} parent=167 // pred_check_branch
          %1251 = sbr.rel (%p1249) target = $region180
        $region179: #{transformer_decoder.2} parent=167 // pred_region
          %1252 = dma.done [#allocation5], 16
        $region180: #{transformer_decoder.2} parent=167 // pred_fallthru
          _
        // Predicated region
        $region181: #{transformer_decoder.2} parent=167 // pred_check
          %p1253 = pneg %p366
        $region182: #{transformer_decoder.2} parent=167 // pred_check_branch
          %1255 = sbr.rel (%p1253) target = $region184
        $region183: #{transformer_decoder.2} parent=167 // pred_region
          %1256 = dma.done [#allocation8], 16
        $region184: #{transformer_decoder.2} parent=167 // pred_fallthru
          _
        // Predicated region
        $region185: #{transformer_decoder.2} parent=167 // pred_check
          %p1257 = pneg %p387
        $region186: #{transformer_decoder.2} parent=167 // pred_check_branch
          %1259 = sbr.rel (%p1257) target = $region188
        $region187: #{transformer_decoder.2} parent=167 // pred_region
          %1260 = dma.done [#allocation8], 16
        $region188: #{transformer_decoder.2} parent=167 // pred_fallthru
          _
        // Predicated region
        $region189: #{transformer_decoder.2} parent=167 // pred_check
          %p1261 = pneg %p408
        $region190: #{transformer_decoder.2} parent=167 // pred_check_branch
          %1263 = sbr.rel (%p1261) target = $region192
        $region191: #{transformer_decoder.2} parent=167 // pred_region
          %1264 = dma.done [#allocation11], 16
        $region192: #{transformer_decoder.2} parent=167 // pred_fallthru
          _
        // Predicated region
        $region193: #{transformer_decoder.2} parent=167 // pred_check
          %p1265 = pneg %p450
        $region194: #{transformer_decoder.2} parent=167 // pred_check_branch
          %1267 = sbr.rel (%p1265) target = $region196
        $region195: #{transformer_decoder.2} parent=167 // pred_region
          %1268 = dma.done [#allocation11], 16
        $region196: #{transformer_decoder.2} parent=167 // pred_fallthru
          _
        // Predicated region
        $region197: #{transformer_decoder.2} parent=167 // pred_check
          %p1269 = pneg %p492
        $region198: #{transformer_decoder.2} parent=167 // pred_check_branch
          %1271 = sbr.rel (%p1269) target = $region200
        $region199: #{transformer_decoder.2} parent=167 // pred_region
          %1272 = dma.done [#allocation14], 16
        $region200: #{transformer_decoder.2} parent=167 // pred_fallthru
          _
        // Predicated region
        $region201: #{transformer_decoder.2} parent=167 // pred_check
          %p1273 = pneg %p534
        $region202: #{transformer_decoder.2} parent=167 // pred_check_branch
          %1275 = sbr.rel (%p1273) target = $region204
        $region203: #{transformer_decoder.2} parent=167 // pred_region
          %1276 = dma.done [#allocation14], 16
        $region204: #{transformer_decoder.2} parent=167 // pred_fallthru
          _
        // Predicated region
        $region205: #{transformer_decoder.2} parent=167 // pred_check
          %p1277 = pneg %p576
        $region206: #{transformer_decoder.2} parent=167 // pred_check_branch
          %1279 = sbr.rel (%p1277) target = $region208
        $region207: #{transformer_decoder.2} parent=167 // pred_region
          %1280 = dma.done [#allocation17], 16
        $region208: #{transformer_decoder.2} parent=167 // pred_fallthru
          _
        // Predicated region
        $region209: #{transformer_decoder.2} parent=167 // pred_check
          %p1281 = pneg %p618
        $region210: #{transformer_decoder.2} parent=167 // pred_check_branch
          %1283 = sbr.rel (%p1281) target = $region212
        $region211: #{transformer_decoder.2} parent=167 // pred_region
          %1284 = dma.done [#allocation17], 16
        $region212: #{transformer_decoder.2} parent=167 // pred_fallthru
          _
        // Predicated region
        $region213: #{transformer_decoder.2} parent=167 // pred_check
          %p1285 = pneg %p639
        $region214: #{transformer_decoder.2} parent=167 // pred_check_branch
          %1287 = sbr.rel (%p1285) target = $region216
        $region215: #{transformer_decoder.2} parent=167 // pred_region
          %1288 = dma.done [#allocation20], 16
        $region216: #{transformer_decoder.2} parent=167 // pred_fallthru
          _
        // Predicated region
        $region217: #{transformer_decoder.2} parent=167 // pred_check
          %p1289 = pneg %p660
        $region218: #{transformer_decoder.2} parent=167 // pred_check_branch
          %1291 = sbr.rel (%p1289) target = $region220
        $region219: #{transformer_decoder.2} parent=167 // pred_region
          %1292 = dma.done [#allocation20], 16
        $region220: #{transformer_decoder.2} parent=167 // pred_fallthru
          _
        // Predicated region
        $region221: #{transformer_decoder.2} parent=167 // pred_check
          %p1293 = pneg %p702
        $region222: #{transformer_decoder.2} parent=167 // pred_check_branch
          %1295 = sbr.rel (%p1293) target = $region224
        $region223: #{transformer_decoder.2} parent=167 // pred_region
          %1296 = dma.done [#allocation23], 16
        $region224: #{transformer_decoder.2} parent=167 // pred_fallthru
          _
        // Predicated region
        $region225: #{transformer_decoder.2} parent=167 // pred_check
          %p1297 = pneg %p744
        $region226: #{transformer_decoder.2} parent=167 // pred_check_branch
          %1299 = sbr.rel (%p1297) target = $region228
        $region227: #{transformer_decoder.2} parent=167 // pred_region
          %1300 = dma.done [#allocation23], 16
        $region228: #{transformer_decoder.2} parent=167 // pred_fallthru
          _
        // Predicated region
        $region229: #{transformer_decoder.2} parent=167 // pred_check
          %p1301 = pneg %p765
        $region230: #{transformer_decoder.2} parent=167 // pred_check_branch
          %1303 = sbr.rel (%p1301) target = $region232
        $region231: #{transformer_decoder.2} parent=167 // pred_region
          %1304 = dma.done [#allocation26], 16
        $region232: #{transformer_decoder.2} parent=167 // pred_fallthru
          _
        // Predicated region
        $region233: #{transformer_decoder.2} parent=167 // pred_check
          %p1305 = pneg %p786
        $region234: #{transformer_decoder.2} parent=167 // pred_check_branch
          %1307 = sbr.rel (%p1305) target = $region236
        $region235: #{transformer_decoder.2} parent=167 // pred_region
          %1308 = dma.done [#allocation26], 16
        $region236: #{transformer_decoder.2} parent=167 // pred_fallthru
          _
        // Predicated region
        $region237: #{transformer_decoder.2} parent=167 // pred_check
          %p1309 = pneg %p891
        $region238: #{transformer_decoder.2} parent=167 // pred_check_branch
          %1311 = sbr.rel (%p1309) target = $region240
        $region239: #{transformer_decoder.2} parent=167 // pred_region
          %1312 = dma.done [#allocation29], 16
        $region240: #{transformer_decoder.2} parent=167 // pred_fallthru
          _
        %p1313 = scmp.lt.s32.totalorder %s99, 1
        %s1314 = scalar_select %p1313, %s99, 1
        %s1315 = smul.addr %s1314, 4
        %s1316 = scalar_lea.vmem %s1, %s1315
        %p1317 = pneg %p120
        %p1318 = pneg %p117
        %p1319 = scmp.lt.s32.totalorder %s99, 1
        %s1320 = scalar_select %p1319, %s99, 1
        %s1321 = smul.addr %s1320, 4
        %s1322 = scalar_lea.vmem %s3, %s1321
        %p1323 = pneg %p146
        %p1324 = pneg %p143
        %p1325 = scmp.lt.s32.totalorder %s99, 1
        %s1326 = scalar_select %p1325, %s99, 1
        %s1327 = smul.addr %s1326, 8
        %s1328 = scalar_lea.vmem %s5, %s1327
        %p1329 = pneg %p172
        %p1330 = pneg %p169
        %p1331 = scmp.lt.s32.totalorder %s99, 1
        %s1332 = scalar_select %p1331, %s99, 1
        %s1333 = smul.addr %s1332, 2
        %s1334 = smul.addr %s1333, 4
        %s1335 = scalar_lea.vmem %s7, %s1334
        %p1336 = pneg %p198
        %p1337 = pneg %p195
        %p1338 = pneg %p219
        %p1339 = pneg %p216
        %p1340 = pneg %p240
        %p1341 = pneg %p237
        %p1342 = pneg %p261
        %p1343 = pneg %p258
        %p1344 = pneg %p282
        %p1345 = pneg %p279
        %p1346 = pneg %p303
        %p1347 = pneg %p300
        %p1348 = pneg %p324
        %p1349 = pneg %p321
        %p1350 = pneg %p345
        %p1351 = pneg %p342
        %p1352 = pneg %p366
        %p1353 = pneg %p363
        %p1354 = pneg %p387
        %p1355 = pneg %p384
        %p1356 = pneg %p408
        %p1357 = pneg %p405
        %p1358 = pneg %p429
        %p1359 = pneg %p426
        %p1360 = pneg %p450
        %p1361 = pneg %p447
        %p1362 = pneg %p471
        %p1363 = pneg %p468
        %p1364 = pneg %p492
        %p1365 = pneg %p489
        %p1366 = pneg %p513
        %p1367 = pneg %p510
        %p1368 = pneg %p534
        %p1369 = pneg %p531
        %p1370 = pneg %p555
        %p1371 = pneg %p552
        %p1372 = pneg %p576
        %p1373 = pneg %p573
        %p1374 = pneg %p597
        %p1375 = pneg %p594
        %p1376 = pneg %p618
        %p1377 = pneg %p615
        %p1378 = pneg %p639
        %p1379 = pneg %p636
        %p1380 = pneg %p660
        %p1381 = pneg %p657
        %p1382 = pneg %p681
        %p1383 = pneg %p678
        %p1384 = pneg %p702
        %p1385 = pneg %p699
        %p1386 = pneg %p723
        %p1387 = pneg %p720
        %p1388 = pneg %p744
        %p1389 = pneg %p741
        %p1390 = pneg %p765
        %p1391 = pneg %p762
        %p1392 = pneg %p786
        %p1393 = pneg %p783
        %p1394 = pneg %p807
        %p1395 = pneg %p804
        %p1396 = pneg %p828
        %p1397 = pneg %p825
        %p1398 = pneg %p849
        %p1399 = pneg %p846
        %p1400 = pneg %p870
        %p1401 = pneg %p867
        %p1402 = pneg %p891
        %p1403 = pneg %p888
        %p1404 = pneg %p917
        %p1405 = pneg %p914
        %p1406 = scmp.lt.s32.totalorder %s99, 1
        %s1407 = scalar_select %p1406, %s99, 1
        %s1408 = smul.addr %s1407, 4
        %s1409 = scalar_lea.vmem %s75, %s1408
        %p1410 = pneg %p943
        %p1411 = pneg %p940
        %p1412 = scmp.lt.s32.totalorder %s99, 1
        %s1413 = scalar_select %p1412, %s99, 1
        %s1414 = smul.addr %s1413, 8
        %s1415 = scalar_lea.vmem %s77, %s1414
        %p1416 = scmp.lt.s32.totalorder %s99, 1
        %s1417 = scalar_select %p1416, %s99, 1
        %s1418 = smul.addr %s1417, 4
        %s1419 = scalar_lea.vmem %s1, %s1418
        %p1420 = scmp.lt.s32.totalorder %s99, 1
        %s1421 = scalar_select %p1420, %s99, 1
        %s1422 = smul.addr %s1421, 4
        %s1423 = scalar_lea.vmem %s3, %s1422
        %p1424 = scmp.lt.s32.totalorder %s99, 1
        %s1425 = scalar_select %p1424, %s99, 1
        %s1426 = smul.addr %s1425, 8
        %s1427 = scalar_lea.vmem %s5, %s1426
        %p1428 = scmp.lt.s32.totalorder %s99, 1
        %s1429 = scalar_select %p1428, %s99, 1
        %s1430 = smul.addr %s1429, 2
        %s1431 = smul.addr %s1430, 4
        %s1432 = scalar_lea.vmem %s7, %s1431
        %p1433 = scmp.lt.s32.totalorder %s99, 1
        %s1434 = scalar_select %p1433, %s99, 1
        %s1435 = smul.addr %s1434, 4
        %s1436 = scalar_lea.vmem %s75, %s1435
        %p1437 = scmp.lt.s32.totalorder %s99, 1
        %s1438 = scalar_select %p1437, %s99, 1
        %s1439 = smul.addr %s1438, 8
        %s1440 = scalar_lea.vmem %s77, %s1439
        %v1442 = vld [vmem:[%s1419] sm:$0xf]
        %v1443 = vld [vmem:[%s1423] sm:$0xf]
        %v1444 = vld [vmem:[%s1432] sm:$0xf]
        %v1445 = vld [vmem:[%s1432 + $0x4] sm:$0xf]
        %v1446 = vld [vmem:[%s1427] sm:$0xff]
        %v1447 = vunpack.c.l.bf16 %v1442
        %v1448 = vlaneseq
        %v1449 = vand.u32 %v1448, 127
        %vm1450 = vcmp.lt.s32.totalorder %v1449, 8
        %v1451 = vsel %vm1450, 1, 0
        %vm1452 = vcmp.eq.s32.totalorder %v1451, 1
        %v1453 = vsel %vm1452, %v1446, 0.0
        %v1454 = vadd.bf16 %v1442, %v1443
        %v1455 = vld [vmem:[%s9] sm:$0xff]
        %v1456 = vld [vmem:[%s9 + $0x8] sm:$0xff]
        %v1457 = vld [vmem:[%s9 + $0x10] sm:$0xff]
        %v1458 = vld [vmem:[%s9 + $0x18] sm:$0xff]
        %v1459 = vpack.c.bf16 %v1456, %v1455
        %v1460 = vpack.c.bf16 %v1458, %v1457
        %v1461 = vld [vmem:[#allocation2] sm:$0x1]
        %v1463 = vlaneseq
        %v1464 = vshrl.u32 %v1463, 7
        %v1465 = vsub.s32 0, %v1464
        %v1466 = vrot.slane %v1461, %v1465
        %vm1468 = vcmask 261120
        %v1470 = vsel %vm1468, %v1454, 0
        %1472 = vmatprep.subr.bf16.mxu0 0
        %1473 = vmatpush1.bf16.msra.mxu0 0
        %1474 = vmatprep.subr.bf16.mxu0 0
        %1475 = vmatpush1.bf16.msra.mxu0 0
        %1476 = vmatprep.subr.bf16.mxu0 0
        %1477 = vmatpush1.bf16.msra.mxu0 0
        %1478 = vmatprep.subr.bf16.mxu0 0
        %1479 = vmatpush1.bf16.msra.mxu0 0
        %1480 = vmatprep.subr.bf16.mxu0 0
        %1481 = vmatpush1.bf16.msra.mxu0 0
        %1482 = vmatprep.subr.bf16.mxu0 0
        %1483 = vmatpush1.bf16.msra.mxu0 0
        %1484 = vmatprep.subr.bf16.mxu0 0
        %1485 = vmatpush1.bf16.msra.mxu0 %v1460
        %1486 = vmatprep.subr.bf16.mxu0 0
        %1487 = vmatpush1.bf16.msra.mxu0 %v1459
        %1488 = vmatprep.subr.bf16.mxu0 0
        %1489 = vmatpush2.bf16.msra.mxu0 0
        %1490 = vmatprep.subr.bf16.mxu0 0
        %1491 = vmatpush2.bf16.msra.mxu0 0
        %1492 = vmatprep.subr.bf16.mxu0 0
        %1493 = vmatpush2.bf16.msra.mxu0 0
        %1494 = vmatprep.subr.bf16.mxu0 0
        %1495 = vmatpush2.bf16.msra.mxu0 0
        %1496 = vmatprep.subr.bf16.mxu0 0
        %1497 = vmatpush2.bf16.msra.mxu0 0
        %1498 = vmatprep.subr.bf16.mxu0 0
        %1499 = vmatpush2.bf16.msra.mxu0 0
        %1500 = vmatprep.subr.bf16.mxu0 0
        %1501 = vmatpush2.bf16.msra.mxu0 0
        %1502 = vmatprep.subr.bf16.mxu0 0
        %1503 = vmatpush2.bf16.msra.mxu0 0
        %1504 = vmatprep.mubr.bf16.mxu0 0
        %1505 = vmatmul.mubr.bf16.gmra.mxu0 %v1470
        %v1506 = vpop.f32.mrf.mxu0
        %v1507 = vadd.f32 %v1466, %v1506
        %v1508 = vpop.f32.mrf.mxu0
        %v1509 = vpop.f32.mrf.mxu0
        %v1510 = vpop.f32.mrf.mxu0
        %1511 = vdwg.mxu0
        %v1512 = vld [vmem:[%s13] sm:$0xff]
        %v1513 = vld [vmem:[%s13 + $0x8] sm:$0xff]
        %v1514 = vld [vmem:[%s13 + $0x10] sm:$0xff]
        %v1515 = vld [vmem:[%s13 + $0x18] sm:$0xff]
        %v1516 = vpack.c.bf16 %v1513, %v1512
        %v1517 = vpack.c.bf16 %v1515, %v1514
        %v1518 = vld [vmem:[#allocation4] sm:$0x1]
        %v1520 = vlaneseq
        %v1521 = vshrl.u32 %v1520, 7
        %v1522 = vsub.s32 0, %v1521
        %v1523 = vrot.slane %v1518, %v1522
        %1525 = vmatprep.subr.bf16.mxu0 0
        %1526 = vmatpush1.bf16.msra.mxu0 0
        %1527 = vmatprep.subr.bf16.mxu0 0
        %1528 = vmatpush1.bf16.msra.mxu0 0
        %1529 = vmatprep.subr.bf16.mxu0 0
        %1530 = vmatpush1.bf16.msra.mxu0 0
        %1531 = vmatprep.subr.bf16.mxu0 0
        %1532 = vmatpush1.bf16.msra.mxu0 0
        %1533 = vmatprep.subr.bf16.mxu0 0
        %1534 = vmatpush1.bf16.msra.mxu0 0
        %1535 = vmatprep.subr.bf16.mxu0 0
        %1536 = vmatpush1.bf16.msra.mxu0 0
        %1537 = vmatprep.subr.bf16.mxu0 0
        %1538 = vmatpush1.bf16.msra.mxu0 %v1517
        %1539 = vmatprep.subr.bf16.mxu0 0
        %1540 = vmatpush1.bf16.msra.mxu0 %v1516
        %1541 = vmatprep.subr.bf16.mxu0 0
        %1542 = vmatpush2.bf16.msra.mxu0 0
        %1543 = vmatprep.subr.bf16.mxu0 0
        %1544 = vmatpush2.bf16.msra.mxu0 0
        %1545 = vmatprep.subr.bf16.mxu0 0
        %1546 = vmatpush2.bf16.msra.mxu0 0
        %1547 = vmatprep.subr.bf16.mxu0 0
        %1548 = vmatpush2.bf16.msra.mxu0 0
        %1549 = vmatprep.subr.bf16.mxu0 0
        %1550 = vmatpush2.bf16.msra.mxu0 0
        %1551 = vmatprep.subr.bf16.mxu0 0
        %1552 = vmatpush2.bf16.msra.mxu0 0
        %1553 = vmatprep.subr.bf16.mxu0 0
        %1554 = vmatpush2.bf16.msra.mxu0 0
        %1555 = vmatprep.subr.bf16.mxu0 0
        %1556 = vmatpush2.bf16.msra.mxu0 0
        %1557 = vmatprep.mubr.bf16.mxu0 0
        %1558 = vmatmul.mubr.bf16.gmra.mxu0 %v1470
        %v1559 = vpop.f32.mrf.mxu0
        %v1560 = vadd.f32 %v1523, %v1559
        %v1561 = vpop.f32.mrf.mxu0
        %v1562 = vpop.f32.mrf.mxu0
        %v1563 = vpop.f32.mrf.mxu0
        %1564 = vdwg.mxu0
        %v1565 = vld [vmem:[%s17] sm:$0xff]
        %v1566 = vld [vmem:[%s17 + $0x8] sm:$0xff]
        %v1567 = vld [vmem:[%s17 + $0x10] sm:$0xff]
        %v1568 = vld [vmem:[%s17 + $0x18] sm:$0xff]
        %v1569 = vpack.c.bf16 %v1566, %v1565
        %v1570 = vpack.c.bf16 %v1568, %v1567
        %v1571 = vld [vmem:[#allocation6] sm:$0x1]
        %v1573 = vlaneseq
        %v1574 = vshrl.u32 %v1573, 7
        %v1575 = vsub.s32 0, %v1574
        %v1576 = vrot.slane %v1571, %v1575
        %v1579 = vsel %vm1468, %v1442, 0
        %1581 = vmatprep.subr.bf16.mxu0 0
        %1582 = vmatpush1.bf16.msra.mxu0 0
        %1583 = vmatprep.subr.bf16.mxu0 0
        %1584 = vmatpush1.bf16.msra.mxu0 0
        %1585 = vmatprep.subr.bf16.mxu0 0
        %1586 = vmatpush1.bf16.msra.mxu0 0
        %1587 = vmatprep.subr.bf16.mxu0 0
        %1588 = vmatpush1.bf16.msra.mxu0 0
        %1589 = vmatprep.subr.bf16.mxu0 0
        %1590 = vmatpush1.bf16.msra.mxu0 0
        %1591 = vmatprep.subr.bf16.mxu0 0
        %1592 = vmatpush1.bf16.msra.mxu0 0
        %1593 = vmatprep.subr.bf16.mxu0 0
        %1594 = vmatpush1.bf16.msra.mxu0 %v1570
        %1595 = vmatprep.subr.bf16.mxu0 0
        %1596 = vmatpush1.bf16.msra.mxu0 %v1569
        %1597 = vmatprep.subr.bf16.mxu0 0
        %1598 = vmatpush2.bf16.msra.mxu0 0
        %1599 = vmatprep.subr.bf16.mxu0 0
        %1600 = vmatpush2.bf16.msra.mxu0 0
        %1601 = vmatprep.subr.bf16.mxu0 0
        %1602 = vmatpush2.bf16.msra.mxu0 0
        %1603 = vmatprep.subr.bf16.mxu0 0
        %1604 = vmatpush2.bf16.msra.mxu0 0
        %1605 = vmatprep.subr.bf16.mxu0 0
        %1606 = vmatpush2.bf16.msra.mxu0 0
        %1607 = vmatprep.subr.bf16.mxu0 0
        %1608 = vmatpush2.bf16.msra.mxu0 0
        %1609 = vmatprep.subr.bf16.mxu0 0
        %1610 = vmatpush2.bf16.msra.mxu0 0
        %1611 = vmatprep.subr.bf16.mxu0 0
        %1612 = vmatpush2.bf16.msra.mxu0 0
        %1613 = vmatprep.mubr.bf16.mxu0 0
        %1614 = vmatmul.mubr.bf16.gmra.mxu0 %v1579
        %v1615 = vpop.f32.mrf.mxu0
        %v1616 = vadd.f32 %v1576, %v1615
        %v1617 = vpop.f32.mrf.mxu0
        %v1618 = vpop.f32.mrf.mxu0
        %v1619 = vpop.f32.mrf.mxu0
        %1620 = vdwg.mxu0
        %v1621 = vld [vmem:[%s21] sm:$0xff]
        %v1622 = vld [vmem:[%s21 + $0x8] sm:$0xff]
        %v1623 = vld [vmem:[%s21 + $0x10] sm:$0xff]
        %v1624 = vld [vmem:[%s21 + $0x18] sm:$0xff]
        %v1625 = vld [vmem:[#allocation7] sm:$0x1]
        %v1626 = vmul.f32 %v1507, 0.35355338
        %v1627 = vpack.c.bf16 %v1626, %v1626
        %v1628 = vpack.c.bf16 %v1560, %v1560
        %v1629 = vpack.c.bf16 %v1616, %v1616
        %vm1630 = vcmask 64512
        %v1632 = vsel %vm1630, %v1627, 0
        %v1635 = vsel %vm1630, %v1628, 0
        %1637 = vmatprep.subr.bf16.mxu0 0
        %1638 = vmatpush1.bf16.xpose.msra.mxu0 0
        %1639 = vmatprep.subr.bf16.mxu0 0
        %1640 = vmatpush1.bf16.xpose.msra.mxu0 0
        %1641 = vmatprep.subr.bf16.mxu0 0
        %1642 = vmatpush1.bf16.xpose.msra.mxu0 0
        %1643 = vmatprep.subr.bf16.mxu0 0
        %1644 = vmatpush1.bf16.xpose.msra.mxu0 0
        %1645 = vmatprep.subr.bf16.mxu0 0
        %1646 = vmatpush1.bf16.xpose.msra.mxu0 0
        %1647 = vmatprep.subr.bf16.mxu0 0
        %1648 = vmatpush1.bf16.xpose.msra.mxu0 0
        %1649 = vmatprep.subr.bf16.mxu0 0
        %1650 = vmatpush1.bf16.xpose.msra.mxu0 0
        %1651 = vmatprep.subr.bf16.mxu0 0
        %1652 = vmatpush1.bf16.xpose.msra.mxu0 %v1635
        %1653 = vmatprep.subr.bf16.mxu0 0
        %1654 = vmatpush2.bf16.xpose.msra.mxu0 0
        %1655 = vmatprep.subr.bf16.mxu0 0
        %1656 = vmatpush2.bf16.xpose.msra.mxu0 0
        %1657 = vmatprep.subr.bf16.mxu0 0
        %1658 = vmatpush2.bf16.xpose.msra.mxu0 0
        %1659 = vmatprep.subr.bf16.mxu0 0
        %1660 = vmatpush2.bf16.xpose.msra.mxu0 0
        %1661 = vmatprep.subr.bf16.mxu0 0
        %1662 = vmatpush2.bf16.xpose.msra.mxu0 0
        %1663 = vmatprep.subr.bf16.mxu0 0
        %1664 = vmatpush2.bf16.xpose.msra.mxu0 0
        %1665 = vmatprep.subr.bf16.mxu0 0
        %1666 = vmatpush2.bf16.xpose.msra.mxu0 0
        %1667 = vmatprep.subr.bf16.mxu0 0
        %1668 = vmatpush2.bf16.xpose.msra.mxu0 0
        %1669 = vmatprep.mubr.bf16.mxu0 0
        %1670 = vmatmul.mubr.bf16.gmra.mxu0 %v1632
        %v1671 = vpop.f32.mrf.mxu0
        %v1672 = vadd.f32 0.0, %v1671
        %v1673 = vpop.f32.mrf.mxu0
        %v1674 = vpop.f32.mrf.mxu0
        %v1675 = vpop.f32.mrf.mxu0
        %1676 = vdwg.mxu0
        %v1677 = vsel %vm1630, %v1672, -inf
        %1678 = vmax.xlane.f32.xlu0 %v1677
        %v1679 = vpop.xlane.xlu0 %1678
        %v1680 = vsub.f32 %v1672, %v1679
        %v1681 = vmul.f32 %v1680, 1.442695
        %v1682 = vpow.pop %v1681
        %v1683 = vsel %vm1630, %v1682, 0.0
        %1684 = vadd.xlane.f32.xlu0 %v1683
        %v1685 = vpop.xlane.xlu0 %1684
        %v1686 = vrcp.pop %v1685
        %v1687 = vmul.f32 %v1682, %v1686
        %v1688 = vpack.c.bf16 %v1687, %v1687
        %v1690 = vsel %vm1630, %v1688, 0
        %vm1692 = vcmask 1043456
        %v1694 = vsel %vm1692, %v1629, 0
        %1696 = vmatprep.subr.bf16.mxu0 0
        %1697 = vmatpush1.bf16.msra.mxu0 0
        %1698 = vmatprep.subr.bf16.mxu0 0
        %1699 = vmatpush1.bf16.msra.mxu0 0
        %1700 = vmatprep.subr.bf16.mxu0 0
        %1701 = vmatpush1.bf16.msra.mxu0 0
        %1702 = vmatprep.subr.bf16.mxu0 0
        %1703 = vmatpush1.bf16.msra.mxu0 0
        %1704 = vmatprep.subr.bf16.mxu0 0
        %1705 = vmatpush1.bf16.msra.mxu0 0
        %1706 = vmatprep.subr.bf16.mxu0 0
        %1707 = vmatpush1.bf16.msra.mxu0 0
        %1708 = vmatprep.subr.bf16.mxu0 0
        %1709 = vmatpush1.bf16.msra.mxu0 0
        %1710 = vmatprep.subr.bf16.mxu0 0
        %1711 = vmatpush1.bf16.msra.mxu0 %v1694
        %1712 = vmatprep.subr.bf16.mxu0 0
        %1713 = vmatpush2.bf16.msra.mxu0 0
        %1714 = vmatprep.subr.bf16.mxu0 0
        %1715 = vmatpush2.bf16.msra.mxu0 0
        %1716 = vmatprep.subr.bf16.mxu0 0
        %1717 = vmatpush2.bf16.msra.mxu0 0
        %1718 = vmatprep.subr.bf16.mxu0 0
        %1719 = vmatpush2.bf16.msra.mxu0 0
        %1720 = vmatprep.subr.bf16.mxu0 0
        %1721 = vmatpush2.bf16.msra.mxu0 0
        %1722 = vmatprep.subr.bf16.mxu0 0
        %1723 = vmatpush2.bf16.msra.mxu0 0
        %1724 = vmatprep.subr.bf16.mxu0 0
        %1725 = vmatpush2.bf16.msra.mxu0 0
        %1726 = vmatprep.subr.bf16.mxu0 0
        %1727 = vmatpush2.bf16.msra.mxu0 0
        %1728 = vmatprep.mubr.bf16.mxu0 0
        %1729 = vmatmul.mubr.bf16.gmra.mxu0 %v1690
        %v1730 = vpop.f32.mrf.mxu0
        %v1731 = vadd.f32 0.0, %v1730
        %v1732 = vpop.f32.mrf.mxu0
        %v1733 = vpop.f32.mrf.mxu0
        %v1734 = vpop.f32.mrf.mxu0
        %1735 = vdwg.mxu0
        %1737 = vrot.lane.b32.xlu0 %v1627, 120
        %v1738 = vpop.permute.xlu0 %1737
        %1740 = vrot.lane.b32.xlu0 %v1628, 120
        %v1741 = vpop.permute.xlu0 %1740
        %v1743 = vsel %vm1630, %v1738, 0
        %v1746 = vsel %vm1630, %v1741, 0
        %1748 = vmatprep.subr.bf16.mxu0 0
        %1749 = vmatpush1.bf16.xpose.msra.mxu0 0
        %1750 = vmatprep.subr.bf16.mxu0 0
        %1751 = vmatpush1.bf16.xpose.msra.mxu0 0
        %1752 = vmatprep.subr.bf16.mxu0 0
        %1753 = vmatpush1.bf16.xpose.msra.mxu0 0
        %1754 = vmatprep.subr.bf16.mxu0 0
        %1755 = vmatpush1.bf16.xpose.msra.mxu0 0
        %1756 = vmatprep.subr.bf16.mxu0 0
        %1757 = vmatpush1.bf16.xpose.msra.mxu0 0
        %1758 = vmatprep.subr.bf16.mxu0 0
        %1759 = vmatpush1.bf16.xpose.msra.mxu0 0
        %1760 = vmatprep.subr.bf16.mxu0 0
        %1761 = vmatpush1.bf16.xpose.msra.mxu0 0
        %1762 = vmatprep.subr.bf16.mxu0 0
        %1763 = vmatpush1.bf16.xpose.msra.mxu0 %v1746
        %1764 = vmatprep.subr.bf16.mxu0 0
        %1765 = vmatpush2.bf16.xpose.msra.mxu0 0
        %1766 = vmatprep.subr.bf16.mxu0 0
        %1767 = vmatpush2.bf16.xpose.msra.mxu0 0
        %1768 = vmatprep.subr.bf16.mxu0 0
        %1769 = vmatpush2.bf16.xpose.msra.mxu0 0
        %1770 = vmatprep.subr.bf16.mxu0 0
        %1771 = vmatpush2.bf16.xpose.msra.mxu0 0
        %1772 = vmatprep.subr.bf16.mxu0 0
        %1773 = vmatpush2.bf16.xpose.msra.mxu0 0
        %1774 = vmatprep.subr.bf16.mxu0 0
        %1775 = vmatpush2.bf16.xpose.msra.mxu0 0
        %1776 = vmatprep.subr.bf16.mxu0 0
        %1777 = vmatpush2.bf16.xpose.msra.mxu0 0
        %1778 = vmatprep.subr.bf16.mxu0 0
        %1779 = vmatpush2.bf16.xpose.msra.mxu0 0
        %1780 = vmatprep.mubr.bf16.mxu0 0
        %1781 = vmatmul.mubr.bf16.gmra.mxu0 %v1743
        %v1782 = vpop.f32.mrf.mxu0
        %v1783 = vadd.f32 0.0, %v1782
        %v1784 = vpop.f32.mrf.mxu0
        %v1785 = vpop.f32.mrf.mxu0
        %v1786 = vpop.f32.mrf.mxu0
        %1787 = vdwg.mxu0
        %v1788 = vsel %vm1630, %v1783, -inf
        %1789 = vmax.xlane.f32.xlu0 %v1788
        %v1790 = vpop.xlane.xlu0 %1789
        %v1791 = vsub.f32 %v1783, %v1790
        %v1792 = vmul.f32 %v1791, 1.442695
        %v1793 = vpow.pop %v1792
        %v1794 = vsel %vm1630, %v1793, 0.0
        %1795 = vadd.xlane.f32.xlu0 %v1794
        %v1796 = vpop.xlane.xlu0 %1795
        %v1797 = vrcp.pop %v1796
        %v1798 = vmul.f32 %v1793, %v1797
        %v1799 = vpack.c.bf16 %v1798, %v1798
        %1801 = vrot.lane.b32.xlu0 %v1629, 120
        %v1802 = vpop.permute.xlu0 %1801
        %v1804 = vsel %vm1630, %v1799, 0
        %v1807 = vsel %vm1692, %v1802, 0
        %1809 = vmatprep.subr.bf16.mxu0 0
        %1810 = vmatpush1.bf16.msra.mxu0 0
        %1811 = vmatprep.subr.bf16.mxu0 0
        %1812 = vmatpush1.bf16.msra.mxu0 0
        %1813 = vmatprep.subr.bf16.mxu0 0
        %1814 = vmatpush1.bf16.msra.mxu0 0
        %1815 = vmatprep.subr.bf16.mxu0 0
        %1816 = vmatpush1.bf16.msra.mxu0 0
        %1817 = vmatprep.subr.bf16.mxu0 0
        %1818 = vmatpush1.bf16.msra.mxu0 0
        %1819 = vmatprep.subr.bf16.mxu0 0
        %1820 = vmatpush1.bf16.msra.mxu0 0
        %1821 = vmatprep.subr.bf16.mxu0 0
        %1822 = vmatpush1.bf16.msra.mxu0 0
        %1823 = vmatprep.subr.bf16.mxu0 0
        %1824 = vmatpush1.bf16.msra.mxu0 %v1807
        %1825 = vmatprep.subr.bf16.mxu0 0
        %1826 = vmatpush2.bf16.msra.mxu0 0
        %1827 = vmatprep.subr.bf16.mxu0 0
        %1828 = vmatpush2.bf16.msra.mxu0 0
        %1829 = vmatprep.subr.bf16.mxu0 0
        %1830 = vmatpush2.bf16.msra.mxu0 0
        %1831 = vmatprep.subr.bf16.mxu0 0
        %1832 = vmatpush2.bf16.msra.mxu0 0
        %1833 = vmatprep.subr.bf16.mxu0 0
        %1834 = vmatpush2.bf16.msra.mxu0 0
        %1835 = vmatprep.subr.bf16.mxu0 0
        %1836 = vmatpush2.bf16.msra.mxu0 0
        %1837 = vmatprep.subr.bf16.mxu0 0
        %1838 = vmatpush2.bf16.msra.mxu0 0
        %1839 = vmatprep.subr.bf16.mxu0 0
        %1840 = vmatpush2.bf16.msra.mxu0 0
        %1841 = vmatprep.mubr.bf16.mxu0 0
        %1842 = vmatmul.mubr.bf16.gmra.mxu0 %v1804
        %v1843 = vpop.f32.mrf.mxu0
        %v1844 = vadd.f32 0.0, %v1843
        %v1845 = vpop.f32.mrf.mxu0
        %v1846 = vpop.f32.mrf.mxu0
        %v1847 = vpop.f32.mrf.mxu0
        %1848 = vdwg.mxu0
        %1849 = vrot.lane.b32.xlu0 %v1627, 112
        %v1850 = vpop.permute.xlu0 %1849
        %1851 = vrot.lane.b32.xlu0 %v1628, 112
        %v1852 = vpop.permute.xlu0 %1851
        %v1854 = vsel %vm1630, %v1850, 0
        %v1857 = vsel %vm1630, %v1852, 0
        %1859 = vmatprep.subr.bf16.mxu0 0
        %1860 = vmatpush1.bf16.xpose.msra.mxu0 0
        %1861 = vmatprep.subr.bf16.mxu0 0
        %1862 = vmatpush1.bf16.xpose.msra.mxu0 0
        %1863 = vmatprep.subr.bf16.mxu0 0
        %1864 = vmatpush1.bf16.xpose.msra.mxu0 0
        %1865 = vmatprep.subr.bf16.mxu0 0
        %1866 = vmatpush1.bf16.xpose.msra.mxu0 0
        %1867 = vmatprep.subr.bf16.mxu0 0
        %1868 = vmatpush1.bf16.xpose.msra.mxu0 0
        %1869 = vmatprep.subr.bf16.mxu0 0
        %1870 = vmatpush1.bf16.xpose.msra.mxu0 0
        %1871 = vmatprep.subr.bf16.mxu0 0
        %1872 = vmatpush1.bf16.xpose.msra.mxu0 0
        %1873 = vmatprep.subr.bf16.mxu0 0
        %1874 = vmatpush1.bf16.xpose.msra.mxu0 %v1857
        %1875 = vmatprep.subr.bf16.mxu0 0
        %1876 = vmatpush2.bf16.xpose.msra.mxu0 0
        %1877 = vmatprep.subr.bf16.mxu0 0
        %1878 = vmatpush2.bf16.xpose.msra.mxu0 0
        %1879 = vmatprep.subr.bf16.mxu0 0
        %1880 = vmatpush2.bf16.xpose.msra.mxu0 0
        %1881 = vmatprep.subr.bf16.mxu0 0
        %1882 = vmatpush2.bf16.xpose.msra.mxu0 0
        %1883 = vmatprep.subr.bf16.mxu0 0
        %1884 = vmatpush2.bf16.xpose.msra.mxu0 0
        %1885 = vmatprep.subr.bf16.mxu0 0
        %1886 = vmatpush2.bf16.xpose.msra.mxu0 0
        %1887 = vmatprep.subr.bf16.mxu0 0
        %1888 = vmatpush2.bf16.xpose.msra.mxu0 0
        %1889 = vmatprep.subr.bf16.mxu0 0
        %1890 = vmatpush2.bf16.xpose.msra.mxu0 0
        %1891 = vmatprep.mubr.bf16.mxu0 0
        %1892 = vmatmul.mubr.bf16.gmra.mxu0 %v1854
        %v1893 = vpop.f32.mrf.mxu0
        %v1894 = vadd.f32 0.0, %v1893
        %v1895 = vpop.f32.mrf.mxu0
        %v1896 = vpop.f32.mrf.mxu0
        %v1897 = vpop.f32.mrf.mxu0
        %1898 = vdwg.mxu0
        %v1899 = vsel %vm1630, %v1894, -inf
        %1900 = vmax.xlane.f32.xlu0 %v1899
        %v1901 = vpop.xlane.xlu0 %1900
        %v1902 = vsub.f32 %v1894, %v1901
        %v1903 = vmul.f32 %v1902, 1.442695
        %v1904 = vpow.pop %v1903
        %v1905 = vsel %vm1630, %v1904, 0.0
        %1906 = vadd.xlane.f32.xlu0 %v1905
        %v1907 = vpop.xlane.xlu0 %1906
        %v1908 = vrcp.pop %v1907
        %v1909 = vmul.f32 %v1904, %v1908
        %v1910 = vpack.c.bf16 %v1909, %v1909
        %1911 = vrot.lane.b32.xlu0 %v1629, 112
        %v1912 = vpop.permute.xlu0 %1911
        %v1914 = vsel %vm1630, %v1910, 0
        %v1917 = vsel %vm1692, %v1912, 0
        %1919 = vmatprep.subr.bf16.mxu0 0
        %1920 = vmatpush1.bf16.msra.mxu0 0
        %1921 = vmatprep.subr.bf16.mxu0 0
        %1922 = vmatpush1.bf16.msra.mxu0 0
        %1923 = vmatprep.subr.bf16.mxu0 0
        %1924 = vmatpush1.bf16.msra.mxu0 0
        %1925 = vmatprep.subr.bf16.mxu0 0
        %1926 = vmatpush1.bf16.msra.mxu0 0
        %1927 = vmatprep.subr.bf16.mxu0 0
        %1928 = vmatpush1.bf16.msra.mxu0 0
        %1929 = vmatprep.subr.bf16.mxu0 0
        %1930 = vmatpush1.bf16.msra.mxu0 0
        %1931 = vmatprep.subr.bf16.mxu0 0
        %1932 = vmatpush1.bf16.msra.mxu0 0
        %1933 = vmatprep.subr.bf16.mxu0 0
        %1934 = vmatpush1.bf16.msra.mxu0 %v1917
        %1935 = vmatprep.subr.bf16.mxu0 0
        %1936 = vmatpush2.bf16.msra.mxu0 0
        %1937 = vmatprep.subr.bf16.mxu0 0
        %1938 = vmatpush2.bf16.msra.mxu0 0
        %1939 = vmatprep.subr.bf16.mxu0 0
        %1940 = vmatpush2.bf16.msra.mxu0 0
        %1941 = vmatprep.subr.bf16.mxu0 0
        %1942 = vmatpush2.bf16.msra.mxu0 0
        %1943 = vmatprep.subr.bf16.mxu0 0
        %1944 = vmatpush2.bf16.msra.mxu0 0
        %1945 = vmatprep.subr.bf16.mxu0 0
        %1946 = vmatpush2.bf16.msra.mxu0 0
        %1947 = vmatprep.subr.bf16.mxu0 0
        %1948 = vmatpush2.bf16.msra.mxu0 0
        %1949 = vmatprep.subr.bf16.mxu0 0
        %1950 = vmatpush2.bf16.msra.mxu0 0
        %1951 = vmatprep.mubr.bf16.mxu0 0
        %1952 = vmatmul.mubr.bf16.gmra.mxu0 %v1914
        %v1953 = vpop.f32.mrf.mxu0
        %v1954 = vadd.f32 0.0, %v1953
        %v1955 = vpop.f32.mrf.mxu0
        %v1956 = vpop.f32.mrf.mxu0
        %v1957 = vpop.f32.mrf.mxu0
        %1958 = vdwg.mxu0
        %1959 = vrot.lane.b32.xlu0 %v1627, 104
        %v1960 = vpop.permute.xlu0 %1959
        %1961 = vrot.lane.b32.xlu0 %v1628, 104
        %v1962 = vpop.permute.xlu0 %1961
        %v1964 = vsel %vm1630, %v1960, 0
        %v1967 = vsel %vm1630, %v1962, 0
        %1969 = vmatprep.subr.bf16.mxu0 0
        %1970 = vmatpush1.bf16.xpose.msra.mxu0 0
        %1971 = vmatprep.subr.bf16.mxu0 0
        %1972 = vmatpush1.bf16.xpose.msra.mxu0 0
        %1973 = vmatprep.subr.bf16.mxu0 0
        %1974 = vmatpush1.bf16.xpose.msra.mxu0 0
        %1975 = vmatprep.subr.bf16.mxu0 0
        %1976 = vmatpush1.bf16.xpose.msra.mxu0 0
        %1977 = vmatprep.subr.bf16.mxu0 0
        %1978 = vmatpush1.bf16.xpose.msra.mxu0 0
        %1979 = vmatprep.subr.bf16.mxu0 0
        %1980 = vmatpush1.bf16.xpose.msra.mxu0 0
        %1981 = vmatprep.subr.bf16.mxu0 0
        %1982 = vmatpush1.bf16.xpose.msra.mxu0 0
        %1983 = vmatprep.subr.bf16.mxu0 0
        %1984 = vmatpush1.bf16.xpose.msra.mxu0 %v1967
        %1985 = vmatprep.subr.bf16.mxu0 0
        %1986 = vmatpush2.bf16.xpose.msra.mxu0 0
        %1987 = vmatprep.subr.bf16.mxu0 0
        %1988 = vmatpush2.bf16.xpose.msra.mxu0 0
        %1989 = vmatprep.subr.bf16.mxu0 0
        %1990 = vmatpush2.bf16.xpose.msra.mxu0 0
        %1991 = vmatprep.subr.bf16.mxu0 0
        %1992 = vmatpush2.bf16.xpose.msra.mxu0 0
        %1993 = vmatprep.subr.bf16.mxu0 0
        %1994 = vmatpush2.bf16.xpose.msra.mxu0 0
        %1995 = vmatprep.subr.bf16.mxu0 0
        %1996 = vmatpush2.bf16.xpose.msra.mxu0 0
        %1997 = vmatprep.subr.bf16.mxu0 0
        %1998 = vmatpush2.bf16.xpose.msra.mxu0 0
        %1999 = vmatprep.subr.bf16.mxu0 0
        %2000 = vmatpush2.bf16.xpose.msra.mxu0 0
        %2001 = vmatprep.mubr.bf16.mxu0 0
        %2002 = vmatmul.mubr.bf16.gmra.mxu0 %v1964
        %v2003 = vpop.f32.mrf.mxu0
        %v2004 = vadd.f32 0.0, %v2003
        %v2005 = vpop.f32.mrf.mxu0
        %v2006 = vpop.f32.mrf.mxu0
        %v2007 = vpop.f32.mrf.mxu0
        %2008 = vdwg.mxu0
        %v2009 = vsel %vm1630, %v2004, -inf
        %2010 = vmax.xlane.f32.xlu0 %v2009
        %v2011 = vpop.xlane.xlu0 %2010
        %v2012 = vsub.f32 %v2004, %v2011
        %v2013 = vmul.f32 %v2012, 1.442695
        %v2014 = vpow.pop %v2013
        %v2015 = vsel %vm1630, %v2014, 0.0
        %2016 = vadd.xlane.f32.xlu0 %v2015
        %v2017 = vpop.xlane.xlu0 %2016
        %v2018 = vrcp.pop %v2017
        %v2019 = vmul.f32 %v2014, %v2018
        %v2020 = vpack.c.bf16 %v2019, %v2019
        %2021 = vrot.lane.b32.xlu0 %v1629, 104
        %v2022 = vpop.permute.xlu0 %2021
        %v2024 = vsel %vm1630, %v2020, 0
        %v2027 = vsel %vm1692, %v2022, 0
        %2029 = vmatprep.subr.bf16.mxu0 0
        %2030 = vmatpush1.bf16.msra.mxu0 0
        %2031 = vmatprep.subr.bf16.mxu0 0
        %2032 = vmatpush1.bf16.msra.mxu0 0
        %2033 = vmatprep.subr.bf16.mxu0 0
        %2034 = vmatpush1.bf16.msra.mxu0 0
        %2035 = vmatprep.subr.bf16.mxu0 0
        %2036 = vmatpush1.bf16.msra.mxu0 0
        %2037 = vmatprep.subr.bf16.mxu0 0
        %2038 = vmatpush1.bf16.msra.mxu0 0
        %2039 = vmatprep.subr.bf16.mxu0 0
        %2040 = vmatpush1.bf16.msra.mxu0 0
        %2041 = vmatprep.subr.bf16.mxu0 0
        %2042 = vmatpush1.bf16.msra.mxu0 0
        %2043 = vmatprep.subr.bf16.mxu0 0
        %2044 = vmatpush1.bf16.msra.mxu0 %v2027
        %2045 = vmatprep.subr.bf16.mxu0 0
        %2046 = vmatpush2.bf16.msra.mxu0 0
        %2047 = vmatprep.subr.bf16.mxu0 0
        %2048 = vmatpush2.bf16.msra.mxu0 0
        %2049 = vmatprep.subr.bf16.mxu0 0
        %2050 = vmatpush2.bf16.msra.mxu0 0
        %2051 = vmatprep.subr.bf16.mxu0 0
        %2052 = vmatpush2.bf16.msra.mxu0 0
        %2053 = vmatprep.subr.bf16.mxu0 0
        %2054 = vmatpush2.bf16.msra.mxu0 0
        %2055 = vmatprep.subr.bf16.mxu0 0
        %2056 = vmatpush2.bf16.msra.mxu0 0
        %2057 = vmatprep.subr.bf16.mxu0 0
        %2058 = vmatpush2.bf16.msra.mxu0 0
        %2059 = vmatprep.subr.bf16.mxu0 0
        %2060 = vmatpush2.bf16.msra.mxu0 0
        %2061 = vmatprep.mubr.bf16.mxu0 0
        %2062 = vmatmul.mubr.bf16.gmra.mxu0 %v2024
        %v2063 = vpop.f32.mrf.mxu0
        %v2064 = vadd.f32 0.0, %v2063
        %v2065 = vpop.f32.mrf.mxu0
        %v2066 = vpop.f32.mrf.mxu0
        %v2067 = vpop.f32.mrf.mxu0
        %2068 = vdwg.mxu0
        %2070 = vrot.lane.b32.xlu0 %v1844, 8
        %v2071 = vpop.permute.xlu0 %2070
        %2074 = vrot.lane.b32.xlu0 %v1954, 16
        %v2075 = vpop.permute.xlu0 %2074
        %2078 = vrot.lane.b32.xlu0 %v2064, 24
        %v2079 = vpop.permute.xlu0 %2078
        %v2081 = vsel %vm1630, %v1731, %v2071
        %vm2082 = vcmask 130048
        %v2083 = vsel %vm2082, %v2081, %v2075
        %vm2084 = vcmask 195584
        %v2085 = vsel %vm2084, %v2083, %v2079
        %v2086 = vpack.c.bf16 %v2085, %v2085
        %v2087 = vpack.c.bf16 %v1622, %v1621
        %v2088 = vpack.c.bf16 %v1624, %v1623
        %v2090 = vlaneseq
        %v2091 = vshrl.u32 %v2090, 7
        %v2092 = vsub.s32 0, %v2091
        %v2093 = vrot.slane %v1625, %v2092
        %v2096 = vsel %vm1468, %v2086, 0
        %2098 = vmatprep.subr.bf16.mxu0 0
        %2099 = vmatpush1.bf16.msra.mxu0 0
        %2100 = vmatprep.subr.bf16.mxu0 0
        %2101 = vmatpush1.bf16.msra.mxu0 0
        %2102 = vmatprep.subr.bf16.mxu0 0
        %2103 = vmatpush1.bf16.msra.mxu0 0
        %2104 = vmatprep.subr.bf16.mxu0 0
        %2105 = vmatpush1.bf16.msra.mxu0 0
        %2106 = vmatprep.subr.bf16.mxu0 0
        %2107 = vmatpush1.bf16.msra.mxu0 0
        %2108 = vmatprep.subr.bf16.mxu0 0
        %2109 = vmatpush1.bf16.msra.mxu0 0
        %2110 = vmatprep.subr.bf16.mxu0 0
        %2111 = vmatpush1.bf16.msra.mxu0 %v2088
        %2112 = vmatprep.subr.bf16.mxu0 0
        %2113 = vmatpush1.bf16.msra.mxu0 %v2087
        %2114 = vmatprep.subr.bf16.mxu0 0
        %2115 = vmatpush2.bf16.msra.mxu0 0
        %2116 = vmatprep.subr.bf16.mxu0 0
        %2117 = vmatpush2.bf16.msra.mxu0 0
        %2118 = vmatprep.subr.bf16.mxu0 0
        %2119 = vmatpush2.bf16.msra.mxu0 0
        %2120 = vmatprep.subr.bf16.mxu0 0
        %2121 = vmatpush2.bf16.msra.mxu0 0
        %2122 = vmatprep.subr.bf16.mxu0 0
        %2123 = vmatpush2.bf16.msra.mxu0 0
        %2124 = vmatprep.subr.bf16.mxu0 0
        %2125 = vmatpush2.bf16.msra.mxu0 0
        %2126 = vmatprep.subr.bf16.mxu0 0
        %2127 = vmatpush2.bf16.msra.mxu0 0
        %2128 = vmatprep.subr.bf16.mxu0 0
        %2129 = vmatpush2.bf16.msra.mxu0 0
        %2130 = vmatprep.mubr.bf16.mxu0 0
        %2131 = vmatmul.mubr.bf16.gmra.mxu0 %v2096
        %v2132 = vpop.f32.mrf.mxu0
        %v2133 = vadd.f32 %v2093, %v2132
        %v2134 = vpop.f32.mrf.mxu0
        %v2135 = vpop.f32.mrf.mxu0
        %v2136 = vpop.f32.mrf.mxu0
        %2137 = vdwg.mxu0
        %v2138 = vadd.f32 %v1447, %v2133
        %v2139 = vld [vmem:[#allocation9] sm:$0x1]
        %v2140 = vld [vmem:[#allocation10] sm:$0x1]
        %v2141 = vsel %vm1468, %v2138, 0.0
        %2142 = vadd.xlane.f32.xlu0 %v2141
        %v2143 = vpop.xlane.xlu0 %2142
        %v2144 = vrcp.pop 32.0
        %v2145 = vmul.f32 %v2143, %v2144
        %v2146 = vsub.f32 %v2138, %v2145
        %v2147 = vmul.f32 %v2146, %v2146
        %v2148 = vsel %vm1468, %v2147, 0.0
        %2149 = vadd.xlane.f32.xlu0 %v2148
        %v2150 = vpop.xlane.xlu0 %2149
        %v2151 = vmul.f32 %v2150, %v2144
        %v2152 = vadd.f32 %v2151, 1e-05
        %v2153 = vrsqrt.pop %v2152
        %v2154 = vmul.f32 %v2146, %v2153
        %v2156 = vlaneseq
        %v2157 = vshrl.u32 %v2156, 7
        %v2158 = vsub.s32 0, %v2157
        %v2159 = vrot.slane %v2139, %v2158
        %v2161 = vmul.f32 %v2154, %v2159
        %v2163 = vlaneseq
        %v2164 = vshrl.u32 %v2163, 7
        %v2165 = vsub.s32 0, %v2164
        %v2166 = vrot.slane %v2140, %v2165
        %v2168 = vadd.f32 %v2161, %v2166
        %v2169 = vld [vmem:[%s29] sm:$0xff]
        %v2170 = vld [vmem:[%s29 + $0x8] sm:$0xff]
        %v2171 = vld [vmem:[%s29 + $0x10] sm:$0xff]
        %v2172 = vld [vmem:[%s29 + $0x18] sm:$0xff]
        %v2173 = vld [vmem:[%s29 + $0x20] sm:$0xff]
        %v2174 = vld [vmem:[%s29 + $0x28] sm:$0xff]
        %v2175 = vld [vmem:[%s29 + $0x30] sm:$0xff]
        %v2176 = vld [vmem:[%s29 + $0x38] sm:$0xff]
        %v2177 = vld [vmem:[%s29 + $0x40] sm:$0xff]
        %v2178 = vld [vmem:[%s29 + $0x48] sm:$0xff]
        %v2179 = vld [vmem:[%s29 + $0x50] sm:$0xff]
        %v2180 = vld [vmem:[%s29 + $0x58] sm:$0xff]
        %v2181 = vld [vmem:[%s29 + $0x60] sm:$0xff]
        %v2182 = vld [vmem:[%s29 + $0x68] sm:$0xff]
        %v2183 = vld [vmem:[%s29 + $0x70] sm:$0xff]
        %v2184 = vld [vmem:[%s29 + $0x78] sm:$0xff]
        %v2185 = vpack.c.bf16 %v1453, %v1453
        %v2186 = vpack.c.bf16 %v2170, %v2169
        %v2187 = vpack.c.bf16 %v2172, %v2171
        %v2188 = vpack.c.bf16 %v2174, %v2173
        %v2189 = vpack.c.bf16 %v2176, %v2175
        %v2190 = vpack.c.bf16 %v2178, %v2177
        %v2191 = vpack.c.bf16 %v2180, %v2179
        %v2192 = vpack.c.bf16 %v2182, %v2181
        %v2193 = vpack.c.bf16 %v2184, %v2183
        %v2194 = vld [vmem:[#allocation12] sm:$0x1]
        %v2196 = vlaneseq
        %v2197 = vshrl.u32 %v2196, 7
        %v2198 = vsub.s32 0, %v2197
        %v2199 = vrot.slane %v2194, %v2198
        %2201 = vmatprep.subr.bf16.mxu0 0
        %2202 = vmatpush1.bf16.msra.mxu0 %v2193
        %2203 = vmatprep.subr.bf16.mxu0 0
        %2204 = vmatpush1.bf16.msra.mxu0 %v2192
        %2205 = vmatprep.subr.bf16.mxu0 0
        %2206 = vmatpush1.bf16.msra.mxu0 %v2191
        %2207 = vmatprep.subr.bf16.mxu0 0
        %2208 = vmatpush1.bf16.msra.mxu0 %v2190
        %2209 = vmatprep.subr.bf16.mxu0 0
        %2210 = vmatpush1.bf16.msra.mxu0 %v2189
        %2211 = vmatprep.subr.bf16.mxu0 0
        %2212 = vmatpush1.bf16.msra.mxu0 %v2188
        %2213 = vmatprep.subr.bf16.mxu0 0
        %2214 = vmatpush1.bf16.msra.mxu0 %v2187
        %2215 = vmatprep.subr.bf16.mxu0 0
        %2216 = vmatpush1.bf16.msra.mxu0 %v2186
        %2217 = vmatprep.subr.bf16.mxu0 0
        %2218 = vmatpush2.bf16.msra.mxu0 0
        %2219 = vmatprep.subr.bf16.mxu0 0
        %2220 = vmatpush2.bf16.msra.mxu0 0
        %2221 = vmatprep.subr.bf16.mxu0 0
        %2222 = vmatpush2.bf16.msra.mxu0 0
        %2223 = vmatprep.subr.bf16.mxu0 0
        %2224 = vmatpush2.bf16.msra.mxu0 0
        %2225 = vmatprep.subr.bf16.mxu0 0
        %2226 = vmatpush2.bf16.msra.mxu0 0
        %2227 = vmatprep.subr.bf16.mxu0 0
        %2228 = vmatpush2.bf16.msra.mxu0 0
        %2229 = vmatprep.subr.bf16.mxu0 0
        %2230 = vmatpush2.bf16.msra.mxu0 0
        %2231 = vmatprep.subr.bf16.mxu0 0
        %2232 = vmatpush2.bf16.msra.mxu0 0
        %2233 = vmatprep.mubr.bf16.mxu0 0
        %2234 = vmatmul.mubr.bf16.gmra.mxu0 %v2185
        %v2235 = vpop.f32.mrf.mxu0
        %v2236 = vadd.f32 %v2199, %v2235
        %v2237 = vpop.f32.mrf.mxu0
        %v2238 = vpop.f32.mrf.mxu0
        %v2239 = vpop.f32.mrf.mxu0
        %2240 = vdwg.mxu0
        %v2241 = vunpack.c.l.bf16 %v1443
        %v2242 = vadd.f32 %v2168, %v2241
        %v2243 = vadd.f32 %v2242, %v2236
        %v2244 = vld [vmem:[%s33] sm:$0xff]
        %v2245 = vld [vmem:[%s33 + $0x8] sm:$0xff]
        %v2246 = vld [vmem:[%s33 + $0x10] sm:$0xff]
        %v2247 = vld [vmem:[%s33 + $0x18] sm:$0xff]
        %v2248 = vpack.c.bf16 %v2243, %v2243
        %v2249 = vpack.c.bf16 %v2245, %v2244
        %v2250 = vpack.c.bf16 %v2247, %v2246
        %v2251 = vld [vmem:[#allocation13] sm:$0x1]
        %v2253 = vlaneseq
        %v2254 = vshrl.u32 %v2253, 7
        %v2255 = vsub.s32 0, %v2254
        %v2256 = vrot.slane %v2251, %v2255
        %v2259 = vsel %vm1468, %v2248, 0
        %2261 = vmatprep.subr.bf16.mxu0 0
        %2262 = vmatpush1.bf16.msra.mxu0 0
        %2263 = vmatprep.subr.bf16.mxu0 0
        %2264 = vmatpush1.bf16.msra.mxu0 0
        %2265 = vmatprep.subr.bf16.mxu0 0
        %2266 = vmatpush1.bf16.msra.mxu0 0
        %2267 = vmatprep.subr.bf16.mxu0 0
        %2268 = vmatpush1.bf16.msra.mxu0 0
        %2269 = vmatprep.subr.bf16.mxu0 0
        %2270 = vmatpush1.bf16.msra.mxu0 0
        %2271 = vmatprep.subr.bf16.mxu0 0
        %2272 = vmatpush1.bf16.msra.mxu0 0
        %2273 = vmatprep.subr.bf16.mxu0 0
        %2274 = vmatpush1.bf16.msra.mxu0 %v2250
        %2275 = vmatprep.subr.bf16.mxu0 0
        %2276 = vmatpush1.bf16.msra.mxu0 %v2249
        %2277 = vmatprep.subr.bf16.mxu0 0
        %2278 = vmatpush2.bf16.msra.mxu0 0
        %2279 = vmatprep.subr.bf16.mxu0 0
        %2280 = vmatpush2.bf16.msra.mxu0 0
        %2281 = vmatprep.subr.bf16.mxu0 0
        %2282 = vmatpush2.bf16.msra.mxu0 0
        %2283 = vmatprep.subr.bf16.mxu0 0
        %2284 = vmatpush2.bf16.msra.mxu0 0
        %2285 = vmatprep.subr.bf16.mxu0 0
        %2286 = vmatpush2.bf16.msra.mxu0 0
        %2287 = vmatprep.subr.bf16.mxu0 0
        %2288 = vmatpush2.bf16.msra.mxu0 0
        %2289 = vmatprep.subr.bf16.mxu0 0
        %2290 = vmatpush2.bf16.msra.mxu0 0
        %2291 = vmatprep.subr.bf16.mxu0 0
        %2292 = vmatpush2.bf16.msra.mxu0 0
        %2293 = vmatprep.mubr.bf16.mxu0 0
        %2294 = vmatmul.mubr.bf16.gmra.mxu0 %v2259
        %v2295 = vpop.f32.mrf.mxu0
        %v2296 = vadd.f32 %v2256, %v2295
        %v2297 = vpop.f32.mrf.mxu0
        %v2298 = vpop.f32.mrf.mxu0
        %v2299 = vpop.f32.mrf.mxu0
        %2300 = vdwg.mxu0
        %v2301 = vld [vmem:[%s37] sm:$0xff]
        %v2302 = vld [vmem:[%s37 + $0x8] sm:$0xff]
        %v2303 = vld [vmem:[%s37 + $0x10] sm:$0xff]
        %v2304 = vld [vmem:[%s37 + $0x18] sm:$0xff]
        %v2305 = vpack.c.bf16 %v2302, %v2301
        %v2306 = vpack.c.bf16 %v2304, %v2303
        %v2307 = vld [vmem:[#allocation15] sm:$0x1]
        %v2309 = vlaneseq
        %v2310 = vshrl.u32 %v2309, 7
        %v2311 = vsub.s32 0, %v2310
        %v2312 = vrot.slane %v2307, %v2311
        %v2316 = vunpack.c.l.b16 %v1444
        %v2317 = vunpack.c.l.b16 %v1445
        %v2318 = vpack.c.b16 %v2317, %v2316
        %v2320 = vsel %vm1468, %v2318, 0
        %2322 = vmatprep.subr.bf16.mxu0 0
        %2323 = vmatpush1.bf16.msra.mxu0 0
        %2324 = vmatprep.subr.bf16.mxu0 0
        %2325 = vmatpush1.bf16.msra.mxu0 0
        %2326 = vmatprep.subr.bf16.mxu0 0
        %2327 = vmatpush1.bf16.msra.mxu0 0
        %2328 = vmatprep.subr.bf16.mxu0 0
        %2329 = vmatpush1.bf16.msra.mxu0 0
        %2330 = vmatprep.subr.bf16.mxu0 0
        %2331 = vmatpush1.bf16.msra.mxu0 0
        %2332 = vmatprep.subr.bf16.mxu0 0
        %2333 = vmatpush1.bf16.msra.mxu0 0
        %2334 = vmatprep.subr.bf16.mxu0 0
        %2335 = vmatpush1.bf16.msra.mxu0 %v2306
        %2336 = vmatprep.subr.bf16.mxu0 0
        %2337 = vmatpush1.bf16.msra.mxu0 %v2305
        %2338 = vmatprep.subr.bf16.mxu0 0
        %2339 = vmatpush2.bf16.msra.mxu0 0
        %2340 = vmatprep.subr.bf16.mxu0 0
        %2341 = vmatpush2.bf16.msra.mxu0 0
        %2342 = vmatprep.subr.bf16.mxu0 0
        %2343 = vmatpush2.bf16.msra.mxu0 0
        %2344 = vmatprep.subr.bf16.mxu0 0
        %2345 = vmatpush2.bf16.msra.mxu0 0
        %2346 = vmatprep.subr.bf16.mxu0 0
        %2347 = vmatpush2.bf16.msra.mxu0 0
        %2348 = vmatprep.subr.bf16.mxu0 0
        %2349 = vmatpush2.bf16.msra.mxu0 0
        %2350 = vmatprep.subr.bf16.mxu0 0
        %2351 = vmatpush2.bf16.msra.mxu0 0
        %2352 = vmatprep.subr.bf16.mxu0 0
        %2353 = vmatpush2.bf16.msra.mxu0 0
        %2354 = vmatprep.mubr.bf16.mxu0 0
        %2355 = vmatmul.mubr.bf16.gmra.mxu0 %v2320
        %v2356 = vpop.f32.mrf.mxu0
        %v2357 = vadd.f32 %v2312, %v2356
        %v2358 = vpop.f32.mrf.mxu0
        %v2359 = vpop.f32.mrf.mxu0
        %v2360 = vadd.f32 %v2312, %v2359
        %v2361 = vpop.f32.mrf.mxu0
        %2362 = vdwg.mxu0
        %v2363 = vld [vmem:[%s41] sm:$0xff]
        %v2364 = vld [vmem:[%s41 + $0x8] sm:$0xff]
        %v2365 = vld [vmem:[%s41 + $0x10] sm:$0xff]
        %v2366 = vld [vmem:[%s41 + $0x18] sm:$0xff]
        %v2367 = vpack.c.bf16 %v2364, %v2363
        %v2368 = vpack.c.bf16 %v2366, %v2365
        %v2369 = vld [vmem:[#allocation16] sm:$0x1]
        %v2371 = vlaneseq
        %v2372 = vshrl.u32 %v2371, 7
        %v2373 = vsub.s32 0, %v2372
        %v2374 = vrot.slane %v2369, %v2373
        %2376 = vmatprep.subr.bf16.mxu0 0
        %2377 = vmatpush1.bf16.msra.mxu0 0
        %2378 = vmatprep.subr.bf16.mxu0 0
        %2379 = vmatpush1.bf16.msra.mxu0 0
        %2380 = vmatprep.subr.bf16.mxu0 0
        %2381 = vmatpush1.bf16.msra.mxu0 0
        %2382 = vmatprep.subr.bf16.mxu0 0
        %2383 = vmatpush1.bf16.msra.mxu0 0
        %2384 = vmatprep.subr.bf16.mxu0 0
        %2385 = vmatpush1.bf16.msra.mxu0 0
        %2386 = vmatprep.subr.bf16.mxu0 0
        %2387 = vmatpush1.bf16.msra.mxu0 0
        %2388 = vmatprep.subr.bf16.mxu0 0
        %2389 = vmatpush1.bf16.msra.mxu0 %v2368
        %2390 = vmatprep.subr.bf16.mxu0 0
        %2391 = vmatpush1.bf16.msra.mxu0 %v2367
        %2392 = vmatprep.subr.bf16.mxu0 0
        %2393 = vmatpush2.bf16.msra.mxu0 0
        %2394 = vmatprep.subr.bf16.mxu0 0
        %2395 = vmatpush2.bf16.msra.mxu0 0
        %2396 = vmatprep.subr.bf16.mxu0 0
        %2397 = vmatpush2.bf16.msra.mxu0 0
        %2398 = vmatprep.subr.bf16.mxu0 0
        %2399 = vmatpush2.bf16.msra.mxu0 0
        %2400 = vmatprep.subr.bf16.mxu0 0
        %2401 = vmatpush2.bf16.msra.mxu0 0
        %2402 = vmatprep.subr.bf16.mxu0 0
        %2403 = vmatpush2.bf16.msra.mxu0 0
        %2404 = vmatprep.subr.bf16.mxu0 0
        %2405 = vmatpush2.bf16.msra.mxu0 0
        %2406 = vmatprep.subr.bf16.mxu0 0
        %2407 = vmatpush2.bf16.msra.mxu0 0
        %2408 = vmatprep.mubr.bf16.mxu0 0
        %2409 = vmatmul.mubr.bf16.gmra.mxu0 %v2320
        %v2410 = vpop.f32.mrf.mxu0
        %v2411 = vadd.f32 %v2374, %v2410
        %v2412 = vpop.f32.mrf.mxu0
        %v2413 = vpop.f32.mrf.mxu0
        %v2414 = vadd.f32 %v2374, %v2413
        %v2415 = vpop.f32.mrf.mxu0
        %2416 = vdwg.mxu0
        %v2417 = vld [vmem:[%s45] sm:$0xff]
        %v2418 = vld [vmem:[%s45 + $0x8] sm:$0xff]
        %v2419 = vld [vmem:[%s45 + $0x10] sm:$0xff]
        %v2420 = vld [vmem:[%s45 + $0x18] sm:$0xff]
        %v2421 = vld [vmem:[#allocation18] sm:$0x1]
        %v2422 = vmul.f32 %v2296, 0.35355338
        %v2423 = vpack.c.bf16 %v2422, %v2422
        %v2424 = vpack.c.bf16 %v2360, %v2357
        %v2425 = vpack.c.bf16 %v2414, %v2411
        %v2427 = vsel %vm1630, %v2423, 0
        %v2430 = vsel %vm1630, %v2424, 0
        %2432 = vmatprep.subr.bf16.mxu0 0
        %2433 = vmatpush1.bf16.xpose.msra.mxu0 0
        %2434 = vmatprep.subr.bf16.mxu0 0
        %2435 = vmatpush1.bf16.xpose.msra.mxu0 0
        %2436 = vmatprep.subr.bf16.mxu0 0
        %2437 = vmatpush1.bf16.xpose.msra.mxu0 0
        %2438 = vmatprep.subr.bf16.mxu0 0
        %2439 = vmatpush1.bf16.xpose.msra.mxu0 0
        %2440 = vmatprep.subr.bf16.mxu0 0
        %2441 = vmatpush1.bf16.xpose.msra.mxu0 0
        %2442 = vmatprep.subr.bf16.mxu0 0
        %2443 = vmatpush1.bf16.xpose.msra.mxu0 0
        %2444 = vmatprep.subr.bf16.mxu0 0
        %2445 = vmatpush1.bf16.xpose.msra.mxu0 0
        %2446 = vmatprep.subr.bf16.mxu0 0
        %2447 = vmatpush1.bf16.xpose.msra.mxu0 %v2430
        %2448 = vmatprep.subr.bf16.mxu0 0
        %2449 = vmatpush2.bf16.xpose.msra.mxu0 0
        %2450 = vmatprep.subr.bf16.mxu0 0
        %2451 = vmatpush2.bf16.xpose.msra.mxu0 0
        %2452 = vmatprep.subr.bf16.mxu0 0
        %2453 = vmatpush2.bf16.xpose.msra.mxu0 0
        %2454 = vmatprep.subr.bf16.mxu0 0
        %2455 = vmatpush2.bf16.xpose.msra.mxu0 0
        %2456 = vmatprep.subr.bf16.mxu0 0
        %2457 = vmatpush2.bf16.xpose.msra.mxu0 0
        %2458 = vmatprep.subr.bf16.mxu0 0
        %2459 = vmatpush2.bf16.xpose.msra.mxu0 0
        %2460 = vmatprep.subr.bf16.mxu0 0
        %2461 = vmatpush2.bf16.xpose.msra.mxu0 0
        %2462 = vmatprep.subr.bf16.mxu0 0
        %2463 = vmatpush2.bf16.xpose.msra.mxu0 0
        %2464 = vmatprep.mubr.bf16.mxu0 0
        %2465 = vmatmul.mubr.bf16.gmra.mxu0 %v2427
        %v2466 = vpop.f32.mrf.mxu0
        %v2467 = vadd.f32 0.0, %v2466
        %v2468 = vpop.f32.mrf.mxu0
        %v2469 = vpop.f32.mrf.mxu0
        %v2470 = vpop.f32.mrf.mxu0
        %2471 = vdwg.mxu0
        %v2472 = vsel %vm2082, %v2467, -inf
        %2473 = vmax.xlane.f32.xlu0 %v2472
        %v2474 = vpop.xlane.xlu0 %2473
        %v2475 = vsub.f32 %v2467, %v2474
        %v2476 = vmul.f32 %v2475, 1.442695
        %v2477 = vpow.pop %v2476
        %v2478 = vsel %vm2082, %v2477, 0.0
        %2479 = vadd.xlane.f32.xlu0 %v2478
        %v2480 = vpop.xlane.xlu0 %2479
        %v2481 = vrcp.pop %v2480
        %v2482 = vmul.f32 %v2477, %v2481
        %v2483 = vpack.c.bf16 %v2482, %v2482
        %v2485 = vsel %vm2082, %v2483, 0
        %2487 = vmatprep.subr.bf16.mxu0 0
        %2488 = vmatpush1.bf16.msra.mxu0 0
        %2489 = vmatprep.subr.bf16.mxu0 0
        %2490 = vmatpush1.bf16.msra.mxu0 0
        %2491 = vmatprep.subr.bf16.mxu0 0
        %2492 = vmatpush1.bf16.msra.mxu0 0
        %2493 = vmatprep.subr.bf16.mxu0 0
        %2494 = vmatpush1.bf16.msra.mxu0 0
        %2495 = vmatprep.subr.bf16.mxu0 0
        %2496 = vmatpush1.bf16.msra.mxu0 0
        %2497 = vmatprep.subr.bf16.mxu0 0
        %2498 = vmatpush1.bf16.msra.mxu0 0
        %2499 = vmatprep.subr.bf16.mxu0 0
        %2500 = vmatpush1.bf16.msra.mxu0 0
        %2501 = vmatprep.subr.bf16.mxu0 0
        %2502 = vmatpush1.bf16.msra.mxu0 %v2425
        %2503 = vmatprep.subr.bf16.mxu0 0
        %2504 = vmatpush2.bf16.msra.mxu0 0
        %2505 = vmatprep.subr.bf16.mxu0 0
        %2506 = vmatpush2.bf16.msra.mxu0 0
        %2507 = vmatprep.subr.bf16.mxu0 0
        %2508 = vmatpush2.bf16.msra.mxu0 0
        %2509 = vmatprep.subr.bf16.mxu0 0
        %2510 = vmatpush2.bf16.msra.mxu0 0
        %2511 = vmatprep.subr.bf16.mxu0 0
        %2512 = vmatpush2.bf16.msra.mxu0 0
        %2513 = vmatprep.subr.bf16.mxu0 0
        %2514 = vmatpush2.bf16.msra.mxu0 0
        %2515 = vmatprep.subr.bf16.mxu0 0
        %2516 = vmatpush2.bf16.msra.mxu0 0
        %2517 = vmatprep.subr.bf16.mxu0 0
        %2518 = vmatpush2.bf16.msra.mxu0 0
        %2519 = vmatprep.mubr.bf16.mxu0 0
        %2520 = vmatmul.mubr.bf16.gmra.mxu0 %v2485
        %v2521 = vpop.f32.mrf.mxu0
        %v2522 = vadd.f32 0.0, %v2521
        %v2523 = vpop.f32.mrf.mxu0
        %v2524 = vpop.f32.mrf.mxu0
        %v2525 = vpop.f32.mrf.mxu0
        %2526 = vdwg.mxu0
        %2528 = vrot.lane.b32.xlu0 %v2423, 120
        %v2529 = vpop.permute.xlu0 %2528
        %2531 = vrot.lane.b32.xlu0 %v2424, 120
        %v2532 = vpop.permute.xlu0 %2531
        %v2534 = vsel %vm1630, %v2529, 0
        %v2537 = vsel %vm1630, %v2532, 0
        %2539 = vmatprep.subr.bf16.mxu0 0
        %2540 = vmatpush1.bf16.xpose.msra.mxu0 0
        %2541 = vmatprep.subr.bf16.mxu0 0
        %2542 = vmatpush1.bf16.xpose.msra.mxu0 0
        %2543 = vmatprep.subr.bf16.mxu0 0
        %2544 = vmatpush1.bf16.xpose.msra.mxu0 0
        %2545 = vmatprep.subr.bf16.mxu0 0
        %2546 = vmatpush1.bf16.xpose.msra.mxu0 0
        %2547 = vmatprep.subr.bf16.mxu0 0
        %2548 = vmatpush1.bf16.xpose.msra.mxu0 0
        %2549 = vmatprep.subr.bf16.mxu0 0
        %2550 = vmatpush1.bf16.xpose.msra.mxu0 0
        %2551 = vmatprep.subr.bf16.mxu0 0
        %2552 = vmatpush1.bf16.xpose.msra.mxu0 0
        %2553 = vmatprep.subr.bf16.mxu0 0
        %2554 = vmatpush1.bf16.xpose.msra.mxu0 %v2537
        %2555 = vmatprep.subr.bf16.mxu0 0
        %2556 = vmatpush2.bf16.xpose.msra.mxu0 0
        %2557 = vmatprep.subr.bf16.mxu0 0
        %2558 = vmatpush2.bf16.xpose.msra.mxu0 0
        %2559 = vmatprep.subr.bf16.mxu0 0
        %2560 = vmatpush2.bf16.xpose.msra.mxu0 0
        %2561 = vmatprep.subr.bf16.mxu0 0
        %2562 = vmatpush2.bf16.xpose.msra.mxu0 0
        %2563 = vmatprep.subr.bf16.mxu0 0
        %2564 = vmatpush2.bf16.xpose.msra.mxu0 0
        %2565 = vmatprep.subr.bf16.mxu0 0
        %2566 = vmatpush2.bf16.xpose.msra.mxu0 0
        %2567 = vmatprep.subr.bf16.mxu0 0
        %2568 = vmatpush2.bf16.xpose.msra.mxu0 0
        %2569 = vmatprep.subr.bf16.mxu0 0
        %2570 = vmatpush2.bf16.xpose.msra.mxu0 0
        %2571 = vmatprep.mubr.bf16.mxu0 0
        %2572 = vmatmul.mubr.bf16.gmra.mxu0 %v2534
        %v2573 = vpop.f32.mrf.mxu0
        %v2574 = vadd.f32 0.0, %v2573
        %v2575 = vpop.f32.mrf.mxu0
        %v2576 = vpop.f32.mrf.mxu0
        %v2577 = vpop.f32.mrf.mxu0
        %2578 = vdwg.mxu0
        %v2579 = vsel %vm2082, %v2574, -inf
        %2580 = vmax.xlane.f32.xlu0 %v2579
        %v2581 = vpop.xlane.xlu0 %2580
        %v2582 = vsub.f32 %v2574, %v2581
        %v2583 = vmul.f32 %v2582, 1.442695
        %v2584 = vpow.pop %v2583
        %v2585 = vsel %vm2082, %v2584, 0.0
        %2586 = vadd.xlane.f32.xlu0 %v2585
        %v2587 = vpop.xlane.xlu0 %2586
        %v2588 = vrcp.pop %v2587
        %v2589 = vmul.f32 %v2584, %v2588
        %v2590 = vpack.c.bf16 %v2589, %v2589
        %2592 = vrot.lane.b32.xlu0 %v2425, 120
        %v2593 = vpop.permute.xlu0 %2592
        %v2596 = vsel %vm2082, %v2590, 0
        %2598 = vmatprep.subr.bf16.mxu0 0
        %2599 = vmatpush1.bf16.msra.mxu0 0
        %2600 = vmatprep.subr.bf16.mxu0 0
        %2601 = vmatpush1.bf16.msra.mxu0 0
        %2602 = vmatprep.subr.bf16.mxu0 0
        %2603 = vmatpush1.bf16.msra.mxu0 0
        %2604 = vmatprep.subr.bf16.mxu0 0
        %2605 = vmatpush1.bf16.msra.mxu0 0
        %2606 = vmatprep.subr.bf16.mxu0 0
        %2607 = vmatpush1.bf16.msra.mxu0 0
        %2608 = vmatprep.subr.bf16.mxu0 0
        %2609 = vmatpush1.bf16.msra.mxu0 0
        %2610 = vmatprep.subr.bf16.mxu0 0
        %2611 = vmatpush1.bf16.msra.mxu0 0
        %2612 = vmatprep.subr.bf16.mxu0 0
        %2613 = vmatpush1.bf16.msra.mxu0 %v2593
        %2614 = vmatprep.subr.bf16.mxu0 0
        %2615 = vmatpush2.bf16.msra.mxu0 0
        %2616 = vmatprep.subr.bf16.mxu0 0
        %2617 = vmatpush2.bf16.msra.mxu0 0
        %2618 = vmatprep.subr.bf16.mxu0 0
        %2619 = vmatpush2.bf16.msra.mxu0 0
        %2620 = vmatprep.subr.bf16.mxu0 0
        %2621 = vmatpush2.bf16.msra.mxu0 0
        %2622 = vmatprep.subr.bf16.mxu0 0
        %2623 = vmatpush2.bf16.msra.mxu0 0
        %2624 = vmatprep.subr.bf16.mxu0 0
        %2625 = vmatpush2.bf16.msra.mxu0 0
        %2626 = vmatprep.subr.bf16.mxu0 0
        %2627 = vmatpush2.bf16.msra.mxu0 0
        %2628 = vmatprep.subr.bf16.mxu0 0
        %2629 = vmatpush2.bf16.msra.mxu0 0
        %2630 = vmatprep.mubr.bf16.mxu0 0
        %2631 = vmatmul.mubr.bf16.gmra.mxu0 %v2596
        %v2632 = vpop.f32.mrf.mxu0
        %v2633 = vadd.f32 0.0, %v2632
        %v2634 = vpop.f32.mrf.mxu0
        %v2635 = vpop.f32.mrf.mxu0
        %v2636 = vpop.f32.mrf.mxu0
        %2637 = vdwg.mxu0
        %2638 = vrot.lane.b32.xlu0 %v2423, 112
        %v2639 = vpop.permute.xlu0 %2638
        %2640 = vrot.lane.b32.xlu0 %v2424, 112
        %v2641 = vpop.permute.xlu0 %2640
        %v2643 = vsel %vm1630, %v2639, 0
        %v2646 = vsel %vm1630, %v2641, 0
        %2648 = vmatprep.subr.bf16.mxu0 0
        %2649 = vmatpush1.bf16.xpose.msra.mxu0 0
        %2650 = vmatprep.subr.bf16.mxu0 0
        %2651 = vmatpush1.bf16.xpose.msra.mxu0 0
        %2652 = vmatprep.subr.bf16.mxu0 0
        %2653 = vmatpush1.bf16.xpose.msra.mxu0 0
        %2654 = vmatprep.subr.bf16.mxu0 0
        %2655 = vmatpush1.bf16.xpose.msra.mxu0 0
        %2656 = vmatprep.subr.bf16.mxu0 0
        %2657 = vmatpush1.bf16.xpose.msra.mxu0 0
        %2658 = vmatprep.subr.bf16.mxu0 0
        %2659 = vmatpush1.bf16.xpose.msra.mxu0 0
        %2660 = vmatprep.subr.bf16.mxu0 0
        %2661 = vmatpush1.bf16.xpose.msra.mxu0 0
        %2662 = vmatprep.subr.bf16.mxu0 0
        %2663 = vmatpush1.bf16.xpose.msra.mxu0 %v2646
        %2664 = vmatprep.subr.bf16.mxu0 0
        %2665 = vmatpush2.bf16.xpose.msra.mxu0 0
        %2666 = vmatprep.subr.bf16.mxu0 0
        %2667 = vmatpush2.bf16.xpose.msra.mxu0 0
        %2668 = vmatprep.subr.bf16.mxu0 0
        %2669 = vmatpush2.bf16.xpose.msra.mxu0 0
        %2670 = vmatprep.subr.bf16.mxu0 0
        %2671 = vmatpush2.bf16.xpose.msra.mxu0 0
        %2672 = vmatprep.subr.bf16.mxu0 0
        %2673 = vmatpush2.bf16.xpose.msra.mxu0 0
        %2674 = vmatprep.subr.bf16.mxu0 0
        %2675 = vmatpush2.bf16.xpose.msra.mxu0 0
        %2676 = vmatprep.subr.bf16.mxu0 0
        %2677 = vmatpush2.bf16.xpose.msra.mxu0 0
        %2678 = vmatprep.subr.bf16.mxu0 0
        %2679 = vmatpush2.bf16.xpose.msra.mxu0 0
        %2680 = vmatprep.mubr.bf16.mxu0 0
        %2681 = vmatmul.mubr.bf16.gmra.mxu0 %v2643
        %v2682 = vpop.f32.mrf.mxu0
        %v2683 = vadd.f32 0.0, %v2682
        %v2684 = vpop.f32.mrf.mxu0
        %v2685 = vpop.f32.mrf.mxu0
        %v2686 = vpop.f32.mrf.mxu0
        %2687 = vdwg.mxu0
        %v2688 = vsel %vm2082, %v2683, -inf
        %2689 = vmax.xlane.f32.xlu0 %v2688
        %v2690 = vpop.xlane.xlu0 %2689
        %v2691 = vsub.f32 %v2683, %v2690
        %v2692 = vmul.f32 %v2691, 1.442695
        %v2693 = vpow.pop %v2692
        %v2694 = vsel %vm2082, %v2693, 0.0
        %2695 = vadd.xlane.f32.xlu0 %v2694
        %v2696 = vpop.xlane.xlu0 %2695
        %v2697 = vrcp.pop %v2696
        %v2698 = vmul.f32 %v2693, %v2697
        %v2699 = vpack.c.bf16 %v2698, %v2698
        %2700 = vrot.lane.b32.xlu0 %v2425, 112
        %v2701 = vpop.permute.xlu0 %2700
        %v2704 = vsel %vm2082, %v2699, 0
        %2706 = vmatprep.subr.bf16.mxu0 0
        %2707 = vmatpush1.bf16.msra.mxu0 0
        %2708 = vmatprep.subr.bf16.mxu0 0
        %2709 = vmatpush1.bf16.msra.mxu0 0
        %2710 = vmatprep.subr.bf16.mxu0 0
        %2711 = vmatpush1.bf16.msra.mxu0 0
        %2712 = vmatprep.subr.bf16.mxu0 0
        %2713 = vmatpush1.bf16.msra.mxu0 0
        %2714 = vmatprep.subr.bf16.mxu0 0
        %2715 = vmatpush1.bf16.msra.mxu0 0
        %2716 = vmatprep.subr.bf16.mxu0 0
        %2717 = vmatpush1.bf16.msra.mxu0 0
        %2718 = vmatprep.subr.bf16.mxu0 0
        %2719 = vmatpush1.bf16.msra.mxu0 0
        %2720 = vmatprep.subr.bf16.mxu0 0
        %2721 = vmatpush1.bf16.msra.mxu0 %v2701
        %2722 = vmatprep.subr.bf16.mxu0 0
        %2723 = vmatpush2.bf16.msra.mxu0 0
        %2724 = vmatprep.subr.bf16.mxu0 0
        %2725 = vmatpush2.bf16.msra.mxu0 0
        %2726 = vmatprep.subr.bf16.mxu0 0
        %2727 = vmatpush2.bf16.msra.mxu0 0
        %2728 = vmatprep.subr.bf16.mxu0 0
        %2729 = vmatpush2.bf16.msra.mxu0 0
        %2730 = vmatprep.subr.bf16.mxu0 0
        %2731 = vmatpush2.bf16.msra.mxu0 0
        %2732 = vmatprep.subr.bf16.mxu0 0
        %2733 = vmatpush2.bf16.msra.mxu0 0
        %2734 = vmatprep.subr.bf16.mxu0 0
        %2735 = vmatpush2.bf16.msra.mxu0 0
        %2736 = vmatprep.subr.bf16.mxu0 0
        %2737 = vmatpush2.bf16.msra.mxu0 0
        %2738 = vmatprep.mubr.bf16.mxu0 0
        %2739 = vmatmul.mubr.bf16.gmra.mxu0 %v2704
        %v2740 = vpop.f32.mrf.mxu0
        %v2741 = vadd.f32 0.0, %v2740
        %v2742 = vpop.f32.mrf.mxu0
        %v2743 = vpop.f32.mrf.mxu0
        %v2744 = vpop.f32.mrf.mxu0
        %2745 = vdwg.mxu0
        %2746 = vrot.lane.b32.xlu0 %v2423, 104
        %v2747 = vpop.permute.xlu0 %2746
        %2748 = vrot.lane.b32.xlu0 %v2424, 104
        %v2749 = vpop.permute.xlu0 %2748
        %v2751 = vsel %vm1630, %v2747, 0
        %v2754 = vsel %vm1630, %v2749, 0
        %2756 = vmatprep.subr.bf16.mxu0 0
        %2757 = vmatpush1.bf16.xpose.msra.mxu0 0
        %2758 = vmatprep.subr.bf16.mxu0 0
        %2759 = vmatpush1.bf16.xpose.msra.mxu0 0
        %2760 = vmatprep.subr.bf16.mxu0 0
        %2761 = vmatpush1.bf16.xpose.msra.mxu0 0
        %2762 = vmatprep.subr.bf16.mxu0 0
        %2763 = vmatpush1.bf16.xpose.msra.mxu0 0
        %2764 = vmatprep.subr.bf16.mxu0 0
        %2765 = vmatpush1.bf16.xpose.msra.mxu0 0
        %2766 = vmatprep.subr.bf16.mxu0 0
        %2767 = vmatpush1.bf16.xpose.msra.mxu0 0
        %2768 = vmatprep.subr.bf16.mxu0 0
        %2769 = vmatpush1.bf16.xpose.msra.mxu0 0
        %2770 = vmatprep.subr.bf16.mxu0 0
        %2771 = vmatpush1.bf16.xpose.msra.mxu0 %v2754
        %2772 = vmatprep.subr.bf16.mxu0 0
        %2773 = vmatpush2.bf16.xpose.msra.mxu0 0
        %2774 = vmatprep.subr.bf16.mxu0 0
        %2775 = vmatpush2.bf16.xpose.msra.mxu0 0
        %2776 = vmatprep.subr.bf16.mxu0 0
        %2777 = vmatpush2.bf16.xpose.msra.mxu0 0
        %2778 = vmatprep.subr.bf16.mxu0 0
        %2779 = vmatpush2.bf16.xpose.msra.mxu0 0
        %2780 = vmatprep.subr.bf16.mxu0 0
        %2781 = vmatpush2.bf16.xpose.msra.mxu0 0
        %2782 = vmatprep.subr.bf16.mxu0 0
        %2783 = vmatpush2.bf16.xpose.msra.mxu0 0
        %2784 = vmatprep.subr.bf16.mxu0 0
        %2785 = vmatpush2.bf16.xpose.msra.mxu0 0
        %2786 = vmatprep.subr.bf16.mxu0 0
        %2787 = vmatpush2.bf16.xpose.msra.mxu0 0
        %2788 = vmatprep.mubr.bf16.mxu0 0
        %2789 = vmatmul.mubr.bf16.gmra.mxu0 %v2751
        %v2790 = vpop.f32.mrf.mxu0
        %v2791 = vadd.f32 0.0, %v2790
        %v2792 = vpop.f32.mrf.mxu0
        %v2793 = vpop.f32.mrf.mxu0
        %v2794 = vpop.f32.mrf.mxu0
        %2795 = vdwg.mxu0
        %v2796 = vsel %vm2082, %v2791, -inf
        %2797 = vmax.xlane.f32.xlu0 %v2796
        %v2798 = vpop.xlane.xlu0 %2797
        %v2799 = vsub.f32 %v2791, %v2798
        %v2800 = vmul.f32 %v2799, 1.442695
        %v2801 = vpow.pop %v2800
        %v2802 = vsel %vm2082, %v2801, 0.0
        %2803 = vadd.xlane.f32.xlu0 %v2802
        %v2804 = vpop.xlane.xlu0 %2803
        %v2805 = vrcp.pop %v2804
        %v2806 = vmul.f32 %v2801, %v2805
        %v2807 = vpack.c.bf16 %v2806, %v2806
        %2808 = vrot.lane.b32.xlu0 %v2425, 104
        %v2809 = vpop.permute.xlu0 %2808
        %v2812 = vsel %vm2082, %v2807, 0
        %2814 = vmatprep.subr.bf16.mxu0 0
        %2815 = vmatpush1.bf16.msra.mxu0 0
        %2816 = vmatprep.subr.bf16.mxu0 0
        %2817 = vmatpush1.bf16.msra.mxu0 0
        %2818 = vmatprep.subr.bf16.mxu0 0
        %2819 = vmatpush1.bf16.msra.mxu0 0
        %2820 = vmatprep.subr.bf16.mxu0 0
        %2821 = vmatpush1.bf16.msra.mxu0 0
        %2822 = vmatprep.subr.bf16.mxu0 0
        %2823 = vmatpush1.bf16.msra.mxu0 0
        %2824 = vmatprep.subr.bf16.mxu0 0
        %2825 = vmatpush1.bf16.msra.mxu0 0
        %2826 = vmatprep.subr.bf16.mxu0 0
        %2827 = vmatpush1.bf16.msra.mxu0 0
        %2828 = vmatprep.subr.bf16.mxu0 0
        %2829 = vmatpush1.bf16.msra.mxu0 %v2809
        %2830 = vmatprep.subr.bf16.mxu0 0
        %2831 = vmatpush2.bf16.msra.mxu0 0
        %2832 = vmatprep.subr.bf16.mxu0 0
        %2833 = vmatpush2.bf16.msra.mxu0 0
        %2834 = vmatprep.subr.bf16.mxu0 0
        %2835 = vmatpush2.bf16.msra.mxu0 0
        %2836 = vmatprep.subr.bf16.mxu0 0
        %2837 = vmatpush2.bf16.msra.mxu0 0
        %2838 = vmatprep.subr.bf16.mxu0 0
        %2839 = vmatpush2.bf16.msra.mxu0 0
        %2840 = vmatprep.subr.bf16.mxu0 0
        %2841 = vmatpush2.bf16.msra.mxu0 0
        %2842 = vmatprep.subr.bf16.mxu0 0
        %2843 = vmatpush2.bf16.msra.mxu0 0
        %2844 = vmatprep.subr.bf16.mxu0 0
        %2845 = vmatpush2.bf16.msra.mxu0 0
        %2846 = vmatprep.mubr.bf16.mxu0 0
        %2847 = vmatmul.mubr.bf16.gmra.mxu0 %v2812
        %v2848 = vpop.f32.mrf.mxu0
        %v2849 = vadd.f32 0.0, %v2848
        %v2850 = vpop.f32.mrf.mxu0
        %v2851 = vpop.f32.mrf.mxu0
        %v2852 = vpop.f32.mrf.mxu0
        %2853 = vdwg.mxu0
        %2855 = vrot.lane.b32.xlu0 %v2633, 8
        %v2856 = vpop.permute.xlu0 %2855
        %2859 = vrot.lane.b32.xlu0 %v2741, 16
        %v2860 = vpop.permute.xlu0 %2859
        %2863 = vrot.lane.b32.xlu0 %v2849, 24
        %v2864 = vpop.permute.xlu0 %2863
        %v2866 = vsel %vm1630, %v2522, %v2856
        %v2867 = vsel %vm2082, %v2866, %v2860
        %v2868 = vsel %vm2084, %v2867, %v2864
        %v2869 = vpack.c.bf16 %v2868, %v2868
        %v2870 = vpack.c.bf16 %v2418, %v2417
        %v2871 = vpack.c.bf16 %v2420, %v2419
        %v2873 = vlaneseq
        %v2874 = vshrl.u32 %v2873, 7
        %v2875 = vsub.s32 0, %v2874
        %v2876 = vrot.slane %v2421, %v2875
        %v2879 = vsel %vm1468, %v2869, 0
        %2881 = vmatprep.subr.bf16.mxu0 0
        %2882 = vmatpush1.bf16.msra.mxu0 0
        %2883 = vmatprep.subr.bf16.mxu0 0
        %2884 = vmatpush1.bf16.msra.mxu0 0
        %2885 = vmatprep.subr.bf16.mxu0 0
        %2886 = vmatpush1.bf16.msra.mxu0 0
        %2887 = vmatprep.subr.bf16.mxu0 0
        %2888 = vmatpush1.bf16.msra.mxu0 0
        %2889 = vmatprep.subr.bf16.mxu0 0
        %2890 = vmatpush1.bf16.msra.mxu0 0
        %2891 = vmatprep.subr.bf16.mxu0 0
        %2892 = vmatpush1.bf16.msra.mxu0 0
        %2893 = vmatprep.subr.bf16.mxu0 0
        %2894 = vmatpush1.bf16.msra.mxu0 %v2871
        %2895 = vmatprep.subr.bf16.mxu0 0
        %2896 = vmatpush1.bf16.msra.mxu0 %v2870
        %2897 = vmatprep.subr.bf16.mxu0 0
        %2898 = vmatpush2.bf16.msra.mxu0 0
        %2899 = vmatprep.subr.bf16.mxu0 0
        %2900 = vmatpush2.bf16.msra.mxu0 0
        %2901 = vmatprep.subr.bf16.mxu0 0
        %2902 = vmatpush2.bf16.msra.mxu0 0
        %2903 = vmatprep.subr.bf16.mxu0 0
        %2904 = vmatpush2.bf16.msra.mxu0 0
        %2905 = vmatprep.subr.bf16.mxu0 0
        %2906 = vmatpush2.bf16.msra.mxu0 0
        %2907 = vmatprep.subr.bf16.mxu0 0
        %2908 = vmatpush2.bf16.msra.mxu0 0
        %2909 = vmatprep.subr.bf16.mxu0 0
        %2910 = vmatpush2.bf16.msra.mxu0 0
        %2911 = vmatprep.subr.bf16.mxu0 0
        %2912 = vmatpush2.bf16.msra.mxu0 0
        %2913 = vmatprep.mubr.bf16.mxu0 0
        %2914 = vmatmul.mubr.bf16.gmra.mxu0 %v2879
        %v2915 = vpop.f32.mrf.mxu0
        %v2916 = vadd.f32 %v2876, %v2915
        %v2917 = vpop.f32.mrf.mxu0
        %v2918 = vpop.f32.mrf.mxu0
        %v2919 = vpop.f32.mrf.mxu0
        %2920 = vdwg.mxu0
        %v2921 = vadd.f32 %v2168, %v2916
        %v2922 = vld [vmem:[#allocation19] sm:$0x1]
        %v2923 = vld [vmem:[#allocation21] sm:$0x1]
        %v2924 = vsel %vm1468, %v2921, 0.0
        %2925 = vadd.xlane.f32.xlu0 %v2924
        %v2926 = vpop.xlane.xlu0 %2925
        %v2927 = vmul.f32 %v2926, %v2144
        %v2928 = vsub.f32 %v2921, %v2927
        %v2929 = vmul.f32 %v2928, %v2928
        %v2930 = vsel %vm1468, %v2929, 0.0
        %2931 = vadd.xlane.f32.xlu0 %v2930
        %v2932 = vpop.xlane.xlu0 %2931
        %v2933 = vmul.f32 %v2932, %v2144
        %v2934 = vadd.f32 %v2933, 1e-05
        %v2935 = vrsqrt.pop %v2934
        %v2936 = vmul.f32 %v2928, %v2935
        %v2938 = vlaneseq
        %v2939 = vshrl.u32 %v2938, 7
        %v2940 = vsub.s32 0, %v2939
        %v2941 = vrot.slane %v2922, %v2940
        %v2943 = vmul.f32 %v2936, %v2941
        %v2945 = vlaneseq
        %v2946 = vshrl.u32 %v2945, 7
        %v2947 = vsub.s32 0, %v2946
        %v2948 = vrot.slane %v2923, %v2947
        %v2950 = vadd.f32 %v2943, %v2948
        %v2951 = vld [vmem:[%s53] sm:$0xff]
        %v2952 = vld [vmem:[%s53 + $0x8] sm:$0xff]
        %v2953 = vld [vmem:[%s53 + $0x10] sm:$0xff]
        %v2954 = vld [vmem:[%s53 + $0x18] sm:$0xff]
        %v2955 = vpack.c.bf16 %v2950, %v2950
        %v2956 = vpack.c.bf16 %v2952, %v2951
        %v2957 = vpack.c.bf16 %v2954, %v2953
        %v2958 = vld [vmem:[#allocation22] sm:$0x1]
        %v2960 = vlaneseq
        %v2961 = vshrl.u32 %v2960, 7
        %v2962 = vsub.s32 0, %v2961
        %v2963 = vrot.slane %v2958, %v2962
        %v2966 = vsel %vm1468, %v2955, 0
        %2968 = vmatprep.subr.bf16.mxu0 0
        %2969 = vmatpush1.bf16.msra.mxu0 0
        %2970 = vmatprep.subr.bf16.mxu0 0
        %2971 = vmatpush1.bf16.msra.mxu0 0
        %2972 = vmatprep.subr.bf16.mxu0 0
        %2973 = vmatpush1.bf16.msra.mxu0 0
        %2974 = vmatprep.subr.bf16.mxu0 0
        %2975 = vmatpush1.bf16.msra.mxu0 0
        %2976 = vmatprep.subr.bf16.mxu0 0
        %2977 = vmatpush1.bf16.msra.mxu0 0
        %2978 = vmatprep.subr.bf16.mxu0 0
        %2979 = vmatpush1.bf16.msra.mxu0 0
        %2980 = vmatprep.subr.bf16.mxu0 0
        %2981 = vmatpush1.bf16.msra.mxu0 %v2957
        %2982 = vmatprep.subr.bf16.mxu0 0
        %2983 = vmatpush1.bf16.msra.mxu0 %v2956
        %2984 = vmatprep.subr.bf16.mxu0 0
        %2985 = vmatpush2.bf16.msra.mxu0 0
        %2986 = vmatprep.subr.bf16.mxu0 0
        %2987 = vmatpush2.bf16.msra.mxu0 0
        %2988 = vmatprep.subr.bf16.mxu0 0
        %2989 = vmatpush2.bf16.msra.mxu0 0
        %2990 = vmatprep.subr.bf16.mxu0 0
        %2991 = vmatpush2.bf16.msra.mxu0 0
        %2992 = vmatprep.subr.bf16.mxu0 0
        %2993 = vmatpush2.bf16.msra.mxu0 0
        %2994 = vmatprep.subr.bf16.mxu0 0
        %2995 = vmatpush2.bf16.msra.mxu0 0
        %2996 = vmatprep.subr.bf16.mxu0 0
        %2997 = vmatpush2.bf16.msra.mxu0 0
        %2998 = vmatprep.subr.bf16.mxu0 0
        %2999 = vmatpush2.bf16.msra.mxu0 0
        %3000 = vmatprep.mubr.bf16.mxu0 0
        %3001 = vmatmul.mubr.bf16.gmra.mxu0 %v2966
        %v3002 = vpop.f32.mrf.mxu0
        %v3003 = vadd.f32 %v2963, %v3002
        %v3004 = vpop.f32.mrf.mxu0
        %v3005 = vpop.f32.mrf.mxu0
        %v3006 = vpop.f32.mrf.mxu0
        %3007 = vdwg.mxu0
        %v3008 = vmax.f32 %v3003, 0.0
        %v3009 = vld [vmem:[%s57] sm:$0xff]
        %v3010 = vld [vmem:[%s57 + $0x8] sm:$0xff]
        %v3011 = vld [vmem:[%s57 + $0x10] sm:$0xff]
        %v3012 = vld [vmem:[%s57 + $0x18] sm:$0xff]
        %v3013 = vld [vmem:[%s57 + $0x20] sm:$0xff]
        %v3014 = vld [vmem:[%s57 + $0x28] sm:$0xff]
        %v3015 = vld [vmem:[%s57 + $0x30] sm:$0xff]
        %v3016 = vld [vmem:[%s57 + $0x38] sm:$0xff]
        %v3017 = vpack.c.bf16 %v3008, %v3008
        %v3018 = vpack.c.bf16 %v3010, %v3009
        %v3019 = vpack.c.bf16 %v3012, %v3011
        %v3020 = vpack.c.bf16 %v3014, %v3013
        %v3021 = vpack.c.bf16 %v3016, %v3015
        %v3022 = vld [vmem:[#allocation24] sm:$0x1]
        %v3024 = vlaneseq
        %v3025 = vshrl.u32 %v3024, 7
        %v3026 = vsub.s32 0, %v3025
        %v3027 = vrot.slane %v3022, %v3026
        %vm3029 = vcmask 523264
        %v3031 = vsel %vm3029, %v3017, 0
        %3033 = vmatprep.subr.bf16.mxu0 0
        %3034 = vmatpush1.bf16.msra.mxu0 0
        %3035 = vmatprep.subr.bf16.mxu0 0
        %3036 = vmatpush1.bf16.msra.mxu0 0
        %3037 = vmatprep.subr.bf16.mxu0 0
        %3038 = vmatpush1.bf16.msra.mxu0 0
        %3039 = vmatprep.subr.bf16.mxu0 0
        %3040 = vmatpush1.bf16.msra.mxu0 0
        %3041 = vmatprep.subr.bf16.mxu0 0
        %3042 = vmatpush1.bf16.msra.mxu0 %v3021
        %3043 = vmatprep.subr.bf16.mxu0 0
        %3044 = vmatpush1.bf16.msra.mxu0 %v3020
        %3045 = vmatprep.subr.bf16.mxu0 0
        %3046 = vmatpush1.bf16.msra.mxu0 %v3019
        %3047 = vmatprep.subr.bf16.mxu0 0
        %3048 = vmatpush1.bf16.msra.mxu0 %v3018
        %3049 = vmatprep.subr.bf16.mxu0 0
        %3050 = vmatpush2.bf16.msra.mxu0 0
        %3051 = vmatprep.subr.bf16.mxu0 0
        %3052 = vmatpush2.bf16.msra.mxu0 0
        %3053 = vmatprep.subr.bf16.mxu0 0
        %3054 = vmatpush2.bf16.msra.mxu0 0
        %3055 = vmatprep.subr.bf16.mxu0 0
        %3056 = vmatpush2.bf16.msra.mxu0 0
        %3057 = vmatprep.subr.bf16.mxu0 0
        %3058 = vmatpush2.bf16.msra.mxu0 0
        %3059 = vmatprep.subr.bf16.mxu0 0
        %3060 = vmatpush2.bf16.msra.mxu0 0
        %3061 = vmatprep.subr.bf16.mxu0 0
        %3062 = vmatpush2.bf16.msra.mxu0 0
        %3063 = vmatprep.subr.bf16.mxu0 0
        %3064 = vmatpush2.bf16.msra.mxu0 0
        %3065 = vmatprep.mubr.bf16.mxu0 0
        %3066 = vmatmul.mubr.bf16.gmra.mxu0 %v3031
        %v3067 = vpop.f32.mrf.mxu0
        %v3068 = vadd.f32 %v3027, %v3067
        %v3069 = vpop.f32.mrf.mxu0
        %v3070 = vpop.f32.mrf.mxu0
        %v3071 = vpop.f32.mrf.mxu0
        %3072 = vdwg.mxu0
        %v3073 = vadd.f32 %v2950, %v3068
        %v3074 = vld [vmem:[#allocation25] sm:$0x1]
        %v3075 = vld [vmem:[#allocation27] sm:$0x1]
        %v3076 = vsel %vm1468, %v3073, 0.0
        %3077 = vadd.xlane.f32.xlu0 %v3076
        %v3078 = vpop.xlane.xlu0 %3077
        %v3079 = vmul.f32 %v3078, %v2144
        %v3080 = vsub.f32 %v3073, %v3079
        %v3081 = vmul.f32 %v3080, %v3080
        %v3082 = vsel %vm1468, %v3081, 0.0
        %3083 = vadd.xlane.f32.xlu0 %v3082
        %v3084 = vpop.xlane.xlu0 %3083
        %v3085 = vmul.f32 %v3084, %v2144
        %v3086 = vadd.f32 %v3085, 1e-05
        %v3087 = vrsqrt.pop %v3086
        %v3088 = vmul.f32 %v3080, %v3087
        %v3090 = vlaneseq
        %v3091 = vshrl.u32 %v3090, 7
        %v3092 = vsub.s32 0, %v3091
        %v3093 = vrot.slane %v3074, %v3092
        %v3095 = vmul.f32 %v3088, %v3093
        %v3097 = vlaneseq
        %v3098 = vshrl.u32 %v3097, 7
        %v3099 = vsub.s32 0, %v3098
        %v3100 = vrot.slane %v3075, %v3099
        %v3102 = vadd.f32 %v3095, %v3100
        %v3103 = vpack.c.bf16 %v3102, %v3102
        %vm3104 = vcmask 257024
        %3105 = vst.msk [vmem:[%s1436] sm:$0xf] %vm3104, %v3103
        %v3106 = vld [vmem:[%s65] sm:$0xff]
        %v3107 = vld [vmem:[%s65 + $0x8] sm:$0xff]
        %v3108 = vld [vmem:[%s65 + $0x10] sm:$0xff]
        %v3109 = vld [vmem:[%s65 + $0x18] sm:$0xff]
        %v3110 = vld [vmem:[%s67] sm:$0x1]
        %v3112 = vlaneseq
        %v3113 = vshrl.u32 %v3112, 7
        %v3114 = vsub.s32 0, %v3113
        %v3115 = vrot.slane %v3110, %v3114
        %v3118 = vsel %vm1468, %v3102, 0
        %3120 = vmatprep.subr.mxu0 0.0
        %3121 = vmatpush1.msra.mxu0 0.0
        %3122 = vmatprep.subr.mxu0 0.0
        %3123 = vmatpush1.msra.mxu0 0.0
        %3124 = vmatprep.subr.mxu0 0.0
        %3125 = vmatpush1.msra.mxu0 0.0
        %3126 = vmatprep.subr.mxu0 0.0
        %3127 = vmatpush1.msra.mxu0 0.0
        %3128 = vmatprep.subr.mxu0 0.0
        %3129 = vmatpush1.msra.mxu0 0.0
        %3130 = vmatprep.subr.mxu0 0.0
        %3131 = vmatpush1.msra.mxu0 0.0
        %3132 = vmatprep.subr.mxu0 0.0
        %3133 = vmatpush1.msra.mxu0 0.0
        %3134 = vmatprep.subr.mxu0 0.0
        %3135 = vmatpush1.msra.mxu0 0.0
        %3136 = vmatprep.subr.mxu0 0.0
        %3137 = vmatpush1.msra.mxu0 0.0
        %3138 = vmatprep.subr.mxu0 0.0
        %3139 = vmatpush1.msra.mxu0 0.0
        %3140 = vmatprep.subr.mxu0 0.0
        %3141 = vmatpush1.msra.mxu0 0.0
        %3142 = vmatprep.subr.mxu0 0.0
        %3143 = vmatpush1.msra.mxu0 0.0
        %3144 = vmatprep.subr.mxu0 0.0
        %3145 = vmatpush1.msra.mxu0 %v3109
        %3146 = vmatprep.subr.mxu0 0.0
        %3147 = vmatpush1.msra.mxu0 %v3108
        %3148 = vmatprep.subr.mxu0 0.0
        %3149 = vmatpush1.msra.mxu0 %v3107
        %3150 = vmatprep.subr.mxu0 0.0
        %3151 = vmatpush1.msra.mxu0 %v3106
        %3152 = vmatprep.subr.mxu0 0.0
        %3153 = vmatpush2.msra.mxu0 0.0
        %3154 = vmatprep.subr.mxu0 0.0
        %3155 = vmatpush2.msra.mxu0 0.0
        %3156 = vmatprep.subr.mxu0 0.0
        %3157 = vmatpush2.msra.mxu0 0.0
        %3158 = vmatprep.subr.mxu0 0.0
        %3159 = vmatpush2.msra.mxu0 0.0
        %3160 = vmatprep.subr.mxu0 0.0
        %3161 = vmatpush2.msra.mxu0 0.0
        %3162 = vmatprep.subr.mxu0 0.0
        %3163 = vmatpush2.msra.mxu0 0.0
        %3164 = vmatprep.subr.mxu0 0.0
        %3165 = vmatpush2.msra.mxu0 0.0
        %3166 = vmatprep.subr.mxu0 0.0
        %3167 = vmatpush2.msra.mxu0 0.0
        %3168 = vmatprep.subr.mxu0 0.0
        %3169 = vmatpush2.msra.mxu0 0.0
        %3170 = vmatprep.subr.mxu0 0.0
        %3171 = vmatpush2.msra.mxu0 0.0
        %3172 = vmatprep.subr.mxu0 0.0
        %3173 = vmatpush2.msra.mxu0 0.0
        %3174 = vmatprep.subr.mxu0 0.0
        %3175 = vmatpush2.msra.mxu0 0.0
        %3176 = vmatprep.subr.mxu0 0.0
        %3177 = vmatpush2.msra.mxu0 0.0
        %3178 = vmatprep.subr.mxu0 0.0
        %3179 = vmatpush2.msra.mxu0 0.0
        %3180 = vmatprep.subr.mxu0 0.0
        %3181 = vmatpush2.msra.mxu0 0.0
        %3182 = vmatprep.subr.mxu0 0.0
        %3183 = vmatpush2.msra.mxu0 0.0
        %3184 = vmatprep.mubr.f32.mxu0 0.0
        %3185 = vmatmul.mubr.f32.gmra.mxu0 %v3118
        %v3186 = vpop.f32.mrf.mxu0
        %v3187 = vadd.f32 %v3115, %v3186
        %v3188 = vpop.f32.mrf.mxu0
        %3189 = vdwg.mxu0
        %v3190 = vmax.f32 %v3187, 0.0
        %v3191 = vld [vmem:[%s69] sm:$0xff]
        %v3192 = vld [vmem:[%s69 + $0x8] sm:$0xff]
        %v3193 = vld [vmem:[%s69 + $0x10] sm:$0xff]
        %v3194 = vld [vmem:[%s69 + $0x18] sm:$0xff]
        %v3195 = vld [vmem:[%s71] sm:$0xff]
        %v3196 = vld [vmem:[%s71 + $0x8] sm:$0xff]
        %v3197 = vld [vmem:[%s71 + $0x10] sm:$0xff]
        %v3198 = vld [vmem:[%s71 + $0x18] sm:$0xff]
        %v3200 = vsel %vm1468, %v3190, 0
        %3202 = vmatprep.subr.mxu0 0.0
        %3203 = vmatpush1.msra.mxu0 0.0
        %3204 = vmatprep.subr.mxu0 0.0
        %3205 = vmatpush1.msra.mxu0 0.0
        %3206 = vmatprep.subr.mxu0 0.0
        %3207 = vmatpush1.msra.mxu0 0.0
        %3208 = vmatprep.subr.mxu0 0.0
        %3209 = vmatpush1.msra.mxu0 0.0
        %3210 = vmatprep.subr.mxu0 0.0
        %3211 = vmatpush1.msra.mxu0 0.0
        %3212 = vmatprep.subr.mxu0 0.0
        %3213 = vmatpush1.msra.mxu0 0.0
        %3214 = vmatprep.subr.mxu0 0.0
        %3215 = vmatpush1.msra.mxu0 0.0
        %3216 = vmatprep.subr.mxu0 0.0
        %3217 = vmatpush1.msra.mxu0 0.0
        %3218 = vmatprep.subr.mxu0 0.0
        %3219 = vmatpush1.msra.mxu0 0.0
        %3220 = vmatprep.subr.mxu0 0.0
        %3221 = vmatpush1.msra.mxu0 0.0
        %3222 = vmatprep.subr.mxu0 0.0
        %3223 = vmatpush1.msra.mxu0 0.0
        %3224 = vmatprep.subr.mxu0 0.0
        %3225 = vmatpush1.msra.mxu0 0.0
        %3226 = vmatprep.subr.mxu0 0.0
        %3227 = vmatpush1.msra.mxu0 %v3198
        %3228 = vmatprep.subr.mxu0 0.0
        %3229 = vmatpush1.msra.mxu0 %v3197
        %3230 = vmatprep.subr.mxu0 0.0
        %3231 = vmatpush1.msra.mxu0 %v3196
        %3232 = vmatprep.subr.mxu0 0.0
        %3233 = vmatpush1.msra.mxu0 %v3195
        %3234 = vmatprep.subr.mxu0 0.0
        %3235 = vmatpush2.msra.mxu0 0.0
        %3236 = vmatprep.subr.mxu0 0.0
        %3237 = vmatpush2.msra.mxu0 0.0
        %3238 = vmatprep.subr.mxu0 0.0
        %3239 = vmatpush2.msra.mxu0 0.0
        %3240 = vmatprep.subr.mxu0 0.0
        %3241 = vmatpush2.msra.mxu0 0.0
        %3242 = vmatprep.subr.mxu0 0.0
        %3243 = vmatpush2.msra.mxu0 0.0
        %3244 = vmatprep.subr.mxu0 0.0
        %3245 = vmatpush2.msra.mxu0 0.0
        %3246 = vmatprep.subr.mxu0 0.0
        %3247 = vmatpush2.msra.mxu0 0.0
        %3248 = vmatprep.subr.mxu0 0.0
        %3249 = vmatpush2.msra.mxu0 0.0
        %3250 = vmatprep.subr.mxu0 0.0
        %3251 = vmatpush2.msra.mxu0 0.0
        %3252 = vmatprep.subr.mxu0 0.0
        %3253 = vmatpush2.msra.mxu0 0.0
        %3254 = vmatprep.subr.mxu0 0.0
        %3255 = vmatpush2.msra.mxu0 0.0
        %3256 = vmatprep.subr.mxu0 0.0
        %3257 = vmatpush2.msra.mxu0 0.0
        %3258 = vmatprep.subr.mxu0 0.0
        %3259 = vmatpush2.msra.mxu0 0.0
        %3260 = vmatprep.subr.mxu0 0.0
        %3261 = vmatpush2.msra.mxu0 0.0
        %3262 = vmatprep.subr.mxu0 0.0
        %3263 = vmatpush2.msra.mxu0 0.0
        %3264 = vmatprep.subr.mxu0 0.0
        %3265 = vmatpush2.msra.mxu0 0.0
        %3266 = vmatprep.mubr.f32.mxu0 0.0
        %3267 = vmatmul.mubr.f32.gmra.mxu0 %v3200
        %v3268 = vpop.f32.mrf.mxu0
        %v3269 = vadd.f32 0.0, %v3268
        %v3270 = vpop.f32.mrf.mxu0
        %3271 = vdwg.mxu0
        %3272 = vmatprep.subr.mxu0 0.0
        %3273 = vmatpush1.msra.mxu0 0.0
        %3274 = vmatprep.subr.mxu0 0.0
        %3275 = vmatpush1.msra.mxu0 0.0
        %3276 = vmatprep.subr.mxu0 0.0
        %3277 = vmatpush1.msra.mxu0 0.0
        %3278 = vmatprep.subr.mxu0 0.0
        %3279 = vmatpush1.msra.mxu0 0.0
        %3280 = vmatprep.subr.mxu0 0.0
        %3281 = vmatpush1.msra.mxu0 0.0
        %3282 = vmatprep.subr.mxu0 0.0
        %3283 = vmatpush1.msra.mxu0 0.0
        %3284 = vmatprep.subr.mxu0 0.0
        %3285 = vmatpush1.msra.mxu0 0.0
        %3286 = vmatprep.subr.mxu0 0.0
        %3287 = vmatpush1.msra.mxu0 0.0
        %3288 = vmatprep.subr.mxu0 0.0
        %3289 = vmatpush1.msra.mxu0 0.0
        %3290 = vmatprep.subr.mxu0 0.0
        %3291 = vmatpush1.msra.mxu0 0.0
        %3292 = vmatprep.subr.mxu0 0.0
        %3293 = vmatpush1.msra.mxu0 0.0
        %3294 = vmatprep.subr.mxu0 0.0
        %3295 = vmatpush1.msra.mxu0 0.0
        %3296 = vmatprep.subr.mxu0 0.0
        %3297 = vmatpush1.msra.mxu0 %v3194
        %3298 = vmatprep.subr.mxu0 0.0
        %3299 = vmatpush1.msra.mxu0 %v3193
        %3300 = vmatprep.subr.mxu0 0.0
        %3301 = vmatpush1.msra.mxu0 %v3192
        %3302 = vmatprep.subr.mxu0 0.0
        %3303 = vmatpush1.msra.mxu0 %v3191
        %3304 = vmatprep.subr.mxu0 0.0
        %3305 = vmatpush2.msra.mxu0 0.0
        %3306 = vmatprep.subr.mxu0 0.0
        %3307 = vmatpush2.msra.mxu0 0.0
        %3308 = vmatprep.subr.mxu0 0.0
        %3309 = vmatpush2.msra.mxu0 0.0
        %3310 = vmatprep.subr.mxu0 0.0
        %3311 = vmatpush2.msra.mxu0 0.0
        %3312 = vmatprep.subr.mxu0 0.0
        %3313 = vmatpush2.msra.mxu0 0.0
        %3314 = vmatprep.subr.mxu0 0.0
        %3315 = vmatpush2.msra.mxu0 0.0
        %3316 = vmatprep.subr.mxu0 0.0
        %3317 = vmatpush2.msra.mxu0 0.0
        %3318 = vmatprep.subr.mxu0 0.0
        %3319 = vmatpush2.msra.mxu0 0.0
        %3320 = vmatprep.subr.mxu0 0.0
        %3321 = vmatpush2.msra.mxu0 0.0
        %3322 = vmatprep.subr.mxu0 0.0
        %3323 = vmatpush2.msra.mxu0 0.0
        %3324 = vmatprep.subr.mxu0 0.0
        %3325 = vmatpush2.msra.mxu0 0.0
        %3326 = vmatprep.subr.mxu0 0.0
        %3327 = vmatpush2.msra.mxu0 0.0
        %3328 = vmatprep.subr.mxu0 0.0
        %3329 = vmatpush2.msra.mxu0 0.0
        %3330 = vmatprep.subr.mxu0 0.0
        %3331 = vmatpush2.msra.mxu0 0.0
        %3332 = vmatprep.subr.mxu0 0.0
        %3333 = vmatpush2.msra.mxu0 0.0
        %3334 = vmatprep.subr.mxu0 0.0
        %3335 = vmatpush2.msra.mxu0 0.0
        %3336 = vmatprep.mubr.f32.mxu0 0.0
        %3337 = vmatmul.mubr.f32.gmra.mxu0 %v3118
        %v3338 = vpop.f32.mrf.mxu0
        %v3339 = vadd.f32 %v3269, %v3338
        %v3340 = vpop.f32.mrf.mxu0
        %3341 = vdwg.mxu0
        %v3342 = vld [vmem:[#allocation28] sm:$0x1]
        %v3344 = vlaneseq
        %v3345 = vshrl.u32 %v3344, 7
        %v3346 = vsub.s32 0, %v3345
        %v3347 = vrot.slane %v3342, %v3346
        %v3349 = vadd.f32 %v3339, %v3347
        %v3350 = vadd.f32 %v3349, %v1453
        %3351 = vst [vmem:[%s1440] sm:$0xff] %v3350
        %p3352 = scmp.lt.s32.totalorder %s99, 1
        %s3353 = scalar_select %p3352, %s99, 1
        %s3354 = smul.addr %s3353, 4
        %s3355 = scalar_lea.vmem %s75, %s3354
        %p3356 = scmp.lt.s32.totalorder %s99, 1
        %s3357 = scalar_select %p3356, %s99, 1
        %s3358 = smul.addr %s3357, 8
        %s3359 = scalar_lea.vmem %s77, %s3358
        // Predicated region
        $region241: #{transformer_decoder.2} parent=167 // pred_check
          %p3360 = pneg %p914
        $region242: #{transformer_decoder.2} parent=167 // pred_check_branch
          %3362 = sbr.rel (%p3360) target = $region244
        $region243: #{transformer_decoder.2} parent=167 // pred_region
          _
        $region244: #{transformer_decoder.2} parent=167 // pred_fallthru
          _
        // Predicated region
        $region245: #{transformer_decoder.2} parent=167 // pred_check
          %p3363 = pneg %p940
        $region246: #{transformer_decoder.2} parent=167 // pred_check_branch
          %3365 = sbr.rel (%p3363) target = $region248
        $region247: #{transformer_decoder.2} parent=167 // pred_region
          _
        $region248: #{transformer_decoder.2} parent=167 // pred_fallthru
          _
      $region168: #{transformer_decoder.2} parent=5 // pred_fallthru
        _
      %p3366 = scmp.le.s32.totalorder 2, %s94
      // Predicated region
      $region249: #{transformer_decoder.2} parent=5 // pred_check
        %p3367 = pneg %p3366
      $region250: #{transformer_decoder.2} parent=5 // pred_check_branch
        %3369 = sbr.rel (%p3367) target = $region252
      $region251: #{transformer_decoder.2} parent=5 // pred_region
        %s3370 = ssub.s32 %s94, 2
        // Predicated region
        $region253: #{transformer_decoder.2} parent=251 // pred_check
          %p3371 = pneg %p920
        $region254: #{transformer_decoder.2} parent=251 // pred_check_branch
          %3373 = sbr.rel (%p3371) target = $region256
        $region255: #{transformer_decoder.2} parent=251 // pred_region
          %p3374 = scmp.lt.s32.totalorder %s100, 1
          %s3375 = scalar_select %p3374, %s100, 1
          %s3376 = smul.addr %s3375, 4
          %s3377 = scalar_lea.vmem %s75, %s3376
        $region256: #{transformer_decoder.2} parent=251 // pred_fallthru
          _
        // Predicated region
        $region257: #{transformer_decoder.2} parent=251 // pred_check
          %p3378 = pneg %p946
        $region258: #{transformer_decoder.2} parent=251 // pred_check_branch
          %3380 = sbr.rel (%p3378) target = $region260
        $region259: #{transformer_decoder.2} parent=251 // pred_region
          %p3381 = scmp.lt.s32.totalorder %s100, 1
          %s3382 = scalar_select %p3381, %s100, 1
          %s3383 = smul.addr %s3382, 8
          %s3384 = scalar_lea.vmem %s77, %s3383
        $region260: #{transformer_decoder.2} parent=251 // pred_fallthru
          _
      $region252: #{transformer_decoder.2} parent=5 // pred_fallthru
        _
    $region6: #{transformer_decoder.2} parent=1 // loop_footer
      %s98 = sadd.s32 1, %s94
    $region7: #{transformer_decoder.2} parent=1 // loop_footer_branch
      %93 = sbr.rel target = $region3
    $region8: #{transformer_decoder.2} parent=1 // loop_exit
      _
    %3385 = vsyncpa [#allocation3], 1
    %s3386 = scalar_lea.sflag [#allocation3], 1
    %3387 = vsyncpa %s3386, 1
    %3388 = vsyncpa [#allocation5], 1
    %3389 = vsyncpa [#allocation8], 1
    %3390 = vsyncpa [#allocation11], 1
    %3391 = vsyncpa [#allocation14], 1
    %3392 = vsyncpa [#allocation17], 1
    %3393 = vsyncpa [#allocation20], 1
    %3394 = vsyncpa [#allocation23], 1
    %3395 = vsyncpa [#allocation26], 1
    %3396 = vsyncpa [#allocation29], 1

</llo_original>
